<compile_context>
chip_gen: v7x
topology: tpu7x:2x2x1
jax: 0.10.0
libtpu: 0.0.40
codegen_flags: <defaults>
</compile_context>

<pallas_src>
import jax
import jax.numpy as jnp
from jax.experimental import pallas as pl
from jax.experimental.pallas import tpu as pltpu


def _elu(h):
    # ELU(alpha=1): x if x > 0 else exp(x) - 1.  Clamp the exp argument so the
    # discarded branch never overflows.
    return jnp.where(h > 0.0, h, jnp.exp(jnp.minimum(h, 0.0)) - 1.0)


def audio_fc_kernel(x_ref, w1_ref, b1_ref, w2_ref, b2_ref, out_ref, acc_ref):
    # x:   (B, tk)     f32   K-tile of the flattened audio features
    # w1:  (tk, H1)    bf16  K-tile of the first Linear weight
    # b1:  (1, H1)     f32
    # w2:  (H1, H2)    bf16  resident across grid
    # b2:  (1, H2)     f32
    # out: (B, H2)     f32   resident across grid
    # acc: (B, H1)     f32   VMEM scratch accumulator for the first matmul
    k = pl.program_id(0)

    @pl.when(k == 0)
    def _init():
        acc_ref[...] = jnp.zeros_like(acc_ref)

    # Partial first matmul: bf16 operands on the MXU, f32 accumulation.
    x_tile = x_ref[...].astype(jnp.bfloat16)
    acc_ref[...] += jnp.dot(x_tile, w1_ref[...],
                            preferred_element_type=jnp.float32)

    @pl.when(k == pl.num_programs(0) - 1)
    def _finalize():
        h1 = _elu(acc_ref[...] + b1_ref[...])                 # (B, H1) f32
        h2 = jnp.dot(h1.astype(jnp.bfloat16), w2_ref[...],
                     preferred_element_type=jnp.float32) + b2_ref[...]
        out_ref[...] = _elu(h2).astype(out_ref.dtype)         # (B, H2)


def audio_fc_forward(audio, w1, b1, w2, b2, *, tk=1920):
    B = audio.shape[0]
    x = audio.reshape(B, -1).astype(jnp.float32)      # audio.view(B, -1)
    D_in, H1 = w1.shape
    H2 = w2.shape[1]
    assert x.shape[1] == D_in and D_in % tk == 0
    nk = D_in // tk

    # Pre-cast weights to bf16: native MXU dtype and half the HBM streaming.
    w1_bf = w1.astype(jnp.bfloat16)
    w2_bf = w2.astype(jnp.bfloat16)

    cost = pl.CostEstimate(
        flops=2 * B * (D_in * H1 + H1 * H2),
        transcendentals=B * (H1 + H2),                 # ELU exps
        bytes_accessed=(B * D_in * 4 + D_in * H1 * 2 + H1 * 4
                        + H1 * H2 * 2 + H2 * 4 + B * H2 * 4),
    )

    return pl.pallas_call(
        audio_fc_kernel,
        out_shape=jax.ShapeDtypeStruct((B, H2), jnp.float32),
        grid_spec=pltpu.PrefetchScalarGridSpec(
            num_scalar_prefetch=0,
            grid=(nk,),
            in_specs=[
                pl.BlockSpec((B, tk), lambda k: (0, k)),     # x K-tile
                pl.BlockSpec((tk, H1), lambda k: (k, 0)),    # w1 K-tile
                pl.BlockSpec((1, H1), lambda k: (0, 0)),     # b1 (resident)
                pl.BlockSpec((H1, H2), lambda k: (0, 0)),    # w2 (resident)
                pl.BlockSpec((1, H2), lambda k: (0, 0)),     # b2 (resident)
            ],
            out_specs=pl.BlockSpec((B, H2), lambda k: (0, 0)),
            scratch_shapes=[pltpu.VMEM((B, H1), jnp.float32)],
        ),
        compiler_params=pltpu.CompilerParams(
            dimension_semantics=("arbitrary",),        # K is a reduction axis
            vmem_limit_bytes=32 * 1024 * 1024,
        ),
        cost_estimate=cost,
    )(x, w1_bf, b1, w2_bf, b2)


def audio_fc_reference_f32(audio, w1, b1, w2, b2):
    """Pure-f32 reference matching the PyTorch module semantics."""
    B = audio.shape[0]
    x = audio.reshape(B, -1)
    h1 = _elu(x @ w1 + b1)
    return _elu(h1 @ w2 + b2)


def audio_fc_reference_bf16(audio, w1, b1, w2, b2):
    """Reference using the same bf16-operand / f32-accumulate matmul recipe."""
    B = audio.shape[0]
    x = audio.reshape(B, -1)
    h1 = _elu(jnp.dot(x.astype(jnp.bfloat16), w1.astype(jnp.bfloat16),
                      preferred_element_type=jnp.float32) + b1)
    return _elu(jnp.dot(h1.astype(jnp.bfloat16), w2.astype(jnp.bfloat16),
                        preferred_element_type=jnp.float32) + b2)


if __name__ == "__main__":
    B = 2
    D_in, H1, H2 = 7680, 1024, 256          # fixed by the module's Linear sizes
    seq, feat = 30, 256                      # 30 * 256 = 7680 (flattened by view)

    key = jax.random.PRNGKey(0)
    k_a, k_w1, k_b1, k_w2, k_b2 = jax.random.split(key, 5)

    audio = jax.random.normal(k_a, (B, seq, feat), dtype=jnp.float32)
    w1 = jax.random.normal(k_w1, (D_in, H1), dtype=jnp.float32) / jnp.sqrt(D_in)
    b1 = jax.random.normal(k_b1, (1, H1), dtype=jnp.float32) * 0.1
    w2 = jax.random.normal(k_w2, (H1, H2), dtype=jnp.float32) / jnp.sqrt(H1)
    b2 = jax.random.normal(k_b2, (1, H2), dtype=jnp.float32) * 0.1

    out = audio_fc_forward(audio, w1, b1, w2, b2)
    out = jax.block_until_ready(out)
    assert out.shape == (B, H2)

    # Tight check against a reference that uses the identical bf16/f32 recipe.
    ref_bf16 = audio_fc_reference_bf16(audio, w1, b1, w2, b2)
    assert jnp.allclose(out, ref_bf16, atol=2e-3, rtol=2e-3), \
        "Pallas output mismatch vs bf16-operand reference"

    # Looser fidelity check against the pure-f32 module semantics (bf16 matmul
    # operands introduce ~1e-2 absolute error at these scales).
    ref_f32 = audio_fc_reference_f32(audio, w1, b1, w2, b2)
    assert jnp.allclose(out, ref_f32, atol=5e-2, rtol=5e-2), \
        "Pallas output mismatch vs f32 reference"

    print("KERNEL_OK")
</pallas_src>

<mosaic_0001>
module attributes {stable_mosaic.version = 11 : i64} {
  func.func @audio_fc_kernel(%arg0: i32, %arg1: memref<2x1920xf32, #tpu.memory_space<vmem>>, %arg2: memref<1920x1024xbf16, #tpu.memory_space<vmem>>, %arg3: memref<1x1024xf32, #tpu.memory_space<vmem>>, %arg4: memref<1024x256xbf16, #tpu.memory_space<vmem>>, %arg5: memref<1x256xf32, #tpu.memory_space<vmem>>, %arg6: memref<2x256xf32, #tpu.memory_space<vmem>>, %arg7: memref<2x1024xf32, #tpu.memory_space<vmem>>) attributes {dimension_semantics = [#tpu.dimension_semantics<arbitrary>], iteration_bounds = array<i64: 4>, scalar_prefetch = 0 : i64, scratch_operands = 1 : i64, tpu.core_type = #tpu.core_type<tc>, window_params = [{transform_indices = @transform_0, window_bounds = array<i64: 2, 1920>}, {transform_indices = @transform_1, window_bounds = array<i64: 1920, 1024>}, {pipeline_mode = #tpu.pipeline_mode<synchronous>, transform_indices = @transform_2, window_bounds = array<i64: 1, 1024>}, {pipeline_mode = #tpu.pipeline_mode<synchronous>, transform_indices = @transform_3, window_bounds = array<i64: 1024, 256>}, {pipeline_mode = #tpu.pipeline_mode<synchronous>, transform_indices = @transform_4, window_bounds = array<i64: 1, 256>}, {pipeline_mode = #tpu.pipeline_mode<synchronous>, transform_indices = @transform_5, window_bounds = array<i64: 2, 256>}]} {
    %c0_i32 = arith.constant 0 : i32
    %0 = arith.cmpi eq, %arg0, %c0_i32 : i32
    %1 = arith.extui %0 : i1 to i32
    %c0_i32_0 = arith.constant 0 : i32
    %2 = arith.cmpi ne, %1, %c0_i32_0 : i32
    scf.if %2 {
      %cst_9 = arith.constant 0.000000e+00 : f32
      %13 = vector.broadcast %cst_9 : f32 to vector<2x1024xf32>
      %c0_10 = arith.constant 0 : index
      %c0_11 = arith.constant 0 : index
      %14 = vector.load %arg7[%c0_10, %c0_11] : memref<2x1024xf32, #tpu.memory_space<vmem>>, vector<2x1024xf32>
      tpu.vector_store %arg7[%c0_10, %c0_11], %13 {strides = array<i32>} : memref<2x1024xf32, #tpu.memory_space<vmem>>, vector<2x1024xf32>,
    } else {
    }
    %c0 = arith.constant 0 : index
    %c0_1 = arith.constant 0 : index
    %3 = vector.load %arg1[%c0, %c0_1] : memref<2x1920xf32, #tpu.memory_space<vmem>>, vector<2x1920xf32>
    %4 = arith.truncf %3 : vector<2x1920xf32> to vector<2x1920xbf16>
    %c0_2 = arith.constant 0 : index
    %c0_3 = arith.constant 0 : index
    %5 = vector.load %arg7[%c0_2, %c0_3] : memref<2x1024xf32, #tpu.memory_space<vmem>>, vector<2x1024xf32>
    %c0_4 = arith.constant 0 : index
    %c0_5 = arith.constant 0 : index
    %6 = vector.load %arg2[%c0_4, %c0_5] : memref<1920x1024xbf16, #tpu.memory_space<vmem>>, vector<1920x1024xbf16>
    %cst = arith.constant dense<0.000000e+00> : vector<2x1024xf32>
    %7 = tpu.matmul %4, %6, %cst {dimension_numbers = #tpu.dot_dimension_numbers<[1], [0], [0], [1], [0, 0, 1, 1], [], []>} : vector<2x1920xbf16>, vector<1920x1024xbf16>, vector<2x1024xf32> -> vector<2x1024xf32>
    %8 = arith.addf %5, %7 : vector<2x1024xf32>
    %c0_6 = arith.constant 0 : index
    %c0_7 = arith.constant 0 : index
    %9 = vector.load %arg7[%c0_6, %c0_7] : memref<2x1024xf32, #tpu.memory_space<vmem>>, vector<2x1024xf32>
    tpu.vector_store %arg7[%c0_6, %c0_7], %8 {strides = array<i32>} : memref<2x1024xf32, #tpu.memory_space<vmem>>, vector<2x1024xf32>,
    %c3_i32 = arith.constant 3 : i32
    %10 = arith.cmpi eq, %arg0, %c3_i32 : i32
    %11 = arith.extui %10 : i1 to i32
    %c0_i32_8 = arith.constant 0 : i32
    %12 = arith.cmpi ne, %11, %c0_i32_8 : i32
    scf.if %12 {
      %c0_9 = arith.constant 0 : index
      %c0_10 = arith.constant 0 : index
      %13 = vector.load %arg7[%c0_9, %c0_10] : memref<2x1024xf32, #tpu.memory_space<vmem>>, vector<2x1024xf32>
      %c0_11 = arith.constant 0 : index
      %c0_12 = arith.constant 0 : index
      %14 = vector.load %arg3[%c0_11, %c0_12] : memref<1x1024xf32, #tpu.memory_space<vmem>>, vector<1x1024xf32>
      %15 = vector.broadcast %14 : vector<1x1024xf32> to vector<2x1024xf32>
      %16 = arith.addf %13, %15 : vector<2x1024xf32>
      %cst_13 = arith.constant 0.000000e+00 : f32
      %17 = vector.broadcast %cst_13 : f32 to vector<2x1024xf32>
      %18 = arith.cmpf ogt, %16, %17 : vector<2x1024xf32>
      %cst_14 = arith.constant 0.000000e+00 : f32
      %19 = vector.broadcast %cst_14 : f32 to vector<2x1024xf32>
      %20 = arith.minimumf %16, %19 : vector<2x1024xf32>
      %21 = math.exp %20 : vector<2x1024xf32>
      %cst_15 = arith.constant 1.000000e+00 : f32
      %22 = vector.broadcast %cst_15 : f32 to vector<2x1024xf32>
      %23 = arith.subf %21, %22 : vector<2x1024xf32>
      %24 = arith.select %18, %16, %23 : vector<2x1024xi1>, vector<2x1024xf32>
      %25 = arith.truncf %24 : vector<2x1024xf32> to vector<2x1024xbf16>
      %c0_16 = arith.constant 0 : index
      %c0_17 = arith.constant 0 : index
      %26 = vector.load %arg4[%c0_16, %c0_17] : memref<1024x256xbf16, #tpu.memory_space<vmem>>, vector<1024x256xbf16>
      %cst_18 = arith.constant dense<0.000000e+00> : vector<2x256xf32>
      %27 = tpu.matmul %25, %26, %cst_18 {dimension_numbers = #tpu.dot_dimension_numbers<[1], [0], [0], [1], [0, 0, 1, 1], [], []>} : vector<2x1024xbf16>, vector<1024x256xbf16>, vector<2x256xf32> -> vector<2x256xf32>
      %c0_19 = arith.constant 0 : index
      %c0_20 = arith.constant 0 : index
      %28 = vector.load %arg5[%c0_19, %c0_20] : memref<1x256xf32, #tpu.memory_space<vmem>>, vector<1x256xf32>
      %29 = vector.broadcast %28 : vector<1x256xf32> to vector<2x256xf32>
      %30 = arith.addf %27, %29 : vector<2x256xf32>
      %cst_21 = arith.constant 0.000000e+00 : f32
      %31 = vector.broadcast %cst_21 : f32 to vector<2x256xf32>
      %32 = arith.cmpf ogt, %30, %31 : vector<2x256xf32>
      %cst_22 = arith.constant 0.000000e+00 : f32
      %33 = vector.broadcast %cst_22 : f32 to vector<2x256xf32>
      %34 = arith.minimumf %30, %33 : vector<2x256xf32>
      %35 = math.exp %34 : vector<2x256xf32>
      %cst_23 = arith.constant 1.000000e+00 : f32
      %36 = vector.broadcast %cst_23 : f32 to vector<2x256xf32>
      %37 = arith.subf %35, %36 : vector<2x256xf32>
      %38 = arith.select %32, %30, %37 : vector<2x256xi1>, vector<2x256xf32>
      %c0_24 = arith.constant 0 : index
      %c0_25 = arith.constant 0 : index
      %39 = vector.load %arg6[%c0_24, %c0_25] : memref<2x256xf32, #tpu.memory_space<vmem>>, vector<2x256xf32>
      tpu.vector_store %arg6[%c0_24, %c0_25], %38 {strides = array<i32>} : memref<2x256xf32, #tpu.memory_space<vmem>>, vector<2x256xf32>,
    } else {
    }
    return
  }
  func.func @transform_0(%arg0: i32) -> (i32, i32) {
    %c0_i32 = arith.constant 0 : i32
    %c0_i32_0 = arith.constant 0 : i32
    return %c0_i32, %arg0 : i32, i32
  }
  func.func @transform_1(%arg0: i32) -> (i32, i32) {
    %c0_i32 = arith.constant 0 : i32
    %c0_i32_0 = arith.constant 0 : i32
    return %arg0, %c0_i32 : i32, i32
  }
  func.func @transform_2(%arg0: i32) -> (i32, i32) {
    %c0_i32 = arith.constant 0 : i32
    %c0_i32_0 = arith.constant 0 : i32
    %c0_i32_1 = arith.constant 0 : i32
    return %c0_i32, %c0_i32_0 : i32, i32
  }
  func.func @transform_3(%arg0: i32) -> (i32, i32) {
    %c0_i32 = arith.constant 0 : i32
    %c0_i32_0 = arith.constant 0 : i32
    %c0_i32_1 = arith.constant 0 : i32
    return %c0_i32, %c0_i32_0 : i32, i32
  }
  func.func @transform_4(%arg0: i32) -> (i32, i32) {
    %c0_i32 = arith.constant 0 : i32
    %c0_i32_0 = arith.constant 0 : i32
    %c0_i32_1 = arith.constant 0 : i32
    return %c0_i32, %c0_i32_0 : i32, i32
  }
  func.func @transform_5(%arg0: i32) -> (i32, i32) {
    %c0_i32 = arith.constant 0 : i32
    %c0_i32_0 = arith.constant 0 : i32
    %c0_i32_1 = arith.constant 0 : i32
    return %c0_i32, %c0_i32_0 : i32, i32
  }
}

</mosaic_0001>

<llo_original>
// kernel: tpu_custom_call.1
$region0: #{tpu_custom_call.1}
  #allocation0 [shape = 'u32[]', space=smem, size = 0x4, offset = 0x4, fixed_abs, tag = 'smem constant byte address 0x4 - core index']
  #allocation1 [shape = 'u32[144,128]{1,0:T(1,128)}', space=vmem, size = 0x12000, scoped, tag = 'internal scratch']
  #allocation2 [shape = 'f32[2,1024]{1,0:T(2,128)}', space=vmem, size = 0x2000, scoped, tag = 'scratch operand']
  %s0 = inlined_call_operand.hbm [shape: f32[2,7680], index: 0, kind: input, shape index: {}]
  %s1 = inlined_call_operand.hbm [shape: bf16[7680,1024], index: 1, kind: input, shape index: {}]
  %s2 = inlined_call_operand.hbm [shape: f32[1,1024], index: 2, kind: input, shape index: {}]
  %s3 = inlined_call_operand.hbm [shape: bf16[1024,256], index: 3, kind: input, shape index: {}]
  %s4 = inlined_call_operand.hbm [shape: f32[1,256], index: 4, kind: input, shape index: {}]
  %s5 = inlined_call_operand.hbm [shape: f32[2,256], index: 5, kind: output, shape index: {}]
  %s6 = sld [smem:[#allocation0]]
  $region81: #{tpu_custom_call.1} parent=0
    _
  %s8 = ssub.s32 1, %s6
  %s9 = scalar_select 0, %s8, %s6
  $region1: #{tpu_custom_call.1} parent=0
    #allocation3 [shape = 'u8[30720]{0}', space=vmem, size = 0x7800, scoped, tag = 'input window, operand 0']
    #allocation4 [shape = 's32[2]{0}', space=sflag, size = 0x8, scoped, tag = 'scoped memory for tpu_custom_call.1']
    #allocation5 [shape = 's32[2]{0}', space=sflag, size = 0x8, scoped, tag = 'scoped memory for tpu_custom_call.1']
    #allocation6 [shape = 'u8[7864320]{0}', space=vmem, size = 0x780000, scoped, tag = 'input window, operand 1']
    #allocation7 [shape = 's32[2]{0}', space=sflag, size = 0x8, scoped, tag = 'scoped memory for tpu_custom_call.1']
    #allocation8 [shape = 'u8[4096]{0}', space=vmem, size = 0x1000, scoped, tag = 'input window, operand 2, single buffered']
    #allocation9 [shape = 'u8[524288]{0}', space=vmem, size = 0x80000, scoped, tag = 'input window, operand 3, single buffered']
    #allocation10 [shape = 's32[1]{0}', space=sflag, size = 0x4, scoped, tag = 'scoped memory for tpu_custom_call.1']
    #allocation11 [shape = 'u8[1024]{0}', space=vmem, size = 0x400, scoped, tag = 'input window, operand 4, single buffered']
    #allocation12 [shape = 'u8[2048]{0}', space=vmem, size = 0x800, scoped, tag = 'output window, operand 0, single buffered']
    %10 = vsyncpa [#allocation4], 0
    %s11 = scalar_lea.sflag [#allocation4], 1
    %12 = vsyncpa %s11, 0
    %13 = vsyncpa [#allocation7], 0
    %s14 = scalar_lea.sflag [#allocation7], 1
    %15 = vsyncpa %s14, 0
    %16 = vsyncpa [#allocation10], 0
    %17 = vsyncpa [#allocation5], 0
    loop: start=0, step=1, limit=6
    $region2: #{tpu_custom_call.1} parent=1 // loop_pre_header
      _
    $region3: #{tpu_custom_call.1} parent=1 // loop_header
      %s19 = sphi 0, %s23
      %p20 = scmp.ge.s32.totalorder %s19, 6
      %s29 = sphi 0, %s31
      %s32 = sphi 0, %s29
      %s33 = sphi 0, %s32
      %s49 = sphi 0, %s33
      %s55 = sphi 0, %s57
      %s58 = sphi 0, %s55
      %s59 = sphi 0, %s58
      %s75 = sphi 0, %s59
      %s79 = sphi 0, %s79
      %s81 = sphi 0, %s79
      %s82 = sphi 0, %s81
      %s96 = sphi 0, %s82
      %s100 = sphi 0, %s100
      %s102 = sphi 0, %s100
      %s103 = sphi 0, %s102
      %s117 = sphi 0, %s103
      %s121 = sphi 0, %s121
      %s123 = sphi 0, %s121
      %s124 = sphi 0, %s123
      %s138 = sphi 0, %s124
      %s142 = sphi 0, %s142
      %s144 = sphi 0, %s142
      %s145 = sphi 0, %s144
      %s159 = sphi 0, %s145
    $region4: #{tpu_custom_call.1} parent=1 // loop_header_branch
      %22 = sbr.rel (%p20) target = $region8
    $region5: #{tpu_custom_call.1} parent=1 // loop_body
      %s24 = ssub.s32 %s19, 1
      %s25 = ssub.s32 %s19, 2
      %s26 = sadd.s32 %s19, 1
      %s27 = ssub.s32 %s19, %s26
      %p28 = scmp.eq.s32.totalorder %s27, 0
      %s30 = sadd.s32 %s29, 1
      %s31 = scalar_select %p28, %s29, %s30
      %p34 = pneg %p28
      %p35 = scmp.eq.s32.totalorder %s19, 3
      %p36 = por %p34, %p35
      %p37 = scmp.ne.s32.totalorder %s29, %s32
      %p38 = scmp.eq.s32.totalorder %s19, 0
      %p39 = por %p37, %p38
      %p40 = scmp.ne.s32.totalorder %s29, %s32
      %p41 = scmp.eq.s32.totalorder %s24, 3
      %p42 = por %p40, %p41
      %p43 = scmp.ne.s32.totalorder %s32, %s33
      %p44 = scmp.eq.s32.totalorder %s24, 0
      %p45 = por %p43, %p44
      %p46 = scmp.ne.s32.totalorder %s32, %s33
      %p47 = scmp.eq.s32.totalorder %s25, 3
      %p48 = por %p46, %p47
      %p50 = scmp.ne.s32.totalorder %s33, %s49
      %p51 = scmp.eq.s32.totalorder %s25, 0
      %p52 = por %p50, %p51
      %s53 = ssub.s32 %s19, %s26
      %p54 = scmp.eq.s32.totalorder %s53, 0
      %s56 = sadd.s32 %s55, 1
      %s57 = scalar_select %p54, %s55, %s56
      %p60 = pneg %p54
      %p61 = scmp.eq.s32.totalorder %s19, 3
      %p62 = por %p60, %p61
      %p63 = scmp.ne.s32.totalorder %s55, %s58
      %p64 = scmp.eq.s32.totalorder %s19, 0
      %p65 = por %p63, %p64
      %p66 = scmp.ne.s32.totalorder %s55, %s58
      %p67 = scmp.eq.s32.totalorder %s24, 3
      %p68 = por %p66, %p67
      %p69 = scmp.ne.s32.totalorder %s58, %s59
      %p70 = scmp.eq.s32.totalorder %s24, 0
      %p71 = por %p69, %p70
      %p72 = scmp.ne.s32.totalorder %s58, %s59
      %p73 = scmp.eq.s32.totalorder %s25, 3
      %p74 = por %p72, %p73
      %p76 = scmp.ne.s32.totalorder %s59, %s75
      %p77 = scmp.eq.s32.totalorder %s25, 0
      %p78 = por %p76, %p77
      %s80 = sadd.s32 %s79, 1
      %p83 = scmp.eq.s32.totalorder %s19, 3
      %p84 = scmp.ne.s32.totalorder %s79, %s81
      %p85 = scmp.eq.s32.totalorder %s19, 0
      %p86 = por %p84, %p85
      %p87 = scmp.ne.s32.totalorder %s79, %s81
      %p88 = scmp.eq.s32.totalorder %s24, 3
      %p89 = por %p87, %p88
      %p90 = scmp.ne.s32.totalorder %s81, %s82
      %p91 = scmp.eq.s32.totalorder %s24, 0
      %p92 = por %p90, %p91
      %p93 = scmp.ne.s32.totalorder %s81, %s82
      %p94 = scmp.eq.s32.totalorder %s25, 3
      %p95 = por %p93, %p94
      %p97 = scmp.ne.s32.totalorder %s82, %s96
      %p98 = scmp.eq.s32.totalorder %s25, 0
      %p99 = por %p97, %p98
      %s101 = sadd.s32 %s100, 1
      %p104 = scmp.eq.s32.totalorder %s19, 3
      %p105 = scmp.ne.s32.totalorder %s100, %s102
      %p106 = scmp.eq.s32.totalorder %s19, 0
      %p107 = por %p105, %p106
      %p108 = scmp.ne.s32.totalorder %s100, %s102
      %p109 = scmp.eq.s32.totalorder %s24, 3
      %p110 = por %p108, %p109
      %p111 = scmp.ne.s32.totalorder %s102, %s103
      %p112 = scmp.eq.s32.totalorder %s24, 0
      %p113 = por %p111, %p112
      %p114 = scmp.ne.s32.totalorder %s102, %s103
      %p115 = scmp.eq.s32.totalorder %s25, 3
      %p116 = por %p114, %p115
      %p118 = scmp.ne.s32.totalorder %s103, %s117
      %p119 = scmp.eq.s32.totalorder %s25, 0
      %p120 = por %p118, %p119
      %s122 = sadd.s32 %s121, 1
      %p125 = scmp.eq.s32.totalorder %s19, 3
      %p126 = scmp.ne.s32.totalorder %s121, %s123
      %p127 = scmp.eq.s32.totalorder %s19, 0
      %p128 = por %p126, %p127
      %p129 = scmp.ne.s32.totalorder %s121, %s123
      %p130 = scmp.eq.s32.totalorder %s24, 3
      %p131 = por %p129, %p130
      %p132 = scmp.ne.s32.totalorder %s123, %s124
      %p133 = scmp.eq.s32.totalorder %s24, 0
      %p134 = por %p132, %p133
      %p135 = scmp.ne.s32.totalorder %s123, %s124
      %p136 = scmp.eq.s32.totalorder %s25, 3
      %p137 = por %p135, %p136
      %p139 = scmp.ne.s32.totalorder %s124, %s138
      %p140 = scmp.eq.s32.totalorder %s25, 0
      %p141 = por %p139, %p140
      %s143 = sadd.s32 %s142, 1
      %p146 = scmp.eq.s32.totalorder %s19, 3
      %p147 = scmp.ne.s32.totalorder %s142, %s144
      %p148 = scmp.eq.s32.totalorder %s19, 0
      %p149 = por %p147, %p148
      %p150 = scmp.ne.s32.totalorder %s142, %s144
      %p151 = scmp.eq.s32.totalorder %s24, 3
      %p152 = por %p150, %p151
      %p153 = scmp.ne.s32.totalorder %s144, %s145
      %p154 = scmp.eq.s32.totalorder %s24, 0
      %p155 = por %p153, %p154
      %p156 = scmp.ne.s32.totalorder %s144, %s145
      %p157 = scmp.eq.s32.totalorder %s25, 3
      %p158 = por %p156, %p157
      %p160 = scmp.ne.s32.totalorder %s145, %s159
      %p161 = scmp.eq.s32.totalorder %s25, 0
      %p162 = por %p160, %p161
      %p163 = scmp.le.s32.totalorder 1, %s19
      %p164 = scmp.lt.s32.totalorder %s19, 5
      %p165 = pnand %p163, %p164
      %p166 = pneg %p165
      // Predicated region
      $region9: #{tpu_custom_call.1} parent=5 // pred_check
        _
      $region10: #{tpu_custom_call.1} parent=5 // pred_check_branch
        %168 = sbr.rel (%p165) target = $region12
      $region11: #{tpu_custom_call.1} parent=5 // pred_region
        %s169 = ssub.s32 %s19, 1
        // Predicated region
        $region13: #{tpu_custom_call.1} parent=11 // pred_check
          %p170 = pneg %p92
        $region14: #{tpu_custom_call.1} parent=11 // pred_check_branch
          %172 = sbr.rel (%p170) target = $region16
        $region15: #{tpu_custom_call.1} parent=11 // pred_region
          %s174 = ssub.s32 128, 128
          %175 = vsyncadd [#allocation7], %s174
          %s177 = sshll.u32 [#allocation8], 4
          %s178 = int_to_ptr.vmem [resolvable:$true] %s177
          %180 = dma.hbm_to_vmem [thread:$0]  %s2, 128, %s178, [#allocation7]
        $region16: #{tpu_custom_call.1} parent=11 // pred_fallthru
          _
        // Predicated region
        $region17: #{tpu_custom_call.1} parent=11 // pred_check
          %p181 = pneg %p113
        $region18: #{tpu_custom_call.1} parent=11 // pred_check_branch
          %183 = sbr.rel (%p181) target = $region20
        $region19: #{tpu_custom_call.1} parent=11 // pred_region
          %s185 = ssub.s32 16384, 16384
          %186 = vsyncadd [#allocation10], %s185
          %s187 = sshll.u32 [#allocation9], 4
          %s188 = int_to_ptr.vmem [resolvable:$true] %s187
          %193 = dma.hbm_to_vmem [thread:$0]  %s3, 16384, %s188, [#allocation10], 128, 128, 8
        $region20: #{tpu_custom_call.1} parent=11 // pred_fallthru
          _
        // Predicated region
        $region21: #{tpu_custom_call.1} parent=11 // pred_check
          %p194 = pneg %p134
        $region22: #{tpu_custom_call.1} parent=11 // pred_check_branch
          %196 = sbr.rel (%p194) target = $region24
        $region23: #{tpu_custom_call.1} parent=11 // pred_region
          %s198 = ssub.s32 32, 32
          %199 = vsyncadd [#allocation10], %s198
          %s201 = sshll.u32 [#allocation11], 4
          %s202 = int_to_ptr.vmem [resolvable:$true] %s201
          %204 = dma.hbm_to_vmem [thread:$0]  %s4, 32, %s202, [#allocation10]
        $region24: #{tpu_custom_call.1} parent=11 // pred_fallthru
          _
      $region12: #{tpu_custom_call.1} parent=5 // pred_fallthru
        _
      %p205 = scmp.lt.s32.totalorder %s19, 4
      // Predicated region
      $region25: #{tpu_custom_call.1} parent=5 // pred_check
        %p206 = pneg %p205
      $region26: #{tpu_custom_call.1} parent=5 // pred_check_branch
        %208 = sbr.rel (%p206) target = $region28
      $region27: #{tpu_custom_call.1} parent=5 // pred_region
        // Predicated region
        $region29: #{tpu_custom_call.1} parent=27 // pred_check
          %p209 = pneg %p39
        $region30: #{tpu_custom_call.1} parent=27 // pred_check_branch
          %211 = sbr.rel (%p209) target = $region32
        $region31: #{tpu_custom_call.1} parent=27 // pred_region
          %s212 = sand.u32 %s29, 1
          %s213 = scalar_lea.sflag [#allocation4], %s212
          %s214 = sand.u32 %s29, 1
          %s215 = smul.addr %s214, 30
          %s216 = scalar_lea.vmem [#allocation3], %s215
          %s217 = smul.u32 15, %s19
          %s219 = ssub.s32 480, 480
          %220 = vsyncadd %s213, %s219
          %s221 = smul.addr %s217, 32
          %s222 = scalar_lea.hbm %s0, %s221
          %s224 = sshll.u32 %s216, 4
          %s225 = int_to_ptr.vmem [resolvable:$true] %s224
          %227 = dma.hbm_to_vmem [thread:$0]  %s222, 480, %s225, %s213
        $region32: #{tpu_custom_call.1} parent=27 // pred_fallthru
          _
        // Predicated region
        $region33: #{tpu_custom_call.1} parent=27 // pred_check
          %p228 = pneg %p65
        $region34: #{tpu_custom_call.1} parent=27 // pred_check_branch
          %230 = sbr.rel (%p228) target = $region36
        $region35: #{tpu_custom_call.1} parent=27 // pred_region
          %s231 = sand.u32 %s19, 1
          %s232 = scalar_lea.sflag [#allocation7], %s231
          %s233 = sand.u32 %s55, 1
          %s234 = smul.addr %s233, 7680
          %s235 = scalar_lea.vmem [#allocation6], %s234
          %s236 = smul.u32 240, %s19
          %s238 = ssub.s32 122880, 122880
          %239 = vsyncadd %s232, %s238
          %s240 = smul.addr %s236, 8
          %s241 = smul.addr %s240, 64
          %s242 = scalar_lea.hbm %s1, %s241
          %s243 = sshll.u32 %s235, 4
          %s244 = int_to_ptr.vmem [resolvable:$true] %s243
          %249 = dma.hbm_to_vmem [thread:$0]  %s242, 122880, %s244, %s232, 512, 512, 32
        $region36: #{tpu_custom_call.1} parent=27 // pred_fallthru
          _
      $region28: #{tpu_custom_call.1} parent=5 // pred_fallthru
        _
      %p250 = scmp.le.s32.totalorder 1, %s19
      %p251 = scmp.lt.s32.totalorder %s19, 5
      %p252 = pnand %p250, %p251
      %p253 = pneg %p252
      // Predicated region
      $region37: #{tpu_custom_call.1} parent=5 // pred_check
        _
      $region38: #{tpu_custom_call.1} parent=5 // pred_check_branch
        %255 = sbr.rel (%p252) target = $region40
      $region39: #{tpu_custom_call.1} parent=5 // pred_region
        %s256 = ssub.s32 %s19, 1
        %s257 = sand.u32 %s32, 1
        %s258 = scalar_lea.sflag [#allocation4], %s257
        %s259 = sand.u32 %s32, 1
        %s260 = smul.addr %s259, 30
        %s261 = scalar_lea.vmem [#allocation3], %s260
        // Predicated region
        $region41: #{tpu_custom_call.1} parent=39 // pred_check
          %p262 = pneg %p45
        $region42: #{tpu_custom_call.1} parent=39 // pred_check_branch
          %264 = sbr.rel (%p262) target = $region44
        $region43: #{tpu_custom_call.1} parent=39 // pred_region
          %265 = dma.done %s258, 480
        $region44: #{tpu_custom_call.1} parent=39 // pred_fallthru
          _
        %s266 = sand.u32 %s24, 1
        %s267 = scalar_lea.sflag [#allocation7], %s266
        %s268 = sand.u32 %s58, 1
        %s269 = smul.addr %s268, 7680
        %s270 = scalar_lea.vmem [#allocation6], %s269
        // Predicated region
        $region45: #{tpu_custom_call.1} parent=39 // pred_check
          %p271 = pneg %p71
        $region46: #{tpu_custom_call.1} parent=39 // pred_check_branch
          %273 = sbr.rel (%p271) target = $region48
        $region47: #{tpu_custom_call.1} parent=39 // pred_region
          %274 = dma.done %s267, 122880
        $region48: #{tpu_custom_call.1} parent=39 // pred_fallthru
          _
        // Predicated region
        $region49: #{tpu_custom_call.1} parent=39 // pred_check
          %p275 = pneg %p92
        $region50: #{tpu_custom_call.1} parent=39 // pred_check_branch
          %277 = sbr.rel (%p275) target = $region52
        $region51: #{tpu_custom_call.1} parent=39 // pred_region
          %278 = dma.done [#allocation7], 128
        $region52: #{tpu_custom_call.1} parent=39 // pred_fallthru
          _
        // Predicated region
        $region53: #{tpu_custom_call.1} parent=39 // pred_check
          %p279 = pneg %p113
        $region54: #{tpu_custom_call.1} parent=39 // pred_check_branch
          %281 = sbr.rel (%p279) target = $region56
        $region55: #{tpu_custom_call.1} parent=39 // pred_region
          %282 = dma.done [#allocation10], 16384
        $region56: #{tpu_custom_call.1} parent=39 // pred_fallthru
          _
        // Predicated region
        $region57: #{tpu_custom_call.1} parent=39 // pred_check
          %p283 = pneg %p134
        $region58: #{tpu_custom_call.1} parent=39 // pred_check_branch
          %285 = sbr.rel (%p283) target = $region60
        $region59: #{tpu_custom_call.1} parent=39 // pred_region
          %286 = dma.done [#allocation10], 32
        $region60: #{tpu_custom_call.1} parent=39 // pred_fallthru
          _
        %s287 = sand.u32 %s32, 1
        %s288 = scalar_lea.sflag [#allocation4], %s287
        %s289 = sand.u32 %s32, 1
        %s290 = smul.addr %s289, 30
        %s291 = scalar_lea.vmem [#allocation3], %s290
        %p292 = pneg %p45
        %p293 = pneg %p42
        %s294 = sand.u32 %s24, 1
        %s295 = scalar_lea.sflag [#allocation7], %s294
        %s296 = sand.u32 %s58, 1
        %s297 = smul.addr %s296, 7680
        %s298 = scalar_lea.vmem [#allocation6], %s297
        %p299 = pneg %p71
        %p300 = pneg %p68
        %p301 = pneg %p92
        %p302 = pneg %p89
        %p303 = pneg %p113
        %p304 = pneg %p110
        %p305 = pneg %p134
        %p306 = pneg %p131
        %p307 = pneg %p155
        %p308 = pneg %p152
        %s309 = smul.u32 15, %s24
        %s310 = smul.u32 240, %s24
        %p312 = scmp.eq.s32.totalorder %s24, 0
        // Predicated region
        $region61: #{tpu_custom_call.1} parent=39 // pred_check
          %p313 = pneg %p312
        $region62: #{tpu_custom_call.1} parent=39 // pred_check_branch
          %315 = sbr.rel (%p313) target = $region64
        $region63: #{tpu_custom_call.1} parent=39 // pred_region
          %316 = vst [vmem:[#allocation2] sm:$0xff] 0.0
          %317 = vst [vmem:[#allocation2 + $0x8] sm:$0xff] 0.0
        $region64: #{tpu_custom_call.1} parent=39 // pred_fallthru
          _
        %v318 = vld [vmem:[%s261] sm:$0xff]
        %v319 = vld [vmem:[%s261 + $0x8] sm:$0xff]
        %v320 = vld [vmem:[%s261 + $0x10] sm:$0xff]
        %v321 = vld [vmem:[%s261 + $0x18] sm:$0x3f]
        %v326 = vcombine.high %v318, %v318
        %v328 = vunpack.c.l.s4 1983009808
        %v329 = vunpack.c.0.s8 %v328
        %v330 = vlaneseq
        %v331 = vshrl.u32 %v330, 7
        %v332 = vsub.s32 %v329, %v331
        %v333 = vrot.slane %v318, %v332
        %v335 = vunpack.c.l.s4 1983009808
        %v336 = vunpack.c.0.s8 %v335
        %v337 = vlaneseq
        %v338 = vshrl.u32 %v337, 7
        %v339 = vsub.s32 %v336, %v338
        %v340 = vrot.slane %v326, %v339
        %v341 = vcombine.high %v333, %v333
        %v342 = vcombine.high %v340, %v340
        %v343 = vcombine.high %v319, %v319
        %v345 = vunpack.c.l.s4 1983009808
        %v346 = vunpack.c.0.s8 %v345
        %v347 = vlaneseq
        %v348 = vshrl.u32 %v347, 7
        %v349 = vsub.s32 %v346, %v348
        %v350 = vrot.slane %v319, %v349
        %v352 = vunpack.c.l.s4 1983009808
        %v353 = vunpack.c.0.s8 %v352
        %v354 = vlaneseq
        %v355 = vshrl.u32 %v354, 7
        %v356 = vsub.s32 %v353, %v355
        %v357 = vrot.slane %v343, %v356
        %v358 = vcombine.high %v350, %v350
        %v359 = vcombine.high %v357, %v357
        %v360 = vcombine.high %v320, %v320
        %v362 = vunpack.c.l.s4 1983009808
        %v363 = vunpack.c.0.s8 %v362
        %v364 = vlaneseq
        %v365 = vshrl.u32 %v364, 7
        %v366 = vsub.s32 %v363, %v365
        %v367 = vrot.slane %v320, %v366
        %v369 = vunpack.c.l.s4 1983009808
        %v370 = vunpack.c.0.s8 %v369
        %v371 = vlaneseq
        %v372 = vshrl.u32 %v371, 7
        %v373 = vsub.s32 %v370, %v372
        %v374 = vrot.slane %v360, %v373
        %v375 = vcombine.high %v367, %v367
        %v376 = vcombine.high %v374, %v374
        %v377 = vcombine.high %v321, %v321
        %v379 = vunpack.c.l.s4 1983009808
        %v380 = vunpack.c.0.s8 %v379
        %v381 = vlaneseq
        %v382 = vshrl.u32 %v381, 7
        %v383 = vsub.s32 %v380, %v382
        %v384 = vrot.slane %v321, %v383
        %v386 = vunpack.c.l.s4 1983009808
        %v387 = vunpack.c.0.s8 %v386
        %v388 = vlaneseq
        %v389 = vshrl.u32 %v388, 7
        %v390 = vsub.s32 %v387, %v389
        %v391 = vrot.slane %v377, %v390
        %v392 = vcombine.high %v384, %v384
        %v408 = vpack.c.bf16 %v333, %v333
        %v409 = vpack.c.bf16 %v341, %v341
        %v410 = vpack.c.bf16 %v340, %v340
        %v411 = vpack.c.bf16 %v342, %v342
        %v412 = vpack.c.bf16 %v350, %v350
        %v413 = vpack.c.bf16 %v358, %v358
        %v414 = vpack.c.bf16 %v357, %v357
        %v415 = vpack.c.bf16 %v359, %v359
        %v416 = vpack.c.bf16 %v367, %v367
        %v417 = vpack.c.bf16 %v375, %v375
        %v418 = vpack.c.bf16 %v374, %v374
        %v419 = vpack.c.bf16 %v376, %v376
        %v420 = vpack.c.bf16 %v384, %v384
        %v421 = vpack.c.bf16 %v392, %v392
        %v422 = vpack.c.bf16 %v391, %v391
        %v423 = vld [vmem:[#allocation2] sm:$0xff]
        %v424 = vld [vmem:[#allocation2 + $0x8] sm:$0xff]
        %v425 = vld [vmem:[%s270] sm:$0xff]
        %v426 = vld [vmem:[%s270 + $0x8] sm:$0xff]
        %v427 = vld [vmem:[%s270 + $0x10] sm:$0xff]
        %v428 = vld [vmem:[%s270 + $0x18] sm:$0xff]
        %v429 = vld [vmem:[%s270 + $0x20] sm:$0xff]
        %v430 = vld [vmem:[%s270 + $0x28] sm:$0xff]
        %v431 = vld [vmem:[%s270 + $0x30] sm:$0xff]
        %v432 = vld [vmem:[%s270 + $0x38] sm:$0xff]
        %v433 = vld [vmem:[%s270 + $0x40] sm:$0xff]
        %v434 = vld [vmem:[%s270 + $0x48] sm:$0xff]
        %v435 = vld [vmem:[%s270 + $0x50] sm:$0xff]
        %v436 = vld [vmem:[%s270 + $0x58] sm:$0xff]
        %v437 = vld [vmem:[%s270 + $0x60] sm:$0xff]
        %v438 = vld [vmem:[%s270 + $0x68] sm:$0xff]
        %v439 = vld [vmem:[%s270 + $0x70] sm:$0xff]
        %v440 = vld [vmem:[%s270 + $0x78] sm:$0xff]
        %v441 = vld [vmem:[%s270 + $0x80] sm:$0xff]
        %v442 = vld [vmem:[%s270 + $0x88] sm:$0xff]
        %v443 = vld [vmem:[%s270 + $0x90] sm:$0xff]
        %v444 = vld [vmem:[%s270 + $0x98] sm:$0xff]
        %v445 = vld [vmem:[%s270 + $0xa0] sm:$0xff]
        %v446 = vld [vmem:[%s270 + $0xa8] sm:$0xff]
        %v447 = vld [vmem:[%s270 + $0xb0] sm:$0xff]
        %v448 = vld [vmem:[%s270 + $0xb8] sm:$0xff]
        %v449 = vld [vmem:[%s270 + $0xc0] sm:$0xff]
        %v450 = vld [vmem:[%s270 + $0xc8] sm:$0xff]
        %v451 = vld [vmem:[%s270 + $0xd0] sm:$0xff]
        %v452 = vld [vmem:[%s270 + $0xd8] sm:$0xff]
        %v453 = vld [vmem:[%s270 + $0xe0] sm:$0xff]
        %v454 = vld [vmem:[%s270 + $0xe8] sm:$0xff]
        %v455 = vld [vmem:[%s270 + $0xf0] sm:$0xff]
        %v456 = vld [vmem:[%s270 + $0xf8] sm:$0xff]
        %v457 = vld [vmem:[%s270 + $0x100] sm:$0xff]
        %v458 = vld [vmem:[%s270 + $0x108] sm:$0xff]
        %v459 = vld [vmem:[%s270 + $0x110] sm:$0xff]
        %v460 = vld [vmem:[%s270 + $0x118] sm:$0xff]
        %v461 = vld [vmem:[%s270 + $0x120] sm:$0xff]
        %v462 = vld [vmem:[%s270 + $0x128] sm:$0xff]
        %v463 = vld [vmem:[%s270 + $0x130] sm:$0xff]
        %v464 = vld [vmem:[%s270 + $0x138] sm:$0xff]
        %v465 = vld [vmem:[%s270 + $0x140] sm:$0xff]
        %v466 = vld [vmem:[%s270 + $0x148] sm:$0xff]
        %v467 = vld [vmem:[%s270 + $0x150] sm:$0xff]
        %v468 = vld [vmem:[%s270 + $0x158] sm:$0xff]
        %v469 = vld [vmem:[%s270 + $0x160] sm:$0xff]
        %v470 = vld [vmem:[%s270 + $0x168] sm:$0xff]
        %v471 = vld [vmem:[%s270 + $0x170] sm:$0xff]
        %v472 = vld [vmem:[%s270 + $0x178] sm:$0xff]
        %v473 = vld [vmem:[%s270 + $0x180] sm:$0xff]
        %v474 = vld [vmem:[%s270 + $0x188] sm:$0xff]
        %v475 = vld [vmem:[%s270 + $0x190] sm:$0xff]
        %v476 = vld [vmem:[%s270 + $0x198] sm:$0xff]
        %v477 = vld [vmem:[%s270 + $0x1a0] sm:$0xff]
        %v478 = vld [vmem:[%s270 + $0x1a8] sm:$0xff]
        %v479 = vld [vmem:[%s270 + $0x1b0] sm:$0xff]
        %v480 = vld [vmem:[%s270 + $0x1b8] sm:$0xff]
        %v481 = vld [vmem:[%s270 + $0x1c0] sm:$0xff]
        %v482 = vld [vmem:[%s270 + $0x1c8] sm:$0xff]
        %v483 = vld [vmem:[%s270 + $0x1d0] sm:$0xff]
        %v484 = vld [vmem:[%s270 + $0x1d8] sm:$0xff]
        %v485 = vld [vmem:[%s270 + $0x1e0] sm:$0xff]
        %v486 = vld [vmem:[%s270 + $0x1e8] sm:$0xff]
        %v487 = vld [vmem:[%s270 + $0x1f0] sm:$0xff]
        %v488 = vld [vmem:[%s270 + $0x1f8] sm:$0xff]
        %v489 = vld [vmem:[%s270 + $0x200] sm:$0xff]
        %v490 = vld [vmem:[%s270 + $0x208] sm:$0xff]
        %v491 = vld [vmem:[%s270 + $0x210] sm:$0xff]
        %v492 = vld [vmem:[%s270 + $0x218] sm:$0xff]
        %v493 = vld [vmem:[%s270 + $0x220] sm:$0xff]
        %v494 = vld [vmem:[%s270 + $0x228] sm:$0xff]
        %v495 = vld [vmem:[%s270 + $0x230] sm:$0xff]
        %v496 = vld [vmem:[%s270 + $0x238] sm:$0xff]
        %v497 = vld [vmem:[%s270 + $0x240] sm:$0xff]
        %v498 = vld [vmem:[%s270 + $0x248] sm:$0xff]
        %v499 = vld [vmem:[%s270 + $0x250] sm:$0xff]
        %v500 = vld [vmem:[%s270 + $0x258] sm:$0xff]
        %v501 = vld [vmem:[%s270 + $0x260] sm:$0xff]
        %v502 = vld [vmem:[%s270 + $0x268] sm:$0xff]
        %v503 = vld [vmem:[%s270 + $0x270] sm:$0xff]
        %v504 = vld [vmem:[%s270 + $0x278] sm:$0xff]
        %v505 = vld [vmem:[%s270 + $0x280] sm:$0xff]
        %v506 = vld [vmem:[%s270 + $0x288] sm:$0xff]
        %v507 = vld [vmem:[%s270 + $0x290] sm:$0xff]
        %v508 = vld [vmem:[%s270 + $0x298] sm:$0xff]
        %v509 = vld [vmem:[%s270 + $0x2a0] sm:$0xff]
        %v510 = vld [vmem:[%s270 + $0x2a8] sm:$0xff]
        %v511 = vld [vmem:[%s270 + $0x2b0] sm:$0xff]
        %v512 = vld [vmem:[%s270 + $0x2b8] sm:$0xff]
        %v513 = vld [vmem:[%s270 + $0x2c0] sm:$0xff]
        %v514 = vld [vmem:[%s270 + $0x2c8] sm:$0xff]
        %v515 = vld [vmem:[%s270 + $0x2d0] sm:$0xff]
        %v516 = vld [vmem:[%s270 + $0x2d8] sm:$0xff]
        %v517 = vld [vmem:[%s270 + $0x2e0] sm:$0xff]
        %v518 = vld [vmem:[%s270 + $0x2e8] sm:$0xff]
        %v519 = vld [vmem:[%s270 + $0x2f0] sm:$0xff]
        %v520 = vld [vmem:[%s270 + $0x2f8] sm:$0xff]
        %v521 = vld [vmem:[%s270 + $0x300] sm:$0xff]
        %v522 = vld [vmem:[%s270 + $0x308] sm:$0xff]
        %v523 = vld [vmem:[%s270 + $0x310] sm:$0xff]
        %v524 = vld [vmem:[%s270 + $0x318] sm:$0xff]
        %v525 = vld [vmem:[%s270 + $0x320] sm:$0xff]
        %v526 = vld [vmem:[%s270 + $0x328] sm:$0xff]
        %v527 = vld [vmem:[%s270 + $0x330] sm:$0xff]
        %v528 = vld [vmem:[%s270 + $0x338] sm:$0xff]
        %v529 = vld [vmem:[%s270 + $0x340] sm:$0xff]
        %v530 = vld [vmem:[%s270 + $0x348] sm:$0xff]
        %v531 = vld [vmem:[%s270 + $0x350] sm:$0xff]
        %v532 = vld [vmem:[%s270 + $0x358] sm:$0xff]
        %v533 = vld [vmem:[%s270 + $0x360] sm:$0xff]
        %v534 = vld [vmem:[%s270 + $0x368] sm:$0xff]
        %v535 = vld [vmem:[%s270 + $0x370] sm:$0xff]
        %v536 = vld [vmem:[%s270 + $0x378] sm:$0xff]
        %v537 = vld [vmem:[%s270 + $0x380] sm:$0xff]
        %v538 = vld [vmem:[%s270 + $0x388] sm:$0xff]
        %v539 = vld [vmem:[%s270 + $0x390] sm:$0xff]
        %v540 = vld [vmem:[%s270 + $0x398] sm:$0xff]
        %v541 = vld [vmem:[%s270 + $0x3a0] sm:$0xff]
        %v542 = vld [vmem:[%s270 + $0x3a8] sm:$0xff]
        %v543 = vld [vmem:[%s270 + $0x3b0] sm:$0xff]
        %v544 = vld [vmem:[%s270 + $0x3b8] sm:$0xff]
        %v545 = vld [vmem:[%s270 + $0x3c0] sm:$0xff]
        %v546 = vld [vmem:[%s270 + $0x3c8] sm:$0xff]
        %v547 = vld [vmem:[%s270 + $0x3d0] sm:$0xff]
        %v548 = vld [vmem:[%s270 + $0x3d8] sm:$0xff]
        %v549 = vld [vmem:[%s270 + $0x3e0] sm:$0xff]
        %v550 = vld [vmem:[%s270 + $0x3e8] sm:$0xff]
        %v551 = vld [vmem:[%s270 + $0x3f0] sm:$0xff]
        %v552 = vld [vmem:[%s270 + $0x3f8] sm:$0xff]
        %v553 = vld [vmem:[%s270 + $0x400] sm:$0xff]
        %v554 = vld [vmem:[%s270 + $0x408] sm:$0xff]
        %v555 = vld [vmem:[%s270 + $0x410] sm:$0xff]
        %v556 = vld [vmem:[%s270 + $0x418] sm:$0xff]
        %v557 = vld [vmem:[%s270 + $0x420] sm:$0xff]
        %v558 = vld [vmem:[%s270 + $0x428] sm:$0xff]
        %v559 = vld [vmem:[%s270 + $0x430] sm:$0xff]
        %v560 = vld [vmem:[%s270 + $0x438] sm:$0xff]
        %v561 = vld [vmem:[%s270 + $0x440] sm:$0xff]
        %v562 = vld [vmem:[%s270 + $0x448] sm:$0xff]
        %v563 = vld [vmem:[%s270 + $0x450] sm:$0xff]
        %v564 = vld [vmem:[%s270 + $0x458] sm:$0xff]
        %v565 = vld [vmem:[%s270 + $0x460] sm:$0xff]
        %v566 = vld [vmem:[%s270 + $0x468] sm:$0xff]
        %v567 = vld [vmem:[%s270 + $0x470] sm:$0xff]
        %v568 = vld [vmem:[%s270 + $0x478] sm:$0xff]
        %v569 = vld [vmem:[%s270 + $0x480] sm:$0xff]
        %v570 = vld [vmem:[%s270 + $0x488] sm:$0xff]
        %v571 = vld [vmem:[%s270 + $0x490] sm:$0xff]
        %v572 = vld [vmem:[%s270 + $0x498] sm:$0xff]
        %v573 = vld [vmem:[%s270 + $0x4a0] sm:$0xff]
        %v574 = vld [vmem:[%s270 + $0x4a8] sm:$0xff]
        %v575 = vld [vmem:[%s270 + $0x4b0] sm:$0xff]
        %v576 = vld [vmem:[%s270 + $0x4b8] sm:$0xff]
        %v577 = vld [vmem:[%s270 + $0x4c0] sm:$0xff]
        %v578 = vld [vmem:[%s270 + $0x4c8] sm:$0xff]
        %v579 = vld [vmem:[%s270 + $0x4d0] sm:$0xff]
        %v580 = vld [vmem:[%s270 + $0x4d8] sm:$0xff]
        %v581 = vld [vmem:[%s270 + $0x4e0] sm:$0xff]
        %v582 = vld [vmem:[%s270 + $0x4e8] sm:$0xff]
        %v583 = vld [vmem:[%s270 + $0x4f0] sm:$0xff]
        %v584 = vld [vmem:[%s270 + $0x4f8] sm:$0xff]
        %v585 = vld [vmem:[%s270 + $0x500] sm:$0xff]
        %v586 = vld [vmem:[%s270 + $0x508] sm:$0xff]
        %v587 = vld [vmem:[%s270 + $0x510] sm:$0xff]
        %v588 = vld [vmem:[%s270 + $0x518] sm:$0xff]
        %v589 = vld [vmem:[%s270 + $0x520] sm:$0xff]
        %v590 = vld [vmem:[%s270 + $0x528] sm:$0xff]
        %v591 = vld [vmem:[%s270 + $0x530] sm:$0xff]
        %v592 = vld [vmem:[%s270 + $0x538] sm:$0xff]
        %v593 = vld [vmem:[%s270 + $0x540] sm:$0xff]
        %v594 = vld [vmem:[%s270 + $0x548] sm:$0xff]
        %v595 = vld [vmem:[%s270 + $0x550] sm:$0xff]
        %v596 = vld [vmem:[%s270 + $0x558] sm:$0xff]
        %v597 = vld [vmem:[%s270 + $0x560] sm:$0xff]
        %v598 = vld [vmem:[%s270 + $0x568] sm:$0xff]
        %v599 = vld [vmem:[%s270 + $0x570] sm:$0xff]
        %v600 = vld [vmem:[%s270 + $0x578] sm:$0xff]
        %v601 = vld [vmem:[%s270 + $0x580] sm:$0xff]
        %v602 = vld [vmem:[%s270 + $0x588] sm:$0xff]
        %v603 = vld [vmem:[%s270 + $0x590] sm:$0xff]
        %v604 = vld [vmem:[%s270 + $0x598] sm:$0xff]
        %v605 = vld [vmem:[%s270 + $0x5a0] sm:$0xff]
        %v606 = vld [vmem:[%s270 + $0x5a8] sm:$0xff]
        %v607 = vld [vmem:[%s270 + $0x5b0] sm:$0xff]
        %v608 = vld [vmem:[%s270 + $0x5b8] sm:$0xff]
        %v609 = vld [vmem:[%s270 + $0x5c0] sm:$0xff]
        %v610 = vld [vmem:[%s270 + $0x5c8] sm:$0xff]
        %v611 = vld [vmem:[%s270 + $0x5d0] sm:$0xff]
        %v612 = vld [vmem:[%s270 + $0x5d8] sm:$0xff]
        %v613 = vld [vmem:[%s270 + $0x5e0] sm:$0xff]
        %v614 = vld [vmem:[%s270 + $0x5e8] sm:$0xff]
        %v615 = vld [vmem:[%s270 + $0x5f0] sm:$0xff]
        %v616 = vld [vmem:[%s270 + $0x5f8] sm:$0xff]
        %v617 = vld [vmem:[%s270 + $0x600] sm:$0xff]
        %v618 = vld [vmem:[%s270 + $0x608] sm:$0xff]
        %v619 = vld [vmem:[%s270 + $0x610] sm:$0xff]
        %v620 = vld [vmem:[%s270 + $0x618] sm:$0xff]
        %v621 = vld [vmem:[%s270 + $0x620] sm:$0xff]
        %v622 = vld [vmem:[%s270 + $0x628] sm:$0xff]
        %v623 = vld [vmem:[%s270 + $0x630] sm:$0xff]
        %v624 = vld [vmem:[%s270 + $0x638] sm:$0xff]
        %v625 = vld [vmem:[%s270 + $0x640] sm:$0xff]
        %v626 = vld [vmem:[%s270 + $0x648] sm:$0xff]
        %v627 = vld [vmem:[%s270 + $0x650] sm:$0xff]
        %v628 = vld [vmem:[%s270 + $0x658] sm:$0xff]
        %v629 = vld [vmem:[%s270 + $0x660] sm:$0xff]
        %v630 = vld [vmem:[%s270 + $0x668] sm:$0xff]
        %v631 = vld [vmem:[%s270 + $0x670] sm:$0xff]
        %v632 = vld [vmem:[%s270 + $0x678] sm:$0xff]
        %v633 = vld [vmem:[%s270 + $0x680] sm:$0xff]
        %v634 = vld [vmem:[%s270 + $0x688] sm:$0xff]
        %v635 = vld [vmem:[%s270 + $0x690] sm:$0xff]
        %v636 = vld [vmem:[%s270 + $0x698] sm:$0xff]
        %v637 = vld [vmem:[%s270 + $0x6a0] sm:$0xff]
        %v638 = vld [vmem:[%s270 + $0x6a8] sm:$0xff]
        %v639 = vld [vmem:[%s270 + $0x6b0] sm:$0xff]
        %v640 = vld [vmem:[%s270 + $0x6b8] sm:$0xff]
        %v641 = vld [vmem:[%s270 + $0x6c0] sm:$0xff]
        %v642 = vld [vmem:[%s270 + $0x6c8] sm:$0xff]
        %v643 = vld [vmem:[%s270 + $0x6d0] sm:$0xff]
        %v644 = vld [vmem:[%s270 + $0x6d8] sm:$0xff]
        %v645 = vld [vmem:[%s270 + $0x6e0] sm:$0xff]
        %v646 = vld [vmem:[%s270 + $0x6e8] sm:$0xff]
        %v647 = vld [vmem:[%s270 + $0x6f0] sm:$0xff]
        %v648 = vld [vmem:[%s270 + $0x6f8] sm:$0xff]
        %v649 = vld [vmem:[%s270 + $0x700] sm:$0xff]
        %v650 = vld [vmem:[%s270 + $0x708] sm:$0xff]
        %v651 = vld [vmem:[%s270 + $0x710] sm:$0xff]
        %v652 = vld [vmem:[%s270 + $0x718] sm:$0xff]
        %v653 = vld [vmem:[%s270 + $0x720] sm:$0xff]
        %v654 = vld [vmem:[%s270 + $0x728] sm:$0xff]
        %v655 = vld [vmem:[%s270 + $0x730] sm:$0xff]
        %v656 = vld [vmem:[%s270 + $0x738] sm:$0xff]
        %v657 = vld [vmem:[%s270 + $0x740] sm:$0xff]
        %v658 = vld [vmem:[%s270 + $0x748] sm:$0xff]
        %v659 = vld [vmem:[%s270 + $0x750] sm:$0xff]
        %v660 = vld [vmem:[%s270 + $0x758] sm:$0xff]
        %v661 = vld [vmem:[%s270 + $0x760] sm:$0xff]
        %v662 = vld [vmem:[%s270 + $0x768] sm:$0xff]
        %v663 = vld [vmem:[%s270 + $0x770] sm:$0xff]
        %v664 = vld [vmem:[%s270 + $0x778] sm:$0xff]
        %v665 = vld [vmem:[%s270 + $0x780] sm:$0xff]
        %v666 = vld [vmem:[%s270 + $0x788] sm:$0xff]
        %v667 = vld [vmem:[%s270 + $0x790] sm:$0xff]
        %v668 = vld [vmem:[%s270 + $0x798] sm:$0xff]
        %v669 = vld [vmem:[%s270 + $0x7a0] sm:$0xff]
        %v670 = vld [vmem:[%s270 + $0x7a8] sm:$0xff]
        %v671 = vld [vmem:[%s270 + $0x7b0] sm:$0xff]
        %v672 = vld [vmem:[%s270 + $0x7b8] sm:$0xff]
        %v673 = vld [vmem:[%s270 + $0x7c0] sm:$0xff]
        %v674 = vld [vmem:[%s270 + $0x7c8] sm:$0xff]
        %v675 = vld [vmem:[%s270 + $0x7d0] sm:$0xff]
        %v676 = vld [vmem:[%s270 + $0x7d8] sm:$0xff]
        %v677 = vld [vmem:[%s270 + $0x7e0] sm:$0xff]
        %v678 = vld [vmem:[%s270 + $0x7e8] sm:$0xff]
        %v679 = vld [vmem:[%s270 + $0x7f0] sm:$0xff]
        %v680 = vld [vmem:[%s270 + $0x7f8] sm:$0xff]
        %v681 = vld [vmem:[%s270 + $0x800] sm:$0xff]
        %v682 = vld [vmem:[%s270 + $0x808] sm:$0xff]
        %v683 = vld [vmem:[%s270 + $0x810] sm:$0xff]
        %v684 = vld [vmem:[%s270 + $0x818] sm:$0xff]
        %v685 = vld [vmem:[%s270 + $0x820] sm:$0xff]
        %v686 = vld [vmem:[%s270 + $0x828] sm:$0xff]
        %v687 = vld [vmem:[%s270 + $0x830] sm:$0xff]
        %v688 = vld [vmem:[%s270 + $0x838] sm:$0xff]
        %v689 = vld [vmem:[%s270 + $0x840] sm:$0xff]
        %v690 = vld [vmem:[%s270 + $0x848] sm:$0xff]
        %v691 = vld [vmem:[%s270 + $0x850] sm:$0xff]
        %v692 = vld [vmem:[%s270 + $0x858] sm:$0xff]
        %v693 = vld [vmem:[%s270 + $0x860] sm:$0xff]
        %v694 = vld [vmem:[%s270 + $0x868] sm:$0xff]
        %v695 = vld [vmem:[%s270 + $0x870] sm:$0xff]
        %v696 = vld [vmem:[%s270 + $0x878] sm:$0xff]
        %v697 = vld [vmem:[%s270 + $0x880] sm:$0xff]
        %v698 = vld [vmem:[%s270 + $0x888] sm:$0xff]
        %v699 = vld [vmem:[%s270 + $0x890] sm:$0xff]
        %v700 = vld [vmem:[%s270 + $0x898] sm:$0xff]
        %v701 = vld [vmem:[%s270 + $0x8a0] sm:$0xff]
        %v702 = vld [vmem:[%s270 + $0x8a8] sm:$0xff]
        %v703 = vld [vmem:[%s270 + $0x8b0] sm:$0xff]
        %v704 = vld [vmem:[%s270 + $0x8b8] sm:$0xff]
        %v705 = vld [vmem:[%s270 + $0x8c0] sm:$0xff]
        %v706 = vld [vmem:[%s270 + $0x8c8] sm:$0xff]
        %v707 = vld [vmem:[%s270 + $0x8d0] sm:$0xff]
        %v708 = vld [vmem:[%s270 + $0x8d8] sm:$0xff]
        %v709 = vld [vmem:[%s270 + $0x8e0] sm:$0xff]
        %v710 = vld [vmem:[%s270 + $0x8e8] sm:$0xff]
        %v711 = vld [vmem:[%s270 + $0x8f0] sm:$0xff]
        %v712 = vld [vmem:[%s270 + $0x8f8] sm:$0xff]
        %v713 = vld [vmem:[%s270 + $0x900] sm:$0xff]
        %v714 = vld [vmem:[%s270 + $0x908] sm:$0xff]
        %v715 = vld [vmem:[%s270 + $0x910] sm:$0xff]
        %v716 = vld [vmem:[%s270 + $0x918] sm:$0xff]
        %v717 = vld [vmem:[%s270 + $0x920] sm:$0xff]
        %v718 = vld [vmem:[%s270 + $0x928] sm:$0xff]
        %v719 = vld [vmem:[%s270 + $0x930] sm:$0xff]
        %v720 = vld [vmem:[%s270 + $0x938] sm:$0xff]
        %v721 = vld [vmem:[%s270 + $0x940] sm:$0xff]
        %v722 = vld [vmem:[%s270 + $0x948] sm:$0xff]
        %v723 = vld [vmem:[%s270 + $0x950] sm:$0xff]
        %v724 = vld [vmem:[%s270 + $0x958] sm:$0xff]
        %v725 = vld [vmem:[%s270 + $0x960] sm:$0xff]
        %v726 = vld [vmem:[%s270 + $0x968] sm:$0xff]
        %v727 = vld [vmem:[%s270 + $0x970] sm:$0xff]
        %v728 = vld [vmem:[%s270 + $0x978] sm:$0xff]
        %v729 = vld [vmem:[%s270 + $0x980] sm:$0xff]
        %v730 = vld [vmem:[%s270 + $0x988] sm:$0xff]
        %v731 = vld [vmem:[%s270 + $0x990] sm:$0xff]
        %v732 = vld [vmem:[%s270 + $0x998] sm:$0xff]
        %v733 = vld [vmem:[%s270 + $0x9a0] sm:$0xff]
        %v734 = vld [vmem:[%s270 + $0x9a8] sm:$0xff]
        %v735 = vld [vmem:[%s270 + $0x9b0] sm:$0xff]
        %v736 = vld [vmem:[%s270 + $0x9b8] sm:$0xff]
        %v737 = vld [vmem:[%s270 + $0x9c0] sm:$0xff]
        %v738 = vld [vmem:[%s270 + $0x9c8] sm:$0xff]
        %v739 = vld [vmem:[%s270 + $0x9d0] sm:$0xff]
        %v740 = vld [vmem:[%s270 + $0x9d8] sm:$0xff]
        %v741 = vld [vmem:[%s270 + $0x9e0] sm:$0xff]
        %v742 = vld [vmem:[%s270 + $0x9e8] sm:$0xff]
        %v743 = vld [vmem:[%s270 + $0x9f0] sm:$0xff]
        %v744 = vld [vmem:[%s270 + $0x9f8] sm:$0xff]
        %v745 = vld [vmem:[%s270 + $0xa00] sm:$0xff]
        %v746 = vld [vmem:[%s270 + $0xa08] sm:$0xff]
        %v747 = vld [vmem:[%s270 + $0xa10] sm:$0xff]
        %v748 = vld [vmem:[%s270 + $0xa18] sm:$0xff]
        %v749 = vld [vmem:[%s270 + $0xa20] sm:$0xff]
        %v750 = vld [vmem:[%s270 + $0xa28] sm:$0xff]
        %v751 = vld [vmem:[%s270 + $0xa30] sm:$0xff]
        %v752 = vld [vmem:[%s270 + $0xa38] sm:$0xff]
        %v753 = vld [vmem:[%s270 + $0xa40] sm:$0xff]
        %v754 = vld [vmem:[%s270 + $0xa48] sm:$0xff]
        %v755 = vld [vmem:[%s270 + $0xa50] sm:$0xff]
        %v756 = vld [vmem:[%s270 + $0xa58] sm:$0xff]
        %v757 = vld [vmem:[%s270 + $0xa60] sm:$0xff]
        %v758 = vld [vmem:[%s270 + $0xa68] sm:$0xff]
        %v759 = vld [vmem:[%s270 + $0xa70] sm:$0xff]
        %v760 = vld [vmem:[%s270 + $0xa78] sm:$0xff]
        %v761 = vld [vmem:[%s270 + $0xa80] sm:$0xff]
        %v762 = vld [vmem:[%s270 + $0xa88] sm:$0xff]
        %v763 = vld [vmem:[%s270 + $0xa90] sm:$0xff]
        %v764 = vld [vmem:[%s270 + $0xa98] sm:$0xff]
        %v765 = vld [vmem:[%s270 + $0xaa0] sm:$0xff]
        %v766 = vld [vmem:[%s270 + $0xaa8] sm:$0xff]
        %v767 = vld [vmem:[%s270 + $0xab0] sm:$0xff]
        %v768 = vld [vmem:[%s270 + $0xab8] sm:$0xff]
        %v769 = vld [vmem:[%s270 + $0xac0] sm:$0xff]
        %v770 = vld [vmem:[%s270 + $0xac8] sm:$0xff]
        %v771 = vld [vmem:[%s270 + $0xad0] sm:$0xff]
        %v772 = vld [vmem:[%s270 + $0xad8] sm:$0xff]
        %v773 = vld [vmem:[%s270 + $0xae0] sm:$0xff]
        %v774 = vld [vmem:[%s270 + $0xae8] sm:$0xff]
        %v775 = vld [vmem:[%s270 + $0xaf0] sm:$0xff]
        %v776 = vld [vmem:[%s270 + $0xaf8] sm:$0xff]
        %v777 = vld [vmem:[%s270 + $0xb00] sm:$0xff]
        %v778 = vld [vmem:[%s270 + $0xb08] sm:$0xff]
        %v779 = vld [vmem:[%s270 + $0xb10] sm:$0xff]
        %v780 = vld [vmem:[%s270 + $0xb18] sm:$0xff]
        %v781 = vld [vmem:[%s270 + $0xb20] sm:$0xff]
        %v782 = vld [vmem:[%s270 + $0xb28] sm:$0xff]
        %v783 = vld [vmem:[%s270 + $0xb30] sm:$0xff]
        %v784 = vld [vmem:[%s270 + $0xb38] sm:$0xff]
        %v785 = vld [vmem:[%s270 + $0xb40] sm:$0xff]
        %v786 = vld [vmem:[%s270 + $0xb48] sm:$0xff]
        %v787 = vld [vmem:[%s270 + $0xb50] sm:$0xff]
        %v788 = vld [vmem:[%s270 + $0xb58] sm:$0xff]
        %v789 = vld [vmem:[%s270 + $0xb60] sm:$0xff]
        %v790 = vld [vmem:[%s270 + $0xb68] sm:$0xff]
        %v791 = vld [vmem:[%s270 + $0xb70] sm:$0xff]
        %v792 = vld [vmem:[%s270 + $0xb78] sm:$0xff]
        %v793 = vld [vmem:[%s270 + $0xb80] sm:$0xff]
        %v794 = vld [vmem:[%s270 + $0xb88] sm:$0xff]
        %v795 = vld [vmem:[%s270 + $0xb90] sm:$0xff]
        %v796 = vld [vmem:[%s270 + $0xb98] sm:$0xff]
        %v797 = vld [vmem:[%s270 + $0xba0] sm:$0xff]
        %v798 = vld [vmem:[%s270 + $0xba8] sm:$0xff]
        %v799 = vld [vmem:[%s270 + $0xbb0] sm:$0xff]
        %v800 = vld [vmem:[%s270 + $0xbb8] sm:$0xff]
        %v801 = vld [vmem:[%s270 + $0xbc0] sm:$0xff]
        %v802 = vld [vmem:[%s270 + $0xbc8] sm:$0xff]
        %v803 = vld [vmem:[%s270 + $0xbd0] sm:$0xff]
        %v804 = vld [vmem:[%s270 + $0xbd8] sm:$0xff]
        %v805 = vld [vmem:[%s270 + $0xbe0] sm:$0xff]
        %v806 = vld [vmem:[%s270 + $0xbe8] sm:$0xff]
        %v807 = vld [vmem:[%s270 + $0xbf0] sm:$0xff]
        %v808 = vld [vmem:[%s270 + $0xbf8] sm:$0xff]
        %v809 = vld [vmem:[%s270 + $0xc00] sm:$0xff]
        %v810 = vld [vmem:[%s270 + $0xc08] sm:$0xff]
        %v811 = vld [vmem:[%s270 + $0xc10] sm:$0xff]
        %v812 = vld [vmem:[%s270 + $0xc18] sm:$0xff]
        %v813 = vld [vmem:[%s270 + $0xc20] sm:$0xff]
        %v814 = vld [vmem:[%s270 + $0xc28] sm:$0xff]
        %v815 = vld [vmem:[%s270 + $0xc30] sm:$0xff]
        %v816 = vld [vmem:[%s270 + $0xc38] sm:$0xff]
        %v817 = vld [vmem:[%s270 + $0xc40] sm:$0xff]
        %v818 = vld [vmem:[%s270 + $0xc48] sm:$0xff]
        %v819 = vld [vmem:[%s270 + $0xc50] sm:$0xff]
        %v820 = vld [vmem:[%s270 + $0xc58] sm:$0xff]
        %v821 = vld [vmem:[%s270 + $0xc60] sm:$0xff]
        %v822 = vld [vmem:[%s270 + $0xc68] sm:$0xff]
        %v823 = vld [vmem:[%s270 + $0xc70] sm:$0xff]
        %v824 = vld [vmem:[%s270 + $0xc78] sm:$0xff]
        %v825 = vld [vmem:[%s270 + $0xc80] sm:$0xff]
        %v826 = vld [vmem:[%s270 + $0xc88] sm:$0xff]
        %v827 = vld [vmem:[%s270 + $0xc90] sm:$0xff]
        %v828 = vld [vmem:[%s270 + $0xc98] sm:$0xff]
        %v829 = vld [vmem:[%s270 + $0xca0] sm:$0xff]
        %v830 = vld [vmem:[%s270 + $0xca8] sm:$0xff]
        %v831 = vld [vmem:[%s270 + $0xcb0] sm:$0xff]
        %v832 = vld [vmem:[%s270 + $0xcb8] sm:$0xff]
        %v833 = vld [vmem:[%s270 + $0xcc0] sm:$0xff]
        %v834 = vld [vmem:[%s270 + $0xcc8] sm:$0xff]
        %v835 = vld [vmem:[%s270 + $0xcd0] sm:$0xff]
        %v836 = vld [vmem:[%s270 + $0xcd8] sm:$0xff]
        %v837 = vld [vmem:[%s270 + $0xce0] sm:$0xff]
        %v838 = vld [vmem:[%s270 + $0xce8] sm:$0xff]
        %v839 = vld [vmem:[%s270 + $0xcf0] sm:$0xff]
        %v840 = vld [vmem:[%s270 + $0xcf8] sm:$0xff]
        %v841 = vld [vmem:[%s270 + $0xd00] sm:$0xff]
        %v842 = vld [vmem:[%s270 + $0xd08] sm:$0xff]
        %v843 = vld [vmem:[%s270 + $0xd10] sm:$0xff]
        %v844 = vld [vmem:[%s270 + $0xd18] sm:$0xff]
        %v845 = vld [vmem:[%s270 + $0xd20] sm:$0xff]
        %v846 = vld [vmem:[%s270 + $0xd28] sm:$0xff]
        %v847 = vld [vmem:[%s270 + $0xd30] sm:$0xff]
        %v848 = vld [vmem:[%s270 + $0xd38] sm:$0xff]
        %v849 = vld [vmem:[%s270 + $0xd40] sm:$0xff]
        %v850 = vld [vmem:[%s270 + $0xd48] sm:$0xff]
        %v851 = vld [vmem:[%s270 + $0xd50] sm:$0xff]
        %v852 = vld [vmem:[%s270 + $0xd58] sm:$0xff]
        %v853 = vld [vmem:[%s270 + $0xd60] sm:$0xff]
        %v854 = vld [vmem:[%s270 + $0xd68] sm:$0xff]
        %v855 = vld [vmem:[%s270 + $0xd70] sm:$0xff]
        %v856 = vld [vmem:[%s270 + $0xd78] sm:$0xff]
        %v857 = vld [vmem:[%s270 + $0xd80] sm:$0xff]
        %v858 = vld [vmem:[%s270 + $0xd88] sm:$0xff]
        %v859 = vld [vmem:[%s270 + $0xd90] sm:$0xff]
        %v860 = vld [vmem:[%s270 + $0xd98] sm:$0xff]
        %v861 = vld [vmem:[%s270 + $0xda0] sm:$0xff]
        %v862 = vld [vmem:[%s270 + $0xda8] sm:$0xff]
        %v863 = vld [vmem:[%s270 + $0xdb0] sm:$0xff]
        %v864 = vld [vmem:[%s270 + $0xdb8] sm:$0xff]
        %v865 = vld [vmem:[%s270 + $0xdc0] sm:$0xff]
        %v866 = vld [vmem:[%s270 + $0xdc8] sm:$0xff]
        %v867 = vld [vmem:[%s270 + $0xdd0] sm:$0xff]
        %v868 = vld [vmem:[%s270 + $0xdd8] sm:$0xff]
        %v869 = vld [vmem:[%s270 + $0xde0] sm:$0xff]
        %v870 = vld [vmem:[%s270 + $0xde8] sm:$0xff]
        %v871 = vld [vmem:[%s270 + $0xdf0] sm:$0xff]
        %v872 = vld [vmem:[%s270 + $0xdf8] sm:$0xff]
        %v873 = vld [vmem:[%s270 + $0xe00] sm:$0xff]
        %v874 = vld [vmem:[%s270 + $0xe08] sm:$0xff]
        %v875 = vld [vmem:[%s270 + $0xe10] sm:$0xff]
        %v876 = vld [vmem:[%s270 + $0xe18] sm:$0xff]
        %v877 = vld [vmem:[%s270 + $0xe20] sm:$0xff]
        %v878 = vld [vmem:[%s270 + $0xe28] sm:$0xff]
        %v879 = vld [vmem:[%s270 + $0xe30] sm:$0xff]
        %v880 = vld [vmem:[%s270 + $0xe38] sm:$0xff]
        %v881 = vld [vmem:[%s270 + $0xe40] sm:$0xff]
        %v882 = vld [vmem:[%s270 + $0xe48] sm:$0xff]
        %v883 = vld [vmem:[%s270 + $0xe50] sm:$0xff]
        %v884 = vld [vmem:[%s270 + $0xe58] sm:$0xff]
        %v885 = vld [vmem:[%s270 + $0xe60] sm:$0xff]
        %v886 = vld [vmem:[%s270 + $0xe68] sm:$0xff]
        %v887 = vld [vmem:[%s270 + $0xe70] sm:$0xff]
        %v888 = vld [vmem:[%s270 + $0xe78] sm:$0xff]
        %v889 = vld [vmem:[%s270 + $0xe80] sm:$0xff]
        %v890 = vld [vmem:[%s270 + $0xe88] sm:$0xff]
        %v891 = vld [vmem:[%s270 + $0xe90] sm:$0xff]
        %v892 = vld [vmem:[%s270 + $0xe98] sm:$0xff]
        %v893 = vld [vmem:[%s270 + $0xea0] sm:$0xff]
        %v894 = vld [vmem:[%s270 + $0xea8] sm:$0xff]
        %v895 = vld [vmem:[%s270 + $0xeb0] sm:$0xff]
        %v896 = vld [vmem:[%s270 + $0xeb8] sm:$0xff]
        %v897 = vld [vmem:[%s270 + $0xec0] sm:$0xff]
        %v898 = vld [vmem:[%s270 + $0xec8] sm:$0xff]
        %v899 = vld [vmem:[%s270 + $0xed0] sm:$0xff]
        %v900 = vld [vmem:[%s270 + $0xed8] sm:$0xff]
        %v901 = vld [vmem:[%s270 + $0xee0] sm:$0xff]
        %v902 = vld [vmem:[%s270 + $0xee8] sm:$0xff]
        %v903 = vld [vmem:[%s270 + $0xef0] sm:$0xff]
        %v904 = vld [vmem:[%s270 + $0xef8] sm:$0xff]
        %v905 = vld [vmem:[%s270 + $0xf00] sm:$0xff]
        %v906 = vld [vmem:[%s270 + $0xf08] sm:$0xff]
        %v907 = vld [vmem:[%s270 + $0xf10] sm:$0xff]
        %v908 = vld [vmem:[%s270 + $0xf18] sm:$0xff]
        %v909 = vld [vmem:[%s270 + $0xf20] sm:$0xff]
        %v910 = vld [vmem:[%s270 + $0xf28] sm:$0xff]
        %v911 = vld [vmem:[%s270 + $0xf30] sm:$0xff]
        %v912 = vld [vmem:[%s270 + $0xf38] sm:$0xff]
        %v913 = vld [vmem:[%s270 + $0xf40] sm:$0xff]
        %v914 = vld [vmem:[%s270 + $0xf48] sm:$0xff]
        %v915 = vld [vmem:[%s270 + $0xf50] sm:$0xff]
        %v916 = vld [vmem:[%s270 + $0xf58] sm:$0xff]
        %v917 = vld [vmem:[%s270 + $0xf60] sm:$0xff]
        %v918 = vld [vmem:[%s270 + $0xf68] sm:$0xff]
        %v919 = vld [vmem:[%s270 + $0xf70] sm:$0xff]
        %v920 = vld [vmem:[%s270 + $0xf78] sm:$0xff]
        %v921 = vld [vmem:[%s270 + $0xf80] sm:$0xff]
        %v922 = vld [vmem:[%s270 + $0xf88] sm:$0xff]
        %v923 = vld [vmem:[%s270 + $0xf90] sm:$0xff]
        %v924 = vld [vmem:[%s270 + $0xf98] sm:$0xff]
        %v925 = vld [vmem:[%s270 + $0xfa0] sm:$0xff]
        %v926 = vld [vmem:[%s270 + $0xfa8] sm:$0xff]
        %v927 = vld [vmem:[%s270 + $0xfb0] sm:$0xff]
        %v928 = vld [vmem:[%s270 + $0xfb8] sm:$0xff]
        %v929 = vld [vmem:[%s270 + $0xfc0] sm:$0xff]
        %v930 = vld [vmem:[%s270 + $0xfc8] sm:$0xff]
        %v931 = vld [vmem:[%s270 + $0xfd0] sm:$0xff]
        %v932 = vld [vmem:[%s270 + $0xfd8] sm:$0xff]
        %v933 = vld [vmem:[%s270 + $0xfe0] sm:$0xff]
        %v934 = vld [vmem:[%s270 + $0xfe8] sm:$0xff]
        %v935 = vld [vmem:[%s270 + $0xff0] sm:$0xff]
        %v936 = vld [vmem:[%s270 + $0xff8] sm:$0xff]
        %v937 = vld [vmem:[%s270 + $0x1000] sm:$0xff]
        %v938 = vld [vmem:[%s270 + $0x1008] sm:$0xff]
        %v939 = vld [vmem:[%s270 + $0x1010] sm:$0xff]
        %v940 = vld [vmem:[%s270 + $0x1018] sm:$0xff]
        %v941 = vld [vmem:[%s270 + $0x1020] sm:$0xff]
        %v942 = vld [vmem:[%s270 + $0x1028] sm:$0xff]
        %v943 = vld [vmem:[%s270 + $0x1030] sm:$0xff]
        %v944 = vld [vmem:[%s270 + $0x1038] sm:$0xff]
        %v945 = vld [vmem:[%s270 + $0x1040] sm:$0xff]
        %v946 = vld [vmem:[%s270 + $0x1048] sm:$0xff]
        %v947 = vld [vmem:[%s270 + $0x1050] sm:$0xff]
        %v948 = vld [vmem:[%s270 + $0x1058] sm:$0xff]
        %v949 = vld [vmem:[%s270 + $0x1060] sm:$0xff]
        %v950 = vld [vmem:[%s270 + $0x1068] sm:$0xff]
        %v951 = vld [vmem:[%s270 + $0x1070] sm:$0xff]
        %v952 = vld [vmem:[%s270 + $0x1078] sm:$0xff]
        %v953 = vld [vmem:[%s270 + $0x1080] sm:$0xff]
        %v954 = vld [vmem:[%s270 + $0x1088] sm:$0xff]
        %v955 = vld [vmem:[%s270 + $0x1090] sm:$0xff]
        %v956 = vld [vmem:[%s270 + $0x1098] sm:$0xff]
        %v957 = vld [vmem:[%s270 + $0x10a0] sm:$0xff]
        %v958 = vld [vmem:[%s270 + $0x10a8] sm:$0xff]
        %v959 = vld [vmem:[%s270 + $0x10b0] sm:$0xff]
        %v960 = vld [vmem:[%s270 + $0x10b8] sm:$0xff]
        %v961 = vld [vmem:[%s270 + $0x10c0] sm:$0xff]
        %v962 = vld [vmem:[%s270 + $0x10c8] sm:$0xff]
        %v963 = vld [vmem:[%s270 + $0x10d0] sm:$0xff]
        %v964 = vld [vmem:[%s270 + $0x10d8] sm:$0xff]
        %v965 = vld [vmem:[%s270 + $0x10e0] sm:$0xff]
        %v966 = vld [vmem:[%s270 + $0x10e8] sm:$0xff]
        %v967 = vld [vmem:[%s270 + $0x10f0] sm:$0xff]
        %v968 = vld [vmem:[%s270 + $0x10f8] sm:$0xff]
        %v969 = vld [vmem:[%s270 + $0x1100] sm:$0xff]
        %v970 = vld [vmem:[%s270 + $0x1108] sm:$0xff]
        %v971 = vld [vmem:[%s270 + $0x1110] sm:$0xff]
        %v972 = vld [vmem:[%s270 + $0x1118] sm:$0xff]
        %v973 = vld [vmem:[%s270 + $0x1120] sm:$0xff]
        %v974 = vld [vmem:[%s270 + $0x1128] sm:$0xff]
        %v975 = vld [vmem:[%s270 + $0x1130] sm:$0xff]
        %v976 = vld [vmem:[%s270 + $0x1138] sm:$0xff]
        %v977 = vld [vmem:[%s270 + $0x1140] sm:$0xff]
        %v978 = vld [vmem:[%s270 + $0x1148] sm:$0xff]
        %v979 = vld [vmem:[%s270 + $0x1150] sm:$0xff]
        %v980 = vld [vmem:[%s270 + $0x1158] sm:$0xff]
        %v981 = vld [vmem:[%s270 + $0x1160] sm:$0xff]
        %v982 = vld [vmem:[%s270 + $0x1168] sm:$0xff]
        %v983 = vld [vmem:[%s270 + $0x1170] sm:$0xff]
        %v984 = vld [vmem:[%s270 + $0x1178] sm:$0xff]
        %v985 = vld [vmem:[%s270 + $0x1180] sm:$0xff]
        %v986 = vld [vmem:[%s270 + $0x1188] sm:$0xff]
        %v987 = vld [vmem:[%s270 + $0x1190] sm:$0xff]
        %v988 = vld [vmem:[%s270 + $0x1198] sm:$0xff]
        %v989 = vld [vmem:[%s270 + $0x11a0] sm:$0xff]
        %v990 = vld [vmem:[%s270 + $0x11a8] sm:$0xff]
        %v991 = vld [vmem:[%s270 + $0x11b0] sm:$0xff]
        %v992 = vld [vmem:[%s270 + $0x11b8] sm:$0xff]
        %v993 = vld [vmem:[%s270 + $0x11c0] sm:$0xff]
        %v994 = vld [vmem:[%s270 + $0x11c8] sm:$0xff]
        %v995 = vld [vmem:[%s270 + $0x11d0] sm:$0xff]
        %v996 = vld [vmem:[%s270 + $0x11d8] sm:$0xff]
        %v997 = vld [vmem:[%s270 + $0x11e0] sm:$0xff]
        %v998 = vld [vmem:[%s270 + $0x11e8] sm:$0xff]
        %v999 = vld [vmem:[%s270 + $0x11f0] sm:$0xff]
        %v1000 = vld [vmem:[%s270 + $0x11f8] sm:$0xff]
        %v1001 = vld [vmem:[%s270 + $0x1200] sm:$0xff]
        %v1002 = vld [vmem:[%s270 + $0x1208] sm:$0xff]
        %v1003 = vld [vmem:[%s270 + $0x1210] sm:$0xff]
        %v1004 = vld [vmem:[%s270 + $0x1218] sm:$0xff]
        %v1005 = vld [vmem:[%s270 + $0x1220] sm:$0xff]
        %v1006 = vld [vmem:[%s270 + $0x1228] sm:$0xff]
        %v1007 = vld [vmem:[%s270 + $0x1230] sm:$0xff]
        %v1008 = vld [vmem:[%s270 + $0x1238] sm:$0xff]
        %v1009 = vld [vmem:[%s270 + $0x1240] sm:$0xff]
        %v1010 = vld [vmem:[%s270 + $0x1248] sm:$0xff]
        %v1011 = vld [vmem:[%s270 + $0x1250] sm:$0xff]
        %v1012 = vld [vmem:[%s270 + $0x1258] sm:$0xff]
        %v1013 = vld [vmem:[%s270 + $0x1260] sm:$0xff]
        %v1014 = vld [vmem:[%s270 + $0x1268] sm:$0xff]
        %v1015 = vld [vmem:[%s270 + $0x1270] sm:$0xff]
        %v1016 = vld [vmem:[%s270 + $0x1278] sm:$0xff]
        %v1017 = vld [vmem:[%s270 + $0x1280] sm:$0xff]
        %v1018 = vld [vmem:[%s270 + $0x1288] sm:$0xff]
        %v1019 = vld [vmem:[%s270 + $0x1290] sm:$0xff]
        %v1020 = vld [vmem:[%s270 + $0x1298] sm:$0xff]
        %v1021 = vld [vmem:[%s270 + $0x12a0] sm:$0xff]
        %v1022 = vld [vmem:[%s270 + $0x12a8] sm:$0xff]
        %v1023 = vld [vmem:[%s270 + $0x12b0] sm:$0xff]
        %v1024 = vld [vmem:[%s270 + $0x12b8] sm:$0xff]
        %v1025 = vld [vmem:[%s270 + $0x12c0] sm:$0xff]
        %v1026 = vld [vmem:[%s270 + $0x12c8] sm:$0xff]
        %v1027 = vld [vmem:[%s270 + $0x12d0] sm:$0xff]
        %v1028 = vld [vmem:[%s270 + $0x12d8] sm:$0xff]
        %v1029 = vld [vmem:[%s270 + $0x12e0] sm:$0xff]
        %v1030 = vld [vmem:[%s270 + $0x12e8] sm:$0xff]
        %v1031 = vld [vmem:[%s270 + $0x12f0] sm:$0xff]
        %v1032 = vld [vmem:[%s270 + $0x12f8] sm:$0xff]
        %v1033 = vld [vmem:[%s270 + $0x1300] sm:$0xff]
        %v1034 = vld [vmem:[%s270 + $0x1308] sm:$0xff]
        %v1035 = vld [vmem:[%s270 + $0x1310] sm:$0xff]
        %v1036 = vld [vmem:[%s270 + $0x1318] sm:$0xff]
        %v1037 = vld [vmem:[%s270 + $0x1320] sm:$0xff]
        %v1038 = vld [vmem:[%s270 + $0x1328] sm:$0xff]
        %v1039 = vld [vmem:[%s270 + $0x1330] sm:$0xff]
        %v1040 = vld [vmem:[%s270 + $0x1338] sm:$0xff]
        %v1041 = vld [vmem:[%s270 + $0x1340] sm:$0xff]
        %v1042 = vld [vmem:[%s270 + $0x1348] sm:$0xff]
        %v1043 = vld [vmem:[%s270 + $0x1350] sm:$0xff]
        %v1044 = vld [vmem:[%s270 + $0x1358] sm:$0xff]
        %v1045 = vld [vmem:[%s270 + $0x1360] sm:$0xff]
        %v1046 = vld [vmem:[%s270 + $0x1368] sm:$0xff]
        %v1047 = vld [vmem:[%s270 + $0x1370] sm:$0xff]
        %v1048 = vld [vmem:[%s270 + $0x1378] sm:$0xff]
        %v1049 = vld [vmem:[%s270 + $0x1380] sm:$0xff]
        %v1050 = vld [vmem:[%s270 + $0x1388] sm:$0xff]
        %v1051 = vld [vmem:[%s270 + $0x1390] sm:$0xff]
        %v1052 = vld [vmem:[%s270 + $0x1398] sm:$0xff]
        %v1053 = vld [vmem:[%s270 + $0x13a0] sm:$0xff]
        %v1054 = vld [vmem:[%s270 + $0x13a8] sm:$0xff]
        %v1055 = vld [vmem:[%s270 + $0x13b0] sm:$0xff]
        %v1056 = vld [vmem:[%s270 + $0x13b8] sm:$0xff]
        %v1057 = vld [vmem:[%s270 + $0x13c0] sm:$0xff]
        %v1058 = vld [vmem:[%s270 + $0x13c8] sm:$0xff]
        %v1059 = vld [vmem:[%s270 + $0x13d0] sm:$0xff]
        %v1060 = vld [vmem:[%s270 + $0x13d8] sm:$0xff]
        %v1061 = vld [vmem:[%s270 + $0x13e0] sm:$0xff]
        %v1062 = vld [vmem:[%s270 + $0x13e8] sm:$0xff]
        %v1063 = vld [vmem:[%s270 + $0x13f0] sm:$0xff]
        %v1064 = vld [vmem:[%s270 + $0x13f8] sm:$0xff]
        %v1065 = vld [vmem:[%s270 + $0x1400] sm:$0xff]
        %v1066 = vld [vmem:[%s270 + $0x1408] sm:$0xff]
        %v1067 = vld [vmem:[%s270 + $0x1410] sm:$0xff]
        %v1068 = vld [vmem:[%s270 + $0x1418] sm:$0xff]
        %v1069 = vld [vmem:[%s270 + $0x1420] sm:$0xff]
        %v1070 = vld [vmem:[%s270 + $0x1428] sm:$0xff]
        %v1071 = vld [vmem:[%s270 + $0x1430] sm:$0xff]
        %v1072 = vld [vmem:[%s270 + $0x1438] sm:$0xff]
        %v1073 = vld [vmem:[%s270 + $0x1440] sm:$0xff]
        %v1074 = vld [vmem:[%s270 + $0x1448] sm:$0xff]
        %v1075 = vld [vmem:[%s270 + $0x1450] sm:$0xff]
        %v1076 = vld [vmem:[%s270 + $0x1458] sm:$0xff]
        %v1077 = vld [vmem:[%s270 + $0x1460] sm:$0xff]
        %v1078 = vld [vmem:[%s270 + $0x1468] sm:$0xff]
        %v1079 = vld [vmem:[%s270 + $0x1470] sm:$0xff]
        %v1080 = vld [vmem:[%s270 + $0x1478] sm:$0xff]
        %v1081 = vld [vmem:[%s270 + $0x1480] sm:$0xff]
        %v1082 = vld [vmem:[%s270 + $0x1488] sm:$0xff]
        %v1083 = vld [vmem:[%s270 + $0x1490] sm:$0xff]
        %v1084 = vld [vmem:[%s270 + $0x1498] sm:$0xff]
        %v1085 = vld [vmem:[%s270 + $0x14a0] sm:$0xff]
        %v1086 = vld [vmem:[%s270 + $0x14a8] sm:$0xff]
        %v1087 = vld [vmem:[%s270 + $0x14b0] sm:$0xff]
        %v1088 = vld [vmem:[%s270 + $0x14b8] sm:$0xff]
        %v1089 = vld [vmem:[%s270 + $0x14c0] sm:$0xff]
        %v1090 = vld [vmem:[%s270 + $0x14c8] sm:$0xff]
        %v1091 = vld [vmem:[%s270 + $0x14d0] sm:$0xff]
        %v1092 = vld [vmem:[%s270 + $0x14d8] sm:$0xff]
        %v1093 = vld [vmem:[%s270 + $0x14e0] sm:$0xff]
        %v1094 = vld [vmem:[%s270 + $0x14e8] sm:$0xff]
        %v1095 = vld [vmem:[%s270 + $0x14f0] sm:$0xff]
        %v1096 = vld [vmem:[%s270 + $0x14f8] sm:$0xff]
        %v1097 = vld [vmem:[%s270 + $0x1500] sm:$0xff]
        %v1098 = vld [vmem:[%s270 + $0x1508] sm:$0xff]
        %v1099 = vld [vmem:[%s270 + $0x1510] sm:$0xff]
        %v1100 = vld [vmem:[%s270 + $0x1518] sm:$0xff]
        %v1101 = vld [vmem:[%s270 + $0x1520] sm:$0xff]
        %v1102 = vld [vmem:[%s270 + $0x1528] sm:$0xff]
        %v1103 = vld [vmem:[%s270 + $0x1530] sm:$0xff]
        %v1104 = vld [vmem:[%s270 + $0x1538] sm:$0xff]
        %v1105 = vld [vmem:[%s270 + $0x1540] sm:$0xff]
        %v1106 = vld [vmem:[%s270 + $0x1548] sm:$0xff]
        %v1107 = vld [vmem:[%s270 + $0x1550] sm:$0xff]
        %v1108 = vld [vmem:[%s270 + $0x1558] sm:$0xff]
        %v1109 = vld [vmem:[%s270 + $0x1560] sm:$0xff]
        %v1110 = vld [vmem:[%s270 + $0x1568] sm:$0xff]
        %v1111 = vld [vmem:[%s270 + $0x1570] sm:$0xff]
        %v1112 = vld [vmem:[%s270 + $0x1578] sm:$0xff]
        %v1113 = vld [vmem:[%s270 + $0x1580] sm:$0xff]
        %v1114 = vld [vmem:[%s270 + $0x1588] sm:$0xff]
        %v1115 = vld [vmem:[%s270 + $0x1590] sm:$0xff]
        %v1116 = vld [vmem:[%s270 + $0x1598] sm:$0xff]
        %v1117 = vld [vmem:[%s270 + $0x15a0] sm:$0xff]
        %v1118 = vld [vmem:[%s270 + $0x15a8] sm:$0xff]
        %v1119 = vld [vmem:[%s270 + $0x15b0] sm:$0xff]
        %v1120 = vld [vmem:[%s270 + $0x15b8] sm:$0xff]
        %v1121 = vld [vmem:[%s270 + $0x15c0] sm:$0xff]
        %v1122 = vld [vmem:[%s270 + $0x15c8] sm:$0xff]
        %v1123 = vld [vmem:[%s270 + $0x15d0] sm:$0xff]
        %v1124 = vld [vmem:[%s270 + $0x15d8] sm:$0xff]
        %v1125 = vld [vmem:[%s270 + $0x15e0] sm:$0xff]
        %v1126 = vld [vmem:[%s270 + $0x15e8] sm:$0xff]
        %v1127 = vld [vmem:[%s270 + $0x15f0] sm:$0xff]
        %v1128 = vld [vmem:[%s270 + $0x15f8] sm:$0xff]
        %v1129 = vld [vmem:[%s270 + $0x1600] sm:$0xff]
        %v1130 = vld [vmem:[%s270 + $0x1608] sm:$0xff]
        %v1131 = vld [vmem:[%s270 + $0x1610] sm:$0xff]
        %v1132 = vld [vmem:[%s270 + $0x1618] sm:$0xff]
        %v1133 = vld [vmem:[%s270 + $0x1620] sm:$0xff]
        %v1134 = vld [vmem:[%s270 + $0x1628] sm:$0xff]
        %v1135 = vld [vmem:[%s270 + $0x1630] sm:$0xff]
        %v1136 = vld [vmem:[%s270 + $0x1638] sm:$0xff]
        %v1137 = vld [vmem:[%s270 + $0x1640] sm:$0xff]
        %v1138 = vld [vmem:[%s270 + $0x1648] sm:$0xff]
        %v1139 = vld [vmem:[%s270 + $0x1650] sm:$0xff]
        %v1140 = vld [vmem:[%s270 + $0x1658] sm:$0xff]
        %v1141 = vld [vmem:[%s270 + $0x1660] sm:$0xff]
        %v1142 = vld [vmem:[%s270 + $0x1668] sm:$0xff]
        %v1143 = vld [vmem:[%s270 + $0x1670] sm:$0xff]
        %v1144 = vld [vmem:[%s270 + $0x1678] sm:$0xff]
        %v1145 = vld [vmem:[%s270 + $0x1680] sm:$0xff]
        %v1146 = vld [vmem:[%s270 + $0x1688] sm:$0xff]
        %v1147 = vld [vmem:[%s270 + $0x1690] sm:$0xff]
        %v1148 = vld [vmem:[%s270 + $0x1698] sm:$0xff]
        %v1149 = vld [vmem:[%s270 + $0x16a0] sm:$0xff]
        %v1150 = vld [vmem:[%s270 + $0x16a8] sm:$0xff]
        %v1151 = vld [vmem:[%s270 + $0x16b0] sm:$0xff]
        %v1152 = vld [vmem:[%s270 + $0x16b8] sm:$0xff]
        %v1153 = vld [vmem:[%s270 + $0x16c0] sm:$0xff]
        %v1154 = vld [vmem:[%s270 + $0x16c8] sm:$0xff]
        %v1155 = vld [vmem:[%s270 + $0x16d0] sm:$0xff]
        %v1156 = vld [vmem:[%s270 + $0x16d8] sm:$0xff]
        %v1157 = vld [vmem:[%s270 + $0x16e0] sm:$0xff]
        %v1158 = vld [vmem:[%s270 + $0x16e8] sm:$0xff]
        %v1159 = vld [vmem:[%s270 + $0x16f0] sm:$0xff]
        %v1160 = vld [vmem:[%s270 + $0x16f8] sm:$0xff]
        %v1161 = vld [vmem:[%s270 + $0x1700] sm:$0xff]
        %v1162 = vld [vmem:[%s270 + $0x1708] sm:$0xff]
        %v1163 = vld [vmem:[%s270 + $0x1710] sm:$0xff]
        %v1164 = vld [vmem:[%s270 + $0x1718] sm:$0xff]
        %v1165 = vld [vmem:[%s270 + $0x1720] sm:$0xff]
        %v1166 = vld [vmem:[%s270 + $0x1728] sm:$0xff]
        %v1167 = vld [vmem:[%s270 + $0x1730] sm:$0xff]
        %v1168 = vld [vmem:[%s270 + $0x1738] sm:$0xff]
        %v1169 = vld [vmem:[%s270 + $0x1740] sm:$0xff]
        %v1170 = vld [vmem:[%s270 + $0x1748] sm:$0xff]
        %v1171 = vld [vmem:[%s270 + $0x1750] sm:$0xff]
        %v1172 = vld [vmem:[%s270 + $0x1758] sm:$0xff]
        %v1173 = vld [vmem:[%s270 + $0x1760] sm:$0xff]
        %v1174 = vld [vmem:[%s270 + $0x1768] sm:$0xff]
        %v1175 = vld [vmem:[%s270 + $0x1770] sm:$0xff]
        %v1176 = vld [vmem:[%s270 + $0x1778] sm:$0xff]
        %v1177 = vld [vmem:[%s270 + $0x1780] sm:$0xff]
        %v1178 = vld [vmem:[%s270 + $0x1788] sm:$0xff]
        %v1179 = vld [vmem:[%s270 + $0x1790] sm:$0xff]
        %v1180 = vld [vmem:[%s270 + $0x1798] sm:$0xff]
        %v1181 = vld [vmem:[%s270 + $0x17a0] sm:$0xff]
        %v1182 = vld [vmem:[%s270 + $0x17a8] sm:$0xff]
        %v1183 = vld [vmem:[%s270 + $0x17b0] sm:$0xff]
        %v1184 = vld [vmem:[%s270 + $0x17b8] sm:$0xff]
        %v1185 = vld [vmem:[%s270 + $0x17c0] sm:$0xff]
        %v1186 = vld [vmem:[%s270 + $0x17c8] sm:$0xff]
        %v1187 = vld [vmem:[%s270 + $0x17d0] sm:$0xff]
        %v1188 = vld [vmem:[%s270 + $0x17d8] sm:$0xff]
        %v1189 = vld [vmem:[%s270 + $0x17e0] sm:$0xff]
        %v1190 = vld [vmem:[%s270 + $0x17e8] sm:$0xff]
        %v1191 = vld [vmem:[%s270 + $0x17f0] sm:$0xff]
        %v1192 = vld [vmem:[%s270 + $0x17f8] sm:$0xff]
        %v1193 = vld [vmem:[%s270 + $0x1800] sm:$0xff]
        %v1194 = vld [vmem:[%s270 + $0x1808] sm:$0xff]
        %v1195 = vld [vmem:[%s270 + $0x1810] sm:$0xff]
        %v1196 = vld [vmem:[%s270 + $0x1818] sm:$0xff]
        %v1197 = vld [vmem:[%s270 + $0x1820] sm:$0xff]
        %v1198 = vld [vmem:[%s270 + $0x1828] sm:$0xff]
        %v1199 = vld [vmem:[%s270 + $0x1830] sm:$0xff]
        %v1200 = vld [vmem:[%s270 + $0x1838] sm:$0xff]
        %v1201 = vld [vmem:[%s270 + $0x1840] sm:$0xff]
        %v1202 = vld [vmem:[%s270 + $0x1848] sm:$0xff]
        %v1203 = vld [vmem:[%s270 + $0x1850] sm:$0xff]
        %v1204 = vld [vmem:[%s270 + $0x1858] sm:$0xff]
        %v1205 = vld [vmem:[%s270 + $0x1860] sm:$0xff]
        %v1206 = vld [vmem:[%s270 + $0x1868] sm:$0xff]
        %v1207 = vld [vmem:[%s270 + $0x1870] sm:$0xff]
        %v1208 = vld [vmem:[%s270 + $0x1878] sm:$0xff]
        %v1209 = vld [vmem:[%s270 + $0x1880] sm:$0xff]
        %v1210 = vld [vmem:[%s270 + $0x1888] sm:$0xff]
        %v1211 = vld [vmem:[%s270 + $0x1890] sm:$0xff]
        %v1212 = vld [vmem:[%s270 + $0x1898] sm:$0xff]
        %v1213 = vld [vmem:[%s270 + $0x18a0] sm:$0xff]
        %v1214 = vld [vmem:[%s270 + $0x18a8] sm:$0xff]
        %v1215 = vld [vmem:[%s270 + $0x18b0] sm:$0xff]
        %v1216 = vld [vmem:[%s270 + $0x18b8] sm:$0xff]
        %v1217 = vld [vmem:[%s270 + $0x18c0] sm:$0xff]
        %v1218 = vld [vmem:[%s270 + $0x18c8] sm:$0xff]
        %v1219 = vld [vmem:[%s270 + $0x18d0] sm:$0xff]
        %v1220 = vld [vmem:[%s270 + $0x18d8] sm:$0xff]
        %v1221 = vld [vmem:[%s270 + $0x18e0] sm:$0xff]
        %v1222 = vld [vmem:[%s270 + $0x18e8] sm:$0xff]
        %v1223 = vld [vmem:[%s270 + $0x18f0] sm:$0xff]
        %v1224 = vld [vmem:[%s270 + $0x18f8] sm:$0xff]
        %v1225 = vld [vmem:[%s270 + $0x1900] sm:$0xff]
        %v1226 = vld [vmem:[%s270 + $0x1908] sm:$0xff]
        %v1227 = vld [vmem:[%s270 + $0x1910] sm:$0xff]
        %v1228 = vld [vmem:[%s270 + $0x1918] sm:$0xff]
        %v1229 = vld [vmem:[%s270 + $0x1920] sm:$0xff]
        %v1230 = vld [vmem:[%s270 + $0x1928] sm:$0xff]
        %v1231 = vld [vmem:[%s270 + $0x1930] sm:$0xff]
        %v1232 = vld [vmem:[%s270 + $0x1938] sm:$0xff]
        %v1233 = vld [vmem:[%s270 + $0x1940] sm:$0xff]
        %v1234 = vld [vmem:[%s270 + $0x1948] sm:$0xff]
        %v1235 = vld [vmem:[%s270 + $0x1950] sm:$0xff]
        %v1236 = vld [vmem:[%s270 + $0x1958] sm:$0xff]
        %v1237 = vld [vmem:[%s270 + $0x1960] sm:$0xff]
        %v1238 = vld [vmem:[%s270 + $0x1968] sm:$0xff]
        %v1239 = vld [vmem:[%s270 + $0x1970] sm:$0xff]
        %v1240 = vld [vmem:[%s270 + $0x1978] sm:$0xff]
        %v1241 = vld [vmem:[%s270 + $0x1980] sm:$0xff]
        %v1242 = vld [vmem:[%s270 + $0x1988] sm:$0xff]
        %v1243 = vld [vmem:[%s270 + $0x1990] sm:$0xff]
        %v1244 = vld [vmem:[%s270 + $0x1998] sm:$0xff]
        %v1245 = vld [vmem:[%s270 + $0x19a0] sm:$0xff]
        %v1246 = vld [vmem:[%s270 + $0x19a8] sm:$0xff]
        %v1247 = vld [vmem:[%s270 + $0x19b0] sm:$0xff]
        %v1248 = vld [vmem:[%s270 + $0x19b8] sm:$0xff]
        %v1249 = vld [vmem:[%s270 + $0x19c0] sm:$0xff]
        %v1250 = vld [vmem:[%s270 + $0x19c8] sm:$0xff]
        %v1251 = vld [vmem:[%s270 + $0x19d0] sm:$0xff]
        %v1252 = vld [vmem:[%s270 + $0x19d8] sm:$0xff]
        %v1253 = vld [vmem:[%s270 + $0x19e0] sm:$0xff]
        %v1254 = vld [vmem:[%s270 + $0x19e8] sm:$0xff]
        %v1255 = vld [vmem:[%s270 + $0x19f0] sm:$0xff]
        %v1256 = vld [vmem:[%s270 + $0x19f8] sm:$0xff]
        %v1257 = vld [vmem:[%s270 + $0x1a00] sm:$0xff]
        %v1258 = vld [vmem:[%s270 + $0x1a08] sm:$0xff]
        %v1259 = vld [vmem:[%s270 + $0x1a10] sm:$0xff]
        %v1260 = vld [vmem:[%s270 + $0x1a18] sm:$0xff]
        %v1261 = vld [vmem:[%s270 + $0x1a20] sm:$0xff]
        %v1262 = vld [vmem:[%s270 + $0x1a28] sm:$0xff]
        %v1263 = vld [vmem:[%s270 + $0x1a30] sm:$0xff]
        %v1264 = vld [vmem:[%s270 + $0x1a38] sm:$0xff]
        %v1265 = vld [vmem:[%s270 + $0x1a40] sm:$0xff]
        %v1266 = vld [vmem:[%s270 + $0x1a48] sm:$0xff]
        %v1267 = vld [vmem:[%s270 + $0x1a50] sm:$0xff]
        %v1268 = vld [vmem:[%s270 + $0x1a58] sm:$0xff]
        %v1269 = vld [vmem:[%s270 + $0x1a60] sm:$0xff]
        %v1270 = vld [vmem:[%s270 + $0x1a68] sm:$0xff]
        %v1271 = vld [vmem:[%s270 + $0x1a70] sm:$0xff]
        %v1272 = vld [vmem:[%s270 + $0x1a78] sm:$0xff]
        %v1273 = vld [vmem:[%s270 + $0x1a80] sm:$0xff]
        %v1274 = vld [vmem:[%s270 + $0x1a88] sm:$0xff]
        %v1275 = vld [vmem:[%s270 + $0x1a90] sm:$0xff]
        %v1276 = vld [vmem:[%s270 + $0x1a98] sm:$0xff]
        %v1277 = vld [vmem:[%s270 + $0x1aa0] sm:$0xff]
        %v1278 = vld [vmem:[%s270 + $0x1aa8] sm:$0xff]
        %v1279 = vld [vmem:[%s270 + $0x1ab0] sm:$0xff]
        %v1280 = vld [vmem:[%s270 + $0x1ab8] sm:$0xff]
        %v1281 = vld [vmem:[%s270 + $0x1ac0] sm:$0xff]
        %v1282 = vld [vmem:[%s270 + $0x1ac8] sm:$0xff]
        %v1283 = vld [vmem:[%s270 + $0x1ad0] sm:$0xff]
        %v1284 = vld [vmem:[%s270 + $0x1ad8] sm:$0xff]
        %v1285 = vld [vmem:[%s270 + $0x1ae0] sm:$0xff]
        %v1286 = vld [vmem:[%s270 + $0x1ae8] sm:$0xff]
        %v1287 = vld [vmem:[%s270 + $0x1af0] sm:$0xff]
        %v1288 = vld [vmem:[%s270 + $0x1af8] sm:$0xff]
        %v1289 = vld [vmem:[%s270 + $0x1b00] sm:$0xff]
        %v1290 = vld [vmem:[%s270 + $0x1b08] sm:$0xff]
        %v1291 = vld [vmem:[%s270 + $0x1b10] sm:$0xff]
        %v1292 = vld [vmem:[%s270 + $0x1b18] sm:$0xff]
        %v1293 = vld [vmem:[%s270 + $0x1b20] sm:$0xff]
        %v1294 = vld [vmem:[%s270 + $0x1b28] sm:$0xff]
        %v1295 = vld [vmem:[%s270 + $0x1b30] sm:$0xff]
        %v1296 = vld [vmem:[%s270 + $0x1b38] sm:$0xff]
        %v1297 = vld [vmem:[%s270 + $0x1b40] sm:$0xff]
        %v1298 = vld [vmem:[%s270 + $0x1b48] sm:$0xff]
        %v1299 = vld [vmem:[%s270 + $0x1b50] sm:$0xff]
        %v1300 = vld [vmem:[%s270 + $0x1b58] sm:$0xff]
        %v1301 = vld [vmem:[%s270 + $0x1b60] sm:$0xff]
        %v1302 = vld [vmem:[%s270 + $0x1b68] sm:$0xff]
        %v1303 = vld [vmem:[%s270 + $0x1b70] sm:$0xff]
        %v1304 = vld [vmem:[%s270 + $0x1b78] sm:$0xff]
        %v1305 = vld [vmem:[%s270 + $0x1b80] sm:$0xff]
        %v1306 = vld [vmem:[%s270 + $0x1b88] sm:$0xff]
        %v1307 = vld [vmem:[%s270 + $0x1b90] sm:$0xff]
        %v1308 = vld [vmem:[%s270 + $0x1b98] sm:$0xff]
        %v1309 = vld [vmem:[%s270 + $0x1ba0] sm:$0xff]
        %v1310 = vld [vmem:[%s270 + $0x1ba8] sm:$0xff]
        %v1311 = vld [vmem:[%s270 + $0x1bb0] sm:$0xff]
        %v1312 = vld [vmem:[%s270 + $0x1bb8] sm:$0xff]
        %v1313 = vld [vmem:[%s270 + $0x1bc0] sm:$0xff]
        %v1314 = vld [vmem:[%s270 + $0x1bc8] sm:$0xff]
        %v1315 = vld [vmem:[%s270 + $0x1bd0] sm:$0xff]
        %v1316 = vld [vmem:[%s270 + $0x1bd8] sm:$0xff]
        %v1317 = vld [vmem:[%s270 + $0x1be0] sm:$0xff]
        %v1318 = vld [vmem:[%s270 + $0x1be8] sm:$0xff]
        %v1319 = vld [vmem:[%s270 + $0x1bf0] sm:$0xff]
        %v1320 = vld [vmem:[%s270 + $0x1bf8] sm:$0xff]
        %v1321 = vld [vmem:[%s270 + $0x1c00] sm:$0xff]
        %v1322 = vld [vmem:[%s270 + $0x1c08] sm:$0xff]
        %v1323 = vld [vmem:[%s270 + $0x1c10] sm:$0xff]
        %v1324 = vld [vmem:[%s270 + $0x1c18] sm:$0xff]
        %v1325 = vld [vmem:[%s270 + $0x1c20] sm:$0xff]
        %v1326 = vld [vmem:[%s270 + $0x1c28] sm:$0xff]
        %v1327 = vld [vmem:[%s270 + $0x1c30] sm:$0xff]
        %v1328 = vld [vmem:[%s270 + $0x1c38] sm:$0xff]
        %v1329 = vld [vmem:[%s270 + $0x1c40] sm:$0xff]
        %v1330 = vld [vmem:[%s270 + $0x1c48] sm:$0xff]
        %v1331 = vld [vmem:[%s270 + $0x1c50] sm:$0xff]
        %v1332 = vld [vmem:[%s270 + $0x1c58] sm:$0xff]
        %v1333 = vld [vmem:[%s270 + $0x1c60] sm:$0xff]
        %v1334 = vld [vmem:[%s270 + $0x1c68] sm:$0xff]
        %v1335 = vld [vmem:[%s270 + $0x1c70] sm:$0xff]
        %v1336 = vld [vmem:[%s270 + $0x1c78] sm:$0xff]
        %v1337 = vld [vmem:[%s270 + $0x1c80] sm:$0xff]
        %v1338 = vld [vmem:[%s270 + $0x1c88] sm:$0xff]
        %v1339 = vld [vmem:[%s270 + $0x1c90] sm:$0xff]
        %v1340 = vld [vmem:[%s270 + $0x1c98] sm:$0xff]
        %v1341 = vld [vmem:[%s270 + $0x1ca0] sm:$0xff]
        %v1342 = vld [vmem:[%s270 + $0x1ca8] sm:$0xff]
        %v1343 = vld [vmem:[%s270 + $0x1cb0] sm:$0xff]
        %v1344 = vld [vmem:[%s270 + $0x1cb8] sm:$0xff]
        %v1345 = vld [vmem:[%s270 + $0x1cc0] sm:$0xff]
        %v1346 = vld [vmem:[%s270 + $0x1cc8] sm:$0xff]
        %v1347 = vld [vmem:[%s270 + $0x1cd0] sm:$0xff]
        %v1348 = vld [vmem:[%s270 + $0x1cd8] sm:$0xff]
        %v1349 = vld [vmem:[%s270 + $0x1ce0] sm:$0xff]
        %v1350 = vld [vmem:[%s270 + $0x1ce8] sm:$0xff]
        %v1351 = vld [vmem:[%s270 + $0x1cf0] sm:$0xff]
        %v1352 = vld [vmem:[%s270 + $0x1cf8] sm:$0xff]
        %v1353 = vld [vmem:[%s270 + $0x1d00] sm:$0xff]
        %v1354 = vld [vmem:[%s270 + $0x1d08] sm:$0xff]
        %v1355 = vld [vmem:[%s270 + $0x1d10] sm:$0xff]
        %v1356 = vld [vmem:[%s270 + $0x1d18] sm:$0xff]
        %v1357 = vld [vmem:[%s270 + $0x1d20] sm:$0xff]
        %v1358 = vld [vmem:[%s270 + $0x1d28] sm:$0xff]
        %v1359 = vld [vmem:[%s270 + $0x1d30] sm:$0xff]
        %v1360 = vld [vmem:[%s270 + $0x1d38] sm:$0xff]
        %v1361 = vld [vmem:[%s270 + $0x1d40] sm:$0xff]
        %v1362 = vld [vmem:[%s270 + $0x1d48] sm:$0xff]
        %v1363 = vld [vmem:[%s270 + $0x1d50] sm:$0xff]
        %v1364 = vld [vmem:[%s270 + $0x1d58] sm:$0xff]
        %v1365 = vld [vmem:[%s270 + $0x1d60] sm:$0xff]
        %v1366 = vld [vmem:[%s270 + $0x1d68] sm:$0xff]
        %v1367 = vld [vmem:[%s270 + $0x1d70] sm:$0xff]
        %v1368 = vld [vmem:[%s270 + $0x1d78] sm:$0xff]
        %v1369 = vld [vmem:[%s270 + $0x1d80] sm:$0xff]
        %v1370 = vld [vmem:[%s270 + $0x1d88] sm:$0xff]
        %v1371 = vld [vmem:[%s270 + $0x1d90] sm:$0xff]
        %v1372 = vld [vmem:[%s270 + $0x1d98] sm:$0xff]
        %v1373 = vld [vmem:[%s270 + $0x1da0] sm:$0xff]
        %v1374 = vld [vmem:[%s270 + $0x1da8] sm:$0xff]
        %v1375 = vld [vmem:[%s270 + $0x1db0] sm:$0xff]
        %v1376 = vld [vmem:[%s270 + $0x1db8] sm:$0xff]
        %v1377 = vld [vmem:[%s270 + $0x1dc0] sm:$0xff]
        %v1378 = vld [vmem:[%s270 + $0x1dc8] sm:$0xff]
        %v1379 = vld [vmem:[%s270 + $0x1dd0] sm:$0xff]
        %v1380 = vld [vmem:[%s270 + $0x1dd8] sm:$0xff]
        %v1381 = vld [vmem:[%s270 + $0x1de0] sm:$0xff]
        %v1382 = vld [vmem:[%s270 + $0x1de8] sm:$0xff]
        %v1383 = vld [vmem:[%s270 + $0x1df0] sm:$0xff]
        %v1384 = vld [vmem:[%s270 + $0x1df8] sm:$0xff]
        %v2345 = vunpack.c.l.b16 %v425
        %v2346 = vunpack.c.h.b16 %v425
        %v2347 = vunpack.c.l.b16 %v426
        %v2348 = vunpack.c.h.b16 %v426
        %v2349 = vunpack.c.l.b16 %v427
        %v2350 = vunpack.c.h.b16 %v427
        %v2351 = vunpack.c.l.b16 %v428
        %v2352 = vunpack.c.h.b16 %v428
        %v2353 = vunpack.c.l.b16 %v429
        %v2354 = vunpack.c.h.b16 %v429
        %v2355 = vunpack.c.l.b16 %v430
        %v2356 = vunpack.c.h.b16 %v430
        %v2357 = vunpack.c.l.b16 %v431
        %v2358 = vunpack.c.h.b16 %v431
        %v2359 = vunpack.c.l.b16 %v432
        %v2360 = vunpack.c.h.b16 %v432
        %v2361 = vunpack.c.l.b16 %v433
        %v2362 = vunpack.c.h.b16 %v433
        %v2363 = vunpack.c.l.b16 %v434
        %v2364 = vunpack.c.h.b16 %v434
        %v2365 = vunpack.c.l.b16 %v435
        %v2366 = vunpack.c.h.b16 %v435
        %v2367 = vunpack.c.l.b16 %v436
        %v2368 = vunpack.c.h.b16 %v436
        %v2369 = vunpack.c.l.b16 %v437
        %v2370 = vunpack.c.h.b16 %v437
        %v2371 = vunpack.c.l.b16 %v438
        %v2372 = vunpack.c.h.b16 %v438
        %v2373 = vunpack.c.l.b16 %v439
        %v2374 = vunpack.c.h.b16 %v439
        %v2375 = vunpack.c.l.b16 %v440
        %v2376 = vunpack.c.h.b16 %v440
        %v2377 = vunpack.c.l.b16 %v441
        %v2378 = vunpack.c.h.b16 %v441
        %v2379 = vunpack.c.l.b16 %v442
        %v2380 = vunpack.c.h.b16 %v442
        %v2381 = vunpack.c.l.b16 %v443
        %v2382 = vunpack.c.h.b16 %v443
        %v2383 = vunpack.c.l.b16 %v444
        %v2384 = vunpack.c.h.b16 %v444
        %v2385 = vunpack.c.l.b16 %v445
        %v2386 = vunpack.c.h.b16 %v445
        %v2387 = vunpack.c.l.b16 %v446
        %v2388 = vunpack.c.h.b16 %v446
        %v2389 = vunpack.c.l.b16 %v447
        %v2390 = vunpack.c.h.b16 %v447
        %v2391 = vunpack.c.l.b16 %v448
        %v2392 = vunpack.c.h.b16 %v448
        %v2393 = vunpack.c.l.b16 %v449
        %v2394 = vunpack.c.h.b16 %v449
        %v2395 = vunpack.c.l.b16 %v450
        %v2396 = vunpack.c.h.b16 %v450
        %v2397 = vunpack.c.l.b16 %v451
        %v2398 = vunpack.c.h.b16 %v451
        %v2399 = vunpack.c.l.b16 %v452
        %v2400 = vunpack.c.h.b16 %v452
        %v2401 = vunpack.c.l.b16 %v453
        %v2402 = vunpack.c.h.b16 %v453
        %v2403 = vunpack.c.l.b16 %v454
        %v2404 = vunpack.c.h.b16 %v454
        %v2405 = vunpack.c.l.b16 %v455
        %v2406 = vunpack.c.h.b16 %v455
        %v2407 = vunpack.c.l.b16 %v456
        %v2408 = vunpack.c.h.b16 %v456
        %v2409 = vunpack.c.l.b16 %v457
        %v2410 = vunpack.c.h.b16 %v457
        %v2411 = vunpack.c.l.b16 %v458
        %v2412 = vunpack.c.h.b16 %v458
        %v2413 = vunpack.c.l.b16 %v459
        %v2414 = vunpack.c.h.b16 %v459
        %v2415 = vunpack.c.l.b16 %v460
        %v2416 = vunpack.c.h.b16 %v460
        %v2417 = vunpack.c.l.b16 %v461
        %v2418 = vunpack.c.h.b16 %v461
        %v2419 = vunpack.c.l.b16 %v462
        %v2420 = vunpack.c.h.b16 %v462
        %v2421 = vunpack.c.l.b16 %v463
        %v2422 = vunpack.c.h.b16 %v463
        %v2423 = vunpack.c.l.b16 %v464
        %v2424 = vunpack.c.h.b16 %v464
        %v2425 = vunpack.c.l.b16 %v465
        %v2426 = vunpack.c.h.b16 %v465
        %v2427 = vunpack.c.l.b16 %v466
        %v2428 = vunpack.c.h.b16 %v466
        %v2429 = vunpack.c.l.b16 %v467
        %v2430 = vunpack.c.h.b16 %v467
        %v2431 = vunpack.c.l.b16 %v468
        %v2432 = vunpack.c.h.b16 %v468
        %v2433 = vunpack.c.l.b16 %v469
        %v2434 = vunpack.c.h.b16 %v469
        %v2435 = vunpack.c.l.b16 %v470
        %v2436 = vunpack.c.h.b16 %v470
        %v2437 = vunpack.c.l.b16 %v471
        %v2438 = vunpack.c.h.b16 %v471
        %v2439 = vunpack.c.l.b16 %v472
        %v2440 = vunpack.c.h.b16 %v472
        %v2441 = vunpack.c.l.b16 %v473
        %v2442 = vunpack.c.h.b16 %v473
        %v2443 = vunpack.c.l.b16 %v474
        %v2444 = vunpack.c.h.b16 %v474
        %v2445 = vunpack.c.l.b16 %v475
        %v2446 = vunpack.c.h.b16 %v475
        %v2447 = vunpack.c.l.b16 %v476
        %v2448 = vunpack.c.h.b16 %v476
        %v2449 = vunpack.c.l.b16 %v477
        %v2450 = vunpack.c.h.b16 %v477
        %v2451 = vunpack.c.l.b16 %v478
        %v2452 = vunpack.c.h.b16 %v478
        %v2453 = vunpack.c.l.b16 %v479
        %v2454 = vunpack.c.h.b16 %v479
        %v2455 = vunpack.c.l.b16 %v480
        %v2456 = vunpack.c.h.b16 %v480
        %v2457 = vunpack.c.l.b16 %v481
        %v2458 = vunpack.c.h.b16 %v481
        %v2459 = vunpack.c.l.b16 %v482
        %v2460 = vunpack.c.h.b16 %v482
        %v2461 = vunpack.c.l.b16 %v483
        %v2462 = vunpack.c.h.b16 %v483
        %v2463 = vunpack.c.l.b16 %v484
        %v2464 = vunpack.c.h.b16 %v484
        %v2465 = vunpack.c.l.b16 %v485
        %v2466 = vunpack.c.h.b16 %v485
        %v2467 = vunpack.c.l.b16 %v486
        %v2468 = vunpack.c.h.b16 %v486
        %v2469 = vunpack.c.l.b16 %v487
        %v2470 = vunpack.c.h.b16 %v487
        %v2471 = vunpack.c.l.b16 %v488
        %v2472 = vunpack.c.h.b16 %v488
        %v2473 = vunpack.c.l.b16 %v489
        %v2474 = vunpack.c.h.b16 %v489
        %v2475 = vunpack.c.l.b16 %v490
        %v2476 = vunpack.c.h.b16 %v490
        %v2477 = vunpack.c.l.b16 %v491
        %v2478 = vunpack.c.h.b16 %v491
        %v2479 = vunpack.c.l.b16 %v492
        %v2480 = vunpack.c.h.b16 %v492
        %v2481 = vunpack.c.l.b16 %v493
        %v2482 = vunpack.c.h.b16 %v493
        %v2483 = vunpack.c.l.b16 %v494
        %v2484 = vunpack.c.h.b16 %v494
        %v2485 = vunpack.c.l.b16 %v495
        %v2486 = vunpack.c.h.b16 %v495
        %v2487 = vunpack.c.l.b16 %v496
        %v2488 = vunpack.c.h.b16 %v496
        %v2489 = vunpack.c.l.b16 %v497
        %v2490 = vunpack.c.h.b16 %v497
        %v2491 = vunpack.c.l.b16 %v498
        %v2492 = vunpack.c.h.b16 %v498
        %v2493 = vunpack.c.l.b16 %v499
        %v2494 = vunpack.c.h.b16 %v499
        %v2495 = vunpack.c.l.b16 %v500
        %v2496 = vunpack.c.h.b16 %v500
        %v2497 = vunpack.c.l.b16 %v501
        %v2498 = vunpack.c.h.b16 %v501
        %v2499 = vunpack.c.l.b16 %v502
        %v2500 = vunpack.c.h.b16 %v502
        %v2501 = vunpack.c.l.b16 %v503
        %v2502 = vunpack.c.h.b16 %v503
        %v2503 = vunpack.c.l.b16 %v504
        %v2504 = vunpack.c.h.b16 %v504
        %v2505 = vunpack.c.l.b16 %v505
        %v2506 = vunpack.c.h.b16 %v505
        %v2507 = vunpack.c.l.b16 %v506
        %v2508 = vunpack.c.h.b16 %v506
        %v2509 = vunpack.c.l.b16 %v507
        %v2510 = vunpack.c.h.b16 %v507
        %v2511 = vunpack.c.l.b16 %v508
        %v2512 = vunpack.c.h.b16 %v508
        %v2513 = vunpack.c.l.b16 %v509
        %v2514 = vunpack.c.h.b16 %v509
        %v2515 = vunpack.c.l.b16 %v510
        %v2516 = vunpack.c.h.b16 %v510
        %v2517 = vunpack.c.l.b16 %v511
        %v2518 = vunpack.c.h.b16 %v511
        %v2519 = vunpack.c.l.b16 %v512
        %v2520 = vunpack.c.h.b16 %v512
        %v2521 = vunpack.c.l.b16 %v513
        %v2522 = vunpack.c.h.b16 %v513
        %v2523 = vunpack.c.l.b16 %v514
        %v2524 = vunpack.c.h.b16 %v514
        %v2525 = vunpack.c.l.b16 %v515
        %v2526 = vunpack.c.h.b16 %v515
        %v2527 = vunpack.c.l.b16 %v516
        %v2528 = vunpack.c.h.b16 %v516
        %v2529 = vunpack.c.l.b16 %v517
        %v2530 = vunpack.c.h.b16 %v517
        %v2531 = vunpack.c.l.b16 %v518
        %v2532 = vunpack.c.h.b16 %v518
        %v2533 = vunpack.c.l.b16 %v519
        %v2534 = vunpack.c.h.b16 %v519
        %v2535 = vunpack.c.l.b16 %v520
        %v2536 = vunpack.c.h.b16 %v520
        %v2537 = vunpack.c.l.b16 %v521
        %v2538 = vunpack.c.h.b16 %v521
        %v2539 = vunpack.c.l.b16 %v522
        %v2540 = vunpack.c.h.b16 %v522
        %v2541 = vunpack.c.l.b16 %v523
        %v2542 = vunpack.c.h.b16 %v523
        %v2543 = vunpack.c.l.b16 %v524
        %v2544 = vunpack.c.h.b16 %v524
        %v2545 = vunpack.c.l.b16 %v525
        %v2546 = vunpack.c.h.b16 %v525
        %v2547 = vunpack.c.l.b16 %v526
        %v2548 = vunpack.c.h.b16 %v526
        %v2549 = vunpack.c.l.b16 %v527
        %v2550 = vunpack.c.h.b16 %v527
        %v2551 = vunpack.c.l.b16 %v528
        %v2552 = vunpack.c.h.b16 %v528
        %v2553 = vunpack.c.l.b16 %v529
        %v2554 = vunpack.c.h.b16 %v529
        %v2555 = vunpack.c.l.b16 %v530
        %v2556 = vunpack.c.h.b16 %v530
        %v2557 = vunpack.c.l.b16 %v531
        %v2558 = vunpack.c.h.b16 %v531
        %v2559 = vunpack.c.l.b16 %v532
        %v2560 = vunpack.c.h.b16 %v532
        %v2561 = vunpack.c.l.b16 %v533
        %v2562 = vunpack.c.h.b16 %v533
        %v2563 = vunpack.c.l.b16 %v534
        %v2564 = vunpack.c.h.b16 %v534
        %v2565 = vunpack.c.l.b16 %v535
        %v2566 = vunpack.c.h.b16 %v535
        %v2567 = vunpack.c.l.b16 %v536
        %v2568 = vunpack.c.h.b16 %v536
        %v2569 = vunpack.c.l.b16 %v537
        %v2570 = vunpack.c.h.b16 %v537
        %v2571 = vunpack.c.l.b16 %v538
        %v2572 = vunpack.c.h.b16 %v538
        %v2573 = vunpack.c.l.b16 %v539
        %v2574 = vunpack.c.h.b16 %v539
        %v2575 = vunpack.c.l.b16 %v540
        %v2576 = vunpack.c.h.b16 %v540
        %v2577 = vunpack.c.l.b16 %v541
        %v2578 = vunpack.c.h.b16 %v541
        %v2579 = vunpack.c.l.b16 %v542
        %v2580 = vunpack.c.h.b16 %v542
        %v2581 = vunpack.c.l.b16 %v543
        %v2582 = vunpack.c.h.b16 %v543
        %v2583 = vunpack.c.l.b16 %v544
        %v2584 = vunpack.c.h.b16 %v544
        %v2585 = vunpack.c.l.b16 %v545
        %v2586 = vunpack.c.h.b16 %v545
        %v2587 = vunpack.c.l.b16 %v546
        %v2588 = vunpack.c.h.b16 %v546
        %v2589 = vunpack.c.l.b16 %v547
        %v2590 = vunpack.c.h.b16 %v547
        %v2591 = vunpack.c.l.b16 %v548
        %v2592 = vunpack.c.h.b16 %v548
        %v2593 = vunpack.c.l.b16 %v549
        %v2594 = vunpack.c.h.b16 %v549
        %v2595 = vunpack.c.l.b16 %v550
        %v2596 = vunpack.c.h.b16 %v550
        %v2597 = vunpack.c.l.b16 %v551
        %v2598 = vunpack.c.h.b16 %v551
        %v2599 = vunpack.c.l.b16 %v552
        %v2600 = vunpack.c.h.b16 %v552
        %v2601 = vunpack.c.l.b16 %v553
        %v2602 = vunpack.c.h.b16 %v553
        %v2603 = vunpack.c.l.b16 %v554
        %v2604 = vunpack.c.h.b16 %v554
        %v2605 = vunpack.c.l.b16 %v555
        %v2606 = vunpack.c.h.b16 %v555
        %v2607 = vunpack.c.l.b16 %v556
        %v2608 = vunpack.c.h.b16 %v556
        %v2609 = vunpack.c.l.b16 %v557
        %v2610 = vunpack.c.h.b16 %v557
        %v2611 = vunpack.c.l.b16 %v558
        %v2612 = vunpack.c.h.b16 %v558
        %v2613 = vunpack.c.l.b16 %v559
        %v2614 = vunpack.c.h.b16 %v559
        %v2615 = vunpack.c.l.b16 %v560
        %v2616 = vunpack.c.h.b16 %v560
        %v2617 = vunpack.c.l.b16 %v561
        %v2618 = vunpack.c.h.b16 %v561
        %v2619 = vunpack.c.l.b16 %v562
        %v2620 = vunpack.c.h.b16 %v562
        %v2621 = vunpack.c.l.b16 %v563
        %v2622 = vunpack.c.h.b16 %v563
        %v2623 = vunpack.c.l.b16 %v564
        %v2624 = vunpack.c.h.b16 %v564
        %v2625 = vunpack.c.l.b16 %v565
        %v2626 = vunpack.c.h.b16 %v565
        %v2627 = vunpack.c.l.b16 %v566
        %v2628 = vunpack.c.h.b16 %v566
        %v2629 = vunpack.c.l.b16 %v567
        %v2630 = vunpack.c.h.b16 %v567
        %v2631 = vunpack.c.l.b16 %v568
        %v2632 = vunpack.c.h.b16 %v568
        %v2633 = vunpack.c.l.b16 %v569
        %v2634 = vunpack.c.h.b16 %v569
        %v2635 = vunpack.c.l.b16 %v570
        %v2636 = vunpack.c.h.b16 %v570
        %v2637 = vunpack.c.l.b16 %v571
        %v2638 = vunpack.c.h.b16 %v571
        %v2639 = vunpack.c.l.b16 %v572
        %v2640 = vunpack.c.h.b16 %v572
        %v2641 = vunpack.c.l.b16 %v573
        %v2642 = vunpack.c.h.b16 %v573
        %v2643 = vunpack.c.l.b16 %v574
        %v2644 = vunpack.c.h.b16 %v574
        %v2645 = vunpack.c.l.b16 %v575
        %v2646 = vunpack.c.h.b16 %v575
        %v2647 = vunpack.c.l.b16 %v576
        %v2648 = vunpack.c.h.b16 %v576
        %v2649 = vunpack.c.l.b16 %v577
        %v2650 = vunpack.c.h.b16 %v577
        %v2651 = vunpack.c.l.b16 %v578
        %v2652 = vunpack.c.h.b16 %v578
        %v2653 = vunpack.c.l.b16 %v579
        %v2654 = vunpack.c.h.b16 %v579
        %v2655 = vunpack.c.l.b16 %v580
        %v2656 = vunpack.c.h.b16 %v580
        %v2657 = vunpack.c.l.b16 %v581
        %v2658 = vunpack.c.h.b16 %v581
        %v2659 = vunpack.c.l.b16 %v582
        %v2660 = vunpack.c.h.b16 %v582
        %v2661 = vunpack.c.l.b16 %v583
        %v2662 = vunpack.c.h.b16 %v583
        %v2663 = vunpack.c.l.b16 %v584
        %v2664 = vunpack.c.h.b16 %v584
        %v2665 = vunpack.c.l.b16 %v585
        %v2666 = vunpack.c.h.b16 %v585
        %v2667 = vunpack.c.l.b16 %v586
        %v2668 = vunpack.c.h.b16 %v586
        %v2669 = vunpack.c.l.b16 %v587
        %v2670 = vunpack.c.h.b16 %v587
        %v2671 = vunpack.c.l.b16 %v588
        %v2672 = vunpack.c.h.b16 %v588
        %v2673 = vunpack.c.l.b16 %v589
        %v2674 = vunpack.c.h.b16 %v589
        %v2675 = vunpack.c.l.b16 %v590
        %v2676 = vunpack.c.h.b16 %v590
        %v2677 = vunpack.c.l.b16 %v591
        %v2678 = vunpack.c.h.b16 %v591
        %v2679 = vunpack.c.l.b16 %v592
        %v2680 = vunpack.c.h.b16 %v592
        %v2681 = vunpack.c.l.b16 %v593
        %v2682 = vunpack.c.h.b16 %v593
        %v2683 = vunpack.c.l.b16 %v594
        %v2684 = vunpack.c.h.b16 %v594
        %v2685 = vunpack.c.l.b16 %v595
        %v2686 = vunpack.c.h.b16 %v595
        %v2687 = vunpack.c.l.b16 %v596
        %v2688 = vunpack.c.h.b16 %v596
        %v2689 = vunpack.c.l.b16 %v597
        %v2690 = vunpack.c.h.b16 %v597
        %v2691 = vunpack.c.l.b16 %v598
        %v2692 = vunpack.c.h.b16 %v598
        %v2693 = vunpack.c.l.b16 %v599
        %v2694 = vunpack.c.h.b16 %v599
        %v2695 = vunpack.c.l.b16 %v600
        %v2696 = vunpack.c.h.b16 %v600
        %v2697 = vunpack.c.l.b16 %v601
        %v2698 = vunpack.c.h.b16 %v601
        %v2699 = vunpack.c.l.b16 %v602
        %v2700 = vunpack.c.h.b16 %v602
        %v2701 = vunpack.c.l.b16 %v603
        %v2702 = vunpack.c.h.b16 %v603
        %v2703 = vunpack.c.l.b16 %v604
        %v2704 = vunpack.c.h.b16 %v604
        %v2705 = vunpack.c.l.b16 %v605
        %v2706 = vunpack.c.h.b16 %v605
        %v2707 = vunpack.c.l.b16 %v606
        %v2708 = vunpack.c.h.b16 %v606
        %v2709 = vunpack.c.l.b16 %v607
        %v2710 = vunpack.c.h.b16 %v607
        %v2711 = vunpack.c.l.b16 %v608
        %v2712 = vunpack.c.h.b16 %v608
        %v2713 = vunpack.c.l.b16 %v609
        %v2714 = vunpack.c.h.b16 %v609
        %v2715 = vunpack.c.l.b16 %v610
        %v2716 = vunpack.c.h.b16 %v610
        %v2717 = vunpack.c.l.b16 %v611
        %v2718 = vunpack.c.h.b16 %v611
        %v2719 = vunpack.c.l.b16 %v612
        %v2720 = vunpack.c.h.b16 %v612
        %v2721 = vunpack.c.l.b16 %v613
        %v2722 = vunpack.c.h.b16 %v613
        %v2723 = vunpack.c.l.b16 %v614
        %v2724 = vunpack.c.h.b16 %v614
        %v2725 = vunpack.c.l.b16 %v615
        %v2726 = vunpack.c.h.b16 %v615
        %v2727 = vunpack.c.l.b16 %v616
        %v2728 = vunpack.c.h.b16 %v616
        %v2729 = vunpack.c.l.b16 %v617
        %v2730 = vunpack.c.h.b16 %v617
        %v2731 = vunpack.c.l.b16 %v618
        %v2732 = vunpack.c.h.b16 %v618
        %v2733 = vunpack.c.l.b16 %v619
        %v2734 = vunpack.c.h.b16 %v619
        %v2735 = vunpack.c.l.b16 %v620
        %v2736 = vunpack.c.h.b16 %v620
        %v2737 = vunpack.c.l.b16 %v621
        %v2738 = vunpack.c.h.b16 %v621
        %v2739 = vunpack.c.l.b16 %v622
        %v2740 = vunpack.c.h.b16 %v622
        %v2741 = vunpack.c.l.b16 %v623
        %v2742 = vunpack.c.h.b16 %v623
        %v2743 = vunpack.c.l.b16 %v624
        %v2744 = vunpack.c.h.b16 %v624
        %v2745 = vunpack.c.l.b16 %v625
        %v2746 = vunpack.c.h.b16 %v625
        %v2747 = vunpack.c.l.b16 %v626
        %v2748 = vunpack.c.h.b16 %v626
        %v2749 = vunpack.c.l.b16 %v627
        %v2750 = vunpack.c.h.b16 %v627
        %v2751 = vunpack.c.l.b16 %v628
        %v2752 = vunpack.c.h.b16 %v628
        %v2753 = vunpack.c.l.b16 %v629
        %v2754 = vunpack.c.h.b16 %v629
        %v2755 = vunpack.c.l.b16 %v630
        %v2756 = vunpack.c.h.b16 %v630
        %v2757 = vunpack.c.l.b16 %v631
        %v2758 = vunpack.c.h.b16 %v631
        %v2759 = vunpack.c.l.b16 %v632
        %v2760 = vunpack.c.h.b16 %v632
        %v2761 = vunpack.c.l.b16 %v633
        %v2762 = vunpack.c.h.b16 %v633
        %v2763 = vunpack.c.l.b16 %v634
        %v2764 = vunpack.c.h.b16 %v634
        %v2765 = vunpack.c.l.b16 %v635
        %v2766 = vunpack.c.h.b16 %v635
        %v2767 = vunpack.c.l.b16 %v636
        %v2768 = vunpack.c.h.b16 %v636
        %v2769 = vunpack.c.l.b16 %v637
        %v2770 = vunpack.c.h.b16 %v637
        %v2771 = vunpack.c.l.b16 %v638
        %v2772 = vunpack.c.h.b16 %v638
        %v2773 = vunpack.c.l.b16 %v639
        %v2774 = vunpack.c.h.b16 %v639
        %v2775 = vunpack.c.l.b16 %v640
        %v2776 = vunpack.c.h.b16 %v640
        %v2777 = vunpack.c.l.b16 %v641
        %v2778 = vunpack.c.h.b16 %v641
        %v2779 = vunpack.c.l.b16 %v642
        %v2780 = vunpack.c.h.b16 %v642
        %v2781 = vunpack.c.l.b16 %v643
        %v2782 = vunpack.c.h.b16 %v643
        %v2783 = vunpack.c.l.b16 %v644
        %v2784 = vunpack.c.h.b16 %v644
        %v2785 = vunpack.c.l.b16 %v645
        %v2786 = vunpack.c.h.b16 %v645
        %v2787 = vunpack.c.l.b16 %v646
        %v2788 = vunpack.c.h.b16 %v646
        %v2789 = vunpack.c.l.b16 %v647
        %v2790 = vunpack.c.h.b16 %v647
        %v2791 = vunpack.c.l.b16 %v648
        %v2792 = vunpack.c.h.b16 %v648
        %v2793 = vunpack.c.l.b16 %v649
        %v2794 = vunpack.c.h.b16 %v649
        %v2795 = vunpack.c.l.b16 %v650
        %v2796 = vunpack.c.h.b16 %v650
        %v2797 = vunpack.c.l.b16 %v651
        %v2798 = vunpack.c.h.b16 %v651
        %v2799 = vunpack.c.l.b16 %v652
        %v2800 = vunpack.c.h.b16 %v652
        %v2801 = vunpack.c.l.b16 %v653
        %v2802 = vunpack.c.h.b16 %v653
        %v2803 = vunpack.c.l.b16 %v654
        %v2804 = vunpack.c.h.b16 %v654
        %v2805 = vunpack.c.l.b16 %v655
        %v2806 = vunpack.c.h.b16 %v655
        %v2807 = vunpack.c.l.b16 %v656
        %v2808 = vunpack.c.h.b16 %v656
        %v2809 = vunpack.c.l.b16 %v657
        %v2810 = vunpack.c.h.b16 %v657
        %v2811 = vunpack.c.l.b16 %v658
        %v2812 = vunpack.c.h.b16 %v658
        %v2813 = vunpack.c.l.b16 %v659
        %v2814 = vunpack.c.h.b16 %v659
        %v2815 = vunpack.c.l.b16 %v660
        %v2816 = vunpack.c.h.b16 %v660
        %v2817 = vunpack.c.l.b16 %v661
        %v2818 = vunpack.c.h.b16 %v661
        %v2819 = vunpack.c.l.b16 %v662
        %v2820 = vunpack.c.h.b16 %v662
        %v2821 = vunpack.c.l.b16 %v663
        %v2822 = vunpack.c.h.b16 %v663
        %v2823 = vunpack.c.l.b16 %v664
        %v2824 = vunpack.c.h.b16 %v664
        %v2825 = vunpack.c.l.b16 %v665
        %v2826 = vunpack.c.h.b16 %v665
        %v2827 = vunpack.c.l.b16 %v666
        %v2828 = vunpack.c.h.b16 %v666
        %v2829 = vunpack.c.l.b16 %v667
        %v2830 = vunpack.c.h.b16 %v667
        %v2831 = vunpack.c.l.b16 %v668
        %v2832 = vunpack.c.h.b16 %v668
        %v2833 = vunpack.c.l.b16 %v669
        %v2834 = vunpack.c.h.b16 %v669
        %v2835 = vunpack.c.l.b16 %v670
        %v2836 = vunpack.c.h.b16 %v670
        %v2837 = vunpack.c.l.b16 %v671
        %v2838 = vunpack.c.h.b16 %v671
        %v2839 = vunpack.c.l.b16 %v672
        %v2840 = vunpack.c.h.b16 %v672
        %v2841 = vunpack.c.l.b16 %v673
        %v2842 = vunpack.c.h.b16 %v673
        %v2843 = vunpack.c.l.b16 %v674
        %v2844 = vunpack.c.h.b16 %v674
        %v2845 = vunpack.c.l.b16 %v675
        %v2846 = vunpack.c.h.b16 %v675
        %v2847 = vunpack.c.l.b16 %v676
        %v2848 = vunpack.c.h.b16 %v676
        %v2849 = vunpack.c.l.b16 %v677
        %v2850 = vunpack.c.h.b16 %v677
        %v2851 = vunpack.c.l.b16 %v678
        %v2852 = vunpack.c.h.b16 %v678
        %v2853 = vunpack.c.l.b16 %v679
        %v2854 = vunpack.c.h.b16 %v679
        %v2855 = vunpack.c.l.b16 %v680
        %v2856 = vunpack.c.h.b16 %v680
        %v2857 = vunpack.c.l.b16 %v681
        %v2858 = vunpack.c.h.b16 %v681
        %v2859 = vunpack.c.l.b16 %v682
        %v2860 = vunpack.c.h.b16 %v682
        %v2861 = vunpack.c.l.b16 %v683
        %v2862 = vunpack.c.h.b16 %v683
        %v2863 = vunpack.c.l.b16 %v684
        %v2864 = vunpack.c.h.b16 %v684
        %v2865 = vunpack.c.l.b16 %v685
        %v2866 = vunpack.c.h.b16 %v685
        %v2867 = vunpack.c.l.b16 %v686
        %v2868 = vunpack.c.h.b16 %v686
        %v2869 = vunpack.c.l.b16 %v687
        %v2870 = vunpack.c.h.b16 %v687
        %v2871 = vunpack.c.l.b16 %v688
        %v2872 = vunpack.c.h.b16 %v688
        %v2873 = vunpack.c.l.b16 %v689
        %v2874 = vunpack.c.h.b16 %v689
        %v2875 = vunpack.c.l.b16 %v690
        %v2876 = vunpack.c.h.b16 %v690
        %v2877 = vunpack.c.l.b16 %v691
        %v2878 = vunpack.c.h.b16 %v691
        %v2879 = vunpack.c.l.b16 %v692
        %v2880 = vunpack.c.h.b16 %v692
        %v2881 = vunpack.c.l.b16 %v693
        %v2882 = vunpack.c.h.b16 %v693
        %v2883 = vunpack.c.l.b16 %v694
        %v2884 = vunpack.c.h.b16 %v694
        %v2885 = vunpack.c.l.b16 %v695
        %v2886 = vunpack.c.h.b16 %v695
        %v2887 = vunpack.c.l.b16 %v696
        %v2888 = vunpack.c.h.b16 %v696
        %v2889 = vunpack.c.l.b16 %v697
        %v2890 = vunpack.c.h.b16 %v697
        %v2891 = vunpack.c.l.b16 %v698
        %v2892 = vunpack.c.h.b16 %v698
        %v2893 = vunpack.c.l.b16 %v699
        %v2894 = vunpack.c.h.b16 %v699
        %v2895 = vunpack.c.l.b16 %v700
        %v2896 = vunpack.c.h.b16 %v700
        %v2897 = vunpack.c.l.b16 %v701
        %v2898 = vunpack.c.h.b16 %v701
        %v2899 = vunpack.c.l.b16 %v702
        %v2900 = vunpack.c.h.b16 %v702
        %v2901 = vunpack.c.l.b16 %v703
        %v2902 = vunpack.c.h.b16 %v703
        %v2903 = vunpack.c.l.b16 %v704
        %v2904 = vunpack.c.h.b16 %v704
        %v2905 = vunpack.c.l.b16 %v705
        %v2906 = vunpack.c.h.b16 %v705
        %v2907 = vunpack.c.l.b16 %v706
        %v2908 = vunpack.c.h.b16 %v706
        %v2909 = vunpack.c.l.b16 %v707
        %v2910 = vunpack.c.h.b16 %v707
        %v2911 = vunpack.c.l.b16 %v708
        %v2912 = vunpack.c.h.b16 %v708
        %v2913 = vunpack.c.l.b16 %v709
        %v2914 = vunpack.c.h.b16 %v709
        %v2915 = vunpack.c.l.b16 %v710
        %v2916 = vunpack.c.h.b16 %v710
        %v2917 = vunpack.c.l.b16 %v711
        %v2918 = vunpack.c.h.b16 %v711
        %v2919 = vunpack.c.l.b16 %v712
        %v2920 = vunpack.c.h.b16 %v712
        %v2921 = vunpack.c.l.b16 %v713
        %v2922 = vunpack.c.h.b16 %v713
        %v2923 = vunpack.c.l.b16 %v714
        %v2924 = vunpack.c.h.b16 %v714
        %v2925 = vunpack.c.l.b16 %v715
        %v2926 = vunpack.c.h.b16 %v715
        %v2927 = vunpack.c.l.b16 %v716
        %v2928 = vunpack.c.h.b16 %v716
        %v2929 = vunpack.c.l.b16 %v717
        %v2930 = vunpack.c.h.b16 %v717
        %v2931 = vunpack.c.l.b16 %v718
        %v2932 = vunpack.c.h.b16 %v718
        %v2933 = vunpack.c.l.b16 %v719
        %v2934 = vunpack.c.h.b16 %v719
        %v2935 = vunpack.c.l.b16 %v720
        %v2936 = vunpack.c.h.b16 %v720
        %v2937 = vunpack.c.l.b16 %v721
        %v2938 = vunpack.c.h.b16 %v721
        %v2939 = vunpack.c.l.b16 %v722
        %v2940 = vunpack.c.h.b16 %v722
        %v2941 = vunpack.c.l.b16 %v723
        %v2942 = vunpack.c.h.b16 %v723
        %v2943 = vunpack.c.l.b16 %v724
        %v2944 = vunpack.c.h.b16 %v724
        %v2945 = vunpack.c.l.b16 %v725
        %v2946 = vunpack.c.h.b16 %v725
        %v2947 = vunpack.c.l.b16 %v726
        %v2948 = vunpack.c.h.b16 %v726
        %v2949 = vunpack.c.l.b16 %v727
        %v2950 = vunpack.c.h.b16 %v727
        %v2951 = vunpack.c.l.b16 %v728
        %v2952 = vunpack.c.h.b16 %v728
        %v2953 = vunpack.c.l.b16 %v729
        %v2954 = vunpack.c.h.b16 %v729
        %v2955 = vunpack.c.l.b16 %v730
        %v2956 = vunpack.c.h.b16 %v730
        %v2957 = vunpack.c.l.b16 %v731
        %v2958 = vunpack.c.h.b16 %v731
        %v2959 = vunpack.c.l.b16 %v732
        %v2960 = vunpack.c.h.b16 %v732
        %v2961 = vunpack.c.l.b16 %v733
        %v2962 = vunpack.c.h.b16 %v733
        %v2963 = vunpack.c.l.b16 %v734
        %v2964 = vunpack.c.h.b16 %v734
        %v2965 = vunpack.c.l.b16 %v735
        %v2966 = vunpack.c.h.b16 %v735
        %v2967 = vunpack.c.l.b16 %v736
        %v2968 = vunpack.c.h.b16 %v736
        %v2969 = vunpack.c.l.b16 %v737
        %v2970 = vunpack.c.h.b16 %v737
        %v2971 = vunpack.c.l.b16 %v738
        %v2972 = vunpack.c.h.b16 %v738
        %v2973 = vunpack.c.l.b16 %v739
        %v2974 = vunpack.c.h.b16 %v739
        %v2975 = vunpack.c.l.b16 %v740
        %v2976 = vunpack.c.h.b16 %v740
        %v2977 = vunpack.c.l.b16 %v741
        %v2978 = vunpack.c.h.b16 %v741
        %v2979 = vunpack.c.l.b16 %v742
        %v2980 = vunpack.c.h.b16 %v742
        %v2981 = vunpack.c.l.b16 %v743
        %v2982 = vunpack.c.h.b16 %v743
        %v2983 = vunpack.c.l.b16 %v744
        %v2984 = vunpack.c.h.b16 %v744
        %v2985 = vunpack.c.l.b16 %v745
        %v2986 = vunpack.c.h.b16 %v745
        %v2987 = vunpack.c.l.b16 %v746
        %v2988 = vunpack.c.h.b16 %v746
        %v2989 = vunpack.c.l.b16 %v747
        %v2990 = vunpack.c.h.b16 %v747
        %v2991 = vunpack.c.l.b16 %v748
        %v2992 = vunpack.c.h.b16 %v748
        %v2993 = vunpack.c.l.b16 %v749
        %v2994 = vunpack.c.h.b16 %v749
        %v2995 = vunpack.c.l.b16 %v750
        %v2996 = vunpack.c.h.b16 %v750
        %v2997 = vunpack.c.l.b16 %v751
        %v2998 = vunpack.c.h.b16 %v751
        %v2999 = vunpack.c.l.b16 %v752
        %v3000 = vunpack.c.h.b16 %v752
        %v3001 = vunpack.c.l.b16 %v753
        %v3002 = vunpack.c.h.b16 %v753
        %v3003 = vunpack.c.l.b16 %v754
        %v3004 = vunpack.c.h.b16 %v754
        %v3005 = vunpack.c.l.b16 %v755
        %v3006 = vunpack.c.h.b16 %v755
        %v3007 = vunpack.c.l.b16 %v756
        %v3008 = vunpack.c.h.b16 %v756
        %v3009 = vunpack.c.l.b16 %v757
        %v3010 = vunpack.c.h.b16 %v757
        %v3011 = vunpack.c.l.b16 %v758
        %v3012 = vunpack.c.h.b16 %v758
        %v3013 = vunpack.c.l.b16 %v759
        %v3014 = vunpack.c.h.b16 %v759
        %v3015 = vunpack.c.l.b16 %v760
        %v3016 = vunpack.c.h.b16 %v760
        %v3017 = vunpack.c.l.b16 %v761
        %v3018 = vunpack.c.h.b16 %v761
        %v3019 = vunpack.c.l.b16 %v762
        %v3020 = vunpack.c.h.b16 %v762
        %v3021 = vunpack.c.l.b16 %v763
        %v3022 = vunpack.c.h.b16 %v763
        %v3023 = vunpack.c.l.b16 %v764
        %v3024 = vunpack.c.h.b16 %v764
        %v3025 = vunpack.c.l.b16 %v765
        %v3026 = vunpack.c.h.b16 %v765
        %v3027 = vunpack.c.l.b16 %v766
        %v3028 = vunpack.c.h.b16 %v766
        %v3029 = vunpack.c.l.b16 %v767
        %v3030 = vunpack.c.h.b16 %v767
        %v3031 = vunpack.c.l.b16 %v768
        %v3032 = vunpack.c.h.b16 %v768
        %v3033 = vunpack.c.l.b16 %v769
        %v3034 = vunpack.c.h.b16 %v769
        %v3035 = vunpack.c.l.b16 %v770
        %v3036 = vunpack.c.h.b16 %v770
        %v3037 = vunpack.c.l.b16 %v771
        %v3038 = vunpack.c.h.b16 %v771
        %v3039 = vunpack.c.l.b16 %v772
        %v3040 = vunpack.c.h.b16 %v772
        %v3041 = vunpack.c.l.b16 %v773
        %v3042 = vunpack.c.h.b16 %v773
        %v3043 = vunpack.c.l.b16 %v774
        %v3044 = vunpack.c.h.b16 %v774
        %v3045 = vunpack.c.l.b16 %v775
        %v3046 = vunpack.c.h.b16 %v775
        %v3047 = vunpack.c.l.b16 %v776
        %v3048 = vunpack.c.h.b16 %v776
        %v3049 = vunpack.c.l.b16 %v777
        %v3050 = vunpack.c.h.b16 %v777
        %v3051 = vunpack.c.l.b16 %v778
        %v3052 = vunpack.c.h.b16 %v778
        %v3053 = vunpack.c.l.b16 %v779
        %v3054 = vunpack.c.h.b16 %v779
        %v3055 = vunpack.c.l.b16 %v780
        %v3056 = vunpack.c.h.b16 %v780
        %v3057 = vunpack.c.l.b16 %v781
        %v3058 = vunpack.c.h.b16 %v781
        %v3059 = vunpack.c.l.b16 %v782
        %v3060 = vunpack.c.h.b16 %v782
        %v3061 = vunpack.c.l.b16 %v783
        %v3062 = vunpack.c.h.b16 %v783
        %v3063 = vunpack.c.l.b16 %v784
        %v3064 = vunpack.c.h.b16 %v784
        %v3065 = vunpack.c.l.b16 %v785
        %v3066 = vunpack.c.h.b16 %v785
        %v3067 = vunpack.c.l.b16 %v786
        %v3068 = vunpack.c.h.b16 %v786
        %v3069 = vunpack.c.l.b16 %v787
        %v3070 = vunpack.c.h.b16 %v787
        %v3071 = vunpack.c.l.b16 %v788
        %v3072 = vunpack.c.h.b16 %v788
        %v3073 = vunpack.c.l.b16 %v789
        %v3074 = vunpack.c.h.b16 %v789
        %v3075 = vunpack.c.l.b16 %v790
        %v3076 = vunpack.c.h.b16 %v790
        %v3077 = vunpack.c.l.b16 %v791
        %v3078 = vunpack.c.h.b16 %v791
        %v3079 = vunpack.c.l.b16 %v792
        %v3080 = vunpack.c.h.b16 %v792
        %v3081 = vunpack.c.l.b16 %v793
        %v3082 = vunpack.c.h.b16 %v793
        %v3083 = vunpack.c.l.b16 %v794
        %v3084 = vunpack.c.h.b16 %v794
        %v3085 = vunpack.c.l.b16 %v795
        %v3086 = vunpack.c.h.b16 %v795
        %v3087 = vunpack.c.l.b16 %v796
        %v3088 = vunpack.c.h.b16 %v796
        %v3089 = vunpack.c.l.b16 %v797
        %v3090 = vunpack.c.h.b16 %v797
        %v3091 = vunpack.c.l.b16 %v798
        %v3092 = vunpack.c.h.b16 %v798
        %v3093 = vunpack.c.l.b16 %v799
        %v3094 = vunpack.c.h.b16 %v799
        %v3095 = vunpack.c.l.b16 %v800
        %v3096 = vunpack.c.h.b16 %v800
        %v3097 = vunpack.c.l.b16 %v801
        %v3098 = vunpack.c.h.b16 %v801
        %v3099 = vunpack.c.l.b16 %v802
        %v3100 = vunpack.c.h.b16 %v802
        %v3101 = vunpack.c.l.b16 %v803
        %v3102 = vunpack.c.h.b16 %v803
        %v3103 = vunpack.c.l.b16 %v804
        %v3104 = vunpack.c.h.b16 %v804
        %v3105 = vunpack.c.l.b16 %v805
        %v3106 = vunpack.c.h.b16 %v805
        %v3107 = vunpack.c.l.b16 %v806
        %v3108 = vunpack.c.h.b16 %v806
        %v3109 = vunpack.c.l.b16 %v807
        %v3110 = vunpack.c.h.b16 %v807
        %v3111 = vunpack.c.l.b16 %v808
        %v3112 = vunpack.c.h.b16 %v808
        %v3113 = vunpack.c.l.b16 %v809
        %v3114 = vunpack.c.h.b16 %v809
        %v3115 = vunpack.c.l.b16 %v810
        %v3116 = vunpack.c.h.b16 %v810
        %v3117 = vunpack.c.l.b16 %v811
        %v3118 = vunpack.c.h.b16 %v811
        %v3119 = vunpack.c.l.b16 %v812
        %v3120 = vunpack.c.h.b16 %v812
        %v3121 = vunpack.c.l.b16 %v813
        %v3122 = vunpack.c.h.b16 %v813
        %v3123 = vunpack.c.l.b16 %v814
        %v3124 = vunpack.c.h.b16 %v814
        %v3125 = vunpack.c.l.b16 %v815
        %v3126 = vunpack.c.h.b16 %v815
        %v3127 = vunpack.c.l.b16 %v816
        %v3128 = vunpack.c.h.b16 %v816
        %v3129 = vunpack.c.l.b16 %v817
        %v3130 = vunpack.c.h.b16 %v817
        %v3131 = vunpack.c.l.b16 %v818
        %v3132 = vunpack.c.h.b16 %v818
        %v3133 = vunpack.c.l.b16 %v819
        %v3134 = vunpack.c.h.b16 %v819
        %v3135 = vunpack.c.l.b16 %v820
        %v3136 = vunpack.c.h.b16 %v820
        %v3137 = vunpack.c.l.b16 %v821
        %v3138 = vunpack.c.h.b16 %v821
        %v3139 = vunpack.c.l.b16 %v822
        %v3140 = vunpack.c.h.b16 %v822
        %v3141 = vunpack.c.l.b16 %v823
        %v3142 = vunpack.c.h.b16 %v823
        %v3143 = vunpack.c.l.b16 %v824
        %v3144 = vunpack.c.h.b16 %v824
        %v3145 = vunpack.c.l.b16 %v825
        %v3146 = vunpack.c.h.b16 %v825
        %v3147 = vunpack.c.l.b16 %v826
        %v3148 = vunpack.c.h.b16 %v826
        %v3149 = vunpack.c.l.b16 %v827
        %v3150 = vunpack.c.h.b16 %v827
        %v3151 = vunpack.c.l.b16 %v828
        %v3152 = vunpack.c.h.b16 %v828
        %v3153 = vunpack.c.l.b16 %v829
        %v3154 = vunpack.c.h.b16 %v829
        %v3155 = vunpack.c.l.b16 %v830
        %v3156 = vunpack.c.h.b16 %v830
        %v3157 = vunpack.c.l.b16 %v831
        %v3158 = vunpack.c.h.b16 %v831
        %v3159 = vunpack.c.l.b16 %v832
        %v3160 = vunpack.c.h.b16 %v832
        %v3161 = vunpack.c.l.b16 %v833
        %v3162 = vunpack.c.h.b16 %v833
        %v3163 = vunpack.c.l.b16 %v834
        %v3164 = vunpack.c.h.b16 %v834
        %v3165 = vunpack.c.l.b16 %v835
        %v3166 = vunpack.c.h.b16 %v835
        %v3167 = vunpack.c.l.b16 %v836
        %v3168 = vunpack.c.h.b16 %v836
        %v3169 = vunpack.c.l.b16 %v837
        %v3170 = vunpack.c.h.b16 %v837
        %v3171 = vunpack.c.l.b16 %v838
        %v3172 = vunpack.c.h.b16 %v838
        %v3173 = vunpack.c.l.b16 %v839
        %v3174 = vunpack.c.h.b16 %v839
        %v3175 = vunpack.c.l.b16 %v840
        %v3176 = vunpack.c.h.b16 %v840
        %v3177 = vunpack.c.l.b16 %v841
        %v3178 = vunpack.c.h.b16 %v841
        %v3179 = vunpack.c.l.b16 %v842
        %v3180 = vunpack.c.h.b16 %v842
        %v3181 = vunpack.c.l.b16 %v843
        %v3182 = vunpack.c.h.b16 %v843
        %v3183 = vunpack.c.l.b16 %v844
        %v3184 = vunpack.c.h.b16 %v844
        %v3185 = vunpack.c.l.b16 %v845
        %v3186 = vunpack.c.h.b16 %v845
        %v3187 = vunpack.c.l.b16 %v846
        %v3188 = vunpack.c.h.b16 %v846
        %v3189 = vunpack.c.l.b16 %v847
        %v3190 = vunpack.c.h.b16 %v847
        %v3191 = vunpack.c.l.b16 %v848
        %v3192 = vunpack.c.h.b16 %v848
        %v3193 = vunpack.c.l.b16 %v849
        %v3194 = vunpack.c.h.b16 %v849
        %v3195 = vunpack.c.l.b16 %v850
        %v3196 = vunpack.c.h.b16 %v850
        %v3197 = vunpack.c.l.b16 %v851
        %v3198 = vunpack.c.h.b16 %v851
        %v3199 = vunpack.c.l.b16 %v852
        %v3200 = vunpack.c.h.b16 %v852
        %v3201 = vunpack.c.l.b16 %v853
        %v3202 = vunpack.c.h.b16 %v853
        %v3203 = vunpack.c.l.b16 %v854
        %v3204 = vunpack.c.h.b16 %v854
        %v3205 = vunpack.c.l.b16 %v855
        %v3206 = vunpack.c.h.b16 %v855
        %v3207 = vunpack.c.l.b16 %v856
        %v3208 = vunpack.c.h.b16 %v856
        %v3209 = vunpack.c.l.b16 %v857
        %v3210 = vunpack.c.h.b16 %v857
        %v3211 = vunpack.c.l.b16 %v858
        %v3212 = vunpack.c.h.b16 %v858
        %v3213 = vunpack.c.l.b16 %v859
        %v3214 = vunpack.c.h.b16 %v859
        %v3215 = vunpack.c.l.b16 %v860
        %v3216 = vunpack.c.h.b16 %v860
        %v3217 = vunpack.c.l.b16 %v861
        %v3218 = vunpack.c.h.b16 %v861
        %v3219 = vunpack.c.l.b16 %v862
        %v3220 = vunpack.c.h.b16 %v862
        %v3221 = vunpack.c.l.b16 %v863
        %v3222 = vunpack.c.h.b16 %v863
        %v3223 = vunpack.c.l.b16 %v864
        %v3224 = vunpack.c.h.b16 %v864
        %v3225 = vunpack.c.l.b16 %v865
        %v3226 = vunpack.c.h.b16 %v865
        %v3227 = vunpack.c.l.b16 %v866
        %v3228 = vunpack.c.h.b16 %v866
        %v3229 = vunpack.c.l.b16 %v867
        %v3230 = vunpack.c.h.b16 %v867
        %v3231 = vunpack.c.l.b16 %v868
        %v3232 = vunpack.c.h.b16 %v868
        %v3233 = vunpack.c.l.b16 %v869
        %v3234 = vunpack.c.h.b16 %v869
        %v3235 = vunpack.c.l.b16 %v870
        %v3236 = vunpack.c.h.b16 %v870
        %v3237 = vunpack.c.l.b16 %v871
        %v3238 = vunpack.c.h.b16 %v871
        %v3239 = vunpack.c.l.b16 %v872
        %v3240 = vunpack.c.h.b16 %v872
        %v3241 = vunpack.c.l.b16 %v873
        %v3242 = vunpack.c.h.b16 %v873
        %v3243 = vunpack.c.l.b16 %v874
        %v3244 = vunpack.c.h.b16 %v874
        %v3245 = vunpack.c.l.b16 %v875
        %v3246 = vunpack.c.h.b16 %v875
        %v3247 = vunpack.c.l.b16 %v876
        %v3248 = vunpack.c.h.b16 %v876
        %v3249 = vunpack.c.l.b16 %v877
        %v3250 = vunpack.c.h.b16 %v877
        %v3251 = vunpack.c.l.b16 %v878
        %v3252 = vunpack.c.h.b16 %v878
        %v3253 = vunpack.c.l.b16 %v879
        %v3254 = vunpack.c.h.b16 %v879
        %v3255 = vunpack.c.l.b16 %v880
        %v3256 = vunpack.c.h.b16 %v880
        %v3257 = vunpack.c.l.b16 %v881
        %v3258 = vunpack.c.h.b16 %v881
        %v3259 = vunpack.c.l.b16 %v882
        %v3260 = vunpack.c.h.b16 %v882
        %v3261 = vunpack.c.l.b16 %v883
        %v3262 = vunpack.c.h.b16 %v883
        %v3263 = vunpack.c.l.b16 %v884
        %v3264 = vunpack.c.h.b16 %v884
        %v3265 = vunpack.c.l.b16 %v885
        %v3266 = vunpack.c.h.b16 %v885
        %v3267 = vunpack.c.l.b16 %v886
        %v3268 = vunpack.c.h.b16 %v886
        %v3269 = vunpack.c.l.b16 %v887
        %v3270 = vunpack.c.h.b16 %v887
        %v3271 = vunpack.c.l.b16 %v888
        %v3272 = vunpack.c.h.b16 %v888
        %v3273 = vunpack.c.l.b16 %v889
        %v3274 = vunpack.c.h.b16 %v889
        %v3275 = vunpack.c.l.b16 %v890
        %v3276 = vunpack.c.h.b16 %v890
        %v3277 = vunpack.c.l.b16 %v891
        %v3278 = vunpack.c.h.b16 %v891
        %v3279 = vunpack.c.l.b16 %v892
        %v3280 = vunpack.c.h.b16 %v892
        %v3281 = vunpack.c.l.b16 %v893
        %v3282 = vunpack.c.h.b16 %v893
        %v3283 = vunpack.c.l.b16 %v894
        %v3284 = vunpack.c.h.b16 %v894
        %v3285 = vunpack.c.l.b16 %v895
        %v3286 = vunpack.c.h.b16 %v895
        %v3287 = vunpack.c.l.b16 %v896
        %v3288 = vunpack.c.h.b16 %v896
        %v3289 = vunpack.c.l.b16 %v897
        %v3290 = vunpack.c.h.b16 %v897
        %v3291 = vunpack.c.l.b16 %v898
        %v3292 = vunpack.c.h.b16 %v898
        %v3293 = vunpack.c.l.b16 %v899
        %v3294 = vunpack.c.h.b16 %v899
        %v3295 = vunpack.c.l.b16 %v900
        %v3296 = vunpack.c.h.b16 %v900
        %v3297 = vunpack.c.l.b16 %v901
        %v3298 = vunpack.c.h.b16 %v901
        %v3299 = vunpack.c.l.b16 %v902
        %v3300 = vunpack.c.h.b16 %v902
        %v3301 = vunpack.c.l.b16 %v903
        %v3302 = vunpack.c.h.b16 %v903
        %v3303 = vunpack.c.l.b16 %v904
        %v3304 = vunpack.c.h.b16 %v904
        %v3305 = vunpack.c.l.b16 %v905
        %v3306 = vunpack.c.h.b16 %v905
        %v3307 = vunpack.c.l.b16 %v906
        %v3308 = vunpack.c.h.b16 %v906
        %v3309 = vunpack.c.l.b16 %v907
        %v3310 = vunpack.c.h.b16 %v907
        %v3311 = vunpack.c.l.b16 %v908
        %v3312 = vunpack.c.h.b16 %v908
        %v3313 = vunpack.c.l.b16 %v909
        %v3314 = vunpack.c.h.b16 %v909
        %v3315 = vunpack.c.l.b16 %v910
        %v3316 = vunpack.c.h.b16 %v910
        %v3317 = vunpack.c.l.b16 %v911
        %v3318 = vunpack.c.h.b16 %v911
        %v3319 = vunpack.c.l.b16 %v912
        %v3320 = vunpack.c.h.b16 %v912
        %v3321 = vunpack.c.l.b16 %v913
        %v3322 = vunpack.c.h.b16 %v913
        %v3323 = vunpack.c.l.b16 %v914
        %v3324 = vunpack.c.h.b16 %v914
        %v3325 = vunpack.c.l.b16 %v915
        %v3326 = vunpack.c.h.b16 %v915
        %v3327 = vunpack.c.l.b16 %v916
        %v3328 = vunpack.c.h.b16 %v916
        %v3329 = vunpack.c.l.b16 %v917
        %v3330 = vunpack.c.h.b16 %v917
        %v3331 = vunpack.c.l.b16 %v918
        %v3332 = vunpack.c.h.b16 %v918
        %v3333 = vunpack.c.l.b16 %v919
        %v3334 = vunpack.c.h.b16 %v919
        %v3335 = vunpack.c.l.b16 %v920
        %v3336 = vunpack.c.h.b16 %v920
        %v3337 = vunpack.c.l.b16 %v921
        %v3338 = vunpack.c.h.b16 %v921
        %v3339 = vunpack.c.l.b16 %v922
        %v3340 = vunpack.c.h.b16 %v922
        %v3341 = vunpack.c.l.b16 %v923
        %v3342 = vunpack.c.h.b16 %v923
        %v3343 = vunpack.c.l.b16 %v924
        %v3344 = vunpack.c.h.b16 %v924
        %v3345 = vunpack.c.l.b16 %v925
        %v3346 = vunpack.c.h.b16 %v925
        %v3347 = vunpack.c.l.b16 %v926
        %v3348 = vunpack.c.h.b16 %v926
        %v3349 = vunpack.c.l.b16 %v927
        %v3350 = vunpack.c.h.b16 %v927
        %v3351 = vunpack.c.l.b16 %v928
        %v3352 = vunpack.c.h.b16 %v928
        %v3353 = vunpack.c.l.b16 %v929
        %v3354 = vunpack.c.h.b16 %v929
        %v3355 = vunpack.c.l.b16 %v930
        %v3356 = vunpack.c.h.b16 %v930
        %v3357 = vunpack.c.l.b16 %v931
        %v3358 = vunpack.c.h.b16 %v931
        %v3359 = vunpack.c.l.b16 %v932
        %v3360 = vunpack.c.h.b16 %v932
        %v3361 = vunpack.c.l.b16 %v933
        %v3362 = vunpack.c.h.b16 %v933
        %v3363 = vunpack.c.l.b16 %v934
        %v3364 = vunpack.c.h.b16 %v934
        %v3365 = vunpack.c.l.b16 %v935
        %v3366 = vunpack.c.h.b16 %v935
        %v3367 = vunpack.c.l.b16 %v936
        %v3368 = vunpack.c.h.b16 %v936
        %v3369 = vunpack.c.l.b16 %v937
        %v3370 = vunpack.c.h.b16 %v937
        %v3371 = vunpack.c.l.b16 %v938
        %v3372 = vunpack.c.h.b16 %v938
        %v3373 = vunpack.c.l.b16 %v939
        %v3374 = vunpack.c.h.b16 %v939
        %v3375 = vunpack.c.l.b16 %v940
        %v3376 = vunpack.c.h.b16 %v940
        %v3377 = vunpack.c.l.b16 %v941
        %v3378 = vunpack.c.h.b16 %v941
        %v3379 = vunpack.c.l.b16 %v942
        %v3380 = vunpack.c.h.b16 %v942
        %v3381 = vunpack.c.l.b16 %v943
        %v3382 = vunpack.c.h.b16 %v943
        %v3383 = vunpack.c.l.b16 %v944
        %v3384 = vunpack.c.h.b16 %v944
        %v3385 = vunpack.c.l.b16 %v945
        %v3386 = vunpack.c.h.b16 %v945
        %v3387 = vunpack.c.l.b16 %v946
        %v3388 = vunpack.c.h.b16 %v946
        %v3389 = vunpack.c.l.b16 %v947
        %v3390 = vunpack.c.h.b16 %v947
        %v3391 = vunpack.c.l.b16 %v948
        %v3392 = vunpack.c.h.b16 %v948
        %v3393 = vunpack.c.l.b16 %v949
        %v3394 = vunpack.c.h.b16 %v949
        %v3395 = vunpack.c.l.b16 %v950
        %v3396 = vunpack.c.h.b16 %v950
        %v3397 = vunpack.c.l.b16 %v951
        %v3398 = vunpack.c.h.b16 %v951
        %v3399 = vunpack.c.l.b16 %v952
        %v3400 = vunpack.c.h.b16 %v952
        %v3401 = vunpack.c.l.b16 %v953
        %v3402 = vunpack.c.h.b16 %v953
        %v3403 = vunpack.c.l.b16 %v954
        %v3404 = vunpack.c.h.b16 %v954
        %v3405 = vunpack.c.l.b16 %v955
        %v3406 = vunpack.c.h.b16 %v955
        %v3407 = vunpack.c.l.b16 %v956
        %v3408 = vunpack.c.h.b16 %v956
        %v3409 = vunpack.c.l.b16 %v957
        %v3410 = vunpack.c.h.b16 %v957
        %v3411 = vunpack.c.l.b16 %v958
        %v3412 = vunpack.c.h.b16 %v958
        %v3413 = vunpack.c.l.b16 %v959
        %v3414 = vunpack.c.h.b16 %v959
        %v3415 = vunpack.c.l.b16 %v960
        %v3416 = vunpack.c.h.b16 %v960
        %v3417 = vunpack.c.l.b16 %v961
        %v3418 = vunpack.c.h.b16 %v961
        %v3419 = vunpack.c.l.b16 %v962
        %v3420 = vunpack.c.h.b16 %v962
        %v3421 = vunpack.c.l.b16 %v963
        %v3422 = vunpack.c.h.b16 %v963
        %v3423 = vunpack.c.l.b16 %v964
        %v3424 = vunpack.c.h.b16 %v964
        %v3425 = vunpack.c.l.b16 %v965
        %v3426 = vunpack.c.h.b16 %v965
        %v3427 = vunpack.c.l.b16 %v966
        %v3428 = vunpack.c.h.b16 %v966
        %v3429 = vunpack.c.l.b16 %v967
        %v3430 = vunpack.c.h.b16 %v967
        %v3431 = vunpack.c.l.b16 %v968
        %v3432 = vunpack.c.h.b16 %v968
        %v3433 = vunpack.c.l.b16 %v969
        %v3434 = vunpack.c.h.b16 %v969
        %v3435 = vunpack.c.l.b16 %v970
        %v3436 = vunpack.c.h.b16 %v970
        %v3437 = vunpack.c.l.b16 %v971
        %v3438 = vunpack.c.h.b16 %v971
        %v3439 = vunpack.c.l.b16 %v972
        %v3440 = vunpack.c.h.b16 %v972
        %v3441 = vunpack.c.l.b16 %v973
        %v3442 = vunpack.c.h.b16 %v973
        %v3443 = vunpack.c.l.b16 %v974
        %v3444 = vunpack.c.h.b16 %v974
        %v3445 = vunpack.c.l.b16 %v975
        %v3446 = vunpack.c.h.b16 %v975
        %v3447 = vunpack.c.l.b16 %v976
        %v3448 = vunpack.c.h.b16 %v976
        %v3449 = vunpack.c.l.b16 %v977
        %v3450 = vunpack.c.h.b16 %v977
        %v3451 = vunpack.c.l.b16 %v978
        %v3452 = vunpack.c.h.b16 %v978
        %v3453 = vunpack.c.l.b16 %v979
        %v3454 = vunpack.c.h.b16 %v979
        %v3455 = vunpack.c.l.b16 %v980
        %v3456 = vunpack.c.h.b16 %v980
        %v3457 = vunpack.c.l.b16 %v981
        %v3458 = vunpack.c.h.b16 %v981
        %v3459 = vunpack.c.l.b16 %v982
        %v3460 = vunpack.c.h.b16 %v982
        %v3461 = vunpack.c.l.b16 %v983
        %v3462 = vunpack.c.h.b16 %v983
        %v3463 = vunpack.c.l.b16 %v984
        %v3464 = vunpack.c.h.b16 %v984
        %v3465 = vunpack.c.l.b16 %v985
        %v3466 = vunpack.c.h.b16 %v985
        %v3467 = vunpack.c.l.b16 %v986
        %v3468 = vunpack.c.h.b16 %v986
        %v3469 = vunpack.c.l.b16 %v987
        %v3470 = vunpack.c.h.b16 %v987
        %v3471 = vunpack.c.l.b16 %v988
        %v3472 = vunpack.c.h.b16 %v988
        %v3473 = vunpack.c.l.b16 %v989
        %v3474 = vunpack.c.h.b16 %v989
        %v3475 = vunpack.c.l.b16 %v990
        %v3476 = vunpack.c.h.b16 %v990
        %v3477 = vunpack.c.l.b16 %v991
        %v3478 = vunpack.c.h.b16 %v991
        %v3479 = vunpack.c.l.b16 %v992
        %v3480 = vunpack.c.h.b16 %v992
        %v3481 = vunpack.c.l.b16 %v993
        %v3482 = vunpack.c.h.b16 %v993
        %v3483 = vunpack.c.l.b16 %v994
        %v3484 = vunpack.c.h.b16 %v994
        %v3485 = vunpack.c.l.b16 %v995
        %v3486 = vunpack.c.h.b16 %v995
        %v3487 = vunpack.c.l.b16 %v996
        %v3488 = vunpack.c.h.b16 %v996
        %v3489 = vunpack.c.l.b16 %v997
        %v3490 = vunpack.c.h.b16 %v997
        %v3491 = vunpack.c.l.b16 %v998
        %v3492 = vunpack.c.h.b16 %v998
        %v3493 = vunpack.c.l.b16 %v999
        %v3494 = vunpack.c.h.b16 %v999
        %v3495 = vunpack.c.l.b16 %v1000
        %v3496 = vunpack.c.h.b16 %v1000
        %v3497 = vunpack.c.l.b16 %v1001
        %v3498 = vunpack.c.h.b16 %v1001
        %v3499 = vunpack.c.l.b16 %v1002
        %v3500 = vunpack.c.h.b16 %v1002
        %v3501 = vunpack.c.l.b16 %v1003
        %v3502 = vunpack.c.h.b16 %v1003
        %v3503 = vunpack.c.l.b16 %v1004
        %v3504 = vunpack.c.h.b16 %v1004
        %v3505 = vunpack.c.l.b16 %v1005
        %v3506 = vunpack.c.h.b16 %v1005
        %v3507 = vunpack.c.l.b16 %v1006
        %v3508 = vunpack.c.h.b16 %v1006
        %v3509 = vunpack.c.l.b16 %v1007
        %v3510 = vunpack.c.h.b16 %v1007
        %v3511 = vunpack.c.l.b16 %v1008
        %v3512 = vunpack.c.h.b16 %v1008
        %v3513 = vunpack.c.l.b16 %v1009
        %v3514 = vunpack.c.h.b16 %v1009
        %v3515 = vunpack.c.l.b16 %v1010
        %v3516 = vunpack.c.h.b16 %v1010
        %v3517 = vunpack.c.l.b16 %v1011
        %v3518 = vunpack.c.h.b16 %v1011
        %v3519 = vunpack.c.l.b16 %v1012
        %v3520 = vunpack.c.h.b16 %v1012
        %v3521 = vunpack.c.l.b16 %v1013
        %v3522 = vunpack.c.h.b16 %v1013
        %v3523 = vunpack.c.l.b16 %v1014
        %v3524 = vunpack.c.h.b16 %v1014
        %v3525 = vunpack.c.l.b16 %v1015
        %v3526 = vunpack.c.h.b16 %v1015
        %v3527 = vunpack.c.l.b16 %v1016
        %v3528 = vunpack.c.h.b16 %v1016
        %v3529 = vunpack.c.l.b16 %v1017
        %v3530 = vunpack.c.h.b16 %v1017
        %v3531 = vunpack.c.l.b16 %v1018
        %v3532 = vunpack.c.h.b16 %v1018
        %v3533 = vunpack.c.l.b16 %v1019
        %v3534 = vunpack.c.h.b16 %v1019
        %v3535 = vunpack.c.l.b16 %v1020
        %v3536 = vunpack.c.h.b16 %v1020
        %v3537 = vunpack.c.l.b16 %v1021
        %v3538 = vunpack.c.h.b16 %v1021
        %v3539 = vunpack.c.l.b16 %v1022
        %v3540 = vunpack.c.h.b16 %v1022
        %v3541 = vunpack.c.l.b16 %v1023
        %v3542 = vunpack.c.h.b16 %v1023
        %v3543 = vunpack.c.l.b16 %v1024
        %v3544 = vunpack.c.h.b16 %v1024
        %v3545 = vunpack.c.l.b16 %v1025
        %v3546 = vunpack.c.h.b16 %v1025
        %v3547 = vunpack.c.l.b16 %v1026
        %v3548 = vunpack.c.h.b16 %v1026
        %v3549 = vunpack.c.l.b16 %v1027
        %v3550 = vunpack.c.h.b16 %v1027
        %v3551 = vunpack.c.l.b16 %v1028
        %v3552 = vunpack.c.h.b16 %v1028
        %v3553 = vunpack.c.l.b16 %v1029
        %v3554 = vunpack.c.h.b16 %v1029
        %v3555 = vunpack.c.l.b16 %v1030
        %v3556 = vunpack.c.h.b16 %v1030
        %v3557 = vunpack.c.l.b16 %v1031
        %v3558 = vunpack.c.h.b16 %v1031
        %v3559 = vunpack.c.l.b16 %v1032
        %v3560 = vunpack.c.h.b16 %v1032
        %v3561 = vunpack.c.l.b16 %v1033
        %v3562 = vunpack.c.h.b16 %v1033
        %v3563 = vunpack.c.l.b16 %v1034
        %v3564 = vunpack.c.h.b16 %v1034
        %v3565 = vunpack.c.l.b16 %v1035
        %v3566 = vunpack.c.h.b16 %v1035
        %v3567 = vunpack.c.l.b16 %v1036
        %v3568 = vunpack.c.h.b16 %v1036
        %v3569 = vunpack.c.l.b16 %v1037
        %v3570 = vunpack.c.h.b16 %v1037
        %v3571 = vunpack.c.l.b16 %v1038
        %v3572 = vunpack.c.h.b16 %v1038
        %v3573 = vunpack.c.l.b16 %v1039
        %v3574 = vunpack.c.h.b16 %v1039
        %v3575 = vunpack.c.l.b16 %v1040
        %v3576 = vunpack.c.h.b16 %v1040
        %v3577 = vunpack.c.l.b16 %v1041
        %v3578 = vunpack.c.h.b16 %v1041
        %v3579 = vunpack.c.l.b16 %v1042
        %v3580 = vunpack.c.h.b16 %v1042
        %v3581 = vunpack.c.l.b16 %v1043
        %v3582 = vunpack.c.h.b16 %v1043
        %v3583 = vunpack.c.l.b16 %v1044
        %v3584 = vunpack.c.h.b16 %v1044
        %v3585 = vunpack.c.l.b16 %v1045
        %v3586 = vunpack.c.h.b16 %v1045
        %v3587 = vunpack.c.l.b16 %v1046
        %v3588 = vunpack.c.h.b16 %v1046
        %v3589 = vunpack.c.l.b16 %v1047
        %v3590 = vunpack.c.h.b16 %v1047
        %v3591 = vunpack.c.l.b16 %v1048
        %v3592 = vunpack.c.h.b16 %v1048
        %v3593 = vunpack.c.l.b16 %v1049
        %v3594 = vunpack.c.h.b16 %v1049
        %v3595 = vunpack.c.l.b16 %v1050
        %v3596 = vunpack.c.h.b16 %v1050
        %v3597 = vunpack.c.l.b16 %v1051
        %v3598 = vunpack.c.h.b16 %v1051
        %v3599 = vunpack.c.l.b16 %v1052
        %v3600 = vunpack.c.h.b16 %v1052
        %v3601 = vunpack.c.l.b16 %v1053
        %v3602 = vunpack.c.h.b16 %v1053
        %v3603 = vunpack.c.l.b16 %v1054
        %v3604 = vunpack.c.h.b16 %v1054
        %v3605 = vunpack.c.l.b16 %v1055
        %v3606 = vunpack.c.h.b16 %v1055
        %v3607 = vunpack.c.l.b16 %v1056
        %v3608 = vunpack.c.h.b16 %v1056
        %v3609 = vunpack.c.l.b16 %v1057
        %v3610 = vunpack.c.h.b16 %v1057
        %v3611 = vunpack.c.l.b16 %v1058
        %v3612 = vunpack.c.h.b16 %v1058
        %v3613 = vunpack.c.l.b16 %v1059
        %v3614 = vunpack.c.h.b16 %v1059
        %v3615 = vunpack.c.l.b16 %v1060
        %v3616 = vunpack.c.h.b16 %v1060
        %v3617 = vunpack.c.l.b16 %v1061
        %v3618 = vunpack.c.h.b16 %v1061
        %v3619 = vunpack.c.l.b16 %v1062
        %v3620 = vunpack.c.h.b16 %v1062
        %v3621 = vunpack.c.l.b16 %v1063
        %v3622 = vunpack.c.h.b16 %v1063
        %v3623 = vunpack.c.l.b16 %v1064
        %v3624 = vunpack.c.h.b16 %v1064
        %v3625 = vunpack.c.l.b16 %v1065
        %v3626 = vunpack.c.h.b16 %v1065
        %v3627 = vunpack.c.l.b16 %v1066
        %v3628 = vunpack.c.h.b16 %v1066
        %v3629 = vunpack.c.l.b16 %v1067
        %v3630 = vunpack.c.h.b16 %v1067
        %v3631 = vunpack.c.l.b16 %v1068
        %v3632 = vunpack.c.h.b16 %v1068
        %v3633 = vunpack.c.l.b16 %v1069
        %v3634 = vunpack.c.h.b16 %v1069
        %v3635 = vunpack.c.l.b16 %v1070
        %v3636 = vunpack.c.h.b16 %v1070
        %v3637 = vunpack.c.l.b16 %v1071
        %v3638 = vunpack.c.h.b16 %v1071
        %v3639 = vunpack.c.l.b16 %v1072
        %v3640 = vunpack.c.h.b16 %v1072
        %v3641 = vunpack.c.l.b16 %v1073
        %v3642 = vunpack.c.h.b16 %v1073
        %v3643 = vunpack.c.l.b16 %v1074
        %v3644 = vunpack.c.h.b16 %v1074
        %v3645 = vunpack.c.l.b16 %v1075
        %v3646 = vunpack.c.h.b16 %v1075
        %v3647 = vunpack.c.l.b16 %v1076
        %v3648 = vunpack.c.h.b16 %v1076
        %v3649 = vunpack.c.l.b16 %v1077
        %v3650 = vunpack.c.h.b16 %v1077
        %v3651 = vunpack.c.l.b16 %v1078
        %v3652 = vunpack.c.h.b16 %v1078
        %v3653 = vunpack.c.l.b16 %v1079
        %v3654 = vunpack.c.h.b16 %v1079
        %v3655 = vunpack.c.l.b16 %v1080
        %v3656 = vunpack.c.h.b16 %v1080
        %v3657 = vunpack.c.l.b16 %v1081
        %v3658 = vunpack.c.h.b16 %v1081
        %v3659 = vunpack.c.l.b16 %v1082
        %v3660 = vunpack.c.h.b16 %v1082
        %v3661 = vunpack.c.l.b16 %v1083
        %v3662 = vunpack.c.h.b16 %v1083
        %v3663 = vunpack.c.l.b16 %v1084
        %v3664 = vunpack.c.h.b16 %v1084
        %v3665 = vunpack.c.l.b16 %v1085
        %v3666 = vunpack.c.h.b16 %v1085
        %v3667 = vunpack.c.l.b16 %v1086
        %v3668 = vunpack.c.h.b16 %v1086
        %v3669 = vunpack.c.l.b16 %v1087
        %v3670 = vunpack.c.h.b16 %v1087
        %v3671 = vunpack.c.l.b16 %v1088
        %v3672 = vunpack.c.h.b16 %v1088
        %v3673 = vunpack.c.l.b16 %v1089
        %v3674 = vunpack.c.h.b16 %v1089
        %v3675 = vunpack.c.l.b16 %v1090
        %v3676 = vunpack.c.h.b16 %v1090
        %v3677 = vunpack.c.l.b16 %v1091
        %v3678 = vunpack.c.h.b16 %v1091
        %v3679 = vunpack.c.l.b16 %v1092
        %v3680 = vunpack.c.h.b16 %v1092
        %v3681 = vunpack.c.l.b16 %v1093
        %v3682 = vunpack.c.h.b16 %v1093
        %v3683 = vunpack.c.l.b16 %v1094
        %v3684 = vunpack.c.h.b16 %v1094
        %v3685 = vunpack.c.l.b16 %v1095
        %v3686 = vunpack.c.h.b16 %v1095
        %v3687 = vunpack.c.l.b16 %v1096
        %v3688 = vunpack.c.h.b16 %v1096
        %v3689 = vunpack.c.l.b16 %v1097
        %v3690 = vunpack.c.h.b16 %v1097
        %v3691 = vunpack.c.l.b16 %v1098
        %v3692 = vunpack.c.h.b16 %v1098
        %v3693 = vunpack.c.l.b16 %v1099
        %v3694 = vunpack.c.h.b16 %v1099
        %v3695 = vunpack.c.l.b16 %v1100
        %v3696 = vunpack.c.h.b16 %v1100
        %v3697 = vunpack.c.l.b16 %v1101
        %v3698 = vunpack.c.h.b16 %v1101
        %v3699 = vunpack.c.l.b16 %v1102
        %v3700 = vunpack.c.h.b16 %v1102
        %v3701 = vunpack.c.l.b16 %v1103
        %v3702 = vunpack.c.h.b16 %v1103
        %v3703 = vunpack.c.l.b16 %v1104
        %v3704 = vunpack.c.h.b16 %v1104
        %v3705 = vunpack.c.l.b16 %v1105
        %v3706 = vunpack.c.h.b16 %v1105
        %v3707 = vunpack.c.l.b16 %v1106
        %v3708 = vunpack.c.h.b16 %v1106
        %v3709 = vunpack.c.l.b16 %v1107
        %v3710 = vunpack.c.h.b16 %v1107
        %v3711 = vunpack.c.l.b16 %v1108
        %v3712 = vunpack.c.h.b16 %v1108
        %v3713 = vunpack.c.l.b16 %v1109
        %v3714 = vunpack.c.h.b16 %v1109
        %v3715 = vunpack.c.l.b16 %v1110
        %v3716 = vunpack.c.h.b16 %v1110
        %v3717 = vunpack.c.l.b16 %v1111
        %v3718 = vunpack.c.h.b16 %v1111
        %v3719 = vunpack.c.l.b16 %v1112
        %v3720 = vunpack.c.h.b16 %v1112
        %v3721 = vunpack.c.l.b16 %v1113
        %v3722 = vunpack.c.h.b16 %v1113
        %v3723 = vunpack.c.l.b16 %v1114
        %v3724 = vunpack.c.h.b16 %v1114
        %v3725 = vunpack.c.l.b16 %v1115
        %v3726 = vunpack.c.h.b16 %v1115
        %v3727 = vunpack.c.l.b16 %v1116
        %v3728 = vunpack.c.h.b16 %v1116
        %v3729 = vunpack.c.l.b16 %v1117
        %v3730 = vunpack.c.h.b16 %v1117
        %v3731 = vunpack.c.l.b16 %v1118
        %v3732 = vunpack.c.h.b16 %v1118
        %v3733 = vunpack.c.l.b16 %v1119
        %v3734 = vunpack.c.h.b16 %v1119
        %v3735 = vunpack.c.l.b16 %v1120
        %v3736 = vunpack.c.h.b16 %v1120
        %v3737 = vunpack.c.l.b16 %v1121
        %v3738 = vunpack.c.h.b16 %v1121
        %v3739 = vunpack.c.l.b16 %v1122
        %v3740 = vunpack.c.h.b16 %v1122
        %v3741 = vunpack.c.l.b16 %v1123
        %v3742 = vunpack.c.h.b16 %v1123
        %v3743 = vunpack.c.l.b16 %v1124
        %v3744 = vunpack.c.h.b16 %v1124
        %v3745 = vunpack.c.l.b16 %v1125
        %v3746 = vunpack.c.h.b16 %v1125
        %v3747 = vunpack.c.l.b16 %v1126
        %v3748 = vunpack.c.h.b16 %v1126
        %v3749 = vunpack.c.l.b16 %v1127
        %v3750 = vunpack.c.h.b16 %v1127
        %v3751 = vunpack.c.l.b16 %v1128
        %v3752 = vunpack.c.h.b16 %v1128
        %v3753 = vunpack.c.l.b16 %v1129
        %v3754 = vunpack.c.h.b16 %v1129
        %v3755 = vunpack.c.l.b16 %v1130
        %v3756 = vunpack.c.h.b16 %v1130
        %v3757 = vunpack.c.l.b16 %v1131
        %v3758 = vunpack.c.h.b16 %v1131
        %v3759 = vunpack.c.l.b16 %v1132
        %v3760 = vunpack.c.h.b16 %v1132
        %v3761 = vunpack.c.l.b16 %v1133
        %v3762 = vunpack.c.h.b16 %v1133
        %v3763 = vunpack.c.l.b16 %v1134
        %v3764 = vunpack.c.h.b16 %v1134
        %v3765 = vunpack.c.l.b16 %v1135
        %v3766 = vunpack.c.h.b16 %v1135
        %v3767 = vunpack.c.l.b16 %v1136
        %v3768 = vunpack.c.h.b16 %v1136
        %v3769 = vunpack.c.l.b16 %v1137
        %v3770 = vunpack.c.h.b16 %v1137
        %v3771 = vunpack.c.l.b16 %v1138
        %v3772 = vunpack.c.h.b16 %v1138
        %v3773 = vunpack.c.l.b16 %v1139
        %v3774 = vunpack.c.h.b16 %v1139
        %v3775 = vunpack.c.l.b16 %v1140
        %v3776 = vunpack.c.h.b16 %v1140
        %v3777 = vunpack.c.l.b16 %v1141
        %v3778 = vunpack.c.h.b16 %v1141
        %v3779 = vunpack.c.l.b16 %v1142
        %v3780 = vunpack.c.h.b16 %v1142
        %v3781 = vunpack.c.l.b16 %v1143
        %v3782 = vunpack.c.h.b16 %v1143
        %v3783 = vunpack.c.l.b16 %v1144
        %v3784 = vunpack.c.h.b16 %v1144
        %v3785 = vunpack.c.l.b16 %v1145
        %v3786 = vunpack.c.h.b16 %v1145
        %v3787 = vunpack.c.l.b16 %v1146
        %v3788 = vunpack.c.h.b16 %v1146
        %v3789 = vunpack.c.l.b16 %v1147
        %v3790 = vunpack.c.h.b16 %v1147
        %v3791 = vunpack.c.l.b16 %v1148
        %v3792 = vunpack.c.h.b16 %v1148
        %v3793 = vunpack.c.l.b16 %v1149
        %v3794 = vunpack.c.h.b16 %v1149
        %v3795 = vunpack.c.l.b16 %v1150
        %v3796 = vunpack.c.h.b16 %v1150
        %v3797 = vunpack.c.l.b16 %v1151
        %v3798 = vunpack.c.h.b16 %v1151
        %v3799 = vunpack.c.l.b16 %v1152
        %v3800 = vunpack.c.h.b16 %v1152
        %v3801 = vunpack.c.l.b16 %v1153
        %v3802 = vunpack.c.h.b16 %v1153
        %v3803 = vunpack.c.l.b16 %v1154
        %v3804 = vunpack.c.h.b16 %v1154
        %v3805 = vunpack.c.l.b16 %v1155
        %v3806 = vunpack.c.h.b16 %v1155
        %v3807 = vunpack.c.l.b16 %v1156
        %v3808 = vunpack.c.h.b16 %v1156
        %v3809 = vunpack.c.l.b16 %v1157
        %v3810 = vunpack.c.h.b16 %v1157
        %v3811 = vunpack.c.l.b16 %v1158
        %v3812 = vunpack.c.h.b16 %v1158
        %v3813 = vunpack.c.l.b16 %v1159
        %v3814 = vunpack.c.h.b16 %v1159
        %v3815 = vunpack.c.l.b16 %v1160
        %v3816 = vunpack.c.h.b16 %v1160
        %v3817 = vunpack.c.l.b16 %v1161
        %v3818 = vunpack.c.h.b16 %v1161
        %v3819 = vunpack.c.l.b16 %v1162
        %v3820 = vunpack.c.h.b16 %v1162
        %v3821 = vunpack.c.l.b16 %v1163
        %v3822 = vunpack.c.h.b16 %v1163
        %v3823 = vunpack.c.l.b16 %v1164
        %v3824 = vunpack.c.h.b16 %v1164
        %v3825 = vunpack.c.l.b16 %v1165
        %v3826 = vunpack.c.h.b16 %v1165
        %v3827 = vunpack.c.l.b16 %v1166
        %v3828 = vunpack.c.h.b16 %v1166
        %v3829 = vunpack.c.l.b16 %v1167
        %v3830 = vunpack.c.h.b16 %v1167
        %v3831 = vunpack.c.l.b16 %v1168
        %v3832 = vunpack.c.h.b16 %v1168
        %v3833 = vunpack.c.l.b16 %v1169
        %v3834 = vunpack.c.h.b16 %v1169
        %v3835 = vunpack.c.l.b16 %v1170
        %v3836 = vunpack.c.h.b16 %v1170
        %v3837 = vunpack.c.l.b16 %v1171
        %v3838 = vunpack.c.h.b16 %v1171
        %v3839 = vunpack.c.l.b16 %v1172
        %v3840 = vunpack.c.h.b16 %v1172
        %v3841 = vunpack.c.l.b16 %v1173
        %v3842 = vunpack.c.h.b16 %v1173
        %v3843 = vunpack.c.l.b16 %v1174
        %v3844 = vunpack.c.h.b16 %v1174
        %v3845 = vunpack.c.l.b16 %v1175
        %v3846 = vunpack.c.h.b16 %v1175
        %v3847 = vunpack.c.l.b16 %v1176
        %v3848 = vunpack.c.h.b16 %v1176
        %v3849 = vunpack.c.l.b16 %v1177
        %v3850 = vunpack.c.h.b16 %v1177
        %v3851 = vunpack.c.l.b16 %v1178
        %v3852 = vunpack.c.h.b16 %v1178
        %v3853 = vunpack.c.l.b16 %v1179
        %v3854 = vunpack.c.h.b16 %v1179
        %v3855 = vunpack.c.l.b16 %v1180
        %v3856 = vunpack.c.h.b16 %v1180
        %v3857 = vunpack.c.l.b16 %v1181
        %v3858 = vunpack.c.h.b16 %v1181
        %v3859 = vunpack.c.l.b16 %v1182
        %v3860 = vunpack.c.h.b16 %v1182
        %v3861 = vunpack.c.l.b16 %v1183
        %v3862 = vunpack.c.h.b16 %v1183
        %v3863 = vunpack.c.l.b16 %v1184
        %v3864 = vunpack.c.h.b16 %v1184
        %v3865 = vunpack.c.l.b16 %v1185
        %v3866 = vunpack.c.h.b16 %v1185
        %v3867 = vunpack.c.l.b16 %v1186
        %v3868 = vunpack.c.h.b16 %v1186
        %v3869 = vunpack.c.l.b16 %v1187
        %v3870 = vunpack.c.h.b16 %v1187
        %v3871 = vunpack.c.l.b16 %v1188
        %v3872 = vunpack.c.h.b16 %v1188
        %v3873 = vunpack.c.l.b16 %v1189
        %v3874 = vunpack.c.h.b16 %v1189
        %v3875 = vunpack.c.l.b16 %v1190
        %v3876 = vunpack.c.h.b16 %v1190
        %v3877 = vunpack.c.l.b16 %v1191
        %v3878 = vunpack.c.h.b16 %v1191
        %v3879 = vunpack.c.l.b16 %v1192
        %v3880 = vunpack.c.h.b16 %v1192
        %v3881 = vunpack.c.l.b16 %v1193
        %v3882 = vunpack.c.h.b16 %v1193
        %v3883 = vunpack.c.l.b16 %v1194
        %v3884 = vunpack.c.h.b16 %v1194
        %v3885 = vunpack.c.l.b16 %v1195
        %v3886 = vunpack.c.h.b16 %v1195
        %v3887 = vunpack.c.l.b16 %v1196
        %v3888 = vunpack.c.h.b16 %v1196
        %v3889 = vunpack.c.l.b16 %v1197
        %v3890 = vunpack.c.h.b16 %v1197
        %v3891 = vunpack.c.l.b16 %v1198
        %v3892 = vunpack.c.h.b16 %v1198
        %v3893 = vunpack.c.l.b16 %v1199
        %v3894 = vunpack.c.h.b16 %v1199
        %v3895 = vunpack.c.l.b16 %v1200
        %v3896 = vunpack.c.h.b16 %v1200
        %v3897 = vunpack.c.l.b16 %v1201
        %v3898 = vunpack.c.h.b16 %v1201
        %v3899 = vunpack.c.l.b16 %v1202
        %v3900 = vunpack.c.h.b16 %v1202
        %v3901 = vunpack.c.l.b16 %v1203
        %v3902 = vunpack.c.h.b16 %v1203
        %v3903 = vunpack.c.l.b16 %v1204
        %v3904 = vunpack.c.h.b16 %v1204
        %v3905 = vunpack.c.l.b16 %v1205
        %v3906 = vunpack.c.h.b16 %v1205
        %v3907 = vunpack.c.l.b16 %v1206
        %v3908 = vunpack.c.h.b16 %v1206
        %v3909 = vunpack.c.l.b16 %v1207
        %v3910 = vunpack.c.h.b16 %v1207
        %v3911 = vunpack.c.l.b16 %v1208
        %v3912 = vunpack.c.h.b16 %v1208
        %v3913 = vunpack.c.l.b16 %v1209
        %v3914 = vunpack.c.h.b16 %v1209
        %v3915 = vunpack.c.l.b16 %v1210
        %v3916 = vunpack.c.h.b16 %v1210
        %v3917 = vunpack.c.l.b16 %v1211
        %v3918 = vunpack.c.h.b16 %v1211
        %v3919 = vunpack.c.l.b16 %v1212
        %v3920 = vunpack.c.h.b16 %v1212
        %v3921 = vunpack.c.l.b16 %v1213
        %v3922 = vunpack.c.h.b16 %v1213
        %v3923 = vunpack.c.l.b16 %v1214
        %v3924 = vunpack.c.h.b16 %v1214
        %v3925 = vunpack.c.l.b16 %v1215
        %v3926 = vunpack.c.h.b16 %v1215
        %v3927 = vunpack.c.l.b16 %v1216
        %v3928 = vunpack.c.h.b16 %v1216
        %v3929 = vunpack.c.l.b16 %v1217
        %v3930 = vunpack.c.h.b16 %v1217
        %v3931 = vunpack.c.l.b16 %v1218
        %v3932 = vunpack.c.h.b16 %v1218
        %v3933 = vunpack.c.l.b16 %v1219
        %v3934 = vunpack.c.h.b16 %v1219
        %v3935 = vunpack.c.l.b16 %v1220
        %v3936 = vunpack.c.h.b16 %v1220
        %v3937 = vunpack.c.l.b16 %v1221
        %v3938 = vunpack.c.h.b16 %v1221
        %v3939 = vunpack.c.l.b16 %v1222
        %v3940 = vunpack.c.h.b16 %v1222
        %v3941 = vunpack.c.l.b16 %v1223
        %v3942 = vunpack.c.h.b16 %v1223
        %v3943 = vunpack.c.l.b16 %v1224
        %v3944 = vunpack.c.h.b16 %v1224
        %v3945 = vunpack.c.l.b16 %v1225
        %v3946 = vunpack.c.h.b16 %v1225
        %v3947 = vunpack.c.l.b16 %v1226
        %v3948 = vunpack.c.h.b16 %v1226
        %v3949 = vunpack.c.l.b16 %v1227
        %v3950 = vunpack.c.h.b16 %v1227
        %v3951 = vunpack.c.l.b16 %v1228
        %v3952 = vunpack.c.h.b16 %v1228
        %v3953 = vunpack.c.l.b16 %v1229
        %v3954 = vunpack.c.h.b16 %v1229
        %v3955 = vunpack.c.l.b16 %v1230
        %v3956 = vunpack.c.h.b16 %v1230
        %v3957 = vunpack.c.l.b16 %v1231
        %v3958 = vunpack.c.h.b16 %v1231
        %v3959 = vunpack.c.l.b16 %v1232
        %v3960 = vunpack.c.h.b16 %v1232
        %v3961 = vunpack.c.l.b16 %v1233
        %v3962 = vunpack.c.h.b16 %v1233
        %v3963 = vunpack.c.l.b16 %v1234
        %v3964 = vunpack.c.h.b16 %v1234
        %v3965 = vunpack.c.l.b16 %v1235
        %v3966 = vunpack.c.h.b16 %v1235
        %v3967 = vunpack.c.l.b16 %v1236
        %v3968 = vunpack.c.h.b16 %v1236
        %v3969 = vunpack.c.l.b16 %v1237
        %v3970 = vunpack.c.h.b16 %v1237
        %v3971 = vunpack.c.l.b16 %v1238
        %v3972 = vunpack.c.h.b16 %v1238
        %v3973 = vunpack.c.l.b16 %v1239
        %v3974 = vunpack.c.h.b16 %v1239
        %v3975 = vunpack.c.l.b16 %v1240
        %v3976 = vunpack.c.h.b16 %v1240
        %v3977 = vunpack.c.l.b16 %v1241
        %v3978 = vunpack.c.h.b16 %v1241
        %v3979 = vunpack.c.l.b16 %v1242
        %v3980 = vunpack.c.h.b16 %v1242
        %v3981 = vunpack.c.l.b16 %v1243
        %v3982 = vunpack.c.h.b16 %v1243
        %v3983 = vunpack.c.l.b16 %v1244
        %v3984 = vunpack.c.h.b16 %v1244
        %v3985 = vunpack.c.l.b16 %v1245
        %v3986 = vunpack.c.h.b16 %v1245
        %v3987 = vunpack.c.l.b16 %v1246
        %v3988 = vunpack.c.h.b16 %v1246
        %v3989 = vunpack.c.l.b16 %v1247
        %v3990 = vunpack.c.h.b16 %v1247
        %v3991 = vunpack.c.l.b16 %v1248
        %v3992 = vunpack.c.h.b16 %v1248
        %v3993 = vunpack.c.l.b16 %v1249
        %v3994 = vunpack.c.h.b16 %v1249
        %v3995 = vunpack.c.l.b16 %v1250
        %v3996 = vunpack.c.h.b16 %v1250
        %v3997 = vunpack.c.l.b16 %v1251
        %v3998 = vunpack.c.h.b16 %v1251
        %v3999 = vunpack.c.l.b16 %v1252
        %v4000 = vunpack.c.h.b16 %v1252
        %v4001 = vunpack.c.l.b16 %v1253
        %v4002 = vunpack.c.h.b16 %v1253
        %v4003 = vunpack.c.l.b16 %v1254
        %v4004 = vunpack.c.h.b16 %v1254
        %v4005 = vunpack.c.l.b16 %v1255
        %v4006 = vunpack.c.h.b16 %v1255
        %v4007 = vunpack.c.l.b16 %v1256
        %v4008 = vunpack.c.h.b16 %v1256
        %v4009 = vunpack.c.l.b16 %v1257
        %v4010 = vunpack.c.h.b16 %v1257
        %v4011 = vunpack.c.l.b16 %v1258
        %v4012 = vunpack.c.h.b16 %v1258
        %v4013 = vunpack.c.l.b16 %v1259
        %v4014 = vunpack.c.h.b16 %v1259
        %v4015 = vunpack.c.l.b16 %v1260
        %v4016 = vunpack.c.h.b16 %v1260
        %v4017 = vunpack.c.l.b16 %v1261
        %v4018 = vunpack.c.h.b16 %v1261
        %v4019 = vunpack.c.l.b16 %v1262
        %v4020 = vunpack.c.h.b16 %v1262
        %v4021 = vunpack.c.l.b16 %v1263
        %v4022 = vunpack.c.h.b16 %v1263
        %v4023 = vunpack.c.l.b16 %v1264
        %v4024 = vunpack.c.h.b16 %v1264
        %v4025 = vunpack.c.l.b16 %v1265
        %v4026 = vunpack.c.h.b16 %v1265
        %v4027 = vunpack.c.l.b16 %v1266
        %v4028 = vunpack.c.h.b16 %v1266
        %v4029 = vunpack.c.l.b16 %v1267
        %v4030 = vunpack.c.h.b16 %v1267
        %v4031 = vunpack.c.l.b16 %v1268
        %v4032 = vunpack.c.h.b16 %v1268
        %v4033 = vunpack.c.l.b16 %v1269
        %v4034 = vunpack.c.h.b16 %v1269
        %v4035 = vunpack.c.l.b16 %v1270
        %v4036 = vunpack.c.h.b16 %v1270
        %v4037 = vunpack.c.l.b16 %v1271
        %v4038 = vunpack.c.h.b16 %v1271
        %v4039 = vunpack.c.l.b16 %v1272
        %v4040 = vunpack.c.h.b16 %v1272
        %v4041 = vunpack.c.l.b16 %v1273
        %v4042 = vunpack.c.h.b16 %v1273
        %v4043 = vunpack.c.l.b16 %v1274
        %v4044 = vunpack.c.h.b16 %v1274
        %v4045 = vunpack.c.l.b16 %v1275
        %v4046 = vunpack.c.h.b16 %v1275
        %v4047 = vunpack.c.l.b16 %v1276
        %v4048 = vunpack.c.h.b16 %v1276
        %v4049 = vunpack.c.l.b16 %v1277
        %v4050 = vunpack.c.h.b16 %v1277
        %v4051 = vunpack.c.l.b16 %v1278
        %v4052 = vunpack.c.h.b16 %v1278
        %v4053 = vunpack.c.l.b16 %v1279
        %v4054 = vunpack.c.h.b16 %v1279
        %v4055 = vunpack.c.l.b16 %v1280
        %v4056 = vunpack.c.h.b16 %v1280
        %v4057 = vunpack.c.l.b16 %v1281
        %v4058 = vunpack.c.h.b16 %v1281
        %v4059 = vunpack.c.l.b16 %v1282
        %v4060 = vunpack.c.h.b16 %v1282
        %v4061 = vunpack.c.l.b16 %v1283
        %v4062 = vunpack.c.h.b16 %v1283
        %v4063 = vunpack.c.l.b16 %v1284
        %v4064 = vunpack.c.h.b16 %v1284
        %v4065 = vunpack.c.l.b16 %v1285
        %v4066 = vunpack.c.h.b16 %v1285
        %v4067 = vunpack.c.l.b16 %v1286
        %v4068 = vunpack.c.h.b16 %v1286
        %v4069 = vunpack.c.l.b16 %v1287
        %v4070 = vunpack.c.h.b16 %v1287
        %v4071 = vunpack.c.l.b16 %v1288
        %v4072 = vunpack.c.h.b16 %v1288
        %v4073 = vunpack.c.l.b16 %v1289
        %v4074 = vunpack.c.h.b16 %v1289
        %v4075 = vunpack.c.l.b16 %v1290
        %v4076 = vunpack.c.h.b16 %v1290
        %v4077 = vunpack.c.l.b16 %v1291
        %v4078 = vunpack.c.h.b16 %v1291
        %v4079 = vunpack.c.l.b16 %v1292
        %v4080 = vunpack.c.h.b16 %v1292
        %v4081 = vunpack.c.l.b16 %v1293
        %v4082 = vunpack.c.h.b16 %v1293
        %v4083 = vunpack.c.l.b16 %v1294
        %v4084 = vunpack.c.h.b16 %v1294
        %v4085 = vunpack.c.l.b16 %v1295
        %v4086 = vunpack.c.h.b16 %v1295
        %v4087 = vunpack.c.l.b16 %v1296
        %v4088 = vunpack.c.h.b16 %v1296
        %v4089 = vunpack.c.l.b16 %v1297
        %v4090 = vunpack.c.h.b16 %v1297
        %v4091 = vunpack.c.l.b16 %v1298
        %v4092 = vunpack.c.h.b16 %v1298
        %v4093 = vunpack.c.l.b16 %v1299
        %v4094 = vunpack.c.h.b16 %v1299
        %v4095 = vunpack.c.l.b16 %v1300
        %v4096 = vunpack.c.h.b16 %v1300
        %v4097 = vunpack.c.l.b16 %v1301
        %v4098 = vunpack.c.h.b16 %v1301
        %v4099 = vunpack.c.l.b16 %v1302
        %v4100 = vunpack.c.h.b16 %v1302
        %v4101 = vunpack.c.l.b16 %v1303
        %v4102 = vunpack.c.h.b16 %v1303
        %v4103 = vunpack.c.l.b16 %v1304
        %v4104 = vunpack.c.h.b16 %v1304
        %v4105 = vunpack.c.l.b16 %v1305
        %v4106 = vunpack.c.h.b16 %v1305
        %v4107 = vunpack.c.l.b16 %v1306
        %v4108 = vunpack.c.h.b16 %v1306
        %v4109 = vunpack.c.l.b16 %v1307
        %v4110 = vunpack.c.h.b16 %v1307
        %v4111 = vunpack.c.l.b16 %v1308
        %v4112 = vunpack.c.h.b16 %v1308
        %v4113 = vunpack.c.l.b16 %v1309
        %v4114 = vunpack.c.h.b16 %v1309
        %v4115 = vunpack.c.l.b16 %v1310
        %v4116 = vunpack.c.h.b16 %v1310
        %v4117 = vunpack.c.l.b16 %v1311
        %v4118 = vunpack.c.h.b16 %v1311
        %v4119 = vunpack.c.l.b16 %v1312
        %v4120 = vunpack.c.h.b16 %v1312
        %v4121 = vunpack.c.l.b16 %v1313
        %v4122 = vunpack.c.h.b16 %v1313
        %v4123 = vunpack.c.l.b16 %v1314
        %v4124 = vunpack.c.h.b16 %v1314
        %v4125 = vunpack.c.l.b16 %v1315
        %v4126 = vunpack.c.h.b16 %v1315
        %v4127 = vunpack.c.l.b16 %v1316
        %v4128 = vunpack.c.h.b16 %v1316
        %v4129 = vunpack.c.l.b16 %v1317
        %v4130 = vunpack.c.h.b16 %v1317
        %v4131 = vunpack.c.l.b16 %v1318
        %v4132 = vunpack.c.h.b16 %v1318
        %v4133 = vunpack.c.l.b16 %v1319
        %v4134 = vunpack.c.h.b16 %v1319
        %v4135 = vunpack.c.l.b16 %v1320
        %v4136 = vunpack.c.h.b16 %v1320
        %v4137 = vunpack.c.l.b16 %v1321
        %v4138 = vunpack.c.h.b16 %v1321
        %v4139 = vunpack.c.l.b16 %v1322
        %v4140 = vunpack.c.h.b16 %v1322
        %v4141 = vunpack.c.l.b16 %v1323
        %v4142 = vunpack.c.h.b16 %v1323
        %v4143 = vunpack.c.l.b16 %v1324
        %v4144 = vunpack.c.h.b16 %v1324
        %v4145 = vunpack.c.l.b16 %v1325
        %v4146 = vunpack.c.h.b16 %v1325
        %v4147 = vunpack.c.l.b16 %v1326
        %v4148 = vunpack.c.h.b16 %v1326
        %v4149 = vunpack.c.l.b16 %v1327
        %v4150 = vunpack.c.h.b16 %v1327
        %v4151 = vunpack.c.l.b16 %v1328
        %v4152 = vunpack.c.h.b16 %v1328
        %v4153 = vunpack.c.l.b16 %v1329
        %v4154 = vunpack.c.h.b16 %v1329
        %v4155 = vunpack.c.l.b16 %v1330
        %v4156 = vunpack.c.h.b16 %v1330
        %v4157 = vunpack.c.l.b16 %v1331
        %v4158 = vunpack.c.h.b16 %v1331
        %v4159 = vunpack.c.l.b16 %v1332
        %v4160 = vunpack.c.h.b16 %v1332
        %v4161 = vunpack.c.l.b16 %v1333
        %v4162 = vunpack.c.h.b16 %v1333
        %v4163 = vunpack.c.l.b16 %v1334
        %v4164 = vunpack.c.h.b16 %v1334
        %v4165 = vunpack.c.l.b16 %v1335
        %v4166 = vunpack.c.h.b16 %v1335
        %v4167 = vunpack.c.l.b16 %v1336
        %v4168 = vunpack.c.h.b16 %v1336
        %v4169 = vunpack.c.l.b16 %v1337
        %v4170 = vunpack.c.h.b16 %v1337
        %v4171 = vunpack.c.l.b16 %v1338
        %v4172 = vunpack.c.h.b16 %v1338
        %v4173 = vunpack.c.l.b16 %v1339
        %v4174 = vunpack.c.h.b16 %v1339
        %v4175 = vunpack.c.l.b16 %v1340
        %v4176 = vunpack.c.h.b16 %v1340
        %v4177 = vunpack.c.l.b16 %v1341
        %v4178 = vunpack.c.h.b16 %v1341
        %v4179 = vunpack.c.l.b16 %v1342
        %v4180 = vunpack.c.h.b16 %v1342
        %v4181 = vunpack.c.l.b16 %v1343
        %v4182 = vunpack.c.h.b16 %v1343
        %v4183 = vunpack.c.l.b16 %v1344
        %v4184 = vunpack.c.h.b16 %v1344
        %v4185 = vunpack.c.l.b16 %v1345
        %v4186 = vunpack.c.h.b16 %v1345
        %v4187 = vunpack.c.l.b16 %v1346
        %v4188 = vunpack.c.h.b16 %v1346
        %v4189 = vunpack.c.l.b16 %v1347
        %v4190 = vunpack.c.h.b16 %v1347
        %v4191 = vunpack.c.l.b16 %v1348
        %v4192 = vunpack.c.h.b16 %v1348
        %v4193 = vunpack.c.l.b16 %v1349
        %v4194 = vunpack.c.h.b16 %v1349
        %v4195 = vunpack.c.l.b16 %v1350
        %v4196 = vunpack.c.h.b16 %v1350
        %v4197 = vunpack.c.l.b16 %v1351
        %v4198 = vunpack.c.h.b16 %v1351
        %v4199 = vunpack.c.l.b16 %v1352
        %v4200 = vunpack.c.h.b16 %v1352
        %v4201 = vunpack.c.l.b16 %v1353
        %v4202 = vunpack.c.h.b16 %v1353
        %v4203 = vunpack.c.l.b16 %v1354
        %v4204 = vunpack.c.h.b16 %v1354
        %v4205 = vunpack.c.l.b16 %v1355
        %v4206 = vunpack.c.h.b16 %v1355
        %v4207 = vunpack.c.l.b16 %v1356
        %v4208 = vunpack.c.h.b16 %v1356
        %v4209 = vunpack.c.l.b16 %v1357
        %v4210 = vunpack.c.h.b16 %v1357
        %v4211 = vunpack.c.l.b16 %v1358
        %v4212 = vunpack.c.h.b16 %v1358
        %v4213 = vunpack.c.l.b16 %v1359
        %v4214 = vunpack.c.h.b16 %v1359
        %v4215 = vunpack.c.l.b16 %v1360
        %v4216 = vunpack.c.h.b16 %v1360
        %v4217 = vunpack.c.l.b16 %v1361
        %v4218 = vunpack.c.h.b16 %v1361
        %v4219 = vunpack.c.l.b16 %v1362
        %v4220 = vunpack.c.h.b16 %v1362
        %v4221 = vunpack.c.l.b16 %v1363
        %v4222 = vunpack.c.h.b16 %v1363
        %v4223 = vunpack.c.l.b16 %v1364
        %v4224 = vunpack.c.h.b16 %v1364
        %v4225 = vunpack.c.l.b16 %v1365
        %v4226 = vunpack.c.h.b16 %v1365
        %v4227 = vunpack.c.l.b16 %v1366
        %v4228 = vunpack.c.h.b16 %v1366
        %v4229 = vunpack.c.l.b16 %v1367
        %v4230 = vunpack.c.h.b16 %v1367
        %v4231 = vunpack.c.l.b16 %v1368
        %v4232 = vunpack.c.h.b16 %v1368
        %v4233 = vunpack.c.l.b16 %v1369
        %v4234 = vunpack.c.h.b16 %v1369
        %v4235 = vunpack.c.l.b16 %v1370
        %v4236 = vunpack.c.h.b16 %v1370
        %v4237 = vunpack.c.l.b16 %v1371
        %v4238 = vunpack.c.h.b16 %v1371
        %v4239 = vunpack.c.l.b16 %v1372
        %v4240 = vunpack.c.h.b16 %v1372
        %v4241 = vunpack.c.l.b16 %v1373
        %v4242 = vunpack.c.h.b16 %v1373
        %v4243 = vunpack.c.l.b16 %v1374
        %v4244 = vunpack.c.h.b16 %v1374
        %v4245 = vunpack.c.l.b16 %v1375
        %v4246 = vunpack.c.h.b16 %v1375
        %v4247 = vunpack.c.l.b16 %v1376
        %v4248 = vunpack.c.h.b16 %v1376
        %v4249 = vunpack.c.l.b16 %v1377
        %v4250 = vunpack.c.h.b16 %v1377
        %v4251 = vunpack.c.l.b16 %v1378
        %v4252 = vunpack.c.h.b16 %v1378
        %v4253 = vunpack.c.l.b16 %v1379
        %v4254 = vunpack.c.h.b16 %v1379
        %v4255 = vunpack.c.l.b16 %v1380
        %v4256 = vunpack.c.h.b16 %v1380
        %v4257 = vunpack.c.l.b16 %v1381
        %v4258 = vunpack.c.h.b16 %v1381
        %v4259 = vunpack.c.l.b16 %v1382
        %v4260 = vunpack.c.h.b16 %v1382
        %v4261 = vunpack.c.l.b16 %v1383
        %v4262 = vunpack.c.h.b16 %v1383
        %v4263 = vunpack.c.l.b16 %v1384
        %v4264 = vunpack.c.h.b16 %v1384
        %v4265 = vpack.c.b16 %v2353, %v2345
        %v4266 = vpack.c.b16 %v2354, %v2346
        %v4267 = vpack.c.b16 %v2355, %v2347
        %v4268 = vpack.c.b16 %v2356, %v2348
        %v4269 = vpack.c.b16 %v2357, %v2349
        %v4270 = vpack.c.b16 %v2358, %v2350
        %v4271 = vpack.c.b16 %v2359, %v2351
        %v4272 = vpack.c.b16 %v2360, %v2352
        %v4273 = vpack.c.b16 %v2369, %v2361
        %v4274 = vpack.c.b16 %v2370, %v2362
        %v4275 = vpack.c.b16 %v2371, %v2363
        %v4276 = vpack.c.b16 %v2372, %v2364
        %v4277 = vpack.c.b16 %v2373, %v2365
        %v4278 = vpack.c.b16 %v2374, %v2366
        %v4279 = vpack.c.b16 %v2375, %v2367
        %v4280 = vpack.c.b16 %v2376, %v2368
        %v4281 = vpack.c.b16 %v2385, %v2377
        %v4282 = vpack.c.b16 %v2386, %v2378
        %v4283 = vpack.c.b16 %v2387, %v2379
        %v4284 = vpack.c.b16 %v2388, %v2380
        %v4285 = vpack.c.b16 %v2389, %v2381
        %v4286 = vpack.c.b16 %v2390, %v2382
        %v4287 = vpack.c.b16 %v2391, %v2383
        %v4288 = vpack.c.b16 %v2392, %v2384
        %v4289 = vpack.c.b16 %v2401, %v2393
        %v4290 = vpack.c.b16 %v2402, %v2394
        %v4291 = vpack.c.b16 %v2403, %v2395
        %v4292 = vpack.c.b16 %v2404, %v2396
        %v4293 = vpack.c.b16 %v2405, %v2397
        %v4294 = vpack.c.b16 %v2406, %v2398
        %v4295 = vpack.c.b16 %v2407, %v2399
        %v4296 = vpack.c.b16 %v2408, %v2400
        %v4297 = vpack.c.b16 %v2417, %v2409
        %v4298 = vpack.c.b16 %v2418, %v2410
        %v4299 = vpack.c.b16 %v2419, %v2411
        %v4300 = vpack.c.b16 %v2420, %v2412
        %v4301 = vpack.c.b16 %v2421, %v2413
        %v4302 = vpack.c.b16 %v2422, %v2414
        %v4303 = vpack.c.b16 %v2423, %v2415
        %v4304 = vpack.c.b16 %v2424, %v2416
        %v4305 = vpack.c.b16 %v2433, %v2425
        %v4306 = vpack.c.b16 %v2434, %v2426
        %v4307 = vpack.c.b16 %v2435, %v2427
        %v4308 = vpack.c.b16 %v2436, %v2428
        %v4309 = vpack.c.b16 %v2437, %v2429
        %v4310 = vpack.c.b16 %v2438, %v2430
        %v4311 = vpack.c.b16 %v2439, %v2431
        %v4312 = vpack.c.b16 %v2440, %v2432
        %v4313 = vpack.c.b16 %v2449, %v2441
        %v4314 = vpack.c.b16 %v2450, %v2442
        %v4315 = vpack.c.b16 %v2451, %v2443
        %v4316 = vpack.c.b16 %v2452, %v2444
        %v4317 = vpack.c.b16 %v2453, %v2445
        %v4318 = vpack.c.b16 %v2454, %v2446
        %v4319 = vpack.c.b16 %v2455, %v2447
        %v4320 = vpack.c.b16 %v2456, %v2448
        %v4321 = vpack.c.b16 %v2465, %v2457
        %v4322 = vpack.c.b16 %v2466, %v2458
        %v4323 = vpack.c.b16 %v2467, %v2459
        %v4324 = vpack.c.b16 %v2468, %v2460
        %v4325 = vpack.c.b16 %v2469, %v2461
        %v4326 = vpack.c.b16 %v2470, %v2462
        %v4327 = vpack.c.b16 %v2471, %v2463
        %v4328 = vpack.c.b16 %v2472, %v2464
        %v4329 = vpack.c.b16 %v2481, %v2473
        %v4330 = vpack.c.b16 %v2482, %v2474
        %v4331 = vpack.c.b16 %v2483, %v2475
        %v4332 = vpack.c.b16 %v2484, %v2476
        %v4333 = vpack.c.b16 %v2485, %v2477
        %v4334 = vpack.c.b16 %v2486, %v2478
        %v4335 = vpack.c.b16 %v2487, %v2479
        %v4336 = vpack.c.b16 %v2488, %v2480
        %v4337 = vpack.c.b16 %v2497, %v2489
        %v4338 = vpack.c.b16 %v2498, %v2490
        %v4339 = vpack.c.b16 %v2499, %v2491
        %v4340 = vpack.c.b16 %v2500, %v2492
        %v4341 = vpack.c.b16 %v2501, %v2493
        %v4342 = vpack.c.b16 %v2502, %v2494
        %v4343 = vpack.c.b16 %v2503, %v2495
        %v4344 = vpack.c.b16 %v2504, %v2496
        %v4345 = vpack.c.b16 %v2513, %v2505
        %v4346 = vpack.c.b16 %v2514, %v2506
        %v4347 = vpack.c.b16 %v2515, %v2507
        %v4348 = vpack.c.b16 %v2516, %v2508
        %v4349 = vpack.c.b16 %v2517, %v2509
        %v4350 = vpack.c.b16 %v2518, %v2510
        %v4351 = vpack.c.b16 %v2519, %v2511
        %v4352 = vpack.c.b16 %v2520, %v2512
        %v4353 = vpack.c.b16 %v2529, %v2521
        %v4354 = vpack.c.b16 %v2530, %v2522
        %v4355 = vpack.c.b16 %v2531, %v2523
        %v4356 = vpack.c.b16 %v2532, %v2524
        %v4357 = vpack.c.b16 %v2533, %v2525
        %v4358 = vpack.c.b16 %v2534, %v2526
        %v4359 = vpack.c.b16 %v2535, %v2527
        %v4360 = vpack.c.b16 %v2536, %v2528
        %v4361 = vpack.c.b16 %v2545, %v2537
        %v4362 = vpack.c.b16 %v2546, %v2538
        %v4363 = vpack.c.b16 %v2547, %v2539
        %v4364 = vpack.c.b16 %v2548, %v2540
        %v4365 = vpack.c.b16 %v2549, %v2541
        %v4366 = vpack.c.b16 %v2550, %v2542
        %v4367 = vpack.c.b16 %v2551, %v2543
        %v4368 = vpack.c.b16 %v2552, %v2544
        %v4369 = vpack.c.b16 %v2561, %v2553
        %v4370 = vpack.c.b16 %v2562, %v2554
        %v4371 = vpack.c.b16 %v2563, %v2555
        %v4372 = vpack.c.b16 %v2564, %v2556
        %v4373 = vpack.c.b16 %v2565, %v2557
        %v4374 = vpack.c.b16 %v2566, %v2558
        %v4375 = vpack.c.b16 %v2567, %v2559
        %v4376 = vpack.c.b16 %v2568, %v2560
        %v4377 = vpack.c.b16 %v2577, %v2569
        %v4378 = vpack.c.b16 %v2578, %v2570
        %v4379 = vpack.c.b16 %v2579, %v2571
        %v4380 = vpack.c.b16 %v2580, %v2572
        %v4381 = vpack.c.b16 %v2581, %v2573
        %v4382 = vpack.c.b16 %v2582, %v2574
        %v4383 = vpack.c.b16 %v2583, %v2575
        %v4384 = vpack.c.b16 %v2584, %v2576
        %v4385 = vpack.c.b16 %v2593, %v2585
        %v4386 = vpack.c.b16 %v2594, %v2586
        %v4387 = vpack.c.b16 %v2595, %v2587
        %v4388 = vpack.c.b16 %v2596, %v2588
        %v4389 = vpack.c.b16 %v2597, %v2589
        %v4390 = vpack.c.b16 %v2598, %v2590
        %v4391 = vpack.c.b16 %v2599, %v2591
        %v4392 = vpack.c.b16 %v2600, %v2592
        %v4393 = vpack.c.b16 %v2609, %v2601
        %v4394 = vpack.c.b16 %v2610, %v2602
        %v4395 = vpack.c.b16 %v2611, %v2603
        %v4396 = vpack.c.b16 %v2612, %v2604
        %v4397 = vpack.c.b16 %v2613, %v2605
        %v4398 = vpack.c.b16 %v2614, %v2606
        %v4399 = vpack.c.b16 %v2615, %v2607
        %v4400 = vpack.c.b16 %v2616, %v2608
        %v4401 = vpack.c.b16 %v2625, %v2617
        %v4402 = vpack.c.b16 %v2626, %v2618
        %v4403 = vpack.c.b16 %v2627, %v2619
        %v4404 = vpack.c.b16 %v2628, %v2620
        %v4405 = vpack.c.b16 %v2629, %v2621
        %v4406 = vpack.c.b16 %v2630, %v2622
        %v4407 = vpack.c.b16 %v2631, %v2623
        %v4408 = vpack.c.b16 %v2632, %v2624
        %v4409 = vpack.c.b16 %v2641, %v2633
        %v4410 = vpack.c.b16 %v2642, %v2634
        %v4411 = vpack.c.b16 %v2643, %v2635
        %v4412 = vpack.c.b16 %v2644, %v2636
        %v4413 = vpack.c.b16 %v2645, %v2637
        %v4414 = vpack.c.b16 %v2646, %v2638
        %v4415 = vpack.c.b16 %v2647, %v2639
        %v4416 = vpack.c.b16 %v2648, %v2640
        %v4417 = vpack.c.b16 %v2657, %v2649
        %v4418 = vpack.c.b16 %v2658, %v2650
        %v4419 = vpack.c.b16 %v2659, %v2651
        %v4420 = vpack.c.b16 %v2660, %v2652
        %v4421 = vpack.c.b16 %v2661, %v2653
        %v4422 = vpack.c.b16 %v2662, %v2654
        %v4423 = vpack.c.b16 %v2663, %v2655
        %v4424 = vpack.c.b16 %v2664, %v2656
        %v4425 = vpack.c.b16 %v2673, %v2665
        %v4426 = vpack.c.b16 %v2674, %v2666
        %v4427 = vpack.c.b16 %v2675, %v2667
        %v4428 = vpack.c.b16 %v2676, %v2668
        %v4429 = vpack.c.b16 %v2677, %v2669
        %v4430 = vpack.c.b16 %v2678, %v2670
        %v4431 = vpack.c.b16 %v2679, %v2671
        %v4432 = vpack.c.b16 %v2680, %v2672
        %v4433 = vpack.c.b16 %v2689, %v2681
        %v4434 = vpack.c.b16 %v2690, %v2682
        %v4435 = vpack.c.b16 %v2691, %v2683
        %v4436 = vpack.c.b16 %v2692, %v2684
        %v4437 = vpack.c.b16 %v2693, %v2685
        %v4438 = vpack.c.b16 %v2694, %v2686
        %v4439 = vpack.c.b16 %v2695, %v2687
        %v4440 = vpack.c.b16 %v2696, %v2688
        %v4441 = vpack.c.b16 %v2705, %v2697
        %v4442 = vpack.c.b16 %v2706, %v2698
        %v4443 = vpack.c.b16 %v2707, %v2699
        %v4444 = vpack.c.b16 %v2708, %v2700
        %v4445 = vpack.c.b16 %v2709, %v2701
        %v4446 = vpack.c.b16 %v2710, %v2702
        %v4447 = vpack.c.b16 %v2711, %v2703
        %v4448 = vpack.c.b16 %v2712, %v2704
        %v4449 = vpack.c.b16 %v2721, %v2713
        %v4450 = vpack.c.b16 %v2722, %v2714
        %v4451 = vpack.c.b16 %v2723, %v2715
        %v4452 = vpack.c.b16 %v2724, %v2716
        %v4453 = vpack.c.b16 %v2725, %v2717
        %v4454 = vpack.c.b16 %v2726, %v2718
        %v4455 = vpack.c.b16 %v2727, %v2719
        %v4456 = vpack.c.b16 %v2728, %v2720
        %v4457 = vpack.c.b16 %v2737, %v2729
        %v4458 = vpack.c.b16 %v2738, %v2730
        %v4459 = vpack.c.b16 %v2739, %v2731
        %v4460 = vpack.c.b16 %v2740, %v2732
        %v4461 = vpack.c.b16 %v2741, %v2733
        %v4462 = vpack.c.b16 %v2742, %v2734
        %v4463 = vpack.c.b16 %v2743, %v2735
        %v4464 = vpack.c.b16 %v2744, %v2736
        %v4465 = vpack.c.b16 %v2753, %v2745
        %v4466 = vpack.c.b16 %v2754, %v2746
        %v4467 = vpack.c.b16 %v2755, %v2747
        %v4468 = vpack.c.b16 %v2756, %v2748
        %v4469 = vpack.c.b16 %v2757, %v2749
        %v4470 = vpack.c.b16 %v2758, %v2750
        %v4471 = vpack.c.b16 %v2759, %v2751
        %v4472 = vpack.c.b16 %v2760, %v2752
        %v4473 = vpack.c.b16 %v2769, %v2761
        %v4474 = vpack.c.b16 %v2770, %v2762
        %v4475 = vpack.c.b16 %v2771, %v2763
        %v4476 = vpack.c.b16 %v2772, %v2764
        %v4477 = vpack.c.b16 %v2773, %v2765
        %v4478 = vpack.c.b16 %v2774, %v2766
        %v4479 = vpack.c.b16 %v2775, %v2767
        %v4480 = vpack.c.b16 %v2776, %v2768
        %v4481 = vpack.c.b16 %v2785, %v2777
        %v4482 = vpack.c.b16 %v2786, %v2778
        %v4483 = vpack.c.b16 %v2787, %v2779
        %v4484 = vpack.c.b16 %v2788, %v2780
        %v4485 = vpack.c.b16 %v2789, %v2781
        %v4486 = vpack.c.b16 %v2790, %v2782
        %v4487 = vpack.c.b16 %v2791, %v2783
        %v4488 = vpack.c.b16 %v2792, %v2784
        %v4489 = vpack.c.b16 %v2801, %v2793
        %v4490 = vpack.c.b16 %v2802, %v2794
        %v4491 = vpack.c.b16 %v2803, %v2795
        %v4492 = vpack.c.b16 %v2804, %v2796
        %v4493 = vpack.c.b16 %v2805, %v2797
        %v4494 = vpack.c.b16 %v2806, %v2798
        %v4495 = vpack.c.b16 %v2807, %v2799
        %v4496 = vpack.c.b16 %v2808, %v2800
        %v4497 = vpack.c.b16 %v2817, %v2809
        %v4498 = vpack.c.b16 %v2818, %v2810
        %v4499 = vpack.c.b16 %v2819, %v2811
        %v4500 = vpack.c.b16 %v2820, %v2812
        %v4501 = vpack.c.b16 %v2821, %v2813
        %v4502 = vpack.c.b16 %v2822, %v2814
        %v4503 = vpack.c.b16 %v2823, %v2815
        %v4504 = vpack.c.b16 %v2824, %v2816
        %v4505 = vpack.c.b16 %v2833, %v2825
        %v4506 = vpack.c.b16 %v2834, %v2826
        %v4507 = vpack.c.b16 %v2835, %v2827
        %v4508 = vpack.c.b16 %v2836, %v2828
        %v4509 = vpack.c.b16 %v2837, %v2829
        %v4510 = vpack.c.b16 %v2838, %v2830
        %v4511 = vpack.c.b16 %v2839, %v2831
        %v4512 = vpack.c.b16 %v2840, %v2832
        %v4513 = vpack.c.b16 %v2849, %v2841
        %v4514 = vpack.c.b16 %v2850, %v2842
        %v4515 = vpack.c.b16 %v2851, %v2843
        %v4516 = vpack.c.b16 %v2852, %v2844
        %v4517 = vpack.c.b16 %v2853, %v2845
        %v4518 = vpack.c.b16 %v2854, %v2846
        %v4519 = vpack.c.b16 %v2855, %v2847
        %v4520 = vpack.c.b16 %v2856, %v2848
        %v4521 = vpack.c.b16 %v2865, %v2857
        %v4522 = vpack.c.b16 %v2866, %v2858
        %v4523 = vpack.c.b16 %v2867, %v2859
        %v4524 = vpack.c.b16 %v2868, %v2860
        %v4525 = vpack.c.b16 %v2869, %v2861
        %v4526 = vpack.c.b16 %v2870, %v2862
        %v4527 = vpack.c.b16 %v2871, %v2863
        %v4528 = vpack.c.b16 %v2872, %v2864
        %v4529 = vpack.c.b16 %v2881, %v2873
        %v4530 = vpack.c.b16 %v2882, %v2874
        %v4531 = vpack.c.b16 %v2883, %v2875
        %v4532 = vpack.c.b16 %v2884, %v2876
        %v4533 = vpack.c.b16 %v2885, %v2877
        %v4534 = vpack.c.b16 %v2886, %v2878
        %v4535 = vpack.c.b16 %v2887, %v2879
        %v4536 = vpack.c.b16 %v2888, %v2880
        %v4537 = vpack.c.b16 %v2897, %v2889
        %v4538 = vpack.c.b16 %v2898, %v2890
        %v4539 = vpack.c.b16 %v2899, %v2891
        %v4540 = vpack.c.b16 %v2900, %v2892
        %v4541 = vpack.c.b16 %v2901, %v2893
        %v4542 = vpack.c.b16 %v2902, %v2894
        %v4543 = vpack.c.b16 %v2903, %v2895
        %v4544 = vpack.c.b16 %v2904, %v2896
        %v4545 = vpack.c.b16 %v2913, %v2905
        %v4546 = vpack.c.b16 %v2914, %v2906
        %v4547 = vpack.c.b16 %v2915, %v2907
        %v4548 = vpack.c.b16 %v2916, %v2908
        %v4549 = vpack.c.b16 %v2917, %v2909
        %v4550 = vpack.c.b16 %v2918, %v2910
        %v4551 = vpack.c.b16 %v2919, %v2911
        %v4552 = vpack.c.b16 %v2920, %v2912
        %v4553 = vpack.c.b16 %v2929, %v2921
        %v4554 = vpack.c.b16 %v2930, %v2922
        %v4555 = vpack.c.b16 %v2931, %v2923
        %v4556 = vpack.c.b16 %v2932, %v2924
        %v4557 = vpack.c.b16 %v2933, %v2925
        %v4558 = vpack.c.b16 %v2934, %v2926
        %v4559 = vpack.c.b16 %v2935, %v2927
        %v4560 = vpack.c.b16 %v2936, %v2928
        %v4561 = vpack.c.b16 %v2945, %v2937
        %v4562 = vpack.c.b16 %v2946, %v2938
        %v4563 = vpack.c.b16 %v2947, %v2939
        %v4564 = vpack.c.b16 %v2948, %v2940
        %v4565 = vpack.c.b16 %v2949, %v2941
        %v4566 = vpack.c.b16 %v2950, %v2942
        %v4567 = vpack.c.b16 %v2951, %v2943
        %v4568 = vpack.c.b16 %v2952, %v2944
        %v4569 = vpack.c.b16 %v2961, %v2953
        %v4570 = vpack.c.b16 %v2962, %v2954
        %v4571 = vpack.c.b16 %v2963, %v2955
        %v4572 = vpack.c.b16 %v2964, %v2956
        %v4573 = vpack.c.b16 %v2965, %v2957
        %v4574 = vpack.c.b16 %v2966, %v2958
        %v4575 = vpack.c.b16 %v2967, %v2959
        %v4576 = vpack.c.b16 %v2968, %v2960
        %v4577 = vpack.c.b16 %v2977, %v2969
        %v4578 = vpack.c.b16 %v2978, %v2970
        %v4579 = vpack.c.b16 %v2979, %v2971
        %v4580 = vpack.c.b16 %v2980, %v2972
        %v4581 = vpack.c.b16 %v2981, %v2973
        %v4582 = vpack.c.b16 %v2982, %v2974
        %v4583 = vpack.c.b16 %v2983, %v2975
        %v4584 = vpack.c.b16 %v2984, %v2976
        %v4585 = vpack.c.b16 %v2993, %v2985
        %v4586 = vpack.c.b16 %v2994, %v2986
        %v4587 = vpack.c.b16 %v2995, %v2987
        %v4588 = vpack.c.b16 %v2996, %v2988
        %v4589 = vpack.c.b16 %v2997, %v2989
        %v4590 = vpack.c.b16 %v2998, %v2990
        %v4591 = vpack.c.b16 %v2999, %v2991
        %v4592 = vpack.c.b16 %v3000, %v2992
        %v4593 = vpack.c.b16 %v3009, %v3001
        %v4594 = vpack.c.b16 %v3010, %v3002
        %v4595 = vpack.c.b16 %v3011, %v3003
        %v4596 = vpack.c.b16 %v3012, %v3004
        %v4597 = vpack.c.b16 %v3013, %v3005
        %v4598 = vpack.c.b16 %v3014, %v3006
        %v4599 = vpack.c.b16 %v3015, %v3007
        %v4600 = vpack.c.b16 %v3016, %v3008
        %v4601 = vpack.c.b16 %v3025, %v3017
        %v4602 = vpack.c.b16 %v3026, %v3018
        %v4603 = vpack.c.b16 %v3027, %v3019
        %v4604 = vpack.c.b16 %v3028, %v3020
        %v4605 = vpack.c.b16 %v3029, %v3021
        %v4606 = vpack.c.b16 %v3030, %v3022
        %v4607 = vpack.c.b16 %v3031, %v3023
        %v4608 = vpack.c.b16 %v3032, %v3024
        %v4609 = vpack.c.b16 %v3041, %v3033
        %v4610 = vpack.c.b16 %v3042, %v3034
        %v4611 = vpack.c.b16 %v3043, %v3035
        %v4612 = vpack.c.b16 %v3044, %v3036
        %v4613 = vpack.c.b16 %v3045, %v3037
        %v4614 = vpack.c.b16 %v3046, %v3038
        %v4615 = vpack.c.b16 %v3047, %v3039
        %v4616 = vpack.c.b16 %v3048, %v3040
        %v4617 = vpack.c.b16 %v3057, %v3049
        %v4618 = vpack.c.b16 %v3058, %v3050
        %v4619 = vpack.c.b16 %v3059, %v3051
        %v4620 = vpack.c.b16 %v3060, %v3052
        %v4621 = vpack.c.b16 %v3061, %v3053
        %v4622 = vpack.c.b16 %v3062, %v3054
        %v4623 = vpack.c.b16 %v3063, %v3055
        %v4624 = vpack.c.b16 %v3064, %v3056
        %v4625 = vpack.c.b16 %v3073, %v3065
        %v4626 = vpack.c.b16 %v3074, %v3066
        %v4627 = vpack.c.b16 %v3075, %v3067
        %v4628 = vpack.c.b16 %v3076, %v3068
        %v4629 = vpack.c.b16 %v3077, %v3069
        %v4630 = vpack.c.b16 %v3078, %v3070
        %v4631 = vpack.c.b16 %v3079, %v3071
        %v4632 = vpack.c.b16 %v3080, %v3072
        %v4633 = vpack.c.b16 %v3089, %v3081
        %v4634 = vpack.c.b16 %v3090, %v3082
        %v4635 = vpack.c.b16 %v3091, %v3083
        %v4636 = vpack.c.b16 %v3092, %v3084
        %v4637 = vpack.c.b16 %v3093, %v3085
        %v4638 = vpack.c.b16 %v3094, %v3086
        %v4639 = vpack.c.b16 %v3095, %v3087
        %v4640 = vpack.c.b16 %v3096, %v3088
        %v4641 = vpack.c.b16 %v3105, %v3097
        %v4642 = vpack.c.b16 %v3106, %v3098
        %v4643 = vpack.c.b16 %v3107, %v3099
        %v4644 = vpack.c.b16 %v3108, %v3100
        %v4645 = vpack.c.b16 %v3109, %v3101
        %v4646 = vpack.c.b16 %v3110, %v3102
        %v4647 = vpack.c.b16 %v3111, %v3103
        %v4648 = vpack.c.b16 %v3112, %v3104
        %v4649 = vpack.c.b16 %v3121, %v3113
        %v4650 = vpack.c.b16 %v3122, %v3114
        %v4651 = vpack.c.b16 %v3123, %v3115
        %v4652 = vpack.c.b16 %v3124, %v3116
        %v4653 = vpack.c.b16 %v3125, %v3117
        %v4654 = vpack.c.b16 %v3126, %v3118
        %v4655 = vpack.c.b16 %v3127, %v3119
        %v4656 = vpack.c.b16 %v3128, %v3120
        %v4657 = vpack.c.b16 %v3137, %v3129
        %v4658 = vpack.c.b16 %v3138, %v3130
        %v4659 = vpack.c.b16 %v3139, %v3131
        %v4660 = vpack.c.b16 %v3140, %v3132
        %v4661 = vpack.c.b16 %v3141, %v3133
        %v4662 = vpack.c.b16 %v3142, %v3134
        %v4663 = vpack.c.b16 %v3143, %v3135
        %v4664 = vpack.c.b16 %v3144, %v3136
        %v4665 = vpack.c.b16 %v3153, %v3145
        %v4666 = vpack.c.b16 %v3154, %v3146
        %v4667 = vpack.c.b16 %v3155, %v3147
        %v4668 = vpack.c.b16 %v3156, %v3148
        %v4669 = vpack.c.b16 %v3157, %v3149
        %v4670 = vpack.c.b16 %v3158, %v3150
        %v4671 = vpack.c.b16 %v3159, %v3151
        %v4672 = vpack.c.b16 %v3160, %v3152
        %v4673 = vpack.c.b16 %v3169, %v3161
        %v4674 = vpack.c.b16 %v3170, %v3162
        %v4675 = vpack.c.b16 %v3171, %v3163
        %v4676 = vpack.c.b16 %v3172, %v3164
        %v4677 = vpack.c.b16 %v3173, %v3165
        %v4678 = vpack.c.b16 %v3174, %v3166
        %v4679 = vpack.c.b16 %v3175, %v3167
        %v4680 = vpack.c.b16 %v3176, %v3168
        %v4681 = vpack.c.b16 %v3185, %v3177
        %v4682 = vpack.c.b16 %v3186, %v3178
        %v4683 = vpack.c.b16 %v3187, %v3179
        %v4684 = vpack.c.b16 %v3188, %v3180
        %v4685 = vpack.c.b16 %v3189, %v3181
        %v4686 = vpack.c.b16 %v3190, %v3182
        %v4687 = vpack.c.b16 %v3191, %v3183
        %v4688 = vpack.c.b16 %v3192, %v3184
        %v4689 = vpack.c.b16 %v3201, %v3193
        %v4690 = vpack.c.b16 %v3202, %v3194
        %v4691 = vpack.c.b16 %v3203, %v3195
        %v4692 = vpack.c.b16 %v3204, %v3196
        %v4693 = vpack.c.b16 %v3205, %v3197
        %v4694 = vpack.c.b16 %v3206, %v3198
        %v4695 = vpack.c.b16 %v3207, %v3199
        %v4696 = vpack.c.b16 %v3208, %v3200
        %v4697 = vpack.c.b16 %v3217, %v3209
        %v4698 = vpack.c.b16 %v3218, %v3210
        %v4699 = vpack.c.b16 %v3219, %v3211
        %v4700 = vpack.c.b16 %v3220, %v3212
        %v4701 = vpack.c.b16 %v3221, %v3213
        %v4702 = vpack.c.b16 %v3222, %v3214
        %v4703 = vpack.c.b16 %v3223, %v3215
        %v4704 = vpack.c.b16 %v3224, %v3216
        %v4705 = vpack.c.b16 %v3233, %v3225
        %v4706 = vpack.c.b16 %v3234, %v3226
        %v4707 = vpack.c.b16 %v3235, %v3227
        %v4708 = vpack.c.b16 %v3236, %v3228
        %v4709 = vpack.c.b16 %v3237, %v3229
        %v4710 = vpack.c.b16 %v3238, %v3230
        %v4711 = vpack.c.b16 %v3239, %v3231
        %v4712 = vpack.c.b16 %v3240, %v3232
        %v4713 = vpack.c.b16 %v3249, %v3241
        %v4714 = vpack.c.b16 %v3250, %v3242
        %v4715 = vpack.c.b16 %v3251, %v3243
        %v4716 = vpack.c.b16 %v3252, %v3244
        %v4717 = vpack.c.b16 %v3253, %v3245
        %v4718 = vpack.c.b16 %v3254, %v3246
        %v4719 = vpack.c.b16 %v3255, %v3247
        %v4720 = vpack.c.b16 %v3256, %v3248
        %v4721 = vpack.c.b16 %v3265, %v3257
        %v4722 = vpack.c.b16 %v3266, %v3258
        %v4723 = vpack.c.b16 %v3267, %v3259
        %v4724 = vpack.c.b16 %v3268, %v3260
        %v4725 = vpack.c.b16 %v3269, %v3261
        %v4726 = vpack.c.b16 %v3270, %v3262
        %v4727 = vpack.c.b16 %v3271, %v3263
        %v4728 = vpack.c.b16 %v3272, %v3264
        %v4729 = vpack.c.b16 %v3281, %v3273
        %v4730 = vpack.c.b16 %v3282, %v3274
        %v4731 = vpack.c.b16 %v3283, %v3275
        %v4732 = vpack.c.b16 %v3284, %v3276
        %v4733 = vpack.c.b16 %v3285, %v3277
        %v4734 = vpack.c.b16 %v3286, %v3278
        %v4735 = vpack.c.b16 %v3287, %v3279
        %v4736 = vpack.c.b16 %v3288, %v3280
        %v4737 = vpack.c.b16 %v3297, %v3289
        %v4738 = vpack.c.b16 %v3298, %v3290
        %v4739 = vpack.c.b16 %v3299, %v3291
        %v4740 = vpack.c.b16 %v3300, %v3292
        %v4741 = vpack.c.b16 %v3301, %v3293
        %v4742 = vpack.c.b16 %v3302, %v3294
        %v4743 = vpack.c.b16 %v3303, %v3295
        %v4744 = vpack.c.b16 %v3304, %v3296
        %v4745 = vpack.c.b16 %v3313, %v3305
        %v4746 = vpack.c.b16 %v3314, %v3306
        %v4747 = vpack.c.b16 %v3315, %v3307
        %v4748 = vpack.c.b16 %v3316, %v3308
        %v4749 = vpack.c.b16 %v3317, %v3309
        %v4750 = vpack.c.b16 %v3318, %v3310
        %v4751 = vpack.c.b16 %v3319, %v3311
        %v4752 = vpack.c.b16 %v3320, %v3312
        %v4753 = vpack.c.b16 %v3329, %v3321
        %v4754 = vpack.c.b16 %v3330, %v3322
        %v4755 = vpack.c.b16 %v3331, %v3323
        %v4756 = vpack.c.b16 %v3332, %v3324
        %v4757 = vpack.c.b16 %v3333, %v3325
        %v4758 = vpack.c.b16 %v3334, %v3326
        %v4759 = vpack.c.b16 %v3335, %v3327
        %v4760 = vpack.c.b16 %v3336, %v3328
        %v4761 = vpack.c.b16 %v3345, %v3337
        %v4762 = vpack.c.b16 %v3346, %v3338
        %v4763 = vpack.c.b16 %v3347, %v3339
        %v4764 = vpack.c.b16 %v3348, %v3340
        %v4765 = vpack.c.b16 %v3349, %v3341
        %v4766 = vpack.c.b16 %v3350, %v3342
        %v4767 = vpack.c.b16 %v3351, %v3343
        %v4768 = vpack.c.b16 %v3352, %v3344
        %v4769 = vpack.c.b16 %v3361, %v3353
        %v4770 = vpack.c.b16 %v3362, %v3354
        %v4771 = vpack.c.b16 %v3363, %v3355
        %v4772 = vpack.c.b16 %v3364, %v3356
        %v4773 = vpack.c.b16 %v3365, %v3357
        %v4774 = vpack.c.b16 %v3366, %v3358
        %v4775 = vpack.c.b16 %v3367, %v3359
        %v4776 = vpack.c.b16 %v3368, %v3360
        %v4777 = vpack.c.b16 %v3377, %v3369
        %v4778 = vpack.c.b16 %v3378, %v3370
        %v4779 = vpack.c.b16 %v3379, %v3371
        %v4780 = vpack.c.b16 %v3380, %v3372
        %v4781 = vpack.c.b16 %v3381, %v3373
        %v4782 = vpack.c.b16 %v3382, %v3374
        %v4783 = vpack.c.b16 %v3383, %v3375
        %v4784 = vpack.c.b16 %v3384, %v3376
        %v4785 = vpack.c.b16 %v3393, %v3385
        %v4786 = vpack.c.b16 %v3394, %v3386
        %v4787 = vpack.c.b16 %v3395, %v3387
        %v4788 = vpack.c.b16 %v3396, %v3388
        %v4789 = vpack.c.b16 %v3397, %v3389
        %v4790 = vpack.c.b16 %v3398, %v3390
        %v4791 = vpack.c.b16 %v3399, %v3391
        %v4792 = vpack.c.b16 %v3400, %v3392
        %v4793 = vpack.c.b16 %v3409, %v3401
        %v4794 = vpack.c.b16 %v3410, %v3402
        %v4795 = vpack.c.b16 %v3411, %v3403
        %v4796 = vpack.c.b16 %v3412, %v3404
        %v4797 = vpack.c.b16 %v3413, %v3405
        %v4798 = vpack.c.b16 %v3414, %v3406
        %v4799 = vpack.c.b16 %v3415, %v3407
        %v4800 = vpack.c.b16 %v3416, %v3408
        %v4801 = vpack.c.b16 %v3425, %v3417
        %v4802 = vpack.c.b16 %v3426, %v3418
        %v4803 = vpack.c.b16 %v3427, %v3419
        %v4804 = vpack.c.b16 %v3428, %v3420
        %v4805 = vpack.c.b16 %v3429, %v3421
        %v4806 = vpack.c.b16 %v3430, %v3422
        %v4807 = vpack.c.b16 %v3431, %v3423
        %v4808 = vpack.c.b16 %v3432, %v3424
        %v4809 = vpack.c.b16 %v3441, %v3433
        %v4810 = vpack.c.b16 %v3442, %v3434
        %v4811 = vpack.c.b16 %v3443, %v3435
        %v4812 = vpack.c.b16 %v3444, %v3436
        %v4813 = vpack.c.b16 %v3445, %v3437
        %v4814 = vpack.c.b16 %v3446, %v3438
        %v4815 = vpack.c.b16 %v3447, %v3439
        %v4816 = vpack.c.b16 %v3448, %v3440
        %v4817 = vpack.c.b16 %v3457, %v3449
        %v4818 = vpack.c.b16 %v3458, %v3450
        %v4819 = vpack.c.b16 %v3459, %v3451
        %v4820 = vpack.c.b16 %v3460, %v3452
        %v4821 = vpack.c.b16 %v3461, %v3453
        %v4822 = vpack.c.b16 %v3462, %v3454
        %v4823 = vpack.c.b16 %v3463, %v3455
        %v4824 = vpack.c.b16 %v3464, %v3456
        %v4825 = vpack.c.b16 %v3473, %v3465
        %v4826 = vpack.c.b16 %v3474, %v3466
        %v4827 = vpack.c.b16 %v3475, %v3467
        %v4828 = vpack.c.b16 %v3476, %v3468
        %v4829 = vpack.c.b16 %v3477, %v3469
        %v4830 = vpack.c.b16 %v3478, %v3470
        %v4831 = vpack.c.b16 %v3479, %v3471
        %v4832 = vpack.c.b16 %v3480, %v3472
        %v4833 = vpack.c.b16 %v3489, %v3481
        %v4834 = vpack.c.b16 %v3490, %v3482
        %v4835 = vpack.c.b16 %v3491, %v3483
        %v4836 = vpack.c.b16 %v3492, %v3484
        %v4837 = vpack.c.b16 %v3493, %v3485
        %v4838 = vpack.c.b16 %v3494, %v3486
        %v4839 = vpack.c.b16 %v3495, %v3487
        %v4840 = vpack.c.b16 %v3496, %v3488
        %v4841 = vpack.c.b16 %v3505, %v3497
        %v4842 = vpack.c.b16 %v3506, %v3498
        %v4843 = vpack.c.b16 %v3507, %v3499
        %v4844 = vpack.c.b16 %v3508, %v3500
        %v4845 = vpack.c.b16 %v3509, %v3501
        %v4846 = vpack.c.b16 %v3510, %v3502
        %v4847 = vpack.c.b16 %v3511, %v3503
        %v4848 = vpack.c.b16 %v3512, %v3504
        %v4849 = vpack.c.b16 %v3521, %v3513
        %v4850 = vpack.c.b16 %v3522, %v3514
        %v4851 = vpack.c.b16 %v3523, %v3515
        %v4852 = vpack.c.b16 %v3524, %v3516
        %v4853 = vpack.c.b16 %v3525, %v3517
        %v4854 = vpack.c.b16 %v3526, %v3518
        %v4855 = vpack.c.b16 %v3527, %v3519
        %v4856 = vpack.c.b16 %v3528, %v3520
        %v4857 = vpack.c.b16 %v3537, %v3529
        %v4858 = vpack.c.b16 %v3538, %v3530
        %v4859 = vpack.c.b16 %v3539, %v3531
        %v4860 = vpack.c.b16 %v3540, %v3532
        %v4861 = vpack.c.b16 %v3541, %v3533
        %v4862 = vpack.c.b16 %v3542, %v3534
        %v4863 = vpack.c.b16 %v3543, %v3535
        %v4864 = vpack.c.b16 %v3544, %v3536
        %v4865 = vpack.c.b16 %v3553, %v3545
        %v4866 = vpack.c.b16 %v3554, %v3546
        %v4867 = vpack.c.b16 %v3555, %v3547
        %v4868 = vpack.c.b16 %v3556, %v3548
        %v4869 = vpack.c.b16 %v3557, %v3549
        %v4870 = vpack.c.b16 %v3558, %v3550
        %v4871 = vpack.c.b16 %v3559, %v3551
        %v4872 = vpack.c.b16 %v3560, %v3552
        %v4873 = vpack.c.b16 %v3569, %v3561
        %v4874 = vpack.c.b16 %v3570, %v3562
        %v4875 = vpack.c.b16 %v3571, %v3563
        %v4876 = vpack.c.b16 %v3572, %v3564
        %v4877 = vpack.c.b16 %v3573, %v3565
        %v4878 = vpack.c.b16 %v3574, %v3566
        %v4879 = vpack.c.b16 %v3575, %v3567
        %v4880 = vpack.c.b16 %v3576, %v3568
        %v4881 = vpack.c.b16 %v3585, %v3577
        %v4882 = vpack.c.b16 %v3586, %v3578
        %v4883 = vpack.c.b16 %v3587, %v3579
        %v4884 = vpack.c.b16 %v3588, %v3580
        %v4885 = vpack.c.b16 %v3589, %v3581
        %v4886 = vpack.c.b16 %v3590, %v3582
        %v4887 = vpack.c.b16 %v3591, %v3583
        %v4888 = vpack.c.b16 %v3592, %v3584
        %v4889 = vpack.c.b16 %v3601, %v3593
        %v4890 = vpack.c.b16 %v3602, %v3594
        %v4891 = vpack.c.b16 %v3603, %v3595
        %v4892 = vpack.c.b16 %v3604, %v3596
        %v4893 = vpack.c.b16 %v3605, %v3597
        %v4894 = vpack.c.b16 %v3606, %v3598
        %v4895 = vpack.c.b16 %v3607, %v3599
        %v4896 = vpack.c.b16 %v3608, %v3600
        %v4897 = vpack.c.b16 %v3617, %v3609
        %v4898 = vpack.c.b16 %v3618, %v3610
        %v4899 = vpack.c.b16 %v3619, %v3611
        %v4900 = vpack.c.b16 %v3620, %v3612
        %v4901 = vpack.c.b16 %v3621, %v3613
        %v4902 = vpack.c.b16 %v3622, %v3614
        %v4903 = vpack.c.b16 %v3623, %v3615
        %v4904 = vpack.c.b16 %v3624, %v3616
        %v4905 = vpack.c.b16 %v3633, %v3625
        %v4906 = vpack.c.b16 %v3634, %v3626
        %v4907 = vpack.c.b16 %v3635, %v3627
        %v4908 = vpack.c.b16 %v3636, %v3628
        %v4909 = vpack.c.b16 %v3637, %v3629
        %v4910 = vpack.c.b16 %v3638, %v3630
        %v4911 = vpack.c.b16 %v3639, %v3631
        %v4912 = vpack.c.b16 %v3640, %v3632
        %v4913 = vpack.c.b16 %v3649, %v3641
        %v4914 = vpack.c.b16 %v3650, %v3642
        %v4915 = vpack.c.b16 %v3651, %v3643
        %v4916 = vpack.c.b16 %v3652, %v3644
        %v4917 = vpack.c.b16 %v3653, %v3645
        %v4918 = vpack.c.b16 %v3654, %v3646
        %v4919 = vpack.c.b16 %v3655, %v3647
        %v4920 = vpack.c.b16 %v3656, %v3648
        %v4921 = vpack.c.b16 %v3665, %v3657
        %v4922 = vpack.c.b16 %v3666, %v3658
        %v4923 = vpack.c.b16 %v3667, %v3659
        %v4924 = vpack.c.b16 %v3668, %v3660
        %v4925 = vpack.c.b16 %v3669, %v3661
        %v4926 = vpack.c.b16 %v3670, %v3662
        %v4927 = vpack.c.b16 %v3671, %v3663
        %v4928 = vpack.c.b16 %v3672, %v3664
        %v4929 = vpack.c.b16 %v3681, %v3673
        %v4930 = vpack.c.b16 %v3682, %v3674
        %v4931 = vpack.c.b16 %v3683, %v3675
        %v4932 = vpack.c.b16 %v3684, %v3676
        %v4933 = vpack.c.b16 %v3685, %v3677
        %v4934 = vpack.c.b16 %v3686, %v3678
        %v4935 = vpack.c.b16 %v3687, %v3679
        %v4936 = vpack.c.b16 %v3688, %v3680
        %v4937 = vpack.c.b16 %v3697, %v3689
        %v4938 = vpack.c.b16 %v3698, %v3690
        %v4939 = vpack.c.b16 %v3699, %v3691
        %v4940 = vpack.c.b16 %v3700, %v3692
        %v4941 = vpack.c.b16 %v3701, %v3693
        %v4942 = vpack.c.b16 %v3702, %v3694
        %v4943 = vpack.c.b16 %v3703, %v3695
        %v4944 = vpack.c.b16 %v3704, %v3696
        %v4945 = vpack.c.b16 %v3713, %v3705
        %v4946 = vpack.c.b16 %v3714, %v3706
        %v4947 = vpack.c.b16 %v3715, %v3707
        %v4948 = vpack.c.b16 %v3716, %v3708
        %v4949 = vpack.c.b16 %v3717, %v3709
        %v4950 = vpack.c.b16 %v3718, %v3710
        %v4951 = vpack.c.b16 %v3719, %v3711
        %v4952 = vpack.c.b16 %v3720, %v3712
        %v4953 = vpack.c.b16 %v3729, %v3721
        %v4954 = vpack.c.b16 %v3730, %v3722
        %v4955 = vpack.c.b16 %v3731, %v3723
        %v4956 = vpack.c.b16 %v3732, %v3724
        %v4957 = vpack.c.b16 %v3733, %v3725
        %v4958 = vpack.c.b16 %v3734, %v3726
        %v4959 = vpack.c.b16 %v3735, %v3727
        %v4960 = vpack.c.b16 %v3736, %v3728
        %v4961 = vpack.c.b16 %v3745, %v3737
        %v4962 = vpack.c.b16 %v3746, %v3738
        %v4963 = vpack.c.b16 %v3747, %v3739
        %v4964 = vpack.c.b16 %v3748, %v3740
        %v4965 = vpack.c.b16 %v3749, %v3741
        %v4966 = vpack.c.b16 %v3750, %v3742
        %v4967 = vpack.c.b16 %v3751, %v3743
        %v4968 = vpack.c.b16 %v3752, %v3744
        %v4969 = vpack.c.b16 %v3761, %v3753
        %v4970 = vpack.c.b16 %v3762, %v3754
        %v4971 = vpack.c.b16 %v3763, %v3755
        %v4972 = vpack.c.b16 %v3764, %v3756
        %v4973 = vpack.c.b16 %v3765, %v3757
        %v4974 = vpack.c.b16 %v3766, %v3758
        %v4975 = vpack.c.b16 %v3767, %v3759
        %v4976 = vpack.c.b16 %v3768, %v3760
        %v4977 = vpack.c.b16 %v3777, %v3769
        %v4978 = vpack.c.b16 %v3778, %v3770
        %v4979 = vpack.c.b16 %v3779, %v3771
        %v4980 = vpack.c.b16 %v3780, %v3772
        %v4981 = vpack.c.b16 %v3781, %v3773
        %v4982 = vpack.c.b16 %v3782, %v3774
        %v4983 = vpack.c.b16 %v3783, %v3775
        %v4984 = vpack.c.b16 %v3784, %v3776
        %v4985 = vpack.c.b16 %v3793, %v3785
        %v4986 = vpack.c.b16 %v3794, %v3786
        %v4987 = vpack.c.b16 %v3795, %v3787
        %v4988 = vpack.c.b16 %v3796, %v3788
        %v4989 = vpack.c.b16 %v3797, %v3789
        %v4990 = vpack.c.b16 %v3798, %v3790
        %v4991 = vpack.c.b16 %v3799, %v3791
        %v4992 = vpack.c.b16 %v3800, %v3792
        %v4993 = vpack.c.b16 %v3809, %v3801
        %v4994 = vpack.c.b16 %v3810, %v3802
        %v4995 = vpack.c.b16 %v3811, %v3803
        %v4996 = vpack.c.b16 %v3812, %v3804
        %v4997 = vpack.c.b16 %v3813, %v3805
        %v4998 = vpack.c.b16 %v3814, %v3806
        %v4999 = vpack.c.b16 %v3815, %v3807
        %v5000 = vpack.c.b16 %v3816, %v3808
        %v5001 = vpack.c.b16 %v3825, %v3817
        %v5002 = vpack.c.b16 %v3826, %v3818
        %v5003 = vpack.c.b16 %v3827, %v3819
        %v5004 = vpack.c.b16 %v3828, %v3820
        %v5005 = vpack.c.b16 %v3829, %v3821
        %v5006 = vpack.c.b16 %v3830, %v3822
        %v5007 = vpack.c.b16 %v3831, %v3823
        %v5008 = vpack.c.b16 %v3832, %v3824
        %v5009 = vpack.c.b16 %v3841, %v3833
        %v5010 = vpack.c.b16 %v3842, %v3834
        %v5011 = vpack.c.b16 %v3843, %v3835
        %v5012 = vpack.c.b16 %v3844, %v3836
        %v5013 = vpack.c.b16 %v3845, %v3837
        %v5014 = vpack.c.b16 %v3846, %v3838
        %v5015 = vpack.c.b16 %v3847, %v3839
        %v5016 = vpack.c.b16 %v3848, %v3840
        %v5017 = vpack.c.b16 %v3857, %v3849
        %v5018 = vpack.c.b16 %v3858, %v3850
        %v5019 = vpack.c.b16 %v3859, %v3851
        %v5020 = vpack.c.b16 %v3860, %v3852
        %v5021 = vpack.c.b16 %v3861, %v3853
        %v5022 = vpack.c.b16 %v3862, %v3854
        %v5023 = vpack.c.b16 %v3863, %v3855
        %v5024 = vpack.c.b16 %v3864, %v3856
        %v5025 = vpack.c.b16 %v3873, %v3865
        %v5026 = vpack.c.b16 %v3874, %v3866
        %v5027 = vpack.c.b16 %v3875, %v3867
        %v5028 = vpack.c.b16 %v3876, %v3868
        %v5029 = vpack.c.b16 %v3877, %v3869
        %v5030 = vpack.c.b16 %v3878, %v3870
        %v5031 = vpack.c.b16 %v3879, %v3871
        %v5032 = vpack.c.b16 %v3880, %v3872
        %v5033 = vpack.c.b16 %v3889, %v3881
        %v5034 = vpack.c.b16 %v3890, %v3882
        %v5035 = vpack.c.b16 %v3891, %v3883
        %v5036 = vpack.c.b16 %v3892, %v3884
        %v5037 = vpack.c.b16 %v3893, %v3885
        %v5038 = vpack.c.b16 %v3894, %v3886
        %v5039 = vpack.c.b16 %v3895, %v3887
        %v5040 = vpack.c.b16 %v3896, %v3888
        %v5041 = vpack.c.b16 %v3905, %v3897
        %v5042 = vpack.c.b16 %v3906, %v3898
        %v5043 = vpack.c.b16 %v3907, %v3899
        %v5044 = vpack.c.b16 %v3908, %v3900
        %v5045 = vpack.c.b16 %v3909, %v3901
        %v5046 = vpack.c.b16 %v3910, %v3902
        %v5047 = vpack.c.b16 %v3911, %v3903
        %v5048 = vpack.c.b16 %v3912, %v3904
        %v5049 = vpack.c.b16 %v3921, %v3913
        %v5050 = vpack.c.b16 %v3922, %v3914
        %v5051 = vpack.c.b16 %v3923, %v3915
        %v5052 = vpack.c.b16 %v3924, %v3916
        %v5053 = vpack.c.b16 %v3925, %v3917
        %v5054 = vpack.c.b16 %v3926, %v3918
        %v5055 = vpack.c.b16 %v3927, %v3919
        %v5056 = vpack.c.b16 %v3928, %v3920
        %v5057 = vpack.c.b16 %v3937, %v3929
        %v5058 = vpack.c.b16 %v3938, %v3930
        %v5059 = vpack.c.b16 %v3939, %v3931
        %v5060 = vpack.c.b16 %v3940, %v3932
        %v5061 = vpack.c.b16 %v3941, %v3933
        %v5062 = vpack.c.b16 %v3942, %v3934
        %v5063 = vpack.c.b16 %v3943, %v3935
        %v5064 = vpack.c.b16 %v3944, %v3936
        %v5065 = vpack.c.b16 %v3953, %v3945
        %v5066 = vpack.c.b16 %v3954, %v3946
        %v5067 = vpack.c.b16 %v3955, %v3947
        %v5068 = vpack.c.b16 %v3956, %v3948
        %v5069 = vpack.c.b16 %v3957, %v3949
        %v5070 = vpack.c.b16 %v3958, %v3950
        %v5071 = vpack.c.b16 %v3959, %v3951
        %v5072 = vpack.c.b16 %v3960, %v3952
        %v5073 = vpack.c.b16 %v3969, %v3961
        %v5074 = vpack.c.b16 %v3970, %v3962
        %v5075 = vpack.c.b16 %v3971, %v3963
        %v5076 = vpack.c.b16 %v3972, %v3964
        %v5077 = vpack.c.b16 %v3973, %v3965
        %v5078 = vpack.c.b16 %v3974, %v3966
        %v5079 = vpack.c.b16 %v3975, %v3967
        %v5080 = vpack.c.b16 %v3976, %v3968
        %v5081 = vpack.c.b16 %v3985, %v3977
        %v5082 = vpack.c.b16 %v3986, %v3978
        %v5083 = vpack.c.b16 %v3987, %v3979
        %v5084 = vpack.c.b16 %v3988, %v3980
        %v5085 = vpack.c.b16 %v3989, %v3981
        %v5086 = vpack.c.b16 %v3990, %v3982
        %v5087 = vpack.c.b16 %v3991, %v3983
        %v5088 = vpack.c.b16 %v3992, %v3984
        %v5089 = vpack.c.b16 %v4001, %v3993
        %v5090 = vpack.c.b16 %v4002, %v3994
        %v5091 = vpack.c.b16 %v4003, %v3995
        %v5092 = vpack.c.b16 %v4004, %v3996
        %v5093 = vpack.c.b16 %v4005, %v3997
        %v5094 = vpack.c.b16 %v4006, %v3998
        %v5095 = vpack.c.b16 %v4007, %v3999
        %v5096 = vpack.c.b16 %v4008, %v4000
        %v5097 = vpack.c.b16 %v4017, %v4009
        %v5098 = vpack.c.b16 %v4018, %v4010
        %v5099 = vpack.c.b16 %v4019, %v4011
        %v5100 = vpack.c.b16 %v4020, %v4012
        %v5101 = vpack.c.b16 %v4021, %v4013
        %v5102 = vpack.c.b16 %v4022, %v4014
        %v5103 = vpack.c.b16 %v4023, %v4015
        %v5104 = vpack.c.b16 %v4024, %v4016
        %v5105 = vpack.c.b16 %v4033, %v4025
        %v5106 = vpack.c.b16 %v4034, %v4026
        %v5107 = vpack.c.b16 %v4035, %v4027
        %v5108 = vpack.c.b16 %v4036, %v4028
        %v5109 = vpack.c.b16 %v4037, %v4029
        %v5110 = vpack.c.b16 %v4038, %v4030
        %v5111 = vpack.c.b16 %v4039, %v4031
        %v5112 = vpack.c.b16 %v4040, %v4032
        %v5113 = vpack.c.b16 %v4049, %v4041
        %v5114 = vpack.c.b16 %v4050, %v4042
        %v5115 = vpack.c.b16 %v4051, %v4043
        %v5116 = vpack.c.b16 %v4052, %v4044
        %v5117 = vpack.c.b16 %v4053, %v4045
        %v5118 = vpack.c.b16 %v4054, %v4046
        %v5119 = vpack.c.b16 %v4055, %v4047
        %v5120 = vpack.c.b16 %v4056, %v4048
        %v5121 = vpack.c.b16 %v4065, %v4057
        %v5122 = vpack.c.b16 %v4066, %v4058
        %v5123 = vpack.c.b16 %v4067, %v4059
        %v5124 = vpack.c.b16 %v4068, %v4060
        %v5125 = vpack.c.b16 %v4069, %v4061
        %v5126 = vpack.c.b16 %v4070, %v4062
        %v5127 = vpack.c.b16 %v4071, %v4063
        %v5128 = vpack.c.b16 %v4072, %v4064
        %v5129 = vpack.c.b16 %v4081, %v4073
        %v5130 = vpack.c.b16 %v4082, %v4074
        %v5131 = vpack.c.b16 %v4083, %v4075
        %v5132 = vpack.c.b16 %v4084, %v4076
        %v5133 = vpack.c.b16 %v4085, %v4077
        %v5134 = vpack.c.b16 %v4086, %v4078
        %v5135 = vpack.c.b16 %v4087, %v4079
        %v5136 = vpack.c.b16 %v4088, %v4080
        %v5137 = vpack.c.b16 %v4097, %v4089
        %v5138 = vpack.c.b16 %v4098, %v4090
        %v5139 = vpack.c.b16 %v4099, %v4091
        %v5140 = vpack.c.b16 %v4100, %v4092
        %v5141 = vpack.c.b16 %v4101, %v4093
        %v5142 = vpack.c.b16 %v4102, %v4094
        %v5143 = vpack.c.b16 %v4103, %v4095
        %v5144 = vpack.c.b16 %v4104, %v4096
        %v5145 = vpack.c.b16 %v4113, %v4105
        %v5146 = vpack.c.b16 %v4114, %v4106
        %v5147 = vpack.c.b16 %v4115, %v4107
        %v5148 = vpack.c.b16 %v4116, %v4108
        %v5149 = vpack.c.b16 %v4117, %v4109
        %v5150 = vpack.c.b16 %v4118, %v4110
        %v5151 = vpack.c.b16 %v4119, %v4111
        %v5152 = vpack.c.b16 %v4120, %v4112
        %v5153 = vpack.c.b16 %v4129, %v4121
        %v5154 = vpack.c.b16 %v4130, %v4122
        %v5155 = vpack.c.b16 %v4131, %v4123
        %v5156 = vpack.c.b16 %v4132, %v4124
        %v5157 = vpack.c.b16 %v4133, %v4125
        %v5158 = vpack.c.b16 %v4134, %v4126
        %v5159 = vpack.c.b16 %v4135, %v4127
        %v5160 = vpack.c.b16 %v4136, %v4128
        %v5161 = vpack.c.b16 %v4145, %v4137
        %v5162 = vpack.c.b16 %v4146, %v4138
        %v5163 = vpack.c.b16 %v4147, %v4139
        %v5164 = vpack.c.b16 %v4148, %v4140
        %v5165 = vpack.c.b16 %v4149, %v4141
        %v5166 = vpack.c.b16 %v4150, %v4142
        %v5167 = vpack.c.b16 %v4151, %v4143
        %v5168 = vpack.c.b16 %v4152, %v4144
        %v5169 = vpack.c.b16 %v4161, %v4153
        %v5170 = vpack.c.b16 %v4162, %v4154
        %v5171 = vpack.c.b16 %v4163, %v4155
        %v5172 = vpack.c.b16 %v4164, %v4156
        %v5173 = vpack.c.b16 %v4165, %v4157
        %v5174 = vpack.c.b16 %v4166, %v4158
        %v5175 = vpack.c.b16 %v4167, %v4159
        %v5176 = vpack.c.b16 %v4168, %v4160
        %v5177 = vpack.c.b16 %v4177, %v4169
        %v5178 = vpack.c.b16 %v4178, %v4170
        %v5179 = vpack.c.b16 %v4179, %v4171
        %v5180 = vpack.c.b16 %v4180, %v4172
        %v5181 = vpack.c.b16 %v4181, %v4173
        %v5182 = vpack.c.b16 %v4182, %v4174
        %v5183 = vpack.c.b16 %v4183, %v4175
        %v5184 = vpack.c.b16 %v4184, %v4176
        %v5185 = vpack.c.b16 %v4193, %v4185
        %v5186 = vpack.c.b16 %v4194, %v4186
        %v5187 = vpack.c.b16 %v4195, %v4187
        %v5188 = vpack.c.b16 %v4196, %v4188
        %v5189 = vpack.c.b16 %v4197, %v4189
        %v5190 = vpack.c.b16 %v4198, %v4190
        %v5191 = vpack.c.b16 %v4199, %v4191
        %v5192 = vpack.c.b16 %v4200, %v4192
        %v5193 = vpack.c.b16 %v4209, %v4201
        %v5194 = vpack.c.b16 %v4210, %v4202
        %v5195 = vpack.c.b16 %v4211, %v4203
        %v5196 = vpack.c.b16 %v4212, %v4204
        %v5197 = vpack.c.b16 %v4213, %v4205
        %v5198 = vpack.c.b16 %v4214, %v4206
        %v5199 = vpack.c.b16 %v4215, %v4207
        %v5200 = vpack.c.b16 %v4216, %v4208
        %v5201 = vpack.c.b16 %v4225, %v4217
        %v5202 = vpack.c.b16 %v4226, %v4218
        %v5203 = vpack.c.b16 %v4227, %v4219
        %v5204 = vpack.c.b16 %v4228, %v4220
        %v5205 = vpack.c.b16 %v4229, %v4221
        %v5206 = vpack.c.b16 %v4230, %v4222
        %v5207 = vpack.c.b16 %v4231, %v4223
        %v5208 = vpack.c.b16 %v4232, %v4224
        %v5209 = vpack.c.b16 %v4241, %v4233
        %v5210 = vpack.c.b16 %v4242, %v4234
        %v5211 = vpack.c.b16 %v4243, %v4235
        %v5212 = vpack.c.b16 %v4244, %v4236
        %v5213 = vpack.c.b16 %v4245, %v4237
        %v5214 = vpack.c.b16 %v4246, %v4238
        %v5215 = vpack.c.b16 %v4247, %v4239
        %v5216 = vpack.c.b16 %v4248, %v4240
        %v5217 = vpack.c.b16 %v4257, %v4249
        %v5218 = vpack.c.b16 %v4258, %v4250
        %v5219 = vpack.c.b16 %v4259, %v4251
        %v5220 = vpack.c.b16 %v4260, %v4252
        %v5221 = vpack.c.b16 %v4261, %v4253
        %v5222 = vpack.c.b16 %v4262, %v4254
        %v5223 = vpack.c.b16 %v4263, %v4255
        %v5224 = vpack.c.b16 %v4264, %v4256
        %6185 = vmatprep.subr.bf16.mxu0 %v4266
        %6186 = vmatpush1.bf16.msra.mxu0 %v4265
        %6187 = vmatprep.subr.bf16.mxu0 %v4274
        %6188 = vmatpush1.bf16.msra.mxu0 %v4273
        %6189 = vmatprep.subr.bf16.mxu0 %v4282
        %6190 = vmatpush1.bf16.msra.mxu0 %v4281
        %6191 = vmatprep.subr.bf16.mxu0 %v4290
        %6192 = vmatpush1.bf16.msra.mxu0 %v4289
        %6193 = vmatprep.subr.bf16.mxu0 %v4298
        %6194 = vmatpush1.bf16.msra.mxu0 %v4297
        %6195 = vmatprep.subr.bf16.mxu0 %v4306
        %6196 = vmatpush1.bf16.msra.mxu0 %v4305
        %6197 = vmatprep.subr.bf16.mxu0 %v4314
        %6198 = vmatpush1.bf16.msra.mxu0 %v4313
        %6199 = vmatprep.subr.bf16.mxu0 %v4322
        %6200 = vmatpush1.bf16.msra.mxu0 %v4321
        %6201 = vmatprep.subr.bf16.mxu0 %v4330
        %6202 = vmatpush1.bf16.msra.mxu0 %v4329
        %6203 = vmatprep.subr.bf16.mxu0 %v4338
        %6204 = vmatpush1.bf16.msra.mxu0 %v4337
        %6205 = vmatprep.subr.bf16.mxu0 %v4346
        %6206 = vmatpush1.bf16.msra.mxu0 %v4345
        %6207 = vmatprep.subr.bf16.mxu0 %v4354
        %6208 = vmatpush1.bf16.msra.mxu0 %v4353
        %6209 = vmatprep.subr.bf16.mxu0 %v4362
        %6210 = vmatpush1.bf16.msra.mxu0 %v4361
        %6211 = vmatprep.subr.bf16.mxu0 %v4370
        %6212 = vmatpush1.bf16.msra.mxu0 %v4369
        %6213 = vmatprep.subr.bf16.mxu0 %v4378
        %6214 = vmatpush1.bf16.msra.mxu0 %v4377
        %6215 = vmatprep.subr.bf16.mxu0 %v4386
        %6216 = vmatpush1.bf16.msra.mxu0 %v4385
        %6217 = vmatprep.mubr.bf16.mxu0 %v409
        %6218 = vmatmul.mubr.bf16.gmra.mrb[0].mxu0 %v408
        %v6219 = vpop.f32.mrb[0].mxu0
        %v6220 = vadd.f32 0.0, %v6219
        %v6221 = vpop.f32.mrb[0].mxu0
        %v6222 = vadd.f32 0.0, %v6221
        %v6223 = vpop.f32.mrb[0].mxu0
        %v6224 = vpop.f32.mrb[0].mxu0
        %6225 = vdwg.mxu0
        %6226 = vmatprep.subr.bf16.mxu0 %v4394
        %6227 = vmatpush1.bf16.msra.mxu0 %v4393
        %6228 = vmatprep.subr.bf16.mxu0 %v4402
        %6229 = vmatpush1.bf16.msra.mxu0 %v4401
        %6230 = vmatprep.subr.bf16.mxu0 %v4410
        %6231 = vmatpush1.bf16.msra.mxu0 %v4409
        %6232 = vmatprep.subr.bf16.mxu0 %v4418
        %6233 = vmatpush1.bf16.msra.mxu0 %v4417
        %6234 = vmatprep.subr.bf16.mxu0 %v4426
        %6235 = vmatpush1.bf16.msra.mxu0 %v4425
        %6236 = vmatprep.subr.bf16.mxu0 %v4434
        %6237 = vmatpush1.bf16.msra.mxu0 %v4433
        %6238 = vmatprep.subr.bf16.mxu0 %v4442
        %6239 = vmatpush1.bf16.msra.mxu0 %v4441
        %6240 = vmatprep.subr.bf16.mxu0 %v4450
        %6241 = vmatpush1.bf16.msra.mxu0 %v4449
        %6242 = vmatprep.subr.bf16.mxu0 %v4458
        %6243 = vmatpush1.bf16.msra.mxu0 %v4457
        %6244 = vmatprep.subr.bf16.mxu0 %v4466
        %6245 = vmatpush1.bf16.msra.mxu0 %v4465
        %6246 = vmatprep.subr.bf16.mxu0 %v4474
        %6247 = vmatpush1.bf16.msra.mxu0 %v4473
        %6248 = vmatprep.subr.bf16.mxu0 %v4482
        %6249 = vmatpush1.bf16.msra.mxu0 %v4481
        %6250 = vmatprep.subr.bf16.mxu0 %v4490
        %6251 = vmatpush1.bf16.msra.mxu0 %v4489
        %6252 = vmatprep.subr.bf16.mxu0 %v4498
        %6253 = vmatpush1.bf16.msra.mxu0 %v4497
        %6254 = vmatprep.subr.bf16.mxu0 %v4506
        %6255 = vmatpush1.bf16.msra.mxu0 %v4505
        %6256 = vmatprep.subr.bf16.mxu0 %v4514
        %6257 = vmatpush1.bf16.msra.mxu0 %v4513
        %6258 = vmatprep.mubr.bf16.mxu0 %v411
        %6259 = vmatmul.mubr.bf16.gmra.mrb[0].mxu0 %v410
        %v6260 = vpop.f32.mrb[0].mxu0
        %v6261 = vadd.f32 %v6220, %v6260
        %v6262 = vpop.f32.mrb[0].mxu0
        %v6263 = vadd.f32 %v6222, %v6262
        %v6264 = vpop.f32.mrb[0].mxu0
        %v6265 = vpop.f32.mrb[0].mxu0
        %6266 = vdwg.mxu0
        %6267 = vmatprep.subr.bf16.mxu0 %v4522
        %6268 = vmatpush1.bf16.msra.mxu0 %v4521
        %6269 = vmatprep.subr.bf16.mxu0 %v4530
        %6270 = vmatpush1.bf16.msra.mxu0 %v4529
        %6271 = vmatprep.subr.bf16.mxu0 %v4538
        %6272 = vmatpush1.bf16.msra.mxu0 %v4537
        %6273 = vmatprep.subr.bf16.mxu0 %v4546
        %6274 = vmatpush1.bf16.msra.mxu0 %v4545
        %6275 = vmatprep.subr.bf16.mxu0 %v4554
        %6276 = vmatpush1.bf16.msra.mxu0 %v4553
        %6277 = vmatprep.subr.bf16.mxu0 %v4562
        %6278 = vmatpush1.bf16.msra.mxu0 %v4561
        %6279 = vmatprep.subr.bf16.mxu0 %v4570
        %6280 = vmatpush1.bf16.msra.mxu0 %v4569
        %6281 = vmatprep.subr.bf16.mxu0 %v4578
        %6282 = vmatpush1.bf16.msra.mxu0 %v4577
        %6283 = vmatprep.subr.bf16.mxu0 %v4586
        %6284 = vmatpush1.bf16.msra.mxu0 %v4585
        %6285 = vmatprep.subr.bf16.mxu0 %v4594
        %6286 = vmatpush1.bf16.msra.mxu0 %v4593
        %6287 = vmatprep.subr.bf16.mxu0 %v4602
        %6288 = vmatpush1.bf16.msra.mxu0 %v4601
        %6289 = vmatprep.subr.bf16.mxu0 %v4610
        %6290 = vmatpush1.bf16.msra.mxu0 %v4609
        %6291 = vmatprep.subr.bf16.mxu0 %v4618
        %6292 = vmatpush1.bf16.msra.mxu0 %v4617
        %6293 = vmatprep.subr.bf16.mxu0 %v4626
        %6294 = vmatpush1.bf16.msra.mxu0 %v4625
        %6295 = vmatprep.subr.bf16.mxu0 %v4634
        %6296 = vmatpush1.bf16.msra.mxu0 %v4633
        %6297 = vmatprep.subr.bf16.mxu0 %v4642
        %6298 = vmatpush1.bf16.msra.mxu0 %v4641
        %6299 = vmatprep.mubr.bf16.mxu0 %v413
        %6300 = vmatmul.mubr.bf16.gmra.mrb[0].mxu0 %v412
        %v6301 = vpop.f32.mrb[0].mxu0
        %v6302 = vadd.f32 %v6261, %v6301
        %v6303 = vpop.f32.mrb[0].mxu0
        %v6304 = vadd.f32 %v6263, %v6303
        %v6305 = vpop.f32.mrb[0].mxu0
        %v6306 = vpop.f32.mrb[0].mxu0
        %6307 = vdwg.mxu0
        %6308 = vmatprep.subr.bf16.mxu0 %v4650
        %6309 = vmatpush1.bf16.msra.mxu0 %v4649
        %6310 = vmatprep.subr.bf16.mxu0 %v4658
        %6311 = vmatpush1.bf16.msra.mxu0 %v4657
        %6312 = vmatprep.subr.bf16.mxu0 %v4666
        %6313 = vmatpush1.bf16.msra.mxu0 %v4665
        %6314 = vmatprep.subr.bf16.mxu0 %v4674
        %6315 = vmatpush1.bf16.msra.mxu0 %v4673
        %6316 = vmatprep.subr.bf16.mxu0 %v4682
        %6317 = vmatpush1.bf16.msra.mxu0 %v4681
        %6318 = vmatprep.subr.bf16.mxu0 %v4690
        %6319 = vmatpush1.bf16.msra.mxu0 %v4689
        %6320 = vmatprep.subr.bf16.mxu0 %v4698
        %6321 = vmatpush1.bf16.msra.mxu0 %v4697
        %6322 = vmatprep.subr.bf16.mxu0 %v4706
        %6323 = vmatpush1.bf16.msra.mxu0 %v4705
        %6324 = vmatprep.subr.bf16.mxu0 %v4714
        %6325 = vmatpush1.bf16.msra.mxu0 %v4713
        %6326 = vmatprep.subr.bf16.mxu0 %v4722
        %6327 = vmatpush1.bf16.msra.mxu0 %v4721
        %6328 = vmatprep.subr.bf16.mxu0 %v4730
        %6329 = vmatpush1.bf16.msra.mxu0 %v4729
        %6330 = vmatprep.subr.bf16.mxu0 %v4738
        %6331 = vmatpush1.bf16.msra.mxu0 %v4737
        %6332 = vmatprep.subr.bf16.mxu0 %v4746
        %6333 = vmatpush1.bf16.msra.mxu0 %v4745
        %6334 = vmatprep.subr.bf16.mxu0 %v4754
        %6335 = vmatpush1.bf16.msra.mxu0 %v4753
        %6336 = vmatprep.subr.bf16.mxu0 %v4762
        %6337 = vmatpush1.bf16.msra.mxu0 %v4761
        %6338 = vmatprep.subr.bf16.mxu0 %v4770
        %6339 = vmatpush1.bf16.msra.mxu0 %v4769
        %6340 = vmatprep.mubr.bf16.mxu0 %v415
        %6341 = vmatmul.mubr.bf16.gmra.mrb[0].mxu0 %v414
        %v6342 = vpop.f32.mrb[0].mxu0
        %v6343 = vadd.f32 %v6302, %v6342
        %v6344 = vpop.f32.mrb[0].mxu0
        %v6345 = vadd.f32 %v6304, %v6344
        %v6346 = vpop.f32.mrb[0].mxu0
        %v6347 = vpop.f32.mrb[0].mxu0
        %6348 = vdwg.mxu0
        %6349 = vmatprep.subr.bf16.mxu0 %v4778
        %6350 = vmatpush1.bf16.msra.mxu0 %v4777
        %6351 = vmatprep.subr.bf16.mxu0 %v4786
        %6352 = vmatpush1.bf16.msra.mxu0 %v4785
        %6353 = vmatprep.subr.bf16.mxu0 %v4794
        %6354 = vmatpush1.bf16.msra.mxu0 %v4793
        %6355 = vmatprep.subr.bf16.mxu0 %v4802
        %6356 = vmatpush1.bf16.msra.mxu0 %v4801
        %6357 = vmatprep.subr.bf16.mxu0 %v4810
        %6358 = vmatpush1.bf16.msra.mxu0 %v4809
        %6359 = vmatprep.subr.bf16.mxu0 %v4818
        %6360 = vmatpush1.bf16.msra.mxu0 %v4817
        %6361 = vmatprep.subr.bf16.mxu0 %v4826
        %6362 = vmatpush1.bf16.msra.mxu0 %v4825
        %6363 = vmatprep.subr.bf16.mxu0 %v4834
        %6364 = vmatpush1.bf16.msra.mxu0 %v4833
        %6365 = vmatprep.subr.bf16.mxu0 %v4842
        %6366 = vmatpush1.bf16.msra.mxu0 %v4841
        %6367 = vmatprep.subr.bf16.mxu0 %v4850
        %6368 = vmatpush1.bf16.msra.mxu0 %v4849
        %6369 = vmatprep.subr.bf16.mxu0 %v4858
        %6370 = vmatpush1.bf16.msra.mxu0 %v4857
        %6371 = vmatprep.subr.bf16.mxu0 %v4866
        %6372 = vmatpush1.bf16.msra.mxu0 %v4865
        %6373 = vmatprep.subr.bf16.mxu0 %v4874
        %6374 = vmatpush1.bf16.msra.mxu0 %v4873
        %6375 = vmatprep.subr.bf16.mxu0 %v4882
        %6376 = vmatpush1.bf16.msra.mxu0 %v4881
        %6377 = vmatprep.subr.bf16.mxu0 %v4890
        %6378 = vmatpush1.bf16.msra.mxu0 %v4889
        %6379 = vmatprep.subr.bf16.mxu0 %v4898
        %6380 = vmatpush1.bf16.msra.mxu0 %v4897
        %6381 = vmatprep.mubr.bf16.mxu0 %v417
        %6382 = vmatmul.mubr.bf16.gmra.mrb[0].mxu0 %v416
        %v6383 = vpop.f32.mrb[0].mxu0
        %v6384 = vadd.f32 %v6343, %v6383
        %v6385 = vpop.f32.mrb[0].mxu0
        %v6386 = vadd.f32 %v6345, %v6385
        %v6387 = vpop.f32.mrb[0].mxu0
        %v6388 = vpop.f32.mrb[0].mxu0
        %6389 = vdwg.mxu0
        %6390 = vmatprep.subr.bf16.mxu0 %v4906
        %6391 = vmatpush1.bf16.msra.mxu0 %v4905
        %6392 = vmatprep.subr.bf16.mxu0 %v4914
        %6393 = vmatpush1.bf16.msra.mxu0 %v4913
        %6394 = vmatprep.subr.bf16.mxu0 %v4922
        %6395 = vmatpush1.bf16.msra.mxu0 %v4921
        %6396 = vmatprep.subr.bf16.mxu0 %v4930
        %6397 = vmatpush1.bf16.msra.mxu0 %v4929
        %6398 = vmatprep.subr.bf16.mxu0 %v4938
        %6399 = vmatpush1.bf16.msra.mxu0 %v4937
        %6400 = vmatprep.subr.bf16.mxu0 %v4946
        %6401 = vmatpush1.bf16.msra.mxu0 %v4945
        %6402 = vmatprep.subr.bf16.mxu0 %v4954
        %6403 = vmatpush1.bf16.msra.mxu0 %v4953
        %6404 = vmatprep.subr.bf16.mxu0 %v4962
        %6405 = vmatpush1.bf16.msra.mxu0 %v4961
        %6406 = vmatprep.subr.bf16.mxu0 %v4970
        %6407 = vmatpush1.bf16.msra.mxu0 %v4969
        %6408 = vmatprep.subr.bf16.mxu0 %v4978
        %6409 = vmatpush1.bf16.msra.mxu0 %v4977
        %6410 = vmatprep.subr.bf16.mxu0 %v4986
        %6411 = vmatpush1.bf16.msra.mxu0 %v4985
        %6412 = vmatprep.subr.bf16.mxu0 %v4994
        %6413 = vmatpush1.bf16.msra.mxu0 %v4993
        %6414 = vmatprep.subr.bf16.mxu0 %v5002
        %6415 = vmatpush1.bf16.msra.mxu0 %v5001
        %6416 = vmatprep.subr.bf16.mxu0 %v5010
        %6417 = vmatpush1.bf16.msra.mxu0 %v5009
        %6418 = vmatprep.subr.bf16.mxu0 %v5018
        %6419 = vmatpush1.bf16.msra.mxu0 %v5017
        %6420 = vmatprep.subr.bf16.mxu0 %v5026
        %6421 = vmatpush1.bf16.msra.mxu0 %v5025
        %6422 = vmatprep.mubr.bf16.mxu0 %v419
        %6423 = vmatmul.mubr.bf16.gmra.mrb[0].mxu0 %v418
        %v6424 = vpop.f32.mrb[0].mxu0
        %v6425 = vadd.f32 %v6384, %v6424
        %v6426 = vpop.f32.mrb[0].mxu0
        %v6427 = vadd.f32 %v6386, %v6426
        %v6428 = vpop.f32.mrb[0].mxu0
        %v6429 = vpop.f32.mrb[0].mxu0
        %6430 = vdwg.mxu0
        %6431 = vmatprep.subr.bf16.mxu0 %v5034
        %6432 = vmatpush1.bf16.msra.mxu0 %v5033
        %6433 = vmatprep.subr.bf16.mxu0 %v5042
        %6434 = vmatpush1.bf16.msra.mxu0 %v5041
        %6435 = vmatprep.subr.bf16.mxu0 %v5050
        %6436 = vmatpush1.bf16.msra.mxu0 %v5049
        %6437 = vmatprep.subr.bf16.mxu0 %v5058
        %6438 = vmatpush1.bf16.msra.mxu0 %v5057
        %6439 = vmatprep.subr.bf16.mxu0 %v5066
        %6440 = vmatpush1.bf16.msra.mxu0 %v5065
        %6441 = vmatprep.subr.bf16.mxu0 %v5074
        %6442 = vmatpush1.bf16.msra.mxu0 %v5073
        %6443 = vmatprep.subr.bf16.mxu0 %v5082
        %6444 = vmatpush1.bf16.msra.mxu0 %v5081
        %6445 = vmatprep.subr.bf16.mxu0 %v5090
        %6446 = vmatpush1.bf16.msra.mxu0 %v5089
        %6447 = vmatprep.subr.bf16.mxu0 %v5098
        %6448 = vmatpush1.bf16.msra.mxu0 %v5097
        %6449 = vmatprep.subr.bf16.mxu0 %v5106
        %6450 = vmatpush1.bf16.msra.mxu0 %v5105
        %6451 = vmatprep.subr.bf16.mxu0 %v5114
        %6452 = vmatpush1.bf16.msra.mxu0 %v5113
        %6453 = vmatprep.subr.bf16.mxu0 %v5122
        %6454 = vmatpush1.bf16.msra.mxu0 %v5121
        %6455 = vmatprep.subr.bf16.mxu0 %v5130
        %6456 = vmatpush1.bf16.msra.mxu0 %v5129
        %6457 = vmatprep.subr.bf16.mxu0 %v5138
        %6458 = vmatpush1.bf16.msra.mxu0 %v5137
        %6459 = vmatprep.subr.bf16.mxu0 %v5146
        %6460 = vmatpush1.bf16.msra.mxu0 %v5145
        %6461 = vmatprep.subr.bf16.mxu0 %v5154
        %6462 = vmatpush1.bf16.msra.mxu0 %v5153
        %6463 = vmatprep.mubr.bf16.mxu0 %v421
        %6464 = vmatmul.mubr.bf16.gmra.mrb[0].mxu0 %v420
        %v6465 = vpop.f32.mrb[0].mxu0
        %v6466 = vadd.f32 %v6425, %v6465
        %v6467 = vpop.f32.mrb[0].mxu0
        %v6468 = vadd.f32 %v6427, %v6467
        %v6469 = vpop.f32.mrb[0].mxu0
        %v6470 = vpop.f32.mrb[0].mxu0
        %6471 = vdwg.mxu0
        %6472 = vmatprep.subr.bf16.mxu0 %v5162
        %6473 = vmatpush1.bf16.msra.mxu0 %v5161
        %6474 = vmatprep.subr.bf16.mxu0 %v5170
        %6475 = vmatpush1.bf16.msra.mxu0 %v5169
        %6476 = vmatprep.subr.bf16.mxu0 %v5178
        %6477 = vmatpush1.bf16.msra.mxu0 %v5177
        %6478 = vmatprep.subr.bf16.mxu0 %v5186
        %6479 = vmatpush1.bf16.msra.mxu0 %v5185
        %6480 = vmatprep.subr.bf16.mxu0 %v5194
        %6481 = vmatpush1.bf16.msra.mxu0 %v5193
        %6482 = vmatprep.subr.bf16.mxu0 %v5202
        %6483 = vmatpush1.bf16.msra.mxu0 %v5201
        %6484 = vmatprep.subr.bf16.mxu0 %v5210
        %6485 = vmatpush1.bf16.msra.mxu0 %v5209
        %6486 = vmatprep.subr.bf16.mxu0 %v5218
        %6487 = vmatpush1.bf16.msra.mxu0 %v5217
        %6488 = vmatprep.subr.bf16.mxu0 0
        %6489 = vmatpush1.bf16.msra.mxu0 0
        %6490 = vmatprep.subr.bf16.mxu0 0
        %6491 = vmatpush1.bf16.msra.mxu0 0
        %6492 = vmatprep.subr.bf16.mxu0 0
        %6493 = vmatpush1.bf16.msra.mxu0 0
        %6494 = vmatprep.subr.bf16.mxu0 0
        %6495 = vmatpush1.bf16.msra.mxu0 0
        %6496 = vmatprep.subr.bf16.mxu0 0
        %6497 = vmatpush1.bf16.msra.mxu0 0
        %6498 = vmatprep.subr.bf16.mxu0 0
        %6499 = vmatpush1.bf16.msra.mxu0 0
        %6500 = vmatprep.subr.bf16.mxu0 0
        %6501 = vmatpush1.bf16.msra.mxu0 0
        %6502 = vmatprep.subr.bf16.mxu0 0
        %6503 = vmatpush1.bf16.msra.mxu0 0
        %6504 = vmatprep.mubr.bf16.mxu0 0
        %6505 = vmatmul.mubr.bf16.gmra.mrb[0].mxu0 %v422
        %v6506 = vpop.f32.mrb[0].mxu0
        %v6507 = vadd.f32 %v6466, %v6506
        %v6508 = vpop.f32.mrb[0].mxu0
        %v6509 = vadd.f32 %v6468, %v6508
        %v6510 = vpop.f32.mrb[0].mxu0
        %v6511 = vpop.f32.mrb[0].mxu0
        %6512 = vdwg.mxu0
        %6513 = vmatprep.subr.bf16.mxu0 %v4268
        %6514 = vmatpush1.bf16.msra.mxu0 %v4267
        %6515 = vmatprep.subr.bf16.mxu0 %v4276
        %6516 = vmatpush1.bf16.msra.mxu0 %v4275
        %6517 = vmatprep.subr.bf16.mxu0 %v4284
        %6518 = vmatpush1.bf16.msra.mxu0 %v4283
        %6519 = vmatprep.subr.bf16.mxu0 %v4292
        %6520 = vmatpush1.bf16.msra.mxu0 %v4291
        %6521 = vmatprep.subr.bf16.mxu0 %v4300
        %6522 = vmatpush1.bf16.msra.mxu0 %v4299
        %6523 = vmatprep.subr.bf16.mxu0 %v4308
        %6524 = vmatpush1.bf16.msra.mxu0 %v4307
        %6525 = vmatprep.subr.bf16.mxu0 %v4316
        %6526 = vmatpush1.bf16.msra.mxu0 %v4315
        %6527 = vmatprep.subr.bf16.mxu0 %v4324
        %6528 = vmatpush1.bf16.msra.mxu0 %v4323
        %6529 = vmatprep.subr.bf16.mxu0 %v4332
        %6530 = vmatpush1.bf16.msra.mxu0 %v4331
        %6531 = vmatprep.subr.bf16.mxu0 %v4340
        %6532 = vmatpush1.bf16.msra.mxu0 %v4339
        %6533 = vmatprep.subr.bf16.mxu0 %v4348
        %6534 = vmatpush1.bf16.msra.mxu0 %v4347
        %6535 = vmatprep.subr.bf16.mxu0 %v4356
        %6536 = vmatpush1.bf16.msra.mxu0 %v4355
        %6537 = vmatprep.subr.bf16.mxu0 %v4364
        %6538 = vmatpush1.bf16.msra.mxu0 %v4363
        %6539 = vmatprep.subr.bf16.mxu0 %v4372
        %6540 = vmatpush1.bf16.msra.mxu0 %v4371
        %6541 = vmatprep.subr.bf16.mxu0 %v4380
        %6542 = vmatpush1.bf16.msra.mxu0 %v4379
        %6543 = vmatprep.subr.bf16.mxu0 %v4388
        %6544 = vmatpush1.bf16.msra.mxu0 %v4387
        %6545 = vmatprep.mubr.bf16.mxu0 %v409
        %6546 = vmatmul.mubr.bf16.gmra.mrb[0].mxu0 %v408
        %v6547 = vpop.f32.mrb[0].mxu0
        %v6548 = vadd.f32 0.0, %v6547
        %v6549 = vpop.f32.mrb[0].mxu0
        %v6550 = vadd.f32 0.0, %v6549
        %v6551 = vpop.f32.mrb[0].mxu0
        %v6552 = vpop.f32.mrb[0].mxu0
        %6553 = vdwg.mxu0
        %6554 = vmatprep.subr.bf16.mxu0 %v4396
        %6555 = vmatpush1.bf16.msra.mxu0 %v4395
        %6556 = vmatprep.subr.bf16.mxu0 %v4404
        %6557 = vmatpush1.bf16.msra.mxu0 %v4403
        %6558 = vmatprep.subr.bf16.mxu0 %v4412
        %6559 = vmatpush1.bf16.msra.mxu0 %v4411
        %6560 = vmatprep.subr.bf16.mxu0 %v4420
        %6561 = vmatpush1.bf16.msra.mxu0 %v4419
        %6562 = vmatprep.subr.bf16.mxu0 %v4428
        %6563 = vmatpush1.bf16.msra.mxu0 %v4427
        %6564 = vmatprep.subr.bf16.mxu0 %v4436
        %6565 = vmatpush1.bf16.msra.mxu0 %v4435
        %6566 = vmatprep.subr.bf16.mxu0 %v4444
        %6567 = vmatpush1.bf16.msra.mxu0 %v4443
        %6568 = vmatprep.subr.bf16.mxu0 %v4452
        %6569 = vmatpush1.bf16.msra.mxu0 %v4451
        %6570 = vmatprep.subr.bf16.mxu0 %v4460
        %6571 = vmatpush1.bf16.msra.mxu0 %v4459
        %6572 = vmatprep.subr.bf16.mxu0 %v4468
        %6573 = vmatpush1.bf16.msra.mxu0 %v4467
        %6574 = vmatprep.subr.bf16.mxu0 %v4476
        %6575 = vmatpush1.bf16.msra.mxu0 %v4475
        %6576 = vmatprep.subr.bf16.mxu0 %v4484
        %6577 = vmatpush1.bf16.msra.mxu0 %v4483
        %6578 = vmatprep.subr.bf16.mxu0 %v4492
        %6579 = vmatpush1.bf16.msra.mxu0 %v4491
        %6580 = vmatprep.subr.bf16.mxu0 %v4500
        %6581 = vmatpush1.bf16.msra.mxu0 %v4499
        %6582 = vmatprep.subr.bf16.mxu0 %v4508
        %6583 = vmatpush1.bf16.msra.mxu0 %v4507
        %6584 = vmatprep.subr.bf16.mxu0 %v4516
        %6585 = vmatpush1.bf16.msra.mxu0 %v4515
        %6586 = vmatprep.mubr.bf16.mxu0 %v411
        %6587 = vmatmul.mubr.bf16.gmra.mrb[0].mxu0 %v410
        %v6588 = vpop.f32.mrb[0].mxu0
        %v6589 = vadd.f32 %v6548, %v6588
        %v6590 = vpop.f32.mrb[0].mxu0
        %v6591 = vadd.f32 %v6550, %v6590
        %v6592 = vpop.f32.mrb[0].mxu0
        %v6593 = vpop.f32.mrb[0].mxu0
        %6594 = vdwg.mxu0
        %6595 = vmatprep.subr.bf16.mxu0 %v4524
        %6596 = vmatpush1.bf16.msra.mxu0 %v4523
        %6597 = vmatprep.subr.bf16.mxu0 %v4532
        %6598 = vmatpush1.bf16.msra.mxu0 %v4531
        %6599 = vmatprep.subr.bf16.mxu0 %v4540
        %6600 = vmatpush1.bf16.msra.mxu0 %v4539
        %6601 = vmatprep.subr.bf16.mxu0 %v4548
        %6602 = vmatpush1.bf16.msra.mxu0 %v4547
        %6603 = vmatprep.subr.bf16.mxu0 %v4556
        %6604 = vmatpush1.bf16.msra.mxu0 %v4555
        %6605 = vmatprep.subr.bf16.mxu0 %v4564
        %6606 = vmatpush1.bf16.msra.mxu0 %v4563
        %6607 = vmatprep.subr.bf16.mxu0 %v4572
        %6608 = vmatpush1.bf16.msra.mxu0 %v4571
        %6609 = vmatprep.subr.bf16.mxu0 %v4580
        %6610 = vmatpush1.bf16.msra.mxu0 %v4579
        %6611 = vmatprep.subr.bf16.mxu0 %v4588
        %6612 = vmatpush1.bf16.msra.mxu0 %v4587
        %6613 = vmatprep.subr.bf16.mxu0 %v4596
        %6614 = vmatpush1.bf16.msra.mxu0 %v4595
        %6615 = vmatprep.subr.bf16.mxu0 %v4604
        %6616 = vmatpush1.bf16.msra.mxu0 %v4603
        %6617 = vmatprep.subr.bf16.mxu0 %v4612
        %6618 = vmatpush1.bf16.msra.mxu0 %v4611
        %6619 = vmatprep.subr.bf16.mxu0 %v4620
        %6620 = vmatpush1.bf16.msra.mxu0 %v4619
        %6621 = vmatprep.subr.bf16.mxu0 %v4628
        %6622 = vmatpush1.bf16.msra.mxu0 %v4627
        %6623 = vmatprep.subr.bf16.mxu0 %v4636
        %6624 = vmatpush1.bf16.msra.mxu0 %v4635
        %6625 = vmatprep.subr.bf16.mxu0 %v4644
        %6626 = vmatpush1.bf16.msra.mxu0 %v4643
        %6627 = vmatprep.mubr.bf16.mxu0 %v413
        %6628 = vmatmul.mubr.bf16.gmra.mrb[0].mxu0 %v412
        %v6629 = vpop.f32.mrb[0].mxu0
        %v6630 = vadd.f32 %v6589, %v6629
        %v6631 = vpop.f32.mrb[0].mxu0
        %v6632 = vadd.f32 %v6591, %v6631
        %v6633 = vpop.f32.mrb[0].mxu0
        %v6634 = vpop.f32.mrb[0].mxu0
        %6635 = vdwg.mxu0
        %6636 = vmatprep.subr.bf16.mxu0 %v4652
        %6637 = vmatpush1.bf16.msra.mxu0 %v4651
        %6638 = vmatprep.subr.bf16.mxu0 %v4660
        %6639 = vmatpush1.bf16.msra.mxu0 %v4659
        %6640 = vmatprep.subr.bf16.mxu0 %v4668
        %6641 = vmatpush1.bf16.msra.mxu0 %v4667
        %6642 = vmatprep.subr.bf16.mxu0 %v4676
        %6643 = vmatpush1.bf16.msra.mxu0 %v4675
        %6644 = vmatprep.subr.bf16.mxu0 %v4684
        %6645 = vmatpush1.bf16.msra.mxu0 %v4683
        %6646 = vmatprep.subr.bf16.mxu0 %v4692
        %6647 = vmatpush1.bf16.msra.mxu0 %v4691
        %6648 = vmatprep.subr.bf16.mxu0 %v4700
        %6649 = vmatpush1.bf16.msra.mxu0 %v4699
        %6650 = vmatprep.subr.bf16.mxu0 %v4708
        %6651 = vmatpush1.bf16.msra.mxu0 %v4707
        %6652 = vmatprep.subr.bf16.mxu0 %v4716
        %6653 = vmatpush1.bf16.msra.mxu0 %v4715
        %6654 = vmatprep.subr.bf16.mxu0 %v4724
        %6655 = vmatpush1.bf16.msra.mxu0 %v4723
        %6656 = vmatprep.subr.bf16.mxu0 %v4732
        %6657 = vmatpush1.bf16.msra.mxu0 %v4731
        %6658 = vmatprep.subr.bf16.mxu0 %v4740
        %6659 = vmatpush1.bf16.msra.mxu0 %v4739
        %6660 = vmatprep.subr.bf16.mxu0 %v4748
        %6661 = vmatpush1.bf16.msra.mxu0 %v4747
        %6662 = vmatprep.subr.bf16.mxu0 %v4756
        %6663 = vmatpush1.bf16.msra.mxu0 %v4755
        %6664 = vmatprep.subr.bf16.mxu0 %v4764
        %6665 = vmatpush1.bf16.msra.mxu0 %v4763
        %6666 = vmatprep.subr.bf16.mxu0 %v4772
        %6667 = vmatpush1.bf16.msra.mxu0 %v4771
        %6668 = vmatprep.mubr.bf16.mxu0 %v415
        %6669 = vmatmul.mubr.bf16.gmra.mrb[0].mxu0 %v414
        %v6670 = vpop.f32.mrb[0].mxu0
        %v6671 = vadd.f32 %v6630, %v6670
        %v6672 = vpop.f32.mrb[0].mxu0
        %v6673 = vadd.f32 %v6632, %v6672
        %v6674 = vpop.f32.mrb[0].mxu0
        %v6675 = vpop.f32.mrb[0].mxu0
        %6676 = vdwg.mxu0
        %6677 = vmatprep.subr.bf16.mxu0 %v4780
        %6678 = vmatpush1.bf16.msra.mxu0 %v4779
        %6679 = vmatprep.subr.bf16.mxu0 %v4788
        %6680 = vmatpush1.bf16.msra.mxu0 %v4787
        %6681 = vmatprep.subr.bf16.mxu0 %v4796
        %6682 = vmatpush1.bf16.msra.mxu0 %v4795
        %6683 = vmatprep.subr.bf16.mxu0 %v4804
        %6684 = vmatpush1.bf16.msra.mxu0 %v4803
        %6685 = vmatprep.subr.bf16.mxu0 %v4812
        %6686 = vmatpush1.bf16.msra.mxu0 %v4811
        %6687 = vmatprep.subr.bf16.mxu0 %v4820
        %6688 = vmatpush1.bf16.msra.mxu0 %v4819
        %6689 = vmatprep.subr.bf16.mxu0 %v4828
        %6690 = vmatpush1.bf16.msra.mxu0 %v4827
        %6691 = vmatprep.subr.bf16.mxu0 %v4836
        %6692 = vmatpush1.bf16.msra.mxu0 %v4835
        %6693 = vmatprep.subr.bf16.mxu0 %v4844
        %6694 = vmatpush1.bf16.msra.mxu0 %v4843
        %6695 = vmatprep.subr.bf16.mxu0 %v4852
        %6696 = vmatpush1.bf16.msra.mxu0 %v4851
        %6697 = vmatprep.subr.bf16.mxu0 %v4860
        %6698 = vmatpush1.bf16.msra.mxu0 %v4859
        %6699 = vmatprep.subr.bf16.mxu0 %v4868
        %6700 = vmatpush1.bf16.msra.mxu0 %v4867
        %6701 = vmatprep.subr.bf16.mxu0 %v4876
        %6702 = vmatpush1.bf16.msra.mxu0 %v4875
        %6703 = vmatprep.subr.bf16.mxu0 %v4884
        %6704 = vmatpush1.bf16.msra.mxu0 %v4883
        %6705 = vmatprep.subr.bf16.mxu0 %v4892
        %6706 = vmatpush1.bf16.msra.mxu0 %v4891
        %6707 = vmatprep.subr.bf16.mxu0 %v4900
        %6708 = vmatpush1.bf16.msra.mxu0 %v4899
        %6709 = vmatprep.mubr.bf16.mxu0 %v417
        %6710 = vmatmul.mubr.bf16.gmra.mrb[0].mxu0 %v416
        %v6711 = vpop.f32.mrb[0].mxu0
        %v6712 = vadd.f32 %v6671, %v6711
        %v6713 = vpop.f32.mrb[0].mxu0
        %v6714 = vadd.f32 %v6673, %v6713
        %v6715 = vpop.f32.mrb[0].mxu0
        %v6716 = vpop.f32.mrb[0].mxu0
        %6717 = vdwg.mxu0
        %6718 = vmatprep.subr.bf16.mxu0 %v4908
        %6719 = vmatpush1.bf16.msra.mxu0 %v4907
        %6720 = vmatprep.subr.bf16.mxu0 %v4916
        %6721 = vmatpush1.bf16.msra.mxu0 %v4915
        %6722 = vmatprep.subr.bf16.mxu0 %v4924
        %6723 = vmatpush1.bf16.msra.mxu0 %v4923
        %6724 = vmatprep.subr.bf16.mxu0 %v4932
        %6725 = vmatpush1.bf16.msra.mxu0 %v4931
        %6726 = vmatprep.subr.bf16.mxu0 %v4940
        %6727 = vmatpush1.bf16.msra.mxu0 %v4939
        %6728 = vmatprep.subr.bf16.mxu0 %v4948
        %6729 = vmatpush1.bf16.msra.mxu0 %v4947
        %6730 = vmatprep.subr.bf16.mxu0 %v4956
        %6731 = vmatpush1.bf16.msra.mxu0 %v4955
        %6732 = vmatprep.subr.bf16.mxu0 %v4964
        %6733 = vmatpush1.bf16.msra.mxu0 %v4963
        %6734 = vmatprep.subr.bf16.mxu0 %v4972
        %6735 = vmatpush1.bf16.msra.mxu0 %v4971
        %6736 = vmatprep.subr.bf16.mxu0 %v4980
        %6737 = vmatpush1.bf16.msra.mxu0 %v4979
        %6738 = vmatprep.subr.bf16.mxu0 %v4988
        %6739 = vmatpush1.bf16.msra.mxu0 %v4987
        %6740 = vmatprep.subr.bf16.mxu0 %v4996
        %6741 = vmatpush1.bf16.msra.mxu0 %v4995
        %6742 = vmatprep.subr.bf16.mxu0 %v5004
        %6743 = vmatpush1.bf16.msra.mxu0 %v5003
        %6744 = vmatprep.subr.bf16.mxu0 %v5012
        %6745 = vmatpush1.bf16.msra.mxu0 %v5011
        %6746 = vmatprep.subr.bf16.mxu0 %v5020
        %6747 = vmatpush1.bf16.msra.mxu0 %v5019
        %6748 = vmatprep.subr.bf16.mxu0 %v5028
        %6749 = vmatpush1.bf16.msra.mxu0 %v5027
        %6750 = vmatprep.mubr.bf16.mxu0 %v419
        %6751 = vmatmul.mubr.bf16.gmra.mrb[0].mxu0 %v418
        %v6752 = vpop.f32.mrb[0].mxu0
        %v6753 = vadd.f32 %v6712, %v6752
        %v6754 = vpop.f32.mrb[0].mxu0
        %v6755 = vadd.f32 %v6714, %v6754
        %v6756 = vpop.f32.mrb[0].mxu0
        %v6757 = vpop.f32.mrb[0].mxu0
        %6758 = vdwg.mxu0
        %6759 = vmatprep.subr.bf16.mxu0 %v5036
        %6760 = vmatpush1.bf16.msra.mxu0 %v5035
        %6761 = vmatprep.subr.bf16.mxu0 %v5044
        %6762 = vmatpush1.bf16.msra.mxu0 %v5043
        %6763 = vmatprep.subr.bf16.mxu0 %v5052
        %6764 = vmatpush1.bf16.msra.mxu0 %v5051
        %6765 = vmatprep.subr.bf16.mxu0 %v5060
        %6766 = vmatpush1.bf16.msra.mxu0 %v5059
        %6767 = vmatprep.subr.bf16.mxu0 %v5068
        %6768 = vmatpush1.bf16.msra.mxu0 %v5067
        %6769 = vmatprep.subr.bf16.mxu0 %v5076
        %6770 = vmatpush1.bf16.msra.mxu0 %v5075
        %6771 = vmatprep.subr.bf16.mxu0 %v5084
        %6772 = vmatpush1.bf16.msra.mxu0 %v5083
        %6773 = vmatprep.subr.bf16.mxu0 %v5092
        %6774 = vmatpush1.bf16.msra.mxu0 %v5091
        %6775 = vmatprep.subr.bf16.mxu0 %v5100
        %6776 = vmatpush1.bf16.msra.mxu0 %v5099
        %6777 = vmatprep.subr.bf16.mxu0 %v5108
        %6778 = vmatpush1.bf16.msra.mxu0 %v5107
        %6779 = vmatprep.subr.bf16.mxu0 %v5116
        %6780 = vmatpush1.bf16.msra.mxu0 %v5115
        %6781 = vmatprep.subr.bf16.mxu0 %v5124
        %6782 = vmatpush1.bf16.msra.mxu0 %v5123
        %6783 = vmatprep.subr.bf16.mxu0 %v5132
        %6784 = vmatpush1.bf16.msra.mxu0 %v5131
        %6785 = vmatprep.subr.bf16.mxu0 %v5140
        %6786 = vmatpush1.bf16.msra.mxu0 %v5139
        %6787 = vmatprep.subr.bf16.mxu0 %v5148
        %6788 = vmatpush1.bf16.msra.mxu0 %v5147
        %6789 = vmatprep.subr.bf16.mxu0 %v5156
        %6790 = vmatpush1.bf16.msra.mxu0 %v5155
        %6791 = vmatprep.mubr.bf16.mxu0 %v421
        %6792 = vmatmul.mubr.bf16.gmra.mrb[0].mxu0 %v420
        %v6793 = vpop.f32.mrb[0].mxu0
        %v6794 = vadd.f32 %v6753, %v6793
        %v6795 = vpop.f32.mrb[0].mxu0
        %v6796 = vadd.f32 %v6755, %v6795
        %v6797 = vpop.f32.mrb[0].mxu0
        %v6798 = vpop.f32.mrb[0].mxu0
        %6799 = vdwg.mxu0
        %6800 = vmatprep.subr.bf16.mxu0 %v5164
        %6801 = vmatpush1.bf16.msra.mxu0 %v5163
        %6802 = vmatprep.subr.bf16.mxu0 %v5172
        %6803 = vmatpush1.bf16.msra.mxu0 %v5171
        %6804 = vmatprep.subr.bf16.mxu0 %v5180
        %6805 = vmatpush1.bf16.msra.mxu0 %v5179
        %6806 = vmatprep.subr.bf16.mxu0 %v5188
        %6807 = vmatpush1.bf16.msra.mxu0 %v5187
        %6808 = vmatprep.subr.bf16.mxu0 %v5196
        %6809 = vmatpush1.bf16.msra.mxu0 %v5195
        %6810 = vmatprep.subr.bf16.mxu0 %v5204
        %6811 = vmatpush1.bf16.msra.mxu0 %v5203
        %6812 = vmatprep.subr.bf16.mxu0 %v5212
        %6813 = vmatpush1.bf16.msra.mxu0 %v5211
        %6814 = vmatprep.subr.bf16.mxu0 %v5220
        %6815 = vmatpush1.bf16.msra.mxu0 %v5219
        %6816 = vmatprep.subr.bf16.mxu0 0
        %6817 = vmatpush1.bf16.msra.mxu0 0
        %6818 = vmatprep.subr.bf16.mxu0 0
        %6819 = vmatpush1.bf16.msra.mxu0 0
        %6820 = vmatprep.subr.bf16.mxu0 0
        %6821 = vmatpush1.bf16.msra.mxu0 0
        %6822 = vmatprep.subr.bf16.mxu0 0
        %6823 = vmatpush1.bf16.msra.mxu0 0
        %6824 = vmatprep.subr.bf16.mxu0 0
        %6825 = vmatpush1.bf16.msra.mxu0 0
        %6826 = vmatprep.subr.bf16.mxu0 0
        %6827 = vmatpush1.bf16.msra.mxu0 0
        %6828 = vmatprep.subr.bf16.mxu0 0
        %6829 = vmatpush1.bf16.msra.mxu0 0
        %6830 = vmatprep.subr.bf16.mxu0 0
        %6831 = vmatpush1.bf16.msra.mxu0 0
        %6832 = vmatprep.mubr.bf16.mxu0 0
        %6833 = vmatmul.mubr.bf16.gmra.mrb[0].mxu0 %v422
        %v6834 = vpop.f32.mrb[0].mxu0
        %v6835 = vadd.f32 %v6794, %v6834
        %v6836 = vpop.f32.mrb[0].mxu0
        %v6837 = vadd.f32 %v6796, %v6836
        %v6838 = vpop.f32.mrb[0].mxu0
        %v6839 = vpop.f32.mrb[0].mxu0
        %6840 = vdwg.mxu0
        %6841 = vmatprep.subr.bf16.mxu0 %v4270
        %6842 = vmatpush1.bf16.msra.mxu0 %v4269
        %6843 = vmatprep.subr.bf16.mxu0 %v4278
        %6844 = vmatpush1.bf16.msra.mxu0 %v4277
        %6845 = vmatprep.subr.bf16.mxu0 %v4286
        %6846 = vmatpush1.bf16.msra.mxu0 %v4285
        %6847 = vmatprep.subr.bf16.mxu0 %v4294
        %6848 = vmatpush1.bf16.msra.mxu0 %v4293
        %6849 = vmatprep.subr.bf16.mxu0 %v4302
        %6850 = vmatpush1.bf16.msra.mxu0 %v4301
        %6851 = vmatprep.subr.bf16.mxu0 %v4310
        %6852 = vmatpush1.bf16.msra.mxu0 %v4309
        %6853 = vmatprep.subr.bf16.mxu0 %v4318
        %6854 = vmatpush1.bf16.msra.mxu0 %v4317
        %6855 = vmatprep.subr.bf16.mxu0 %v4326
        %6856 = vmatpush1.bf16.msra.mxu0 %v4325
        %6857 = vmatprep.subr.bf16.mxu0 %v4334
        %6858 = vmatpush1.bf16.msra.mxu0 %v4333
        %6859 = vmatprep.subr.bf16.mxu0 %v4342
        %6860 = vmatpush1.bf16.msra.mxu0 %v4341
        %6861 = vmatprep.subr.bf16.mxu0 %v4350
        %6862 = vmatpush1.bf16.msra.mxu0 %v4349
        %6863 = vmatprep.subr.bf16.mxu0 %v4358
        %6864 = vmatpush1.bf16.msra.mxu0 %v4357
        %6865 = vmatprep.subr.bf16.mxu0 %v4366
        %6866 = vmatpush1.bf16.msra.mxu0 %v4365
        %6867 = vmatprep.subr.bf16.mxu0 %v4374
        %6868 = vmatpush1.bf16.msra.mxu0 %v4373
        %6869 = vmatprep.subr.bf16.mxu0 %v4382
        %6870 = vmatpush1.bf16.msra.mxu0 %v4381
        %6871 = vmatprep.subr.bf16.mxu0 %v4390
        %6872 = vmatpush1.bf16.msra.mxu0 %v4389
        %6873 = vmatprep.mubr.bf16.mxu0 %v409
        %6874 = vmatmul.mubr.bf16.gmra.mrb[0].mxu0 %v408
        %v6875 = vpop.f32.mrb[0].mxu0
        %v6876 = vadd.f32 0.0, %v6875
        %v6877 = vpop.f32.mrb[0].mxu0
        %v6878 = vadd.f32 0.0, %v6877
        %v6879 = vpop.f32.mrb[0].mxu0
        %v6880 = vpop.f32.mrb[0].mxu0
        %6881 = vdwg.mxu0
        %6882 = vmatprep.subr.bf16.mxu0 %v4398
        %6883 = vmatpush1.bf16.msra.mxu0 %v4397
        %6884 = vmatprep.subr.bf16.mxu0 %v4406
        %6885 = vmatpush1.bf16.msra.mxu0 %v4405
        %6886 = vmatprep.subr.bf16.mxu0 %v4414
        %6887 = vmatpush1.bf16.msra.mxu0 %v4413
        %6888 = vmatprep.subr.bf16.mxu0 %v4422
        %6889 = vmatpush1.bf16.msra.mxu0 %v4421
        %6890 = vmatprep.subr.bf16.mxu0 %v4430
        %6891 = vmatpush1.bf16.msra.mxu0 %v4429
        %6892 = vmatprep.subr.bf16.mxu0 %v4438
        %6893 = vmatpush1.bf16.msra.mxu0 %v4437
        %6894 = vmatprep.subr.bf16.mxu0 %v4446
        %6895 = vmatpush1.bf16.msra.mxu0 %v4445
        %6896 = vmatprep.subr.bf16.mxu0 %v4454
        %6897 = vmatpush1.bf16.msra.mxu0 %v4453
        %6898 = vmatprep.subr.bf16.mxu0 %v4462
        %6899 = vmatpush1.bf16.msra.mxu0 %v4461
        %6900 = vmatprep.subr.bf16.mxu0 %v4470
        %6901 = vmatpush1.bf16.msra.mxu0 %v4469
        %6902 = vmatprep.subr.bf16.mxu0 %v4478
        %6903 = vmatpush1.bf16.msra.mxu0 %v4477
        %6904 = vmatprep.subr.bf16.mxu0 %v4486
        %6905 = vmatpush1.bf16.msra.mxu0 %v4485
        %6906 = vmatprep.subr.bf16.mxu0 %v4494
        %6907 = vmatpush1.bf16.msra.mxu0 %v4493
        %6908 = vmatprep.subr.bf16.mxu0 %v4502
        %6909 = vmatpush1.bf16.msra.mxu0 %v4501
        %6910 = vmatprep.subr.bf16.mxu0 %v4510
        %6911 = vmatpush1.bf16.msra.mxu0 %v4509
        %6912 = vmatprep.subr.bf16.mxu0 %v4518
        %6913 = vmatpush1.bf16.msra.mxu0 %v4517
        %6914 = vmatprep.mubr.bf16.mxu0 %v411
        %6915 = vmatmul.mubr.bf16.gmra.mrb[0].mxu0 %v410
        %v6916 = vpop.f32.mrb[0].mxu0
        %v6917 = vadd.f32 %v6876, %v6916
        %v6918 = vpop.f32.mrb[0].mxu0
        %v6919 = vadd.f32 %v6878, %v6918
        %v6920 = vpop.f32.mrb[0].mxu0
        %v6921 = vpop.f32.mrb[0].mxu0
        %6922 = vdwg.mxu0
        %6923 = vmatprep.subr.bf16.mxu0 %v4526
        %6924 = vmatpush1.bf16.msra.mxu0 %v4525
        %6925 = vmatprep.subr.bf16.mxu0 %v4534
        %6926 = vmatpush1.bf16.msra.mxu0 %v4533
        %6927 = vmatprep.subr.bf16.mxu0 %v4542
        %6928 = vmatpush1.bf16.msra.mxu0 %v4541
        %6929 = vmatprep.subr.bf16.mxu0 %v4550
        %6930 = vmatpush1.bf16.msra.mxu0 %v4549
        %6931 = vmatprep.subr.bf16.mxu0 %v4558
        %6932 = vmatpush1.bf16.msra.mxu0 %v4557
        %6933 = vmatprep.subr.bf16.mxu0 %v4566
        %6934 = vmatpush1.bf16.msra.mxu0 %v4565
        %6935 = vmatprep.subr.bf16.mxu0 %v4574
        %6936 = vmatpush1.bf16.msra.mxu0 %v4573
        %6937 = vmatprep.subr.bf16.mxu0 %v4582
        %6938 = vmatpush1.bf16.msra.mxu0 %v4581
        %6939 = vmatprep.subr.bf16.mxu0 %v4590
        %6940 = vmatpush1.bf16.msra.mxu0 %v4589
        %6941 = vmatprep.subr.bf16.mxu0 %v4598
        %6942 = vmatpush1.bf16.msra.mxu0 %v4597
        %6943 = vmatprep.subr.bf16.mxu0 %v4606
        %6944 = vmatpush1.bf16.msra.mxu0 %v4605
        %6945 = vmatprep.subr.bf16.mxu0 %v4614
        %6946 = vmatpush1.bf16.msra.mxu0 %v4613
        %6947 = vmatprep.subr.bf16.mxu0 %v4622
        %6948 = vmatpush1.bf16.msra.mxu0 %v4621
        %6949 = vmatprep.subr.bf16.mxu0 %v4630
        %6950 = vmatpush1.bf16.msra.mxu0 %v4629
        %6951 = vmatprep.subr.bf16.mxu0 %v4638
        %6952 = vmatpush1.bf16.msra.mxu0 %v4637
        %6953 = vmatprep.subr.bf16.mxu0 %v4646
        %6954 = vmatpush1.bf16.msra.mxu0 %v4645
        %6955 = vmatprep.mubr.bf16.mxu0 %v413
        %6956 = vmatmul.mubr.bf16.gmra.mrb[0].mxu0 %v412
        %v6957 = vpop.f32.mrb[0].mxu0
        %v6958 = vadd.f32 %v6917, %v6957
        %v6959 = vpop.f32.mrb[0].mxu0
        %v6960 = vadd.f32 %v6919, %v6959
        %v6961 = vpop.f32.mrb[0].mxu0
        %v6962 = vpop.f32.mrb[0].mxu0
        %6963 = vdwg.mxu0
        %6964 = vmatprep.subr.bf16.mxu0 %v4654
        %6965 = vmatpush1.bf16.msra.mxu0 %v4653
        %6966 = vmatprep.subr.bf16.mxu0 %v4662
        %6967 = vmatpush1.bf16.msra.mxu0 %v4661
        %6968 = vmatprep.subr.bf16.mxu0 %v4670
        %6969 = vmatpush1.bf16.msra.mxu0 %v4669
        %6970 = vmatprep.subr.bf16.mxu0 %v4678
        %6971 = vmatpush1.bf16.msra.mxu0 %v4677
        %6972 = vmatprep.subr.bf16.mxu0 %v4686
        %6973 = vmatpush1.bf16.msra.mxu0 %v4685
        %6974 = vmatprep.subr.bf16.mxu0 %v4694
        %6975 = vmatpush1.bf16.msra.mxu0 %v4693
        %6976 = vmatprep.subr.bf16.mxu0 %v4702
        %6977 = vmatpush1.bf16.msra.mxu0 %v4701
        %6978 = vmatprep.subr.bf16.mxu0 %v4710
        %6979 = vmatpush1.bf16.msra.mxu0 %v4709
        %6980 = vmatprep.subr.bf16.mxu0 %v4718
        %6981 = vmatpush1.bf16.msra.mxu0 %v4717
        %6982 = vmatprep.subr.bf16.mxu0 %v4726
        %6983 = vmatpush1.bf16.msra.mxu0 %v4725
        %6984 = vmatprep.subr.bf16.mxu0 %v4734
        %6985 = vmatpush1.bf16.msra.mxu0 %v4733
        %6986 = vmatprep.subr.bf16.mxu0 %v4742
        %6987 = vmatpush1.bf16.msra.mxu0 %v4741
        %6988 = vmatprep.subr.bf16.mxu0 %v4750
        %6989 = vmatpush1.bf16.msra.mxu0 %v4749
        %6990 = vmatprep.subr.bf16.mxu0 %v4758
        %6991 = vmatpush1.bf16.msra.mxu0 %v4757
        %6992 = vmatprep.subr.bf16.mxu0 %v4766
        %6993 = vmatpush1.bf16.msra.mxu0 %v4765
        %6994 = vmatprep.subr.bf16.mxu0 %v4774
        %6995 = vmatpush1.bf16.msra.mxu0 %v4773
        %6996 = vmatprep.mubr.bf16.mxu0 %v415
        %6997 = vmatmul.mubr.bf16.gmra.mrb[0].mxu0 %v414
        %v6998 = vpop.f32.mrb[0].mxu0
        %v6999 = vadd.f32 %v6958, %v6998
        %v7000 = vpop.f32.mrb[0].mxu0
        %v7001 = vadd.f32 %v6960, %v7000
        %v7002 = vpop.f32.mrb[0].mxu0
        %v7003 = vpop.f32.mrb[0].mxu0
        %7004 = vdwg.mxu0
        %7005 = vmatprep.subr.bf16.mxu0 %v4782
        %7006 = vmatpush1.bf16.msra.mxu0 %v4781
        %7007 = vmatprep.subr.bf16.mxu0 %v4790
        %7008 = vmatpush1.bf16.msra.mxu0 %v4789
        %7009 = vmatprep.subr.bf16.mxu0 %v4798
        %7010 = vmatpush1.bf16.msra.mxu0 %v4797
        %7011 = vmatprep.subr.bf16.mxu0 %v4806
        %7012 = vmatpush1.bf16.msra.mxu0 %v4805
        %7013 = vmatprep.subr.bf16.mxu0 %v4814
        %7014 = vmatpush1.bf16.msra.mxu0 %v4813
        %7015 = vmatprep.subr.bf16.mxu0 %v4822
        %7016 = vmatpush1.bf16.msra.mxu0 %v4821
        %7017 = vmatprep.subr.bf16.mxu0 %v4830
        %7018 = vmatpush1.bf16.msra.mxu0 %v4829
        %7019 = vmatprep.subr.bf16.mxu0 %v4838
        %7020 = vmatpush1.bf16.msra.mxu0 %v4837
        %7021 = vmatprep.subr.bf16.mxu0 %v4846
        %7022 = vmatpush1.bf16.msra.mxu0 %v4845
        %7023 = vmatprep.subr.bf16.mxu0 %v4854
        %7024 = vmatpush1.bf16.msra.mxu0 %v4853
        %7025 = vmatprep.subr.bf16.mxu0 %v4862
        %7026 = vmatpush1.bf16.msra.mxu0 %v4861
        %7027 = vmatprep.subr.bf16.mxu0 %v4870
        %7028 = vmatpush1.bf16.msra.mxu0 %v4869
        %7029 = vmatprep.subr.bf16.mxu0 %v4878
        %7030 = vmatpush1.bf16.msra.mxu0 %v4877
        %7031 = vmatprep.subr.bf16.mxu0 %v4886
        %7032 = vmatpush1.bf16.msra.mxu0 %v4885
        %7033 = vmatprep.subr.bf16.mxu0 %v4894
        %7034 = vmatpush1.bf16.msra.mxu0 %v4893
        %7035 = vmatprep.subr.bf16.mxu0 %v4902
        %7036 = vmatpush1.bf16.msra.mxu0 %v4901
        %7037 = vmatprep.mubr.bf16.mxu0 %v417
        %7038 = vmatmul.mubr.bf16.gmra.mrb[0].mxu0 %v416
        %v7039 = vpop.f32.mrb[0].mxu0
        %v7040 = vadd.f32 %v6999, %v7039
        %v7041 = vpop.f32.mrb[0].mxu0
        %v7042 = vadd.f32 %v7001, %v7041
        %v7043 = vpop.f32.mrb[0].mxu0
        %v7044 = vpop.f32.mrb[0].mxu0
        %7045 = vdwg.mxu0
        %7046 = vmatprep.subr.bf16.mxu0 %v4910
        %7047 = vmatpush1.bf16.msra.mxu0 %v4909
        %7048 = vmatprep.subr.bf16.mxu0 %v4918
        %7049 = vmatpush1.bf16.msra.mxu0 %v4917
        %7050 = vmatprep.subr.bf16.mxu0 %v4926
        %7051 = vmatpush1.bf16.msra.mxu0 %v4925
        %7052 = vmatprep.subr.bf16.mxu0 %v4934
        %7053 = vmatpush1.bf16.msra.mxu0 %v4933
        %7054 = vmatprep.subr.bf16.mxu0 %v4942
        %7055 = vmatpush1.bf16.msra.mxu0 %v4941
        %7056 = vmatprep.subr.bf16.mxu0 %v4950
        %7057 = vmatpush1.bf16.msra.mxu0 %v4949
        %7058 = vmatprep.subr.bf16.mxu0 %v4958
        %7059 = vmatpush1.bf16.msra.mxu0 %v4957
        %7060 = vmatprep.subr.bf16.mxu0 %v4966
        %7061 = vmatpush1.bf16.msra.mxu0 %v4965
        %7062 = vmatprep.subr.bf16.mxu0 %v4974
        %7063 = vmatpush1.bf16.msra.mxu0 %v4973
        %7064 = vmatprep.subr.bf16.mxu0 %v4982
        %7065 = vmatpush1.bf16.msra.mxu0 %v4981
        %7066 = vmatprep.subr.bf16.mxu0 %v4990
        %7067 = vmatpush1.bf16.msra.mxu0 %v4989
        %7068 = vmatprep.subr.bf16.mxu0 %v4998
        %7069 = vmatpush1.bf16.msra.mxu0 %v4997
        %7070 = vmatprep.subr.bf16.mxu0 %v5006
        %7071 = vmatpush1.bf16.msra.mxu0 %v5005
        %7072 = vmatprep.subr.bf16.mxu0 %v5014
        %7073 = vmatpush1.bf16.msra.mxu0 %v5013
        %7074 = vmatprep.subr.bf16.mxu0 %v5022
        %7075 = vmatpush1.bf16.msra.mxu0 %v5021
        %7076 = vmatprep.subr.bf16.mxu0 %v5030
        %7077 = vmatpush1.bf16.msra.mxu0 %v5029
        %7078 = vmatprep.mubr.bf16.mxu0 %v419
        %7079 = vmatmul.mubr.bf16.gmra.mrb[0].mxu0 %v418
        %v7080 = vpop.f32.mrb[0].mxu0
        %v7081 = vadd.f32 %v7040, %v7080
        %v7082 = vpop.f32.mrb[0].mxu0
        %v7083 = vadd.f32 %v7042, %v7082
        %v7084 = vpop.f32.mrb[0].mxu0
        %v7085 = vpop.f32.mrb[0].mxu0
        %7086 = vdwg.mxu0
        %7087 = vmatprep.subr.bf16.mxu0 %v5038
        %7088 = vmatpush1.bf16.msra.mxu0 %v5037
        %7089 = vmatprep.subr.bf16.mxu0 %v5046
        %7090 = vmatpush1.bf16.msra.mxu0 %v5045
        %7091 = vmatprep.subr.bf16.mxu0 %v5054
        %7092 = vmatpush1.bf16.msra.mxu0 %v5053
        %7093 = vmatprep.subr.bf16.mxu0 %v5062
        %7094 = vmatpush1.bf16.msra.mxu0 %v5061
        %7095 = vmatprep.subr.bf16.mxu0 %v5070
        %7096 = vmatpush1.bf16.msra.mxu0 %v5069
        %7097 = vmatprep.subr.bf16.mxu0 %v5078
        %7098 = vmatpush1.bf16.msra.mxu0 %v5077
        %7099 = vmatprep.subr.bf16.mxu0 %v5086
        %7100 = vmatpush1.bf16.msra.mxu0 %v5085
        %7101 = vmatprep.subr.bf16.mxu0 %v5094
        %7102 = vmatpush1.bf16.msra.mxu0 %v5093
        %7103 = vmatprep.subr.bf16.mxu0 %v5102
        %7104 = vmatpush1.bf16.msra.mxu0 %v5101
        %7105 = vmatprep.subr.bf16.mxu0 %v5110
        %7106 = vmatpush1.bf16.msra.mxu0 %v5109
        %7107 = vmatprep.subr.bf16.mxu0 %v5118
        %7108 = vmatpush1.bf16.msra.mxu0 %v5117
        %7109 = vmatprep.subr.bf16.mxu0 %v5126
        %7110 = vmatpush1.bf16.msra.mxu0 %v5125
        %7111 = vmatprep.subr.bf16.mxu0 %v5134
        %7112 = vmatpush1.bf16.msra.mxu0 %v5133
        %7113 = vmatprep.subr.bf16.mxu0 %v5142
        %7114 = vmatpush1.bf16.msra.mxu0 %v5141
        %7115 = vmatprep.subr.bf16.mxu0 %v5150
        %7116 = vmatpush1.bf16.msra.mxu0 %v5149
        %7117 = vmatprep.subr.bf16.mxu0 %v5158
        %7118 = vmatpush1.bf16.msra.mxu0 %v5157
        %7119 = vmatprep.mubr.bf16.mxu0 %v421
        %7120 = vmatmul.mubr.bf16.gmra.mrb[0].mxu0 %v420
        %v7121 = vpop.f32.mrb[0].mxu0
        %v7122 = vadd.f32 %v7081, %v7121
        %v7123 = vpop.f32.mrb[0].mxu0
        %v7124 = vadd.f32 %v7083, %v7123
        %v7125 = vpop.f32.mrb[0].mxu0
        %v7126 = vpop.f32.mrb[0].mxu0
        %7127 = vdwg.mxu0
        %7128 = vmatprep.subr.bf16.mxu0 %v5166
        %7129 = vmatpush1.bf16.msra.mxu0 %v5165
        %7130 = vmatprep.subr.bf16.mxu0 %v5174
        %7131 = vmatpush1.bf16.msra.mxu0 %v5173
        %7132 = vmatprep.subr.bf16.mxu0 %v5182
        %7133 = vmatpush1.bf16.msra.mxu0 %v5181
        %7134 = vmatprep.subr.bf16.mxu0 %v5190
        %7135 = vmatpush1.bf16.msra.mxu0 %v5189
        %7136 = vmatprep.subr.bf16.mxu0 %v5198
        %7137 = vmatpush1.bf16.msra.mxu0 %v5197
        %7138 = vmatprep.subr.bf16.mxu0 %v5206
        %7139 = vmatpush1.bf16.msra.mxu0 %v5205
        %7140 = vmatprep.subr.bf16.mxu0 %v5214
        %7141 = vmatpush1.bf16.msra.mxu0 %v5213
        %7142 = vmatprep.subr.bf16.mxu0 %v5222
        %7143 = vmatpush1.bf16.msra.mxu0 %v5221
        %7144 = vmatprep.subr.bf16.mxu0 0
        %7145 = vmatpush1.bf16.msra.mxu0 0
        %7146 = vmatprep.subr.bf16.mxu0 0
        %7147 = vmatpush1.bf16.msra.mxu0 0
        %7148 = vmatprep.subr.bf16.mxu0 0
        %7149 = vmatpush1.bf16.msra.mxu0 0
        %7150 = vmatprep.subr.bf16.mxu0 0
        %7151 = vmatpush1.bf16.msra.mxu0 0
        %7152 = vmatprep.subr.bf16.mxu0 0
        %7153 = vmatpush1.bf16.msra.mxu0 0
        %7154 = vmatprep.subr.bf16.mxu0 0
        %7155 = vmatpush1.bf16.msra.mxu0 0
        %7156 = vmatprep.subr.bf16.mxu0 0
        %7157 = vmatpush1.bf16.msra.mxu0 0
        %7158 = vmatprep.subr.bf16.mxu0 0
        %7159 = vmatpush1.bf16.msra.mxu0 0
        %7160 = vmatprep.mubr.bf16.mxu0 0
        %7161 = vmatmul.mubr.bf16.gmra.mrb[0].mxu0 %v422
        %v7162 = vpop.f32.mrb[0].mxu0
        %v7163 = vadd.f32 %v7122, %v7162
        %v7164 = vpop.f32.mrb[0].mxu0
        %v7165 = vadd.f32 %v7124, %v7164
        %v7166 = vpop.f32.mrb[0].mxu0
        %v7167 = vpop.f32.mrb[0].mxu0
        %7168 = vdwg.mxu0
        %7169 = vmatprep.subr.bf16.mxu0 %v4272
        %7170 = vmatpush1.bf16.msra.mxu0 %v4271
        %7171 = vmatprep.subr.bf16.mxu0 %v4280
        %7172 = vmatpush1.bf16.msra.mxu0 %v4279
        %7173 = vmatprep.subr.bf16.mxu0 %v4288
        %7174 = vmatpush1.bf16.msra.mxu0 %v4287
        %7175 = vmatprep.subr.bf16.mxu0 %v4296
        %7176 = vmatpush1.bf16.msra.mxu0 %v4295
        %7177 = vmatprep.subr.bf16.mxu0 %v4304
        %7178 = vmatpush1.bf16.msra.mxu0 %v4303
        %7179 = vmatprep.subr.bf16.mxu0 %v4312
        %7180 = vmatpush1.bf16.msra.mxu0 %v4311
        %7181 = vmatprep.subr.bf16.mxu0 %v4320
        %7182 = vmatpush1.bf16.msra.mxu0 %v4319
        %7183 = vmatprep.subr.bf16.mxu0 %v4328
        %7184 = vmatpush1.bf16.msra.mxu0 %v4327
        %7185 = vmatprep.subr.bf16.mxu0 %v4336
        %7186 = vmatpush1.bf16.msra.mxu0 %v4335
        %7187 = vmatprep.subr.bf16.mxu0 %v4344
        %7188 = vmatpush1.bf16.msra.mxu0 %v4343
        %7189 = vmatprep.subr.bf16.mxu0 %v4352
        %7190 = vmatpush1.bf16.msra.mxu0 %v4351
        %7191 = vmatprep.subr.bf16.mxu0 %v4360
        %7192 = vmatpush1.bf16.msra.mxu0 %v4359
        %7193 = vmatprep.subr.bf16.mxu0 %v4368
        %7194 = vmatpush1.bf16.msra.mxu0 %v4367
        %7195 = vmatprep.subr.bf16.mxu0 %v4376
        %7196 = vmatpush1.bf16.msra.mxu0 %v4375
        %7197 = vmatprep.subr.bf16.mxu0 %v4384
        %7198 = vmatpush1.bf16.msra.mxu0 %v4383
        %7199 = vmatprep.subr.bf16.mxu0 %v4392
        %7200 = vmatpush1.bf16.msra.mxu0 %v4391
        %7201 = vmatprep.mubr.bf16.mxu0 %v409
        %7202 = vmatmul.mubr.bf16.gmra.mrb[0].mxu0 %v408
        %v7203 = vpop.f32.mrb[0].mxu0
        %v7204 = vadd.f32 0.0, %v7203
        %v7205 = vpop.f32.mrb[0].mxu0
        %v7206 = vadd.f32 0.0, %v7205
        %v7207 = vpop.f32.mrb[0].mxu0
        %v7208 = vpop.f32.mrb[0].mxu0
        %7209 = vdwg.mxu0
        %7210 = vmatprep.subr.bf16.mxu0 %v4400
        %7211 = vmatpush1.bf16.msra.mxu0 %v4399
        %7212 = vmatprep.subr.bf16.mxu0 %v4408
        %7213 = vmatpush1.bf16.msra.mxu0 %v4407
        %7214 = vmatprep.subr.bf16.mxu0 %v4416
        %7215 = vmatpush1.bf16.msra.mxu0 %v4415
        %7216 = vmatprep.subr.bf16.mxu0 %v4424
        %7217 = vmatpush1.bf16.msra.mxu0 %v4423
        %7218 = vmatprep.subr.bf16.mxu0 %v4432
        %7219 = vmatpush1.bf16.msra.mxu0 %v4431
        %7220 = vmatprep.subr.bf16.mxu0 %v4440
        %7221 = vmatpush1.bf16.msra.mxu0 %v4439
        %7222 = vmatprep.subr.bf16.mxu0 %v4448
        %7223 = vmatpush1.bf16.msra.mxu0 %v4447
        %7224 = vmatprep.subr.bf16.mxu0 %v4456
        %7225 = vmatpush1.bf16.msra.mxu0 %v4455
        %7226 = vmatprep.subr.bf16.mxu0 %v4464
        %7227 = vmatpush1.bf16.msra.mxu0 %v4463
        %7228 = vmatprep.subr.bf16.mxu0 %v4472
        %7229 = vmatpush1.bf16.msra.mxu0 %v4471
        %7230 = vmatprep.subr.bf16.mxu0 %v4480
        %7231 = vmatpush1.bf16.msra.mxu0 %v4479
        %7232 = vmatprep.subr.bf16.mxu0 %v4488
        %7233 = vmatpush1.bf16.msra.mxu0 %v4487
        %7234 = vmatprep.subr.bf16.mxu0 %v4496
        %7235 = vmatpush1.bf16.msra.mxu0 %v4495
        %7236 = vmatprep.subr.bf16.mxu0 %v4504
        %7237 = vmatpush1.bf16.msra.mxu0 %v4503
        %7238 = vmatprep.subr.bf16.mxu0 %v4512
        %7239 = vmatpush1.bf16.msra.mxu0 %v4511
        %7240 = vmatprep.subr.bf16.mxu0 %v4520
        %7241 = vmatpush1.bf16.msra.mxu0 %v4519
        %7242 = vmatprep.mubr.bf16.mxu0 %v411
        %7243 = vmatmul.mubr.bf16.gmra.mrb[0].mxu0 %v410
        %v7244 = vpop.f32.mrb[0].mxu0
        %v7245 = vadd.f32 %v7204, %v7244
        %v7246 = vpop.f32.mrb[0].mxu0
        %v7247 = vadd.f32 %v7206, %v7246
        %v7248 = vpop.f32.mrb[0].mxu0
        %v7249 = vpop.f32.mrb[0].mxu0
        %7250 = vdwg.mxu0
        %7251 = vmatprep.subr.bf16.mxu0 %v4528
        %7252 = vmatpush1.bf16.msra.mxu0 %v4527
        %7253 = vmatprep.subr.bf16.mxu0 %v4536
        %7254 = vmatpush1.bf16.msra.mxu0 %v4535
        %7255 = vmatprep.subr.bf16.mxu0 %v4544
        %7256 = vmatpush1.bf16.msra.mxu0 %v4543
        %7257 = vmatprep.subr.bf16.mxu0 %v4552
        %7258 = vmatpush1.bf16.msra.mxu0 %v4551
        %7259 = vmatprep.subr.bf16.mxu0 %v4560
        %7260 = vmatpush1.bf16.msra.mxu0 %v4559
        %7261 = vmatprep.subr.bf16.mxu0 %v4568
        %7262 = vmatpush1.bf16.msra.mxu0 %v4567
        %7263 = vmatprep.subr.bf16.mxu0 %v4576
        %7264 = vmatpush1.bf16.msra.mxu0 %v4575
        %7265 = vmatprep.subr.bf16.mxu0 %v4584
        %7266 = vmatpush1.bf16.msra.mxu0 %v4583
        %7267 = vmatprep.subr.bf16.mxu0 %v4592
        %7268 = vmatpush1.bf16.msra.mxu0 %v4591
        %7269 = vmatprep.subr.bf16.mxu0 %v4600
        %7270 = vmatpush1.bf16.msra.mxu0 %v4599
        %7271 = vmatprep.subr.bf16.mxu0 %v4608
        %7272 = vmatpush1.bf16.msra.mxu0 %v4607
        %7273 = vmatprep.subr.bf16.mxu0 %v4616
        %7274 = vmatpush1.bf16.msra.mxu0 %v4615
        %7275 = vmatprep.subr.bf16.mxu0 %v4624
        %7276 = vmatpush1.bf16.msra.mxu0 %v4623
        %7277 = vmatprep.subr.bf16.mxu0 %v4632
        %7278 = vmatpush1.bf16.msra.mxu0 %v4631
        %7279 = vmatprep.subr.bf16.mxu0 %v4640
        %7280 = vmatpush1.bf16.msra.mxu0 %v4639
        %7281 = vmatprep.subr.bf16.mxu0 %v4648
        %7282 = vmatpush1.bf16.msra.mxu0 %v4647
        %7283 = vmatprep.mubr.bf16.mxu0 %v413
        %7284 = vmatmul.mubr.bf16.gmra.mrb[0].mxu0 %v412
        %v7285 = vpop.f32.mrb[0].mxu0
        %v7286 = vadd.f32 %v7245, %v7285
        %v7287 = vpop.f32.mrb[0].mxu0
        %v7288 = vadd.f32 %v7247, %v7287
        %v7289 = vpop.f32.mrb[0].mxu0
        %v7290 = vpop.f32.mrb[0].mxu0
        %7291 = vdwg.mxu0
        %7292 = vmatprep.subr.bf16.mxu0 %v4656
        %7293 = vmatpush1.bf16.msra.mxu0 %v4655
        %7294 = vmatprep.subr.bf16.mxu0 %v4664
        %7295 = vmatpush1.bf16.msra.mxu0 %v4663
        %7296 = vmatprep.subr.bf16.mxu0 %v4672
        %7297 = vmatpush1.bf16.msra.mxu0 %v4671
        %7298 = vmatprep.subr.bf16.mxu0 %v4680
        %7299 = vmatpush1.bf16.msra.mxu0 %v4679
        %7300 = vmatprep.subr.bf16.mxu0 %v4688
        %7301 = vmatpush1.bf16.msra.mxu0 %v4687
        %7302 = vmatprep.subr.bf16.mxu0 %v4696
        %7303 = vmatpush1.bf16.msra.mxu0 %v4695
        %7304 = vmatprep.subr.bf16.mxu0 %v4704
        %7305 = vmatpush1.bf16.msra.mxu0 %v4703
        %7306 = vmatprep.subr.bf16.mxu0 %v4712
        %7307 = vmatpush1.bf16.msra.mxu0 %v4711
        %7308 = vmatprep.subr.bf16.mxu0 %v4720
        %7309 = vmatpush1.bf16.msra.mxu0 %v4719
        %7310 = vmatprep.subr.bf16.mxu0 %v4728
        %7311 = vmatpush1.bf16.msra.mxu0 %v4727
        %7312 = vmatprep.subr.bf16.mxu0 %v4736
        %7313 = vmatpush1.bf16.msra.mxu0 %v4735
        %7314 = vmatprep.subr.bf16.mxu0 %v4744
        %7315 = vmatpush1.bf16.msra.mxu0 %v4743
        %7316 = vmatprep.subr.bf16.mxu0 %v4752
        %7317 = vmatpush1.bf16.msra.mxu0 %v4751
        %7318 = vmatprep.subr.bf16.mxu0 %v4760
        %7319 = vmatpush1.bf16.msra.mxu0 %v4759
        %7320 = vmatprep.subr.bf16.mxu0 %v4768
        %7321 = vmatpush1.bf16.msra.mxu0 %v4767
        %7322 = vmatprep.subr.bf16.mxu0 %v4776
        %7323 = vmatpush1.bf16.msra.mxu0 %v4775
        %7324 = vmatprep.mubr.bf16.mxu0 %v415
        %7325 = vmatmul.mubr.bf16.gmra.mrb[0].mxu0 %v414
        %v7326 = vpop.f32.mrb[0].mxu0
        %v7327 = vadd.f32 %v7286, %v7326
        %v7328 = vpop.f32.mrb[0].mxu0
        %v7329 = vadd.f32 %v7288, %v7328
        %v7330 = vpop.f32.mrb[0].mxu0
        %v7331 = vpop.f32.mrb[0].mxu0
        %7332 = vdwg.mxu0
        %7333 = vmatprep.subr.bf16.mxu0 %v4784
        %7334 = vmatpush1.bf16.msra.mxu0 %v4783
        %7335 = vmatprep.subr.bf16.mxu0 %v4792
        %7336 = vmatpush1.bf16.msra.mxu0 %v4791
        %7337 = vmatprep.subr.bf16.mxu0 %v4800
        %7338 = vmatpush1.bf16.msra.mxu0 %v4799
        %7339 = vmatprep.subr.bf16.mxu0 %v4808
        %7340 = vmatpush1.bf16.msra.mxu0 %v4807
        %7341 = vmatprep.subr.bf16.mxu0 %v4816
        %7342 = vmatpush1.bf16.msra.mxu0 %v4815
        %7343 = vmatprep.subr.bf16.mxu0 %v4824
        %7344 = vmatpush1.bf16.msra.mxu0 %v4823
        %7345 = vmatprep.subr.bf16.mxu0 %v4832
        %7346 = vmatpush1.bf16.msra.mxu0 %v4831
        %7347 = vmatprep.subr.bf16.mxu0 %v4840
        %7348 = vmatpush1.bf16.msra.mxu0 %v4839
        %7349 = vmatprep.subr.bf16.mxu0 %v4848
        %7350 = vmatpush1.bf16.msra.mxu0 %v4847
        %7351 = vmatprep.subr.bf16.mxu0 %v4856
        %7352 = vmatpush1.bf16.msra.mxu0 %v4855
        %7353 = vmatprep.subr.bf16.mxu0 %v4864
        %7354 = vmatpush1.bf16.msra.mxu0 %v4863
        %7355 = vmatprep.subr.bf16.mxu0 %v4872
        %7356 = vmatpush1.bf16.msra.mxu0 %v4871
        %7357 = vmatprep.subr.bf16.mxu0 %v4880
        %7358 = vmatpush1.bf16.msra.mxu0 %v4879
        %7359 = vmatprep.subr.bf16.mxu0 %v4888
        %7360 = vmatpush1.bf16.msra.mxu0 %v4887
        %7361 = vmatprep.subr.bf16.mxu0 %v4896
        %7362 = vmatpush1.bf16.msra.mxu0 %v4895
        %7363 = vmatprep.subr.bf16.mxu0 %v4904
        %7364 = vmatpush1.bf16.msra.mxu0 %v4903
        %7365 = vmatprep.mubr.bf16.mxu0 %v417
        %7366 = vmatmul.mubr.bf16.gmra.mrb[0].mxu0 %v416
        %v7367 = vpop.f32.mrb[0].mxu0
        %v7368 = vadd.f32 %v7327, %v7367
        %v7369 = vpop.f32.mrb[0].mxu0
        %v7370 = vadd.f32 %v7329, %v7369
        %v7371 = vpop.f32.mrb[0].mxu0
        %v7372 = vpop.f32.mrb[0].mxu0
        %7373 = vdwg.mxu0
        %7374 = vmatprep.subr.bf16.mxu0 %v4912
        %7375 = vmatpush1.bf16.msra.mxu0 %v4911
        %7376 = vmatprep.subr.bf16.mxu0 %v4920
        %7377 = vmatpush1.bf16.msra.mxu0 %v4919
        %7378 = vmatprep.subr.bf16.mxu0 %v4928
        %7379 = vmatpush1.bf16.msra.mxu0 %v4927
        %7380 = vmatprep.subr.bf16.mxu0 %v4936
        %7381 = vmatpush1.bf16.msra.mxu0 %v4935
        %7382 = vmatprep.subr.bf16.mxu0 %v4944
        %7383 = vmatpush1.bf16.msra.mxu0 %v4943
        %7384 = vmatprep.subr.bf16.mxu0 %v4952
        %7385 = vmatpush1.bf16.msra.mxu0 %v4951
        %7386 = vmatprep.subr.bf16.mxu0 %v4960
        %7387 = vmatpush1.bf16.msra.mxu0 %v4959
        %7388 = vmatprep.subr.bf16.mxu0 %v4968
        %7389 = vmatpush1.bf16.msra.mxu0 %v4967
        %7390 = vmatprep.subr.bf16.mxu0 %v4976
        %7391 = vmatpush1.bf16.msra.mxu0 %v4975
        %7392 = vmatprep.subr.bf16.mxu0 %v4984
        %7393 = vmatpush1.bf16.msra.mxu0 %v4983
        %7394 = vmatprep.subr.bf16.mxu0 %v4992
        %7395 = vmatpush1.bf16.msra.mxu0 %v4991
        %7396 = vmatprep.subr.bf16.mxu0 %v5000
        %7397 = vmatpush1.bf16.msra.mxu0 %v4999
        %7398 = vmatprep.subr.bf16.mxu0 %v5008
        %7399 = vmatpush1.bf16.msra.mxu0 %v5007
        %7400 = vmatprep.subr.bf16.mxu0 %v5016
        %7401 = vmatpush1.bf16.msra.mxu0 %v5015
        %7402 = vmatprep.subr.bf16.mxu0 %v5024
        %7403 = vmatpush1.bf16.msra.mxu0 %v5023
        %7404 = vmatprep.subr.bf16.mxu0 %v5032
        %7405 = vmatpush1.bf16.msra.mxu0 %v5031
        %7406 = vmatprep.mubr.bf16.mxu0 %v419
        %7407 = vmatmul.mubr.bf16.gmra.mrb[0].mxu0 %v418
        %v7408 = vpop.f32.mrb[0].mxu0
        %v7409 = vadd.f32 %v7368, %v7408
        %v7410 = vpop.f32.mrb[0].mxu0
        %v7411 = vadd.f32 %v7370, %v7410
        %v7412 = vpop.f32.mrb[0].mxu0
        %v7413 = vpop.f32.mrb[0].mxu0
        %7414 = vdwg.mxu0
        %7415 = vmatprep.subr.bf16.mxu0 %v5040
        %7416 = vmatpush1.bf16.msra.mxu0 %v5039
        %7417 = vmatprep.subr.bf16.mxu0 %v5048
        %7418 = vmatpush1.bf16.msra.mxu0 %v5047
        %7419 = vmatprep.subr.bf16.mxu0 %v5056
        %7420 = vmatpush1.bf16.msra.mxu0 %v5055
        %7421 = vmatprep.subr.bf16.mxu0 %v5064
        %7422 = vmatpush1.bf16.msra.mxu0 %v5063
        %7423 = vmatprep.subr.bf16.mxu0 %v5072
        %7424 = vmatpush1.bf16.msra.mxu0 %v5071
        %7425 = vmatprep.subr.bf16.mxu0 %v5080
        %7426 = vmatpush1.bf16.msra.mxu0 %v5079
        %7427 = vmatprep.subr.bf16.mxu0 %v5088
        %7428 = vmatpush1.bf16.msra.mxu0 %v5087
        %7429 = vmatprep.subr.bf16.mxu0 %v5096
        %7430 = vmatpush1.bf16.msra.mxu0 %v5095
        %7431 = vmatprep.subr.bf16.mxu0 %v5104
        %7432 = vmatpush1.bf16.msra.mxu0 %v5103
        %7433 = vmatprep.subr.bf16.mxu0 %v5112
        %7434 = vmatpush1.bf16.msra.mxu0 %v5111
        %7435 = vmatprep.subr.bf16.mxu0 %v5120
        %7436 = vmatpush1.bf16.msra.mxu0 %v5119
        %7437 = vmatprep.subr.bf16.mxu0 %v5128
        %7438 = vmatpush1.bf16.msra.mxu0 %v5127
        %7439 = vmatprep.subr.bf16.mxu0 %v5136
        %7440 = vmatpush1.bf16.msra.mxu0 %v5135
        %7441 = vmatprep.subr.bf16.mxu0 %v5144
        %7442 = vmatpush1.bf16.msra.mxu0 %v5143
        %7443 = vmatprep.subr.bf16.mxu0 %v5152
        %7444 = vmatpush1.bf16.msra.mxu0 %v5151
        %7445 = vmatprep.subr.bf16.mxu0 %v5160
        %7446 = vmatpush1.bf16.msra.mxu0 %v5159
        %7447 = vmatprep.mubr.bf16.mxu0 %v421
        %7448 = vmatmul.mubr.bf16.gmra.mrb[0].mxu0 %v420
        %v7449 = vpop.f32.mrb[0].mxu0
        %v7450 = vadd.f32 %v7409, %v7449
        %v7451 = vpop.f32.mrb[0].mxu0
        %v7452 = vadd.f32 %v7411, %v7451
        %v7453 = vpop.f32.mrb[0].mxu0
        %v7454 = vpop.f32.mrb[0].mxu0
        %7455 = vdwg.mxu0
        %7456 = vmatprep.subr.bf16.mxu0 %v5168
        %7457 = vmatpush1.bf16.msra.mxu0 %v5167
        %7458 = vmatprep.subr.bf16.mxu0 %v5176
        %7459 = vmatpush1.bf16.msra.mxu0 %v5175
        %7460 = vmatprep.subr.bf16.mxu0 %v5184
        %7461 = vmatpush1.bf16.msra.mxu0 %v5183
        %7462 = vmatprep.subr.bf16.mxu0 %v5192
        %7463 = vmatpush1.bf16.msra.mxu0 %v5191
        %7464 = vmatprep.subr.bf16.mxu0 %v5200
        %7465 = vmatpush1.bf16.msra.mxu0 %v5199
        %7466 = vmatprep.subr.bf16.mxu0 %v5208
        %7467 = vmatpush1.bf16.msra.mxu0 %v5207
        %7468 = vmatprep.subr.bf16.mxu0 %v5216
        %7469 = vmatpush1.bf16.msra.mxu0 %v5215
        %7470 = vmatprep.subr.bf16.mxu0 %v5224
        %7471 = vmatpush1.bf16.msra.mxu0 %v5223
        %7472 = vmatprep.subr.bf16.mxu0 0
        %7473 = vmatpush1.bf16.msra.mxu0 0
        %7474 = vmatprep.subr.bf16.mxu0 0
        %7475 = vmatpush1.bf16.msra.mxu0 0
        %7476 = vmatprep.subr.bf16.mxu0 0
        %7477 = vmatpush1.bf16.msra.mxu0 0
        %7478 = vmatprep.subr.bf16.mxu0 0
        %7479 = vmatpush1.bf16.msra.mxu0 0
        %7480 = vmatprep.subr.bf16.mxu0 0
        %7481 = vmatpush1.bf16.msra.mxu0 0
        %7482 = vmatprep.subr.bf16.mxu0 0
        %7483 = vmatpush1.bf16.msra.mxu0 0
        %7484 = vmatprep.subr.bf16.mxu0 0
        %7485 = vmatpush1.bf16.msra.mxu0 0
        %7486 = vmatprep.subr.bf16.mxu0 0
        %7487 = vmatpush1.bf16.msra.mxu0 0
        %7488 = vmatprep.mubr.bf16.mxu0 0
        %7489 = vmatmul.mubr.bf16.gmra.mrb[0].mxu0 %v422
        %v7490 = vpop.f32.mrb[0].mxu0
        %v7491 = vadd.f32 %v7450, %v7490
        %v7492 = vpop.f32.mrb[0].mxu0
        %v7493 = vadd.f32 %v7452, %v7492
        %v7494 = vpop.f32.mrb[0].mxu0
        %v7495 = vpop.f32.mrb[0].mxu0
        %7496 = vdwg.mxu0
        %v7505 = vcombine.low %v6507, %v6509
        %v7506 = vcombine.low %v6835, %v6837
        %v7508 = vunpack.c.l.s4 1983009808
        %v7509 = vunpack.c.0.s8 %v7508
        %v7510 = vlaneseq
        %v7511 = vshrl.u32 %v7510, 7
        %v7512 = vsub.s32 %v7509, %v7511
        %v7513 = vrot.slane %v7505, %v7512
        %v7515 = vunpack.c.l.s4 1983009808
        %v7516 = vunpack.c.0.s8 %v7515
        %v7517 = vlaneseq
        %v7518 = vshrl.u32 %v7517, 7
        %v7519 = vsub.s32 %v7516, %v7518
        %v7520 = vrot.slane %v7506, %v7519
        %v7521 = vcombine.low %v7513, %v7520
        %v7522 = vcombine.low %v7163, %v7165
        %v7523 = vcombine.low %v7491, %v7493
        %v7525 = vunpack.c.l.s4 1983009808
        %v7526 = vunpack.c.0.s8 %v7525
        %v7527 = vlaneseq
        %v7528 = vshrl.u32 %v7527, 7
        %v7529 = vsub.s32 %v7526, %v7528
        %v7530 = vrot.slane %v7522, %v7529
        %v7532 = vunpack.c.l.s4 1983009808
        %v7533 = vunpack.c.0.s8 %v7532
        %v7534 = vlaneseq
        %v7535 = vshrl.u32 %v7534, 7
        %v7536 = vsub.s32 %v7533, %v7535
        %v7537 = vrot.slane %v7523, %v7536
        %v7538 = vcombine.low %v7530, %v7537
        %v7541 = vadd.f32 %v423, %v7521
        %v7542 = vadd.f32 %v424, %v7538
        %7543 = vst [vmem:[#allocation2] sm:$0xff] %v7541
        %7544 = vst [vmem:[#allocation2 + $0x8] sm:$0xff] %v7542
        %p7545 = scmp.eq.s32.totalorder %s24, 3
        // Predicated region
        $region65: #{tpu_custom_call.1} parent=39 // pred_check
          %p7546 = pneg %p7545
        $region66: #{tpu_custom_call.1} parent=39 // pred_check_branch
          %7548 = sbr.rel (%p7546) target = $region68
        $region67: #{tpu_custom_call.1} parent=39 // pred_region
          %v7549 = vld [vmem:[#allocation2] sm:$0xff]
          %v7550 = vld [vmem:[#allocation2 + $0x8] sm:$0xff]
          %v7551 = vld [vmem:[#allocation8] sm:$0xff]
          %v7553 = vlaneseq
          %v7554 = vshrl.u32 %v7553, 7
          %v7555 = vsub.s32 0, %v7554
          %v7556 = vrot.slane %v7551, %v7555
          %v7557 = vlaneseq
          %v7558 = vshrl.u32 %v7557, 7
          %v7559 = vsub.s32 1, %v7558
          %v7560 = vrot.slane %v7551, %v7559
          %v7561 = vlaneseq
          %v7562 = vshrl.u32 %v7561, 7
          %v7563 = vsub.s32 2, %v7562
          %v7564 = vrot.slane %v7551, %v7563
          %v7565 = vlaneseq
          %v7566 = vshrl.u32 %v7565, 7
          %v7567 = vsub.s32 3, %v7566
          %v7568 = vrot.slane %v7551, %v7567
          %v7569 = vlaneseq
          %v7570 = vshrl.u32 %v7569, 7
          %v7571 = vsub.s32 4, %v7570
          %v7572 = vrot.slane %v7551, %v7571
          %v7573 = vlaneseq
          %v7574 = vshrl.u32 %v7573, 7
          %v7575 = vsub.s32 5, %v7574
          %v7576 = vrot.slane %v7551, %v7575
          %v7577 = vlaneseq
          %v7578 = vshrl.u32 %v7577, 7
          %v7579 = vsub.s32 6, %v7578
          %v7580 = vrot.slane %v7551, %v7579
          %v7581 = vlaneseq
          %v7582 = vshrl.u32 %v7581, 7
          %v7583 = vsub.s32 7, %v7582
          %v7584 = vrot.slane %v7551, %v7583
          %v7585 = vcombine.low %v7556, %v7560
          %v7586 = vcombine.low %v7564, %v7568
          %v7588 = vunpack.c.l.s4 1983009808
          %v7589 = vunpack.c.0.s8 %v7588
          %v7590 = vlaneseq
          %v7591 = vshrl.u32 %v7590, 7
          %v7592 = vsub.s32 %v7589, %v7591
          %v7593 = vrot.slane %v7585, %v7592
          %v7595 = vunpack.c.l.s4 1983009808
          %v7596 = vunpack.c.0.s8 %v7595
          %v7597 = vlaneseq
          %v7598 = vshrl.u32 %v7597, 7
          %v7599 = vsub.s32 %v7596, %v7598
          %v7600 = vrot.slane %v7586, %v7599
          %v7601 = vcombine.low %v7593, %v7600
          %v7602 = vcombine.low %v7572, %v7576
          %v7603 = vcombine.low %v7580, %v7584
          %v7605 = vunpack.c.l.s4 1983009808
          %v7606 = vunpack.c.0.s8 %v7605
          %v7607 = vlaneseq
          %v7608 = vshrl.u32 %v7607, 7
          %v7609 = vsub.s32 %v7606, %v7608
          %v7610 = vrot.slane %v7602, %v7609
          %v7612 = vunpack.c.l.s4 1983009808
          %v7613 = vunpack.c.0.s8 %v7612
          %v7614 = vlaneseq
          %v7615 = vshrl.u32 %v7614, 7
          %v7616 = vsub.s32 %v7613, %v7615
          %v7617 = vrot.slane %v7603, %v7616
          %v7618 = vcombine.low %v7610, %v7617
          %v7621 = vadd.f32 %v7549, %v7601
          %v7622 = vadd.f32 %v7550, %v7618
          %vm7623 = vcmp.gt.f32.partialorder %v7621, 0.0
          %vm7624 = vcmp.gt.f32.partialorder %v7622, 0.0
          %v7625 = vmin.f32 %v7621, 0.0
          %v7626 = vmin.f32 %v7622, 0.0
          %v7627 = vmul.f32 %v7625, 1.442695
          %v7628 = vpow.pop %v7627
          %v7629 = vmul.f32 %v7626, 1.442695
          %v7630 = vpow.pop %v7629
          %v7631 = vsub.f32 %v7628, 1.0
          %v7632 = vsub.f32 %v7630, 1.0
          %v7633 = vsel %vm7623, %v7621, %v7631
          %v7634 = vsel %vm7624, %v7622, %v7632
          %v7637 = vcombine.high %v7633, %v7633
          %v7639 = vunpack.c.l.s4 1983009808
          %v7640 = vunpack.c.0.s8 %v7639
          %v7641 = vlaneseq
          %v7642 = vshrl.u32 %v7641, 7
          %v7643 = vsub.s32 %v7640, %v7642
          %v7644 = vrot.slane %v7633, %v7643
          %v7646 = vunpack.c.l.s4 1983009808
          %v7647 = vunpack.c.0.s8 %v7646
          %v7648 = vlaneseq
          %v7649 = vshrl.u32 %v7648, 7
          %v7650 = vsub.s32 %v7647, %v7649
          %v7651 = vrot.slane %v7637, %v7650
          %v7652 = vcombine.high %v7644, %v7644
          %v7653 = vcombine.high %v7651, %v7651
          %v7654 = vcombine.high %v7634, %v7634
          %v7656 = vunpack.c.l.s4 1983009808
          %v7657 = vunpack.c.0.s8 %v7656
          %v7658 = vlaneseq
          %v7659 = vshrl.u32 %v7658, 7
          %v7660 = vsub.s32 %v7657, %v7659
          %v7661 = vrot.slane %v7634, %v7660
          %v7663 = vunpack.c.l.s4 1983009808
          %v7664 = vunpack.c.0.s8 %v7663
          %v7665 = vlaneseq
          %v7666 = vshrl.u32 %v7665, 7
          %v7667 = vsub.s32 %v7664, %v7666
          %v7668 = vrot.slane %v7654, %v7667
          %v7669 = vcombine.high %v7661, %v7661
          %v7670 = vcombine.high %v7668, %v7668
          %v7679 = vpack.c.bf16 %v7644, %v7644
          %v7680 = vpack.c.bf16 %v7652, %v7652
          %v7681 = vpack.c.bf16 %v7651, %v7651
          %v7682 = vpack.c.bf16 %v7653, %v7653
          %v7683 = vpack.c.bf16 %v7661, %v7661
          %v7684 = vpack.c.bf16 %v7669, %v7669
          %v7685 = vpack.c.bf16 %v7668, %v7668
          %v7686 = vpack.c.bf16 %v7670, %v7670
          %v7687 = vld [vmem:[#allocation9] sm:$0xff]
          %v7688 = vld [vmem:[#allocation9 + $0x8] sm:$0xff]
          %v7689 = vld [vmem:[#allocation9 + $0x10] sm:$0xff]
          %v7690 = vld [vmem:[#allocation9 + $0x18] sm:$0xff]
          %v7691 = vld [vmem:[#allocation9 + $0x20] sm:$0xff]
          %v7692 = vld [vmem:[#allocation9 + $0x28] sm:$0xff]
          %v7693 = vld [vmem:[#allocation9 + $0x30] sm:$0xff]
          %v7694 = vld [vmem:[#allocation9 + $0x38] sm:$0xff]
          %v7695 = vld [vmem:[#allocation9 + $0x40] sm:$0xff]
          %v7696 = vld [vmem:[#allocation9 + $0x48] sm:$0xff]
          %v7697 = vld [vmem:[#allocation9 + $0x50] sm:$0xff]
          %v7698 = vld [vmem:[#allocation9 + $0x58] sm:$0xff]
          %v7699 = vld [vmem:[#allocation9 + $0x60] sm:$0xff]
          %v7700 = vld [vmem:[#allocation9 + $0x68] sm:$0xff]
          %v7701 = vld [vmem:[#allocation9 + $0x70] sm:$0xff]
          %v7702 = vld [vmem:[#allocation9 + $0x78] sm:$0xff]
          %v7703 = vld [vmem:[#allocation9 + $0x80] sm:$0xff]
          %v7704 = vld [vmem:[#allocation9 + $0x88] sm:$0xff]
          %v7705 = vld [vmem:[#allocation9 + $0x90] sm:$0xff]
          %v7706 = vld [vmem:[#allocation9 + $0x98] sm:$0xff]
          %v7707 = vld [vmem:[#allocation9 + $0xa0] sm:$0xff]
          %v7708 = vld [vmem:[#allocation9 + $0xa8] sm:$0xff]
          %v7709 = vld [vmem:[#allocation9 + $0xb0] sm:$0xff]
          %v7710 = vld [vmem:[#allocation9 + $0xb8] sm:$0xff]
          %v7711 = vld [vmem:[#allocation9 + $0xc0] sm:$0xff]
          %v7712 = vld [vmem:[#allocation9 + $0xc8] sm:$0xff]
          %v7713 = vld [vmem:[#allocation9 + $0xd0] sm:$0xff]
          %v7714 = vld [vmem:[#allocation9 + $0xd8] sm:$0xff]
          %v7715 = vld [vmem:[#allocation9 + $0xe0] sm:$0xff]
          %v7716 = vld [vmem:[#allocation9 + $0xe8] sm:$0xff]
          %v7717 = vld [vmem:[#allocation9 + $0xf0] sm:$0xff]
          %v7718 = vld [vmem:[#allocation9 + $0xf8] sm:$0xff]
          %v7719 = vld [vmem:[#allocation9 + $0x100] sm:$0xff]
          %v7720 = vld [vmem:[#allocation9 + $0x108] sm:$0xff]
          %v7721 = vld [vmem:[#allocation9 + $0x110] sm:$0xff]
          %v7722 = vld [vmem:[#allocation9 + $0x118] sm:$0xff]
          %v7723 = vld [vmem:[#allocation9 + $0x120] sm:$0xff]
          %v7724 = vld [vmem:[#allocation9 + $0x128] sm:$0xff]
          %v7725 = vld [vmem:[#allocation9 + $0x130] sm:$0xff]
          %v7726 = vld [vmem:[#allocation9 + $0x138] sm:$0xff]
          %v7727 = vld [vmem:[#allocation9 + $0x140] sm:$0xff]
          %v7728 = vld [vmem:[#allocation9 + $0x148] sm:$0xff]
          %v7729 = vld [vmem:[#allocation9 + $0x150] sm:$0xff]
          %v7730 = vld [vmem:[#allocation9 + $0x158] sm:$0xff]
          %v7731 = vld [vmem:[#allocation9 + $0x160] sm:$0xff]
          %v7732 = vld [vmem:[#allocation9 + $0x168] sm:$0xff]
          %v7733 = vld [vmem:[#allocation9 + $0x170] sm:$0xff]
          %v7734 = vld [vmem:[#allocation9 + $0x178] sm:$0xff]
          %v7735 = vld [vmem:[#allocation9 + $0x180] sm:$0xff]
          %v7736 = vld [vmem:[#allocation9 + $0x188] sm:$0xff]
          %v7737 = vld [vmem:[#allocation9 + $0x190] sm:$0xff]
          %v7738 = vld [vmem:[#allocation9 + $0x198] sm:$0xff]
          %v7739 = vld [vmem:[#allocation9 + $0x1a0] sm:$0xff]
          %v7740 = vld [vmem:[#allocation9 + $0x1a8] sm:$0xff]
          %v7741 = vld [vmem:[#allocation9 + $0x1b0] sm:$0xff]
          %v7742 = vld [vmem:[#allocation9 + $0x1b8] sm:$0xff]
          %v7743 = vld [vmem:[#allocation9 + $0x1c0] sm:$0xff]
          %v7744 = vld [vmem:[#allocation9 + $0x1c8] sm:$0xff]
          %v7745 = vld [vmem:[#allocation9 + $0x1d0] sm:$0xff]
          %v7746 = vld [vmem:[#allocation9 + $0x1d8] sm:$0xff]
          %v7747 = vld [vmem:[#allocation9 + $0x1e0] sm:$0xff]
          %v7748 = vld [vmem:[#allocation9 + $0x1e8] sm:$0xff]
          %v7749 = vld [vmem:[#allocation9 + $0x1f0] sm:$0xff]
          %v7750 = vld [vmem:[#allocation9 + $0x1f8] sm:$0xff]
          %v7751 = vld [vmem:[#allocation9 + $0x200] sm:$0xff]
          %v7752 = vld [vmem:[#allocation9 + $0x208] sm:$0xff]
          %v7753 = vld [vmem:[#allocation9 + $0x210] sm:$0xff]
          %v7754 = vld [vmem:[#allocation9 + $0x218] sm:$0xff]
          %v7755 = vld [vmem:[#allocation9 + $0x220] sm:$0xff]
          %v7756 = vld [vmem:[#allocation9 + $0x228] sm:$0xff]
          %v7757 = vld [vmem:[#allocation9 + $0x230] sm:$0xff]
          %v7758 = vld [vmem:[#allocation9 + $0x238] sm:$0xff]
          %v7759 = vld [vmem:[#allocation9 + $0x240] sm:$0xff]
          %v7760 = vld [vmem:[#allocation9 + $0x248] sm:$0xff]
          %v7761 = vld [vmem:[#allocation9 + $0x250] sm:$0xff]
          %v7762 = vld [vmem:[#allocation9 + $0x258] sm:$0xff]
          %v7763 = vld [vmem:[#allocation9 + $0x260] sm:$0xff]
          %v7764 = vld [vmem:[#allocation9 + $0x268] sm:$0xff]
          %v7765 = vld [vmem:[#allocation9 + $0x270] sm:$0xff]
          %v7766 = vld [vmem:[#allocation9 + $0x278] sm:$0xff]
          %v7767 = vld [vmem:[#allocation9 + $0x280] sm:$0xff]
          %v7768 = vld [vmem:[#allocation9 + $0x288] sm:$0xff]
          %v7769 = vld [vmem:[#allocation9 + $0x290] sm:$0xff]
          %v7770 = vld [vmem:[#allocation9 + $0x298] sm:$0xff]
          %v7771 = vld [vmem:[#allocation9 + $0x2a0] sm:$0xff]
          %v7772 = vld [vmem:[#allocation9 + $0x2a8] sm:$0xff]
          %v7773 = vld [vmem:[#allocation9 + $0x2b0] sm:$0xff]
          %v7774 = vld [vmem:[#allocation9 + $0x2b8] sm:$0xff]
          %v7775 = vld [vmem:[#allocation9 + $0x2c0] sm:$0xff]
          %v7776 = vld [vmem:[#allocation9 + $0x2c8] sm:$0xff]
          %v7777 = vld [vmem:[#allocation9 + $0x2d0] sm:$0xff]
          %v7778 = vld [vmem:[#allocation9 + $0x2d8] sm:$0xff]
          %v7779 = vld [vmem:[#allocation9 + $0x2e0] sm:$0xff]
          %v7780 = vld [vmem:[#allocation9 + $0x2e8] sm:$0xff]
          %v7781 = vld [vmem:[#allocation9 + $0x2f0] sm:$0xff]
          %v7782 = vld [vmem:[#allocation9 + $0x2f8] sm:$0xff]
          %v7783 = vld [vmem:[#allocation9 + $0x300] sm:$0xff]
          %v7784 = vld [vmem:[#allocation9 + $0x308] sm:$0xff]
          %v7785 = vld [vmem:[#allocation9 + $0x310] sm:$0xff]
          %v7786 = vld [vmem:[#allocation9 + $0x318] sm:$0xff]
          %v7787 = vld [vmem:[#allocation9 + $0x320] sm:$0xff]
          %v7788 = vld [vmem:[#allocation9 + $0x328] sm:$0xff]
          %v7789 = vld [vmem:[#allocation9 + $0x330] sm:$0xff]
          %v7790 = vld [vmem:[#allocation9 + $0x338] sm:$0xff]
          %v7791 = vld [vmem:[#allocation9 + $0x340] sm:$0xff]
          %v7792 = vld [vmem:[#allocation9 + $0x348] sm:$0xff]
          %v7793 = vld [vmem:[#allocation9 + $0x350] sm:$0xff]
          %v7794 = vld [vmem:[#allocation9 + $0x358] sm:$0xff]
          %v7795 = vld [vmem:[#allocation9 + $0x360] sm:$0xff]
          %v7796 = vld [vmem:[#allocation9 + $0x368] sm:$0xff]
          %v7797 = vld [vmem:[#allocation9 + $0x370] sm:$0xff]
          %v7798 = vld [vmem:[#allocation9 + $0x378] sm:$0xff]
          %v7799 = vld [vmem:[#allocation9 + $0x380] sm:$0xff]
          %v7800 = vld [vmem:[#allocation9 + $0x388] sm:$0xff]
          %v7801 = vld [vmem:[#allocation9 + $0x390] sm:$0xff]
          %v7802 = vld [vmem:[#allocation9 + $0x398] sm:$0xff]
          %v7803 = vld [vmem:[#allocation9 + $0x3a0] sm:$0xff]
          %v7804 = vld [vmem:[#allocation9 + $0x3a8] sm:$0xff]
          %v7805 = vld [vmem:[#allocation9 + $0x3b0] sm:$0xff]
          %v7806 = vld [vmem:[#allocation9 + $0x3b8] sm:$0xff]
          %v7807 = vld [vmem:[#allocation9 + $0x3c0] sm:$0xff]
          %v7808 = vld [vmem:[#allocation9 + $0x3c8] sm:$0xff]
          %v7809 = vld [vmem:[#allocation9 + $0x3d0] sm:$0xff]
          %v7810 = vld [vmem:[#allocation9 + $0x3d8] sm:$0xff]
          %v7811 = vld [vmem:[#allocation9 + $0x3e0] sm:$0xff]
          %v7812 = vld [vmem:[#allocation9 + $0x3e8] sm:$0xff]
          %v7813 = vld [vmem:[#allocation9 + $0x3f0] sm:$0xff]
          %v7814 = vld [vmem:[#allocation9 + $0x3f8] sm:$0xff]
          %v7815 = vld [vmem:[#allocation11] sm:$0x3]
          %v7817 = vlaneseq
          %v7818 = vshrl.u32 %v7817, 7
          %v7819 = vsub.s32 0, %v7818
          %v7820 = vrot.slane %v7815, %v7819
          %v7821 = vlaneseq
          %v7822 = vshrl.u32 %v7821, 7
          %v7823 = vsub.s32 1, %v7822
          %v7824 = vrot.slane %v7815, %v7823
          %v7955 = vunpack.c.l.b16 %v7687
          %v7956 = vunpack.c.h.b16 %v7687
          %v7957 = vunpack.c.l.b16 %v7688
          %v7958 = vunpack.c.h.b16 %v7688
          %v7959 = vunpack.c.l.b16 %v7689
          %v7960 = vunpack.c.h.b16 %v7689
          %v7961 = vunpack.c.l.b16 %v7690
          %v7962 = vunpack.c.h.b16 %v7690
          %v7963 = vunpack.c.l.b16 %v7691
          %v7964 = vunpack.c.h.b16 %v7691
          %v7965 = vunpack.c.l.b16 %v7692
          %v7966 = vunpack.c.h.b16 %v7692
          %v7967 = vunpack.c.l.b16 %v7693
          %v7968 = vunpack.c.h.b16 %v7693
          %v7969 = vunpack.c.l.b16 %v7694
          %v7970 = vunpack.c.h.b16 %v7694
          %v7971 = vunpack.c.l.b16 %v7695
          %v7972 = vunpack.c.h.b16 %v7695
          %v7973 = vunpack.c.l.b16 %v7696
          %v7974 = vunpack.c.h.b16 %v7696
          %v7975 = vunpack.c.l.b16 %v7697
          %v7976 = vunpack.c.h.b16 %v7697
          %v7977 = vunpack.c.l.b16 %v7698
          %v7978 = vunpack.c.h.b16 %v7698
          %v7979 = vunpack.c.l.b16 %v7699
          %v7980 = vunpack.c.h.b16 %v7699
          %v7981 = vunpack.c.l.b16 %v7700
          %v7982 = vunpack.c.h.b16 %v7700
          %v7983 = vunpack.c.l.b16 %v7701
          %v7984 = vunpack.c.h.b16 %v7701
          %v7985 = vunpack.c.l.b16 %v7702
          %v7986 = vunpack.c.h.b16 %v7702
          %v7987 = vunpack.c.l.b16 %v7703
          %v7988 = vunpack.c.h.b16 %v7703
          %v7989 = vunpack.c.l.b16 %v7704
          %v7990 = vunpack.c.h.b16 %v7704
          %v7991 = vunpack.c.l.b16 %v7705
          %v7992 = vunpack.c.h.b16 %v7705
          %v7993 = vunpack.c.l.b16 %v7706
          %v7994 = vunpack.c.h.b16 %v7706
          %v7995 = vunpack.c.l.b16 %v7707
          %v7996 = vunpack.c.h.b16 %v7707
          %v7997 = vunpack.c.l.b16 %v7708
          %v7998 = vunpack.c.h.b16 %v7708
          %v7999 = vunpack.c.l.b16 %v7709
          %v8000 = vunpack.c.h.b16 %v7709
          %v8001 = vunpack.c.l.b16 %v7710
          %v8002 = vunpack.c.h.b16 %v7710
          %v8003 = vunpack.c.l.b16 %v7711
          %v8004 = vunpack.c.h.b16 %v7711
          %v8005 = vunpack.c.l.b16 %v7712
          %v8006 = vunpack.c.h.b16 %v7712
          %v8007 = vunpack.c.l.b16 %v7713
          %v8008 = vunpack.c.h.b16 %v7713
          %v8009 = vunpack.c.l.b16 %v7714
          %v8010 = vunpack.c.h.b16 %v7714
          %v8011 = vunpack.c.l.b16 %v7715
          %v8012 = vunpack.c.h.b16 %v7715
          %v8013 = vunpack.c.l.b16 %v7716
          %v8014 = vunpack.c.h.b16 %v7716
          %v8015 = vunpack.c.l.b16 %v7717
          %v8016 = vunpack.c.h.b16 %v7717
          %v8017 = vunpack.c.l.b16 %v7718
          %v8018 = vunpack.c.h.b16 %v7718
          %v8019 = vunpack.c.l.b16 %v7719
          %v8020 = vunpack.c.h.b16 %v7719
          %v8021 = vunpack.c.l.b16 %v7720
          %v8022 = vunpack.c.h.b16 %v7720
          %v8023 = vunpack.c.l.b16 %v7721
          %v8024 = vunpack.c.h.b16 %v7721
          %v8025 = vunpack.c.l.b16 %v7722
          %v8026 = vunpack.c.h.b16 %v7722
          %v8027 = vunpack.c.l.b16 %v7723
          %v8028 = vunpack.c.h.b16 %v7723
          %v8029 = vunpack.c.l.b16 %v7724
          %v8030 = vunpack.c.h.b16 %v7724
          %v8031 = vunpack.c.l.b16 %v7725
          %v8032 = vunpack.c.h.b16 %v7725
          %v8033 = vunpack.c.l.b16 %v7726
          %v8034 = vunpack.c.h.b16 %v7726
          %v8035 = vunpack.c.l.b16 %v7727
          %v8036 = vunpack.c.h.b16 %v7727
          %v8037 = vunpack.c.l.b16 %v7728
          %v8038 = vunpack.c.h.b16 %v7728
          %v8039 = vunpack.c.l.b16 %v7729
          %v8040 = vunpack.c.h.b16 %v7729
          %v8041 = vunpack.c.l.b16 %v7730
          %v8042 = vunpack.c.h.b16 %v7730
          %v8043 = vunpack.c.l.b16 %v7731
          %v8044 = vunpack.c.h.b16 %v7731
          %v8045 = vunpack.c.l.b16 %v7732
          %v8046 = vunpack.c.h.b16 %v7732
          %v8047 = vunpack.c.l.b16 %v7733
          %v8048 = vunpack.c.h.b16 %v7733
          %v8049 = vunpack.c.l.b16 %v7734
          %v8050 = vunpack.c.h.b16 %v7734
          %v8051 = vunpack.c.l.b16 %v7735
          %v8052 = vunpack.c.h.b16 %v7735
          %v8053 = vunpack.c.l.b16 %v7736
          %v8054 = vunpack.c.h.b16 %v7736
          %v8055 = vunpack.c.l.b16 %v7737
          %v8056 = vunpack.c.h.b16 %v7737
          %v8057 = vunpack.c.l.b16 %v7738
          %v8058 = vunpack.c.h.b16 %v7738
          %v8059 = vunpack.c.l.b16 %v7739
          %v8060 = vunpack.c.h.b16 %v7739
          %v8061 = vunpack.c.l.b16 %v7740
          %v8062 = vunpack.c.h.b16 %v7740
          %v8063 = vunpack.c.l.b16 %v7741
          %v8064 = vunpack.c.h.b16 %v7741
          %v8065 = vunpack.c.l.b16 %v7742
          %v8066 = vunpack.c.h.b16 %v7742
          %v8067 = vunpack.c.l.b16 %v7743
          %v8068 = vunpack.c.h.b16 %v7743
          %v8069 = vunpack.c.l.b16 %v7744
          %v8070 = vunpack.c.h.b16 %v7744
          %v8071 = vunpack.c.l.b16 %v7745
          %v8072 = vunpack.c.h.b16 %v7745
          %v8073 = vunpack.c.l.b16 %v7746
          %v8074 = vunpack.c.h.b16 %v7746
          %v8075 = vunpack.c.l.b16 %v7747
          %v8076 = vunpack.c.h.b16 %v7747
          %v8077 = vunpack.c.l.b16 %v7748
          %v8078 = vunpack.c.h.b16 %v7748
          %v8079 = vunpack.c.l.b16 %v7749
          %v8080 = vunpack.c.h.b16 %v7749
          %v8081 = vunpack.c.l.b16 %v7750
          %v8082 = vunpack.c.h.b16 %v7750
          %v8083 = vunpack.c.l.b16 %v7751
          %v8084 = vunpack.c.h.b16 %v7751
          %v8085 = vunpack.c.l.b16 %v7752
          %v8086 = vunpack.c.h.b16 %v7752
          %v8087 = vunpack.c.l.b16 %v7753
          %v8088 = vunpack.c.h.b16 %v7753
          %v8089 = vunpack.c.l.b16 %v7754
          %v8090 = vunpack.c.h.b16 %v7754
          %v8091 = vunpack.c.l.b16 %v7755
          %v8092 = vunpack.c.h.b16 %v7755
          %v8093 = vunpack.c.l.b16 %v7756
          %v8094 = vunpack.c.h.b16 %v7756
          %v8095 = vunpack.c.l.b16 %v7757
          %v8096 = vunpack.c.h.b16 %v7757
          %v8097 = vunpack.c.l.b16 %v7758
          %v8098 = vunpack.c.h.b16 %v7758
          %v8099 = vunpack.c.l.b16 %v7759
          %v8100 = vunpack.c.h.b16 %v7759
          %v8101 = vunpack.c.l.b16 %v7760
          %v8102 = vunpack.c.h.b16 %v7760
          %v8103 = vunpack.c.l.b16 %v7761
          %v8104 = vunpack.c.h.b16 %v7761
          %v8105 = vunpack.c.l.b16 %v7762
          %v8106 = vunpack.c.h.b16 %v7762
          %v8107 = vunpack.c.l.b16 %v7763
          %v8108 = vunpack.c.h.b16 %v7763
          %v8109 = vunpack.c.l.b16 %v7764
          %v8110 = vunpack.c.h.b16 %v7764
          %v8111 = vunpack.c.l.b16 %v7765
          %v8112 = vunpack.c.h.b16 %v7765
          %v8113 = vunpack.c.l.b16 %v7766
          %v8114 = vunpack.c.h.b16 %v7766
          %v8115 = vunpack.c.l.b16 %v7767
          %v8116 = vunpack.c.h.b16 %v7767
          %v8117 = vunpack.c.l.b16 %v7768
          %v8118 = vunpack.c.h.b16 %v7768
          %v8119 = vunpack.c.l.b16 %v7769
          %v8120 = vunpack.c.h.b16 %v7769
          %v8121 = vunpack.c.l.b16 %v7770
          %v8122 = vunpack.c.h.b16 %v7770
          %v8123 = vunpack.c.l.b16 %v7771
          %v8124 = vunpack.c.h.b16 %v7771
          %v8125 = vunpack.c.l.b16 %v7772
          %v8126 = vunpack.c.h.b16 %v7772
          %v8127 = vunpack.c.l.b16 %v7773
          %v8128 = vunpack.c.h.b16 %v7773
          %v8129 = vunpack.c.l.b16 %v7774
          %v8130 = vunpack.c.h.b16 %v7774
          %v8131 = vunpack.c.l.b16 %v7775
          %v8132 = vunpack.c.h.b16 %v7775
          %v8133 = vunpack.c.l.b16 %v7776
          %v8134 = vunpack.c.h.b16 %v7776
          %v8135 = vunpack.c.l.b16 %v7777
          %v8136 = vunpack.c.h.b16 %v7777
          %v8137 = vunpack.c.l.b16 %v7778
          %v8138 = vunpack.c.h.b16 %v7778
          %v8139 = vunpack.c.l.b16 %v7779
          %v8140 = vunpack.c.h.b16 %v7779
          %v8141 = vunpack.c.l.b16 %v7780
          %v8142 = vunpack.c.h.b16 %v7780
          %v8143 = vunpack.c.l.b16 %v7781
          %v8144 = vunpack.c.h.b16 %v7781
          %v8145 = vunpack.c.l.b16 %v7782
          %v8146 = vunpack.c.h.b16 %v7782
          %v8147 = vunpack.c.l.b16 %v7783
          %v8148 = vunpack.c.h.b16 %v7783
          %v8149 = vunpack.c.l.b16 %v7784
          %v8150 = vunpack.c.h.b16 %v7784
          %v8151 = vunpack.c.l.b16 %v7785
          %v8152 = vunpack.c.h.b16 %v7785
          %v8153 = vunpack.c.l.b16 %v7786
          %v8154 = vunpack.c.h.b16 %v7786
          %v8155 = vunpack.c.l.b16 %v7787
          %v8156 = vunpack.c.h.b16 %v7787
          %v8157 = vunpack.c.l.b16 %v7788
          %v8158 = vunpack.c.h.b16 %v7788
          %v8159 = vunpack.c.l.b16 %v7789
          %v8160 = vunpack.c.h.b16 %v7789
          %v8161 = vunpack.c.l.b16 %v7790
          %v8162 = vunpack.c.h.b16 %v7790
          %v8163 = vunpack.c.l.b16 %v7791
          %v8164 = vunpack.c.h.b16 %v7791
          %v8165 = vunpack.c.l.b16 %v7792
          %v8166 = vunpack.c.h.b16 %v7792
          %v8167 = vunpack.c.l.b16 %v7793
          %v8168 = vunpack.c.h.b16 %v7793
          %v8169 = vunpack.c.l.b16 %v7794
          %v8170 = vunpack.c.h.b16 %v7794
          %v8171 = vunpack.c.l.b16 %v7795
          %v8172 = vunpack.c.h.b16 %v7795
          %v8173 = vunpack.c.l.b16 %v7796
          %v8174 = vunpack.c.h.b16 %v7796
          %v8175 = vunpack.c.l.b16 %v7797
          %v8176 = vunpack.c.h.b16 %v7797
          %v8177 = vunpack.c.l.b16 %v7798
          %v8178 = vunpack.c.h.b16 %v7798
          %v8179 = vunpack.c.l.b16 %v7799
          %v8180 = vunpack.c.h.b16 %v7799
          %v8181 = vunpack.c.l.b16 %v7800
          %v8182 = vunpack.c.h.b16 %v7800
          %v8183 = vunpack.c.l.b16 %v7801
          %v8184 = vunpack.c.h.b16 %v7801
          %v8185 = vunpack.c.l.b16 %v7802
          %v8186 = vunpack.c.h.b16 %v7802
          %v8187 = vunpack.c.l.b16 %v7803
          %v8188 = vunpack.c.h.b16 %v7803
          %v8189 = vunpack.c.l.b16 %v7804
          %v8190 = vunpack.c.h.b16 %v7804
          %v8191 = vunpack.c.l.b16 %v7805
          %v8192 = vunpack.c.h.b16 %v7805
          %v8193 = vunpack.c.l.b16 %v7806
          %v8194 = vunpack.c.h.b16 %v7806
          %v8195 = vunpack.c.l.b16 %v7807
          %v8196 = vunpack.c.h.b16 %v7807
          %v8197 = vunpack.c.l.b16 %v7808
          %v8198 = vunpack.c.h.b16 %v7808
          %v8199 = vunpack.c.l.b16 %v7809
          %v8200 = vunpack.c.h.b16 %v7809
          %v8201 = vunpack.c.l.b16 %v7810
          %v8202 = vunpack.c.h.b16 %v7810
          %v8203 = vunpack.c.l.b16 %v7811
          %v8204 = vunpack.c.h.b16 %v7811
          %v8205 = vunpack.c.l.b16 %v7812
          %v8206 = vunpack.c.h.b16 %v7812
          %v8207 = vunpack.c.l.b16 %v7813
          %v8208 = vunpack.c.h.b16 %v7813
          %v8209 = vunpack.c.l.b16 %v7814
          %v8210 = vunpack.c.h.b16 %v7814
          %v8211 = vpack.c.b16 %v7957, %v7955
          %v8212 = vpack.c.b16 %v7958, %v7956
          %v8213 = vpack.c.b16 %v7961, %v7959
          %v8214 = vpack.c.b16 %v7962, %v7960
          %v8215 = vpack.c.b16 %v7965, %v7963
          %v8216 = vpack.c.b16 %v7966, %v7964
          %v8217 = vpack.c.b16 %v7969, %v7967
          %v8218 = vpack.c.b16 %v7970, %v7968
          %v8219 = vpack.c.b16 %v7973, %v7971
          %v8220 = vpack.c.b16 %v7974, %v7972
          %v8221 = vpack.c.b16 %v7977, %v7975
          %v8222 = vpack.c.b16 %v7978, %v7976
          %v8223 = vpack.c.b16 %v7981, %v7979
          %v8224 = vpack.c.b16 %v7982, %v7980
          %v8225 = vpack.c.b16 %v7985, %v7983
          %v8226 = vpack.c.b16 %v7986, %v7984
          %v8227 = vpack.c.b16 %v7989, %v7987
          %v8228 = vpack.c.b16 %v7990, %v7988
          %v8229 = vpack.c.b16 %v7993, %v7991
          %v8230 = vpack.c.b16 %v7994, %v7992
          %v8231 = vpack.c.b16 %v7997, %v7995
          %v8232 = vpack.c.b16 %v7998, %v7996
          %v8233 = vpack.c.b16 %v8001, %v7999
          %v8234 = vpack.c.b16 %v8002, %v8000
          %v8235 = vpack.c.b16 %v8005, %v8003
          %v8236 = vpack.c.b16 %v8006, %v8004
          %v8237 = vpack.c.b16 %v8009, %v8007
          %v8238 = vpack.c.b16 %v8010, %v8008
          %v8239 = vpack.c.b16 %v8013, %v8011
          %v8240 = vpack.c.b16 %v8014, %v8012
          %v8241 = vpack.c.b16 %v8017, %v8015
          %v8242 = vpack.c.b16 %v8018, %v8016
          %v8243 = vpack.c.b16 %v8021, %v8019
          %v8244 = vpack.c.b16 %v8022, %v8020
          %v8245 = vpack.c.b16 %v8025, %v8023
          %v8246 = vpack.c.b16 %v8026, %v8024
          %v8247 = vpack.c.b16 %v8029, %v8027
          %v8248 = vpack.c.b16 %v8030, %v8028
          %v8249 = vpack.c.b16 %v8033, %v8031
          %v8250 = vpack.c.b16 %v8034, %v8032
          %v8251 = vpack.c.b16 %v8037, %v8035
          %v8252 = vpack.c.b16 %v8038, %v8036
          %v8253 = vpack.c.b16 %v8041, %v8039
          %v8254 = vpack.c.b16 %v8042, %v8040
          %v8255 = vpack.c.b16 %v8045, %v8043
          %v8256 = vpack.c.b16 %v8046, %v8044
          %v8257 = vpack.c.b16 %v8049, %v8047
          %v8258 = vpack.c.b16 %v8050, %v8048
          %v8259 = vpack.c.b16 %v8053, %v8051
          %v8260 = vpack.c.b16 %v8054, %v8052
          %v8261 = vpack.c.b16 %v8057, %v8055
          %v8262 = vpack.c.b16 %v8058, %v8056
          %v8263 = vpack.c.b16 %v8061, %v8059
          %v8264 = vpack.c.b16 %v8062, %v8060
          %v8265 = vpack.c.b16 %v8065, %v8063
          %v8266 = vpack.c.b16 %v8066, %v8064
          %v8267 = vpack.c.b16 %v8069, %v8067
          %v8268 = vpack.c.b16 %v8070, %v8068
          %v8269 = vpack.c.b16 %v8073, %v8071
          %v8270 = vpack.c.b16 %v8074, %v8072
          %v8271 = vpack.c.b16 %v8077, %v8075
          %v8272 = vpack.c.b16 %v8078, %v8076
          %v8273 = vpack.c.b16 %v8081, %v8079
          %v8274 = vpack.c.b16 %v8082, %v8080
          %v8275 = vpack.c.b16 %v8085, %v8083
          %v8276 = vpack.c.b16 %v8086, %v8084
          %v8277 = vpack.c.b16 %v8089, %v8087
          %v8278 = vpack.c.b16 %v8090, %v8088
          %v8279 = vpack.c.b16 %v8093, %v8091
          %v8280 = vpack.c.b16 %v8094, %v8092
          %v8281 = vpack.c.b16 %v8097, %v8095
          %v8282 = vpack.c.b16 %v8098, %v8096
          %v8283 = vpack.c.b16 %v8101, %v8099
          %v8284 = vpack.c.b16 %v8102, %v8100
          %v8285 = vpack.c.b16 %v8105, %v8103
          %v8286 = vpack.c.b16 %v8106, %v8104
          %v8287 = vpack.c.b16 %v8109, %v8107
          %v8288 = vpack.c.b16 %v8110, %v8108
          %v8289 = vpack.c.b16 %v8113, %v8111
          %v8290 = vpack.c.b16 %v8114, %v8112
          %v8291 = vpack.c.b16 %v8117, %v8115
          %v8292 = vpack.c.b16 %v8118, %v8116
          %v8293 = vpack.c.b16 %v8121, %v8119
          %v8294 = vpack.c.b16 %v8122, %v8120
          %v8295 = vpack.c.b16 %v8125, %v8123
          %v8296 = vpack.c.b16 %v8126, %v8124
          %v8297 = vpack.c.b16 %v8129, %v8127
          %v8298 = vpack.c.b16 %v8130, %v8128
          %v8299 = vpack.c.b16 %v8133, %v8131
          %v8300 = vpack.c.b16 %v8134, %v8132
          %v8301 = vpack.c.b16 %v8137, %v8135
          %v8302 = vpack.c.b16 %v8138, %v8136
          %v8303 = vpack.c.b16 %v8141, %v8139
          %v8304 = vpack.c.b16 %v8142, %v8140
          %v8305 = vpack.c.b16 %v8145, %v8143
          %v8306 = vpack.c.b16 %v8146, %v8144
          %v8307 = vpack.c.b16 %v8149, %v8147
          %v8308 = vpack.c.b16 %v8150, %v8148
          %v8309 = vpack.c.b16 %v8153, %v8151
          %v8310 = vpack.c.b16 %v8154, %v8152
          %v8311 = vpack.c.b16 %v8157, %v8155
          %v8312 = vpack.c.b16 %v8158, %v8156
          %v8313 = vpack.c.b16 %v8161, %v8159
          %v8314 = vpack.c.b16 %v8162, %v8160
          %v8315 = vpack.c.b16 %v8165, %v8163
          %v8316 = vpack.c.b16 %v8166, %v8164
          %v8317 = vpack.c.b16 %v8169, %v8167
          %v8318 = vpack.c.b16 %v8170, %v8168
          %v8319 = vpack.c.b16 %v8173, %v8171
          %v8320 = vpack.c.b16 %v8174, %v8172
          %v8321 = vpack.c.b16 %v8177, %v8175
          %v8322 = vpack.c.b16 %v8178, %v8176
          %v8323 = vpack.c.b16 %v8181, %v8179
          %v8324 = vpack.c.b16 %v8182, %v8180
          %v8325 = vpack.c.b16 %v8185, %v8183
          %v8326 = vpack.c.b16 %v8186, %v8184
          %v8327 = vpack.c.b16 %v8189, %v8187
          %v8328 = vpack.c.b16 %v8190, %v8188
          %v8329 = vpack.c.b16 %v8193, %v8191
          %v8330 = vpack.c.b16 %v8194, %v8192
          %v8331 = vpack.c.b16 %v8197, %v8195
          %v8332 = vpack.c.b16 %v8198, %v8196
          %v8333 = vpack.c.b16 %v8201, %v8199
          %v8334 = vpack.c.b16 %v8202, %v8200
          %v8335 = vpack.c.b16 %v8205, %v8203
          %v8336 = vpack.c.b16 %v8206, %v8204
          %v8337 = vpack.c.b16 %v8209, %v8207
          %v8338 = vpack.c.b16 %v8210, %v8208
          %8467 = vmatprep.subr.bf16.mxu0 %v8212
          %8468 = vmatpush1.bf16.msra.mxu0 %v8211
          %8469 = vmatprep.subr.bf16.mxu0 %v8214
          %8470 = vmatpush1.bf16.msra.mxu0 %v8213
          %8471 = vmatprep.subr.bf16.mxu0 %v8216
          %8472 = vmatpush1.bf16.msra.mxu0 %v8215
          %8473 = vmatprep.subr.bf16.mxu0 %v8218
          %8474 = vmatpush1.bf16.msra.mxu0 %v8217
          %8475 = vmatprep.subr.bf16.mxu0 %v8220
          %8476 = vmatpush1.bf16.msra.mxu0 %v8219
          %8477 = vmatprep.subr.bf16.mxu0 %v8222
          %8478 = vmatpush1.bf16.msra.mxu0 %v8221
          %8479 = vmatprep.subr.bf16.mxu0 %v8224
          %8480 = vmatpush1.bf16.msra.mxu0 %v8223
          %8481 = vmatprep.subr.bf16.mxu0 %v8226
          %8482 = vmatpush1.bf16.msra.mxu0 %v8225
          %8483 = vmatprep.subr.bf16.mxu0 %v8228
          %8484 = vmatpush1.bf16.msra.mxu0 %v8227
          %8485 = vmatprep.subr.bf16.mxu0 %v8230
          %8486 = vmatpush1.bf16.msra.mxu0 %v8229
          %8487 = vmatprep.subr.bf16.mxu0 %v8232
          %8488 = vmatpush1.bf16.msra.mxu0 %v8231
          %8489 = vmatprep.subr.bf16.mxu0 %v8234
          %8490 = vmatpush1.bf16.msra.mxu0 %v8233
          %8491 = vmatprep.subr.bf16.mxu0 %v8236
          %8492 = vmatpush1.bf16.msra.mxu0 %v8235
          %8493 = vmatprep.subr.bf16.mxu0 %v8238
          %8494 = vmatpush1.bf16.msra.mxu0 %v8237
          %8495 = vmatprep.subr.bf16.mxu0 %v8240
          %8496 = vmatpush1.bf16.msra.mxu0 %v8239
          %8497 = vmatprep.subr.bf16.mxu0 %v8242
          %8498 = vmatpush1.bf16.msra.mxu0 %v8241
          %8499 = vmatprep.mubr.bf16.mxu0 %v7680
          %8500 = vmatmul.mubr.bf16.gmra.mrb[0].mxu0 %v7679
          %v8501 = vpop.f32.mrb[0].mxu0
          %v8502 = vadd.f32 %v7820, %v8501
          %v8503 = vpop.f32.mrb[0].mxu0
          %v8504 = vadd.f32 %v7824, %v8503
          %v8505 = vpop.f32.mrb[0].mxu0
          %v8506 = vpop.f32.mrb[0].mxu0
          %8507 = vdwg.mxu0
          %8508 = vmatprep.subr.bf16.mxu0 %v8244
          %8509 = vmatpush1.bf16.msra.mxu0 %v8243
          %8510 = vmatprep.subr.bf16.mxu0 %v8246
          %8511 = vmatpush1.bf16.msra.mxu0 %v8245
          %8512 = vmatprep.subr.bf16.mxu0 %v8248
          %8513 = vmatpush1.bf16.msra.mxu0 %v8247
          %8514 = vmatprep.subr.bf16.mxu0 %v8250
          %8515 = vmatpush1.bf16.msra.mxu0 %v8249
          %8516 = vmatprep.subr.bf16.mxu0 %v8252
          %8517 = vmatpush1.bf16.msra.mxu0 %v8251
          %8518 = vmatprep.subr.bf16.mxu0 %v8254
          %8519 = vmatpush1.bf16.msra.mxu0 %v8253
          %8520 = vmatprep.subr.bf16.mxu0 %v8256
          %8521 = vmatpush1.bf16.msra.mxu0 %v8255
          %8522 = vmatprep.subr.bf16.mxu0 %v8258
          %8523 = vmatpush1.bf16.msra.mxu0 %v8257
          %8524 = vmatprep.subr.bf16.mxu0 %v8260
          %8525 = vmatpush1.bf16.msra.mxu0 %v8259
          %8526 = vmatprep.subr.bf16.mxu0 %v8262
          %8527 = vmatpush1.bf16.msra.mxu0 %v8261
          %8528 = vmatprep.subr.bf16.mxu0 %v8264
          %8529 = vmatpush1.bf16.msra.mxu0 %v8263
          %8530 = vmatprep.subr.bf16.mxu0 %v8266
          %8531 = vmatpush1.bf16.msra.mxu0 %v8265
          %8532 = vmatprep.subr.bf16.mxu0 %v8268
          %8533 = vmatpush1.bf16.msra.mxu0 %v8267
          %8534 = vmatprep.subr.bf16.mxu0 %v8270
          %8535 = vmatpush1.bf16.msra.mxu0 %v8269
          %8536 = vmatprep.subr.bf16.mxu0 %v8272
          %8537 = vmatpush1.bf16.msra.mxu0 %v8271
          %8538 = vmatprep.subr.bf16.mxu0 %v8274
          %8539 = vmatpush1.bf16.msra.mxu0 %v8273
          %8540 = vmatprep.mubr.bf16.mxu0 %v7682
          %8541 = vmatmul.mubr.bf16.gmra.mrb[0].mxu0 %v7681
          %v8542 = vpop.f32.mrb[0].mxu0
          %v8543 = vadd.f32 %v8502, %v8542
          %v8544 = vpop.f32.mrb[0].mxu0
          %v8545 = vadd.f32 %v8504, %v8544
          %v8546 = vpop.f32.mrb[0].mxu0
          %v8547 = vpop.f32.mrb[0].mxu0
          %8548 = vdwg.mxu0
          %8549 = vmatprep.subr.bf16.mxu0 %v8276
          %8550 = vmatpush1.bf16.msra.mxu0 %v8275
          %8551 = vmatprep.subr.bf16.mxu0 %v8278
          %8552 = vmatpush1.bf16.msra.mxu0 %v8277
          %8553 = vmatprep.subr.bf16.mxu0 %v8280
          %8554 = vmatpush1.bf16.msra.mxu0 %v8279
          %8555 = vmatprep.subr.bf16.mxu0 %v8282
          %8556 = vmatpush1.bf16.msra.mxu0 %v8281
          %8557 = vmatprep.subr.bf16.mxu0 %v8284
          %8558 = vmatpush1.bf16.msra.mxu0 %v8283
          %8559 = vmatprep.subr.bf16.mxu0 %v8286
          %8560 = vmatpush1.bf16.msra.mxu0 %v8285
          %8561 = vmatprep.subr.bf16.mxu0 %v8288
          %8562 = vmatpush1.bf16.msra.mxu0 %v8287
          %8563 = vmatprep.subr.bf16.mxu0 %v8290
          %8564 = vmatpush1.bf16.msra.mxu0 %v8289
          %8565 = vmatprep.subr.bf16.mxu0 %v8292
          %8566 = vmatpush1.bf16.msra.mxu0 %v8291
          %8567 = vmatprep.subr.bf16.mxu0 %v8294
          %8568 = vmatpush1.bf16.msra.mxu0 %v8293
          %8569 = vmatprep.subr.bf16.mxu0 %v8296
          %8570 = vmatpush1.bf16.msra.mxu0 %v8295
          %8571 = vmatprep.subr.bf16.mxu0 %v8298
          %8572 = vmatpush1.bf16.msra.mxu0 %v8297
          %8573 = vmatprep.subr.bf16.mxu0 %v8300
          %8574 = vmatpush1.bf16.msra.mxu0 %v8299
          %8575 = vmatprep.subr.bf16.mxu0 %v8302
          %8576 = vmatpush1.bf16.msra.mxu0 %v8301
          %8577 = vmatprep.subr.bf16.mxu0 %v8304
          %8578 = vmatpush1.bf16.msra.mxu0 %v8303
          %8579 = vmatprep.subr.bf16.mxu0 %v8306
          %8580 = vmatpush1.bf16.msra.mxu0 %v8305
          %8581 = vmatprep.mubr.bf16.mxu0 %v7684
          %8582 = vmatmul.mubr.bf16.gmra.mrb[0].mxu0 %v7683
          %v8583 = vpop.f32.mrb[0].mxu0
          %v8584 = vadd.f32 %v8543, %v8583
          %v8585 = vpop.f32.mrb[0].mxu0
          %v8586 = vadd.f32 %v8545, %v8585
          %v8587 = vpop.f32.mrb[0].mxu0
          %v8588 = vpop.f32.mrb[0].mxu0
          %8589 = vdwg.mxu0
          %8590 = vmatprep.subr.bf16.mxu0 %v8308
          %8591 = vmatpush1.bf16.msra.mxu0 %v8307
          %8592 = vmatprep.subr.bf16.mxu0 %v8310
          %8593 = vmatpush1.bf16.msra.mxu0 %v8309
          %8594 = vmatprep.subr.bf16.mxu0 %v8312
          %8595 = vmatpush1.bf16.msra.mxu0 %v8311
          %8596 = vmatprep.subr.bf16.mxu0 %v8314
          %8597 = vmatpush1.bf16.msra.mxu0 %v8313
          %8598 = vmatprep.subr.bf16.mxu0 %v8316
          %8599 = vmatpush1.bf16.msra.mxu0 %v8315
          %8600 = vmatprep.subr.bf16.mxu0 %v8318
          %8601 = vmatpush1.bf16.msra.mxu0 %v8317
          %8602 = vmatprep.subr.bf16.mxu0 %v8320
          %8603 = vmatpush1.bf16.msra.mxu0 %v8319
          %8604 = vmatprep.subr.bf16.mxu0 %v8322
          %8605 = vmatpush1.bf16.msra.mxu0 %v8321
          %8606 = vmatprep.subr.bf16.mxu0 %v8324
          %8607 = vmatpush1.bf16.msra.mxu0 %v8323
          %8608 = vmatprep.subr.bf16.mxu0 %v8326
          %8609 = vmatpush1.bf16.msra.mxu0 %v8325
          %8610 = vmatprep.subr.bf16.mxu0 %v8328
          %8611 = vmatpush1.bf16.msra.mxu0 %v8327
          %8612 = vmatprep.subr.bf16.mxu0 %v8330
          %8613 = vmatpush1.bf16.msra.mxu0 %v8329
          %8614 = vmatprep.subr.bf16.mxu0 %v8332
          %8615 = vmatpush1.bf16.msra.mxu0 %v8331
          %8616 = vmatprep.subr.bf16.mxu0 %v8334
          %8617 = vmatpush1.bf16.msra.mxu0 %v8333
          %8618 = vmatprep.subr.bf16.mxu0 %v8336
          %8619 = vmatpush1.bf16.msra.mxu0 %v8335
          %8620 = vmatprep.subr.bf16.mxu0 %v8338
          %8621 = vmatpush1.bf16.msra.mxu0 %v8337
          %8622 = vmatprep.mubr.bf16.mxu0 %v7686
          %8623 = vmatmul.mubr.bf16.gmra.mrb[0].mxu0 %v7685
          %v8624 = vpop.f32.mrb[0].mxu0
          %v8625 = vadd.f32 %v8584, %v8624
          %v8626 = vpop.f32.mrb[0].mxu0
          %v8627 = vadd.f32 %v8586, %v8626
          %v8628 = vpop.f32.mrb[0].mxu0
          %v8629 = vpop.f32.mrb[0].mxu0
          %8630 = vdwg.mxu0
          %vm8631 = vcmp.gt.f32.partialorder %v8625, 0.0
          %vm8632 = vcmp.gt.f32.partialorder %v8627, 0.0
          %v8633 = vmin.f32 %v8625, 0.0
          %v8634 = vmin.f32 %v8627, 0.0
          %v8635 = vmul.f32 %v8633, 1.442695
          %v8636 = vpow.pop %v8635
          %v8637 = vmul.f32 %v8634, 1.442695
          %v8638 = vpow.pop %v8637
          %v8639 = vsub.f32 %v8636, 1.0
          %v8640 = vsub.f32 %v8638, 1.0
          %v8641 = vsel %vm8631, %v8625, %v8639
          %v8642 = vsel %vm8632, %v8627, %v8640
          %v8645 = vcombine.low %v8641, %v8642
          %v8647 = vunpack.c.l.s4 1983009808
          %v8648 = vunpack.c.0.s8 %v8647
          %v8649 = vlaneseq
          %v8650 = vshrl.u32 %v8649, 7
          %v8651 = vsub.s32 %v8648, %v8650
          %v8652 = vrot.slane %v8645, %v8651
          %8654 = vst [vmem:[#allocation12] sm:$0xf] %v8652
        $region68: #{tpu_custom_call.1} parent=39 // pred_fallthru
          _
        // Predicated region
        $region69: #{tpu_custom_call.1} parent=39 // pred_check
          %p8655 = pneg %p152
        $region70: #{tpu_custom_call.1} parent=39 // pred_check_branch
          %8657 = sbr.rel (%p8655) target = $region72
        $region71: #{tpu_custom_call.1} parent=39 // pred_region
          %s8659 = ssub.s32 64, 64
          %8660 = vsyncadd [#allocation5], %s8659
          %s8662 = sshll.u32 [#allocation12], 4
          %s8663 = int_to_ptr.vmem [resolvable:$true] %s8662
          %8665 = dma.vmem_to_hbm [thread:$0]  %s8663, 64, %s5, [#allocation5]
        $region72: #{tpu_custom_call.1} parent=39 // pred_fallthru
          _
        // Predicated region
        $region73: #{tpu_custom_call.1} parent=39 // pred_check
          %p8666 = pneg %p152
        $region74: #{tpu_custom_call.1} parent=39 // pred_check_branch
          %8668 = sbr.rel (%p8666) target = $region76
        $region75: #{tpu_custom_call.1} parent=39 // pred_region
          %8669 = dma.done [#allocation5], 64
        $region76: #{tpu_custom_call.1} parent=39 // pred_fallthru
          _
      $region40: #{tpu_custom_call.1} parent=5 // pred_fallthru
        _
      %p8670 = scmp.le.s32.totalorder 2, %s19
      // Predicated region
      $region77: #{tpu_custom_call.1} parent=5 // pred_check
        %p8671 = pneg %p8670
      $region78: #{tpu_custom_call.1} parent=5 // pred_check_branch
        %8673 = sbr.rel (%p8671) target = $region80
      $region79: #{tpu_custom_call.1} parent=5 // pred_region
        %s8674 = ssub.s32 %s19, 2
      $region80: #{tpu_custom_call.1} parent=5 // pred_fallthru
        _
    $region6: #{tpu_custom_call.1} parent=1 // loop_footer
      %s23 = sadd.s32 1, %s19
    $region7: #{tpu_custom_call.1} parent=1 // loop_footer_branch
      %18 = sbr.rel target = $region3
    $region8: #{tpu_custom_call.1} parent=1 // loop_exit
      _
    %8675 = vsyncpa [#allocation4], 1
    %s8676 = scalar_lea.sflag [#allocation4], 1
    %8677 = vsyncpa %s8676, 1
    %8678 = vsyncpa [#allocation7], 1
    %s8679 = scalar_lea.sflag [#allocation7], 1
    %8680 = vsyncpa %s8679, 1
    %8681 = vsyncpa [#allocation10], 1
    %8682 = vsyncpa [#allocation5], 1
    %s8683 = scalar_lea.sflag [#allocation5], 1
    %8684 = vsyncpa %s8683, 1

</llo_original>
